<compile_context>
chip_gen: v7x
topology: tpu7x:2x2x1
jax: 0.10.0
libtpu: 0.0.40
codegen_flags: <defaults>
</compile_context>

<pallas_src>
import functools

import jax
import jax.numpy as jnp
from jax.experimental import pallas as pl
from jax.experimental.pallas import tpu as pltpu

ACT_DTYPE = jnp.bfloat16          # inter-kernel activation storage in HBM
MM_DTYPE = jnp.bfloat16           # MXU operand dtype (accumulation stays f32)

try:
    _SINGLE_BUFFER = pl.Buffered(1)   # constant-index weights: no double-buffering
except Exception:                      # pragma: no cover - defensive fallback
    _SINGLE_BUFFER = None


@functools.lru_cache(maxsize=None)
def _vmem_limit_bytes():
    cap = 64 * 1024 * 1024            # safe fallback (v7x physical per-core VMEM)
    try:
        cap = int(pltpu.get_tpu_info().vmem_capacity_bytes)
    except Exception:                  # pragma: no cover - defensive fallback
        pass
    # ~25% headroom for compiler-internal scratch + pipeline buffers:
    # v7x 64 MiB -> 48 MiB, v5e/v6e 128 MiB -> 96 MiB.
    return max(32 * 1024 * 1024, min(96 * 1024 * 1024, cap * 3 // 4))


def _cparams(semantics):
    return pltpu.CompilerParams(dimension_semantics=semantics,
                                vmem_limit_bytes=_vmem_limit_bytes())


def _w_spec(arr, grid_rank):
    """Full-array BlockSpec with a constant index map; single-buffered weights."""
    ndim = arr.ndim
    if grid_rank == 1:
        idx = lambda b: (0,) * ndim
    else:
        idx = lambda b, t: (0,) * ndim
    if _SINGLE_BUFFER is not None:
        try:
            return pl.BlockSpec(arr.shape, idx, pipeline_mode=_SINGLE_BUFFER)
        except TypeError:              # pragma: no cover - defensive fallback
            pass
    return pl.BlockSpec(arr.shape, idx)


# ----------------------------------------------------------------------------
# in-kernel helpers (f32 math)
# ----------------------------------------------------------------------------
def _layernorm(x, gamma, beta, eps=1e-5):
    # PyTorch nn.LayerNorm: biased variance, eps inside sqrt.
    mu = jnp.mean(x, axis=-1, keepdims=True)
    var = jnp.mean((x - mu) ** 2, axis=-1, keepdims=True)
    return (x - mu) * jax.lax.rsqrt(var + eps) * gamma + beta


def _erf(x):
    # Abramowitz & Stegun 7.1.26 polynomial, |err| < ~1e-3 with approx recip.
    # TODO(synk): replace with lax.erf if/when Mosaic exposes a direct lowering.
    a1, a2, a3, a4, a5 = 0.254829592, -0.284496736, 1.421413741, -1.453152027, 1.061405429
    p = 0.3275911
    s = jnp.where(x >= 0.0, 1.0, -1.0)
    ax = jnp.abs(x)
    # EUP reciprocal instead of an f32 VPU divide (perf-review item).
    t = pl.reciprocal(1.0 + p * ax, approx=True)
    poly = ((((a5 * t + a4) * t + a3) * t + a2) * t + a1) * t
    return s * (1.0 - poly * jnp.exp(-ax * ax))


def _gelu_exact(x):
    # nn.GELU() default == exact (erf-based) GELU.
    return 0.5 * x * (1.0 + _erf(x * (2.0 ** -0.5)))


# ----------------------------------------------------------------------------
# kernels
# ----------------------------------------------------------------------------
def kv_kernel(x_ref, g1_ref, b1_ref, wkv_ref, ekT_ref, evT_ref,
              kpT_ref, vp_ref, *, heads, dim_head):
    # Pass A: Linformer projected K/V for one batch element, emitted head-major.
    x = x_ref[0].astype(jnp.float32)                                     # (N, D)
    d = x.shape[-1]
    xn = _layernorm(x, g1_ref[...], b1_ref[...]).astype(MM_DTYPE)
    # fused K/V projection: one (N,D)@(D,2D) matmul instead of two (D,D) ones.
    kv = jnp.dot(xn, wkv_ref[...], preferred_element_type=jnp.float32)   # (N, 2D)
    k = kv[:, :d].astype(MM_DTYPE)
    v = kv[:, d:].astype(MM_DTYPE)
    # einsum('bnd,nk->bkd', keys, proj) == projT @ keys (projT prepped outside).
    kp = jnp.dot(ekT_ref[...], k, preferred_element_type=jnp.float32)    # (K, D)
    vp = jnp.dot(evT_ref[...], v, preferred_element_type=jnp.float32)    # (K, D)
    # Head-major, pre-transposed keys: the per-head lane slices + transpose are
    # paid ONCE per (layer, batch) here instead of per N-tile in pass B.
    for h in range(heads):
        sl = slice(h * dim_head, (h + 1) * dim_head)
        kpT_ref[0, h] = kp[:, sl].T.astype(kpT_ref.dtype)                # (dh, K)
        vp_ref[0, h] = vp[:, sl].astype(vp_ref.dtype)                    # (K, dh)


def attn_ffn_kernel(x_ref, kpT_ref, vp_ref,
                    g1_ref, b1_ref, wq_ref, wo_ref, bo_ref,
                    g2_ref, b2_ref, w1_ref, bf1_ref, w2_ref, bf2_ref,
                    out_ref, cat_ref, *, heads, dim_head, emit_pool):
    # Pass B: tile of query rows -> attention + fused out-proj + FFN.
    x = x_ref[0].astype(jnp.float32)                                     # (TM, D)

    # --- PreNorm + LinformerSelfAttention + residual -------------------------
    xn = _layernorm(x, g1_ref[...], b1_ref[...]).astype(MM_DTYPE)
    # single full-width Q projection (softmax scale folded into wq); per-head
    # access is a cheap static lane slice of the bf16 result.
    q = jnp.dot(xn, wq_ref[...],
                preferred_element_type=jnp.float32).astype(MM_DTYPE)     # (TM, D)
    for h in range(heads):                       # static unroll over heads
        sl = slice(h * dim_head, (h + 1) * dim_head)
        qh = q[:, sl]                                                    # (TM, dh)
        dots = jnp.dot(qh, kpT_ref[0, h],
                       preferred_element_type=jnp.float32)               # (TM, K)
        m = jnp.max(dots, axis=-1, keepdims=True)
        e = jnp.exp(dots - m)
        inv = pl.reciprocal(jnp.sum(e, axis=-1, keepdims=True), approx=True)
        attn = (e * inv).astype(MM_DTYPE)
        head_out = jnp.dot(attn, vp_ref[0, h],
                           preferred_element_type=jnp.float32)           # (TM, dh)
        # "concat" = masked lane store; far cheaper than a thin per-head matmul.
        cat_ref[:, sl] = head_out.astype(cat_ref.dtype)
    # ONE full-depth output projection over all heads.
    attn_out = jnp.dot(cat_ref[...], wo_ref[...],
                       preferred_element_type=jnp.float32)               # (TM, D)
    x = x + attn_out + bo_ref[...]

    # --- PreNorm + FeedForward + residual ------------------------------------
    xn2 = _layernorm(x, g2_ref[...], b2_ref[...]).astype(MM_DTYPE)
    h1 = jnp.dot(xn2, w1_ref[...], preferred_element_type=jnp.float32) + bf1_ref[...]
    h1 = _gelu_exact(h1).astype(MM_DTYPE)
    h2 = jnp.dot(h1, w2_ref[...], preferred_element_type=jnp.float32) + bf2_ref[...]
    out = x + h2                                                         # (TM, D)

    if emit_pool:
        # last layer: only the per-tile pooled row sums are consumed downstream
        # (no (B,N,D) writeback); each (b, t) writes its own block -> both grid
        # axes stay "parallel".
        out_ref[0, 0] = jnp.sum(out, axis=0, keepdims=True)              # (1, D)
    else:
        out_ref[0] = out.astype(out_ref.dtype)


def head_kernel(pool_ref, wf_ref, bf_ref, o_ref, *, inv_n):
    p = pool_ref[...]                                                    # (B,T,1,D)
    pooled = jnp.sum(p[:, :, 0, :], axis=1) * inv_n                      # (B, D)
    y = jnp.dot(pooled.astype(MM_DTYPE), wf_ref[...],
                preferred_element_type=jnp.float32) + bf_ref[...]        # (B, C)
    o_ref[...] = y.astype(o_ref.dtype)


# ----------------------------------------------------------------------------
# pallas_call wrappers
# ----------------------------------------------------------------------------
def linformer_kv(x, lp, *, heads):
    B, N, D = x.shape
    K = lp["ekT"].shape[0]
    dh = D // heads
    kernel = functools.partial(kv_kernel, heads=heads, dim_head=dh)
    return pl.pallas_call(
        kernel,
        out_shape=(jax.ShapeDtypeStruct((B, heads, dh, K), MM_DTYPE),
                   jax.ShapeDtypeStruct((B, heads, K, dh), MM_DTYPE)),
        grid=(B,),
        in_specs=[pl.BlockSpec((1, N, D), lambda b: (b, 0, 0)),
                  _w_spec(lp["g1"], 1), _w_spec(lp["b1"], 1),
                  _w_spec(lp["wkv"], 1),
                  _w_spec(lp["ekT"], 1), _w_spec(lp["evT"], 1)],
        out_specs=(pl.BlockSpec((1, heads, dh, K), lambda b: (b, 0, 0, 0)),
                   pl.BlockSpec((1, heads, K, dh), lambda b: (b, 0, 0, 0))),
        compiler_params=_cparams(("parallel",)),
    )(x, lp["g1"], lp["b1"], lp["wkv"], lp["ekT"], lp["evT"])


def linformer_attn_ffn(x, kpT, vp, lp, *, heads, tile_m, emit_pool):
    B, N, D = x.shape
    dh = D // heads
    K = kpT.shape[-1]
    assert N % tile_m == 0
    n_tiles = N // tile_m
    kernel = functools.partial(attn_ffn_kernel, heads=heads, dim_head=dh,
                               emit_pool=emit_pool)
    weights = [lp["g1"], lp["b1"], lp["wq"], lp["wo"], lp["bo"],
               lp["g2"], lp["b2"], lp["w1"], lp["bf1"], lp["w2"], lp["bf2"]]
    x_spec = pl.BlockSpec((1, tile_m, D), lambda b, t: (b, t, 0))
    if emit_pool:
        out_shape = jax.ShapeDtypeStruct((B, n_tiles, 1, D), jnp.float32)
        out_spec = pl.BlockSpec((1, 1, 1, D), lambda b, t: (b, t, 0, 0))
    else:
        out_shape = jax.ShapeDtypeStruct((B, N, D), ACT_DTYPE)
        out_spec = x_spec
    return pl.pallas_call(
        kernel,
        out_shape=out_shape,
        grid=(B, n_tiles),
        in_specs=[x_spec,
                  pl.BlockSpec((1, heads, dh, K), lambda b, t: (b, 0, 0, 0)),
                  pl.BlockSpec((1, heads, K, dh), lambda b, t: (b, 0, 0, 0))]
                 + [_w_spec(w, 2) for w in weights],
        out_specs=out_spec,
        scratch_shapes=[pltpu.VMEM((tile_m, D), MM_DTYPE)],   # head-concat buffer
        compiler_params=_cparams(("parallel", "parallel")),
    )(x, kpT, vp, *weights)


def classify(pool_parts, wf, bf, *, inv_n):
    B, n_tiles, _, D = pool_parts.shape
    C = wf.shape[1]
    kernel = functools.partial(head_kernel, inv_n=inv_n)
    return pl.pallas_call(
        kernel,
        out_shape=jax.ShapeDtypeStruct((B, C), jnp.float32),
        grid=(1,),
        in_specs=[pl.BlockSpec((B, n_tiles, 1, D), lambda i: (0, 0, 0, 0)),
                  _w_spec(wf, 1), _w_spec(bf, 1)],
        out_specs=pl.BlockSpec((B, C), lambda i: (0, 0)),
        compiler_params=_cparams(("arbitrary",)),
    )(pool_parts, wf, bf)


def _pick_tile(n, d, vmem_limit, max_tile=512):
    """Bound TM so the f32 FFN intermediate (TM x 4D) plus a handful of (TM x D)
    f32 temporaries stay well inside the per-core VMEM budget."""
    bytes_per_row = (4 * d + 8 * d) * 4
    cap = max(8, min(max_tile, (vmem_limit // 4) // max(1, bytes_per_row)))
    if n <= cap:
        return n
    for t in range(cap - cap % 8, 7, -8):
        if n % t == 0:
            return t
    return n   # fall back to the full sequence (always legal)


def linformer_forward(x, prepped, *, heads):
    B, N, _ = x.shape
    D = prepped["we"].shape[1]
    # Embedding left to XLA: input_dim << 128 gives a near-zero-utilization MXU
    # contraction and lane-sparse blocks inside Pallas (perf-review item).
    h = (jnp.dot(x, prepped["we"]) + prepped["be"] + prepped["pos"]).astype(ACT_DTYPE)
    tile_m = _pick_tile(N, D, _vmem_limit_bytes())
    n_layers = len(prepped["layers"])
    pool = None
    for i, lp in enumerate(prepped["layers"]):
        kpT, vp = linformer_kv(h, lp, heads=heads)
        last = (i == n_layers - 1)
        out = linformer_attn_ffn(h, kpT, vp, lp, heads=heads,
                                 tile_m=tile_m, emit_pool=last)
        if last:
            pool = out                 # (B, n_tiles, 1, D) per-tile row sums
        else:
            h = out                    # (B, N, D) activations
    return classify(pool, prepped["wf"], prepped["bf"], inv_n=1.0 / N)


# ----------------------------------------------------------------------------
# parameters: f32 master params (PyTorch-shaped) + one-time kernel prep
# ----------------------------------------------------------------------------
def init_params(key, *, input_dim, hidden_dim, heads, layers, classes,
                seq_len=800, k_proj=256):
    keys = jax.random.split(key, 3 + layers)

    def dense(kk, fin, fout):
        return jax.random.normal(kk, (fin, fout), jnp.float32) / jnp.sqrt(float(fin))

    p = {
        "we": dense(keys[0], input_dim, hidden_dim),
        "be": jnp.zeros((1, hidden_dim), jnp.float32),
        "pos": 0.02 * jax.random.normal(keys[1], (seq_len, hidden_dim), jnp.float32),
        "wf": dense(keys[2], hidden_dim, classes),
        "bf": jnp.zeros((1, classes), jnp.float32),
        "layers": [],
    }
    std = 1.0 / jnp.sqrt(float(k_proj))
    for li in range(layers):
        lk = jax.random.split(keys[3 + li], 8)
        p["layers"].append({
            "g1": jnp.ones((1, hidden_dim), jnp.float32),
            "b1": jnp.zeros((1, hidden_dim), jnp.float32),
            "wq": dense(lk[0], hidden_dim, hidden_dim),
            "wk": dense(lk[1], hidden_dim, hidden_dim),
            "wv": dense(lk[2], hidden_dim, hidden_dim),
            "proj_k": jax.random.uniform(lk[3], (seq_len, k_proj), jnp.float32, -std, std),
            "proj_v": jax.random.uniform(lk[4], (seq_len, k_proj), jnp.float32, -std, std),
            "wo": dense(lk[5], hidden_dim, hidden_dim),
            "bo": jnp.zeros((1, hidden_dim), jnp.float32),
            "g2": jnp.ones((1, hidden_dim), jnp.float32),
            "b2": jnp.zeros((1, hidden_dim), jnp.float32),
            "w1": dense(lk[6], hidden_dim, 4 * hidden_dim),
            "bf1": jnp.zeros((1, 4 * hidden_dim), jnp.float32),
            "w2": dense(lk[7], 4 * hidden_dim, hidden_dim),
            "bf2": jnp.zeros((1, hidden_dim), jnp.float32),
        })
    return p


def prepare_params(params, *, seq_n, heads):
    """One-time prep: slice+transpose the Linformer projections, concatenate
    wk|wv, fold the 1/sqrt(dim_head) softmax scale into wq, cast matmul operands
    to bf16 (biases / LayerNorm params stay f32)."""
    # lucidrains' Linformer asserts kv_len <= seq_len and slices proj[:n];
    # we mirror that (guard here per review).
    assert seq_n <= params["pos"].shape[0], "sequence longer than pos table"
    assert seq_n <= params["layers"][0]["proj_k"].shape[0], "sequence longer than Linformer seq_len"
    pp = {
        "we": params["we"],                 # embedding stays f32 (done in XLA)
        "be": params["be"],
        "pos": params["pos"][:seq_n],
        "wf": params["wf"].astype(MM_DTYPE),
        "bf": params["bf"],
        "layers": [],
    }
    for lp in params["layers"]:
        D = lp["wq"].shape[0]
        assert D % heads == 0
        scale = (D // heads) ** -0.5
        pp["layers"].append({
            "g1": lp["g1"], "b1": lp["b1"],
            "wq": (lp["wq"] * scale).astype(MM_DTYPE),        # softmax scale folded in
            "wkv": jnp.concatenate([lp["wk"], lp["wv"]], axis=1).astype(MM_DTYPE),
            "ekT": lp["proj_k"][:seq_n].T.astype(MM_DTYPE),   # (K, N), once
            "evT": lp["proj_v"][:seq_n].T.astype(MM_DTYPE),   # (K, N), once
            "wo": lp["wo"].astype(MM_DTYPE),
            "bo": lp["bo"],
            "g2": lp["g2"], "b2": lp["b2"],
            "w1": lp["w1"].astype(MM_DTYPE), "bf1": lp["bf1"],
            "w2": lp["w2"].astype(MM_DTYPE), "bf2": lp["bf2"],
        })
    return pp


# ----------------------------------------------------------------------------
if __name__ == "__main__":
    # Small shapes consistent with the module: input_dim=4, num_heads=4,
    # num_layers=2, num_classes=2; hidden_dim=32 (divisible by heads), seq=8
    # (< seq_len=800, Linformer k=256 kept as in the module).
    B, N = 2, 8
    INPUT_DIM, HIDDEN, HEADS, LAYERS, CLASSES = 4, 32, 4, 2, 2

    key = jax.random.PRNGKey(0)
    kx, kparam = jax.random.split(key)
    x = jax.random.normal(kx, (B, N, INPUT_DIM), jnp.float32)
    params = init_params(kparam, input_dim=INPUT_DIM, hidden_dim=HIDDEN,
                         heads=HEADS, layers=LAYERS, classes=CLASSES,
                         seq_len=800, k_proj=256)
    prepped = prepare_params(params, seq_n=N, heads=HEADS)

    fwd = jax.jit(functools.partial(linformer_forward, heads=HEADS))
    out = jax.block_until_ready(fwd(x, prepped))

    assert out.shape == (B, CLASSES), out.shape
    assert bool(jnp.all(jnp.isfinite(out)))
    print("KERNEL_OK")
</pallas_src>

<mosaic_0001>
module attributes {stable_mosaic.version = 11 : i64} {
  func.func @kv_kernel(%arg0: i32, %arg1: memref<1x8x32xbf16, #tpu.memory_space<vmem>>, %arg2: memref<1x32xf32, #tpu.memory_space<vmem>>, %arg3: memref<1x32xf32, #tpu.memory_space<vmem>>, %arg4: memref<32x64xbf16, #tpu.memory_space<vmem>>, %arg5: memref<256x8xbf16, #tpu.memory_space<vmem>>, %arg6: memref<256x8xbf16, #tpu.memory_space<vmem>>, %arg7: memref<1x4x8x256xbf16, #tpu.memory_space<vmem>>, %arg8: memref<1x4x256x8xbf16, #tpu.memory_space<vmem>>) attributes {dimension_semantics = [#tpu.dimension_semantics<parallel>], iteration_bounds = array<i64: 2>, scalar_prefetch = 0 : i64, scratch_operands = 0 : i64, tpu.core_type = #tpu.core_type<tc>, window_params = [{transform_indices = @transform_0, window_bounds = array<i64: 1, 8, 32>}, {pipeline_mode = #tpu.pipeline_mode<synchronous>, transform_indices = @transform_1, window_bounds = array<i64: 1, 32>}, {pipeline_mode = #tpu.pipeline_mode<synchronous>, transform_indices = @transform_2, window_bounds = array<i64: 1, 32>}, {pipeline_mode = #tpu.pipeline_mode<synchronous>, transform_indices = @transform_3, window_bounds = array<i64: 32, 64>}, {pipeline_mode = #tpu.pipeline_mode<synchronous>, transform_indices = @transform_4, window_bounds = array<i64: 256, 8>}, {pipeline_mode = #tpu.pipeline_mode<synchronous>, transform_indices = @transform_5, window_bounds = array<i64: 256, 8>}, {transform_indices = @transform_6, window_bounds = array<i64: 1, 4, 8, 256>}, {transform_indices = @transform_7, window_bounds = array<i64: 1, 4, 256, 8>}]} {
    %c0 = arith.constant 0 : index
    %c0_0 = arith.constant 0 : index
    %c0_1 = arith.constant 0 : index
    %0 = vector.load %arg1[%c0, %c0_0, %c0_1] : memref<1x8x32xbf16, #tpu.memory_space<vmem>>, vector<1x8x32xbf16>
    %1 = vector.shape_cast %0 : vector<1x8x32xbf16> to vector<8x32xbf16>
    %2 = arith.extf %1 : vector<8x32xbf16> to vector<8x32xf32>
    %c0_2 = arith.constant 0 : index
    %c0_3 = arith.constant 0 : index
    %3 = vector.load %arg2[%c0_2, %c0_3] : memref<1x32xf32, #tpu.memory_space<vmem>>, vector<1x32xf32>
    %c0_4 = arith.constant 0 : index
    %c0_5 = arith.constant 0 : index
    %4 = vector.load %arg3[%c0_4, %c0_5] : memref<1x32xf32, #tpu.memory_space<vmem>>, vector<1x32xf32>
    %cst = arith.constant dense<0.000000e+00> : vector<8xf32>
    %5 = vector.multi_reduction <add>, %2, %cst [1] : vector<8x32xf32> to vector<8xf32>
    %6 = vector.shape_cast %5 : vector<8xf32> to vector<8x1xf32>
    %cst_6 = arith.constant 3.200000e+01 : f32
    %7 = vector.broadcast %cst_6 : f32 to vector<8x1xf32>
    %8 = arith.divf %6, %7 : vector<8x1xf32>
    %9 = vector.broadcast %8 : vector<8x1xf32> to vector<8x32xf32>
    %10 = arith.subf %2, %9 : vector<8x32xf32>
    %11 = arith.mulf %10, %10 : vector<8x32xf32>
    %cst_7 = arith.constant dense<0.000000e+00> : vector<8xf32>
    %12 = vector.multi_reduction <add>, %11, %cst_7 [1] : vector<8x32xf32> to vector<8xf32>
    %13 = vector.shape_cast %12 : vector<8xf32> to vector<8x1xf32>
    %cst_8 = arith.constant 3.200000e+01 : f32
    %14 = vector.broadcast %cst_8 : f32 to vector<8x1xf32>
    %15 = arith.divf %13, %14 : vector<8x1xf32>
    %16 = vector.broadcast %8 : vector<8x1xf32> to vector<8x32xf32>
    %17 = arith.subf %2, %16 : vector<8x32xf32>
    %cst_9 = arith.constant 9.99999974E-6 : f32
    %18 = vector.broadcast %cst_9 : f32 to vector<8x1xf32>
    %19 = arith.addf %15, %18 : vector<8x1xf32>
    %20 = math.rsqrt %19 : vector<8x1xf32>
    %21 = vector.broadcast %20 : vector<8x1xf32> to vector<8x32xf32>
    %22 = arith.mulf %17, %21 : vector<8x32xf32>
    %23 = vector.broadcast %3 : vector<1x32xf32> to vector<8x32xf32>
    %24 = arith.mulf %22, %23 : vector<8x32xf32>
    %25 = vector.broadcast %4 : vector<1x32xf32> to vector<8x32xf32>
    %26 = arith.addf %24, %25 : vector<8x32xf32>
    %27 = arith.truncf %26 : vector<8x32xf32> to vector<8x32xbf16>
    %c0_10 = arith.constant 0 : index
    %c0_11 = arith.constant 0 : index
    %28 = vector.load %arg4[%c0_10, %c0_11] : memref<32x64xbf16, #tpu.memory_space<vmem>>, vector<32x64xbf16>
    %cst_12 = arith.constant dense<0.000000e+00> : vector<8x64xf32>
    %29 = tpu.matmul %27, %28, %cst_12 {dimension_numbers = #tpu.dot_dimension_numbers<[1], [0], [0], [1], [0, 0, 1, 1], [], []>} : vector<8x32xbf16>, vector<32x64xbf16>, vector<8x64xf32> -> vector<8x64xf32>
    %30 = vector.extract_strided_slice %29 {offsets = [0, 0], sizes = [8, 32], strides = [1, 1]} : vector<8x64xf32> to vector<8x32xf32>
    %31 = arith.truncf %30 : vector<8x32xf32> to vector<8x32xbf16>
    %32 = vector.extract_strided_slice %29 {offsets = [0, 32], sizes = [8, 32], strides = [1, 1]} : vector<8x64xf32> to vector<8x32xf32>
    %33 = arith.truncf %32 : vector<8x32xf32> to vector<8x32xbf16>
    %c0_13 = arith.constant 0 : index
    %c0_14 = arith.constant 0 : index
    %34 = vector.load %arg5[%c0_13, %c0_14] : memref<256x8xbf16, #tpu.memory_space<vmem>>, vector<256x8xbf16>
    %cst_15 = arith.constant dense<0.000000e+00> : vector<256x32xf32>
    %35 = tpu.matmul %34, %31, %cst_15 {dimension_numbers = #tpu.dot_dimension_numbers<[1], [0], [0], [1], [0, 0, 1, 1], [], []>} : vector<256x8xbf16>, vector<8x32xbf16>, vector<256x32xf32> -> vector<256x32xf32>
    %c0_16 = arith.constant 0 : index
    %c0_17 = arith.constant 0 : index
    %36 = vector.load %arg6[%c0_16, %c0_17] : memref<256x8xbf16, #tpu.memory_space<vmem>>, vector<256x8xbf16>
    %cst_18 = arith.constant dense<0.000000e+00> : vector<256x32xf32>
    %37 = tpu.matmul %36, %33, %cst_18 {dimension_numbers = #tpu.dot_dimension_numbers<[1], [0], [0], [1], [0, 0, 1, 1], [], []>} : vector<256x8xbf16>, vector<8x32xbf16>, vector<256x32xf32> -> vector<256x32xf32>
    %38 = vector.extract_strided_slice %35 {offsets = [0, 0], sizes = [256, 8], strides = [1, 1]} : vector<256x32xf32> to vector<256x8xf32>
    %39 = tpu.transpose %38, [1, 0] : vector<256x8xf32> -> vector<8x256xf32>
    %40 = arith.truncf %39 : vector<8x256xf32> to vector<8x256xbf16>
    %c0_19 = arith.constant 0 : index
    %c0_20 = arith.constant 0 : index
    %c0_21 = arith.constant 0 : index
    %c0_22 = arith.constant 0 : index
    %41 = vector.load %arg7[%c0_19, %c0_20, %c0_21, %c0_22] : memref<1x4x8x256xbf16, #tpu.memory_space<vmem>>, vector<1x1x8x256xbf16>
    %42 = vector.shape_cast %41 : vector<1x1x8x256xbf16> to vector<8x256xbf16>
    %43 = vector.shape_cast %40 : vector<8x256xbf16> to vector<1x1x8x256xbf16>
    tpu.vector_store %arg7[%c0_19, %c0_20, %c0_21, %c0_22], %43 {strides = array<i32>} : memref<1x4x8x256xbf16, #tpu.memory_space<vmem>>, vector<1x1x8x256xbf16>,
    %44 = vector.extract_strided_slice %37 {offsets = [0, 0], sizes = [256, 8], strides = [1, 1]} : vector<256x32xf32> to vector<256x8xf32>
    %45 = arith.truncf %44 : vector<256x8xf32> to vector<256x8xbf16>
    %c0_23 = arith.constant 0 : index
    %c0_24 = arith.constant 0 : index
    %c0_25 = arith.constant 0 : index
    %c0_26 = arith.constant 0 : index
    %46 = vector.load %arg8[%c0_23, %c0_24, %c0_25, %c0_26] : memref<1x4x256x8xbf16, #tpu.memory_space<vmem>>, vector<1x1x256x8xbf16>
    %47 = vector.shape_cast %46 : vector<1x1x256x8xbf16> to vector<256x8xbf16>
    %48 = vector.shape_cast %45 : vector<256x8xbf16> to vector<1x1x256x8xbf16>
    tpu.vector_store %arg8[%c0_23, %c0_24, %c0_25, %c0_26], %48 {strides = array<i32>} : memref<1x4x256x8xbf16, #tpu.memory_space<vmem>>, vector<1x1x256x8xbf16>,
    %49 = vector.extract_strided_slice %35 {offsets = [0, 8], sizes = [256, 8], strides = [1, 1]} : vector<256x32xf32> to vector<256x8xf32>
    %50 = tpu.transpose %49, [1, 0] : vector<256x8xf32> -> vector<8x256xf32>
    %51 = arith.truncf %50 : vector<8x256xf32> to vector<8x256xbf16>
    %c0_27 = arith.constant 0 : index
    %c1 = arith.constant 1 : index
    %c0_28 = arith.constant 0 : index
    %c0_29 = arith.constant 0 : index
    %52 = vector.load %arg7[%c0_27, %c1, %c0_28, %c0_29] : memref<1x4x8x256xbf16, #tpu.memory_space<vmem>>, vector<1x1x8x256xbf16>
    %53 = vector.shape_cast %52 : vector<1x1x8x256xbf16> to vector<8x256xbf16>
    %54 = vector.shape_cast %51 : vector<8x256xbf16> to vector<1x1x8x256xbf16>
    tpu.vector_store %arg7[%c0_27, %c1, %c0_28, %c0_29], %54 {strides = array<i32>} : memref<1x4x8x256xbf16, #tpu.memory_space<vmem>>, vector<1x1x8x256xbf16>,
    %55 = vector.extract_strided_slice %37 {offsets = [0, 8], sizes = [256, 8], strides = [1, 1]} : vector<256x32xf32> to vector<256x8xf32>
    %56 = arith.truncf %55 : vector<256x8xf32> to vector<256x8xbf16>
    %c0_30 = arith.constant 0 : index
    %c1_31 = arith.constant 1 : index
    %c0_32 = arith.constant 0 : index
    %c0_33 = arith.constant 0 : index
    %57 = vector.load %arg8[%c0_30, %c1_31, %c0_32, %c0_33] : memref<1x4x256x8xbf16, #tpu.memory_space<vmem>>, vector<1x1x256x8xbf16>
    %58 = vector.shape_cast %57 : vector<1x1x256x8xbf16> to vector<256x8xbf16>
    %59 = vector.shape_cast %56 : vector<256x8xbf16> to vector<1x1x256x8xbf16>
    tpu.vector_store %arg8[%c0_30, %c1_31, %c0_32, %c0_33], %59 {strides = array<i32>} : memref<1x4x256x8xbf16, #tpu.memory_space<vmem>>, vector<1x1x256x8xbf16>,
    %60 = vector.extract_strided_slice %35 {offsets = [0, 16], sizes = [256, 8], strides = [1, 1]} : vector<256x32xf32> to vector<256x8xf32>
    %61 = tpu.transpose %60, [1, 0] : vector<256x8xf32> -> vector<8x256xf32>
    %62 = arith.truncf %61 : vector<8x256xf32> to vector<8x256xbf16>
    %c0_34 = arith.constant 0 : index
    %c2 = arith.constant 2 : index
    %c0_35 = arith.constant 0 : index
    %c0_36 = arith.constant 0 : index
    %63 = vector.load %arg7[%c0_34, %c2, %c0_35, %c0_36] : memref<1x4x8x256xbf16, #tpu.memory_space<vmem>>, vector<1x1x8x256xbf16>
    %64 = vector.shape_cast %63 : vector<1x1x8x256xbf16> to vector<8x256xbf16>
    %65 = vector.shape_cast %62 : vector<8x256xbf16> to vector<1x1x8x256xbf16>
    tpu.vector_store %arg7[%c0_34, %c2, %c0_35, %c0_36], %65 {strides = array<i32>} : memref<1x4x8x256xbf16, #tpu.memory_space<vmem>>, vector<1x1x8x256xbf16>,
    %66 = vector.extract_strided_slice %37 {offsets = [0, 16], sizes = [256, 8], strides = [1, 1]} : vector<256x32xf32> to vector<256x8xf32>
    %67 = arith.truncf %66 : vector<256x8xf32> to vector<256x8xbf16>
    %c0_37 = arith.constant 0 : index
    %c2_38 = arith.constant 2 : index
    %c0_39 = arith.constant 0 : index
    %c0_40 = arith.constant 0 : index
    %68 = vector.load %arg8[%c0_37, %c2_38, %c0_39, %c0_40] : memref<1x4x256x8xbf16, #tpu.memory_space<vmem>>, vector<1x1x256x8xbf16>
    %69 = vector.shape_cast %68 : vector<1x1x256x8xbf16> to vector<256x8xbf16>
    %70 = vector.shape_cast %67 : vector<256x8xbf16> to vector<1x1x256x8xbf16>
    tpu.vector_store %arg8[%c0_37, %c2_38, %c0_39, %c0_40], %70 {strides = array<i32>} : memref<1x4x256x8xbf16, #tpu.memory_space<vmem>>, vector<1x1x256x8xbf16>,
    %71 = vector.extract_strided_slice %35 {offsets = [0, 24], sizes = [256, 8], strides = [1, 1]} : vector<256x32xf32> to vector<256x8xf32>
    %72 = tpu.transpose %71, [1, 0] : vector<256x8xf32> -> vector<8x256xf32>
    %73 = arith.truncf %72 : vector<8x256xf32> to vector<8x256xbf16>
    %c0_41 = arith.constant 0 : index
    %c3 = arith.constant 3 : index
    %c0_42 = arith.constant 0 : index
    %c0_43 = arith.constant 0 : index
    %74 = vector.load %arg7[%c0_41, %c3, %c0_42, %c0_43] : memref<1x4x8x256xbf16, #tpu.memory_space<vmem>>, vector<1x1x8x256xbf16>
    %75 = vector.shape_cast %74 : vector<1x1x8x256xbf16> to vector<8x256xbf16>
    %76 = vector.shape_cast %73 : vector<8x256xbf16> to vector<1x1x8x256xbf16>
    tpu.vector_store %arg7[%c0_41, %c3, %c0_42, %c0_43], %76 {strides = array<i32>} : memref<1x4x8x256xbf16, #tpu.memory_space<vmem>>, vector<1x1x8x256xbf16>,
    %77 = vector.extract_strided_slice %37 {offsets = [0, 24], sizes = [256, 8], strides = [1, 1]} : vector<256x32xf32> to vector<256x8xf32>
    %78 = arith.truncf %77 : vector<256x8xf32> to vector<256x8xbf16>
    %c0_44 = arith.constant 0 : index
    %c3_45 = arith.constant 3 : index
    %c0_46 = arith.constant 0 : index
    %c0_47 = arith.constant 0 : index
    %79 = vector.load %arg8[%c0_44, %c3_45, %c0_46, %c0_47] : memref<1x4x256x8xbf16, #tpu.memory_space<vmem>>, vector<1x1x256x8xbf16>
    %80 = vector.shape_cast %79 : vector<1x1x256x8xbf16> to vector<256x8xbf16>
    %81 = vector.shape_cast %78 : vector<256x8xbf16> to vector<1x1x256x8xbf16>
    tpu.vector_store %arg8[%c0_44, %c3_45, %c0_46, %c0_47], %81 {strides = array<i32>} : memref<1x4x256x8xbf16, #tpu.memory_space<vmem>>, vector<1x1x256x8xbf16>,
    return
  }
  func.func @transform_0(%arg0: i32) -> (i32, i32, i32) {
    %c0_i32 = arith.constant 0 : i32
    %c0_i32_0 = arith.constant 0 : i32
    %c0_i32_1 = arith.constant 0 : i32
    return %arg0, %c0_i32, %c0_i32_0 : i32, i32, i32
  }
  func.func @transform_1(%arg0: i32) -> (i32, i32) {
    %c0_i32 = arith.constant 0 : i32
    %c0_i32_0 = arith.constant 0 : i32
    %c0_i32_1 = arith.constant 0 : i32
    return %c0_i32, %c0_i32_0 : i32, i32
  }
  func.func @transform_2(%arg0: i32) -> (i32, i32) {
    %c0_i32 = arith.constant 0 : i32
    %c0_i32_0 = arith.constant 0 : i32
    %c0_i32_1 = arith.constant 0 : i32
    return %c0_i32, %c0_i32_0 : i32, i32
  }
  func.func @transform_3(%arg0: i32) -> (i32, i32) {
    %c0_i32 = arith.constant 0 : i32
    %c0_i32_0 = arith.constant 0 : i32
    %c0_i32_1 = arith.constant 0 : i32
    return %c0_i32, %c0_i32_0 : i32, i32
  }
  func.func @transform_4(%arg0: i32) -> (i32, i32) {
    %c0_i32 = arith.constant 0 : i32
    %c0_i32_0 = arith.constant 0 : i32
    %c0_i32_1 = arith.constant 0 : i32
    return %c0_i32, %c0_i32_0 : i32, i32
  }
  func.func @transform_5(%arg0: i32) -> (i32, i32) {
    %c0_i32 = arith.constant 0 : i32
    %c0_i32_0 = arith.constant 0 : i32
    %c0_i32_1 = arith.constant 0 : i32
    return %c0_i32, %c0_i32_0 : i32, i32
  }
  func.func @transform_6(%arg0: i32) -> (i32, i32, i32, i32) {
    %c0_i32 = arith.constant 0 : i32
    %c0_i32_0 = arith.constant 0 : i32
    %c0_i32_1 = arith.constant 0 : i32
    %c0_i32_2 = arith.constant 0 : i32
    return %arg0, %c0_i32, %c0_i32_0, %c0_i32_1 : i32, i32, i32, i32
  }
  func.func @transform_7(%arg0: i32) -> (i32, i32, i32, i32) {
    %c0_i32 = arith.constant 0 : i32
    %c0_i32_0 = arith.constant 0 : i32
    %c0_i32_1 = arith.constant 0 : i32
    %c0_i32_2 = arith.constant 0 : i32
    return %arg0, %c0_i32, %c0_i32_0, %c0_i32_1 : i32, i32, i32, i32
  }
}

module attributes {stable_mosaic.version = 11 : i64} {
  func.func @attn_ffn_kernel(%arg0: i32, %arg1: i32, %arg2: memref<1x8x32xbf16, #tpu.memory_space<vmem>>, %arg3: memref<1x4x8x256xbf16, #tpu.memory_space<vmem>>, %arg4: memref<1x4x256x8xbf16, #tpu.memory_space<vmem>>, %arg5: memref<1x32xf32, #tpu.memory_space<vmem>>, %arg6: memref<1x32xf32, #tpu.memory_space<vmem>>, %arg7: memref<32x32xbf16, #tpu.memory_space<vmem>>, %arg8: memref<32x32xbf16, #tpu.memory_space<vmem>>, %arg9: memref<1x32xf32, #tpu.memory_space<vmem>>, %arg10: memref<1x32xf32, #tpu.memory_space<vmem>>, %arg11: memref<1x32xf32, #tpu.memory_space<vmem>>, %arg12: memref<32x128xbf16, #tpu.memory_space<vmem>>, %arg13: memref<1x128xf32, #tpu.memory_space<vmem>>, %arg14: memref<128x32xbf16, #tpu.memory_space<vmem>>, %arg15: memref<1x32xf32, #tpu.memory_space<vmem>>, %arg16: memref<1x1x1x32xf32, #tpu.memory_space<vmem>>, %arg17: memref<8x32xbf16, #tpu.memory_space<vmem>>) attributes {dimension_semantics = [#tpu.dimension_semantics<parallel>, #tpu.dimension_semantics<parallel>], iteration_bounds = array<i64: 2, 1>, scalar_prefetch = 0 : i64, scratch_operands = 1 : i64, tpu.core_type = #tpu.core_type<tc>, window_params = [{transform_indices = @transform_0, window_bounds = array<i64: 1, 8, 32>}, {transform_indices = @transform_1, window_bounds = array<i64: 1, 4, 8, 256>}, {transform_indices = @transform_2, window_bounds = array<i64: 1, 4, 256, 8>}, {pipeline_mode = #tpu.pipeline_mode<synchronous>, transform_indices = @transform_3, window_bounds = array<i64: 1, 32>}, {pipeline_mode = #tpu.pipeline_mode<synchronous>, transform_indices = @transform_4, window_bounds = array<i64: 1, 32>}, {pipeline_mode = #tpu.pipeline_mode<synchronous>, transform_indices = @transform_5, window_bounds = array<i64: 32, 32>}, {pipeline_mode = #tpu.pipeline_mode<synchronous>, transform_indices = @transform_6, window_bounds = array<i64: 32, 32>}, {pipeline_mode = #tpu.pipeline_mode<synchronous>, transform_indices = @transform_7, window_bounds = array<i64: 1, 32>}, {pipeline_mode = #tpu.pipeline_mode<synchronous>, transform_indices = @transform_8, window_bounds = array<i64: 1, 32>}, {pipeline_mode = #tpu.pipeline_mode<synchronous>, transform_indices = @transform_9, window_bounds = array<i64: 1, 32>}, {pipeline_mode = #tpu.pipeline_mode<synchronous>, transform_indices = @transform_10, window_bounds = array<i64: 32, 128>}, {pipeline_mode = #tpu.pipeline_mode<synchronous>, transform_indices = @transform_11, window_bounds = array<i64: 1, 128>}, {pipeline_mode = #tpu.pipeline_mode<synchronous>, transform_indices = @transform_12, window_bounds = array<i64: 128, 32>}, {pipeline_mode = #tpu.pipeline_mode<synchronous>, transform_indices = @transform_13, window_bounds = array<i64: 1, 32>}, {transform_indices = @transform_14, window_bounds = array<i64: 1, 1, 1, 32>}]} {
    %c0 = arith.constant 0 : index
    %c0_0 = arith.constant 0 : index
    %c0_1 = arith.constant 0 : index
    %0 = vector.load %arg2[%c0, %c0_0, %c0_1] : memref<1x8x32xbf16, #tpu.memory_space<vmem>>, vector<1x8x32xbf16>
    %1 = vector.shape_cast %0 : vector<1x8x32xbf16> to vector<8x32xbf16>
    %2 = arith.extf %1 : vector<8x32xbf16> to vector<8x32xf32>
    %c0_2 = arith.constant 0 : index
    %c0_3 = arith.constant 0 : index
    %3 = vector.load %arg5[%c0_2, %c0_3] : memref<1x32xf32, #tpu.memory_space<vmem>>, vector<1x32xf32>
    %c0_4 = arith.constant 0 : index
    %c0_5 = arith.constant 0 : index
    %4 = vector.load %arg6[%c0_4, %c0_5] : memref<1x32xf32, #tpu.memory_space<vmem>>, vector<1x32xf32>
    %cst = arith.constant dense<0.000000e+00> : vector<8xf32>
    %5 = vector.multi_reduction <add>, %2, %cst [1] : vector<8x32xf32> to vector<8xf32>
    %6 = vector.shape_cast %5 : vector<8xf32> to vector<8x1xf32>
    %cst_6 = arith.constant 3.200000e+01 : f32
    %7 = vector.broadcast %cst_6 : f32 to vector<8x1xf32>
    %8 = arith.divf %6, %7 : vector<8x1xf32>
    %9 = vector.broadcast %8 : vector<8x1xf32> to vector<8x32xf32>
    %10 = arith.subf %2, %9 : vector<8x32xf32>
    %11 = arith.mulf %10, %10 : vector<8x32xf32>
    %cst_7 = arith.constant dense<0.000000e+00> : vector<8xf32>
    %12 = vector.multi_reduction <add>, %11, %cst_7 [1] : vector<8x32xf32> to vector<8xf32>
    %13 = vector.shape_cast %12 : vector<8xf32> to vector<8x1xf32>
    %cst_8 = arith.constant 3.200000e+01 : f32
    %14 = vector.broadcast %cst_8 : f32 to vector<8x1xf32>
    %15 = arith.divf %13, %14 : vector<8x1xf32>
    %16 = vector.broadcast %8 : vector<8x1xf32> to vector<8x32xf32>
    %17 = arith.subf %2, %16 : vector<8x32xf32>
    %cst_9 = arith.constant 9.99999974E-6 : f32
    %18 = vector.broadcast %cst_9 : f32 to vector<8x1xf32>
    %19 = arith.addf %15, %18 : vector<8x1xf32>
    %20 = math.rsqrt %19 : vector<8x1xf32>
    %21 = vector.broadcast %20 : vector<8x1xf32> to vector<8x32xf32>
    %22 = arith.mulf %17, %21 : vector<8x32xf32>
    %23 = vector.broadcast %3 : vector<1x32xf32> to vector<8x32xf32>
    %24 = arith.mulf %22, %23 : vector<8x32xf32>
    %25 = vector.broadcast %4 : vector<1x32xf32> to vector<8x32xf32>
    %26 = arith.addf %24, %25 : vector<8x32xf32>
    %27 = arith.truncf %26 : vector<8x32xf32> to vector<8x32xbf16>
    %c0_10 = arith.constant 0 : index
    %c0_11 = arith.constant 0 : index
    %28 = vector.load %arg7[%c0_10, %c0_11] : memref<32x32xbf16, #tpu.memory_space<vmem>>, vector<32x32xbf16>
    %cst_12 = arith.constant dense<0.000000e+00> : vector<8x32xf32>
    %29 = tpu.matmul %27, %28, %cst_12 {dimension_numbers = #tpu.dot_dimension_numbers<[1], [0], [0], [1], [0, 0, 1, 1], [], []>} : vector<8x32xbf16>, vector<32x32xbf16>, vector<8x32xf32> -> vector<8x32xf32>
    %30 = arith.truncf %29 : vector<8x32xf32> to vector<8x32xbf16>
    %31 = vector.extract_strided_slice %30 {offsets = [0, 0], sizes = [8, 8], strides = [1, 1]} : vector<8x32xbf16> to vector<8x8xbf16>
    %c0_13 = arith.constant 0 : index
    %c0_14 = arith.constant 0 : index
    %c0_15 = arith.constant 0 : index
    %c0_16 = arith.constant 0 : index
    %32 = vector.load %arg3[%c0_13, %c0_14, %c0_15, %c0_16] : memref<1x4x8x256xbf16, #tpu.memory_space<vmem>>, vector<1x1x8x256xbf16>
    %33 = vector.shape_cast %32 : vector<1x1x8x256xbf16> to vector<8x256xbf16>
    %cst_17 = arith.constant dense<0.000000e+00> : vector<8x256xf32>
    %34 = tpu.matmul %31, %33, %cst_17 {dimension_numbers = #tpu.dot_dimension_numbers<[1], [0], [0], [1], [0, 0, 1, 1], [], []>} : vector<8x8xbf16>, vector<8x256xbf16>, vector<8x256xf32> -> vector<8x256xf32>
    %cst_18 = arith.constant dense<0xFF800000> : vector<8xf32>
    %35 = vector.multi_reduction <maximumf>, %34, %cst_18 [1] : vector<8x256xf32> to vector<8xf32>
    %36 = vector.shape_cast %35 : vector<8xf32> to vector<8x1xf32>
    %37 = vector.broadcast %36 : vector<8x1xf32> to vector<8x256xf32>
    %38 = arith.subf %34, %37 : vector<8x256xf32>
    %39 = math.exp %38 : vector<8x256xf32>
    %cst_19 = arith.constant dense<0.000000e+00> : vector<8xf32>
    %40 = vector.multi_reduction <add>, %39, %cst_19 [1] : vector<8x256xf32> to vector<8xf32>
    %41 = vector.shape_cast %40 : vector<8xf32> to vector<8x1xf32>
    %42 = tpu.reciprocal %41 {approx = true} : vector<8x1xf32> -> vector<8x1xf32>
    %43 = vector.broadcast %42 : vector<8x1xf32> to vector<8x256xf32>
    %44 = arith.mulf %39, %43 : vector<8x256xf32>
    %45 = arith.truncf %44 : vector<8x256xf32> to vector<8x256xbf16>
    %c0_20 = arith.constant 0 : index
    %c0_21 = arith.constant 0 : index
    %c0_22 = arith.constant 0 : index
    %c0_23 = arith.constant 0 : index
    %46 = vector.load %arg4[%c0_20, %c0_21, %c0_22, %c0_23] : memref<1x4x256x8xbf16, #tpu.memory_space<vmem>>, vector<1x1x256x8xbf16>
    %47 = vector.shape_cast %46 : vector<1x1x256x8xbf16> to vector<256x8xbf16>
    %cst_24 = arith.constant dense<0.000000e+00> : vector<8x8xf32>
    %48 = tpu.matmul %45, %47, %cst_24 {dimension_numbers = #tpu.dot_dimension_numbers<[1], [0], [0], [1], [0, 0, 1, 1], [], []>} : vector<8x256xbf16>, vector<256x8xbf16>, vector<8x8xf32> -> vector<8x8xf32>
    %49 = arith.truncf %48 : vector<8x8xf32> to vector<8x8xbf16>
    %c0_25 = arith.constant 0 : index
    %c0_26 = arith.constant 0 : index
    %50 = vector.load %arg17[%c0_25, %c0_26] : memref<8x32xbf16, #tpu.memory_space<vmem>>, vector<8x8xbf16>
    tpu.vector_store %arg17[%c0_25, %c0_26], %49 {strides = array<i32>} : memref<8x32xbf16, #tpu.memory_space<vmem>>, vector<8x8xbf16>,
    %51 = vector.extract_strided_slice %30 {offsets = [0, 8], sizes = [8, 8], strides = [1, 1]} : vector<8x32xbf16> to vector<8x8xbf16>
    %c0_27 = arith.constant 0 : index
    %c1 = arith.constant 1 : index
    %c0_28 = arith.constant 0 : index
    %c0_29 = arith.constant 0 : index
    %52 = vector.load %arg3[%c0_27, %c1, %c0_28, %c0_29] : memref<1x4x8x256xbf16, #tpu.memory_space<vmem>>, vector<1x1x8x256xbf16>
    %53 = vector.shape_cast %52 : vector<1x1x8x256xbf16> to vector<8x256xbf16>
    %cst_30 = arith.constant dense<0.000000e+00> : vector<8x256xf32>
    %54 = tpu.matmul %51, %53, %cst_30 {dimension_numbers = #tpu.dot_dimension_numbers<[1], [0], [0], [1], [0, 0, 1, 1], [], []>} : vector<8x8xbf16>, vector<8x256xbf16>, vector<8x256xf32> -> vector<8x256xf32>
    %cst_31 = arith.constant dense<0xFF800000> : vector<8xf32>
    %55 = vector.multi_reduction <maximumf>, %54, %cst_31 [1] : vector<8x256xf32> to vector<8xf32>
    %56 = vector.shape_cast %55 : vector<8xf32> to vector<8x1xf32>
    %57 = vector.broadcast %56 : vector<8x1xf32> to vector<8x256xf32>
    %58 = arith.subf %54, %57 : vector<8x256xf32>
    %59 = math.exp %58 : vector<8x256xf32>
    %cst_32 = arith.constant dense<0.000000e+00> : vector<8xf32>
    %60 = vector.multi_reduction <add>, %59, %cst_32 [1] : vector<8x256xf32> to vector<8xf32>
    %61 = vector.shape_cast %60 : vector<8xf32> to vector<8x1xf32>
    %62 = tpu.reciprocal %61 {approx = true} : vector<8x1xf32> -> vector<8x1xf32>
    %63 = vector.broadcast %62 : vector<8x1xf32> to vector<8x256xf32>
    %64 = arith.mulf %59, %63 : vector<8x256xf32>
    %65 = arith.truncf %64 : vector<8x256xf32> to vector<8x256xbf16>
    %c0_33 = arith.constant 0 : index
    %c1_34 = arith.constant 1 : index
    %c0_35 = arith.constant 0 : index
    %c0_36 = arith.constant 0 : index
    %66 = vector.load %arg4[%c0_33, %c1_34, %c0_35, %c0_36] : memref<1x4x256x8xbf16, #tpu.memory_space<vmem>>, vector<1x1x256x8xbf16>
    %67 = vector.shape_cast %66 : vector<1x1x256x8xbf16> to vector<256x8xbf16>
    %cst_37 = arith.constant dense<0.000000e+00> : vector<8x8xf32>
    %68 = tpu.matmul %65, %67, %cst_37 {dimension_numbers = #tpu.dot_dimension_numbers<[1], [0], [0], [1], [0, 0, 1, 1], [], []>} : vector<8x256xbf16>, vector<256x8xbf16>, vector<8x8xf32> -> vector<8x8xf32>
    %69 = arith.truncf %68 : vector<8x8xf32> to vector<8x8xbf16>
    %c0_38 = arith.constant 0 : index
    %c8 = arith.constant 8 : index
    %70 = vector.load %arg17[%c0_38, %c8] : memref<8x32xbf16, #tpu.memory_space<vmem>>, vector<8x8xbf16>
    tpu.vector_store %arg17[%c0_38, %c8], %69 {strides = array<i32>} : memref<8x32xbf16, #tpu.memory_space<vmem>>, vector<8x8xbf16>,
    %71 = vector.extract_strided_slice %30 {offsets = [0, 16], sizes = [8, 8], strides = [1, 1]} : vector<8x32xbf16> to vector<8x8xbf16>
    %c0_39 = arith.constant 0 : index
    %c2 = arith.constant 2 : index
    %c0_40 = arith.constant 0 : index
    %c0_41 = arith.constant 0 : index
    %72 = vector.load %arg3[%c0_39, %c2, %c0_40, %c0_41] : memref<1x4x8x256xbf16, #tpu.memory_space<vmem>>, vector<1x1x8x256xbf16>
    %73 = vector.shape_cast %72 : vector<1x1x8x256xbf16> to vector<8x256xbf16>
    %cst_42 = arith.constant dense<0.000000e+00> : vector<8x256xf32>
    %74 = tpu.matmul %71, %73, %cst_42 {dimension_numbers = #tpu.dot_dimension_numbers<[1], [0], [0], [1], [0, 0, 1, 1], [], []>} : vector<8x8xbf16>, vector<8x256xbf16>, vector<8x256xf32> -> vector<8x256xf32>
    %cst_43 = arith.constant dense<0xFF800000> : vector<8xf32>
    %75 = vector.multi_reduction <maximumf>, %74, %cst_43 [1] : vector<8x256xf32> to vector<8xf32>
    %76 = vector.shape_cast %75 : vector<8xf32> to vector<8x1xf32>
    %77 = vector.broadcast %76 : vector<8x1xf32> to vector<8x256xf32>
    %78 = arith.subf %74, %77 : vector<8x256xf32>
    %79 = math.exp %78 : vector<8x256xf32>
    %cst_44 = arith.constant dense<0.000000e+00> : vector<8xf32>
    %80 = vector.multi_reduction <add>, %79, %cst_44 [1] : vector<8x256xf32> to vector<8xf32>
    %81 = vector.shape_cast %80 : vector<8xf32> to vector<8x1xf32>
    %82 = tpu.reciprocal %81 {approx = true} : vector<8x1xf32> -> vector<8x1xf32>
    %83 = vector.broadcast %82 : vector<8x1xf32> to vector<8x256xf32>
    %84 = arith.mulf %79, %83 : vector<8x256xf32>
    %85 = arith.truncf %84 : vector<8x256xf32> to vector<8x256xbf16>
    %c0_45 = arith.constant 0 : index
    %c2_46 = arith.constant 2 : index
    %c0_47 = arith.constant 0 : index
    %c0_48 = arith.constant 0 : index
    %86 = vector.load %arg4[%c0_45, %c2_46, %c0_47, %c0_48] : memref<1x4x256x8xbf16, #tpu.memory_space<vmem>>, vector<1x1x256x8xbf16>
    %87 = vector.shape_cast %86 : vector<1x1x256x8xbf16> to vector<256x8xbf16>
    %cst_49 = arith.constant dense<0.000000e+00> : vector<8x8xf32>
    %88 = tpu.matmul %85, %87, %cst_49 {dimension_numbers = #tpu.dot_dimension_numbers<[1], [0], [0], [1], [0, 0, 1, 1], [], []>} : vector<8x256xbf16>, vector<256x8xbf16>, vector<8x8xf32> -> vector<8x8xf32>
    %89 = arith.truncf %88 : vector<8x8xf32> to vector<8x8xbf16>
    %c0_50 = arith.constant 0 : index
    %c16 = arith.constant 16 : index
    %90 = vector.load %arg17[%c0_50, %c16] : memref<8x32xbf16, #tpu.memory_space<vmem>>, vector<8x8xbf16>
    tpu.vector_store %arg17[%c0_50, %c16], %89 {strides = array<i32>} : memref<8x32xbf16, #tpu.memory_space<vmem>>, vector<8x8xbf16>,
    %91 = vector.extract_strided_slice %30 {offsets = [0, 24], sizes = [8, 8], strides = [1, 1]} : vector<8x32xbf16> to vector<8x8xbf16>
    %c0_51 = arith.constant 0 : index
    %c3 = arith.constant 3 : index
    %c0_52 = arith.constant 0 : index
    %c0_53 = arith.constant 0 : index
    %92 = vector.load %arg3[%c0_51, %c3, %c0_52, %c0_53] : memref<1x4x8x256xbf16, #tpu.memory_space<vmem>>, vector<1x1x8x256xbf16>
    %93 = vector.shape_cast %92 : vector<1x1x8x256xbf16> to vector<8x256xbf16>
    %cst_54 = arith.constant dense<0.000000e+00> : vector<8x256xf32>
    %94 = tpu.matmul %91, %93, %cst_54 {dimension_numbers = #tpu.dot_dimension_numbers<[1], [0], [0], [1], [0, 0, 1, 1], [], []>} : vector<8x8xbf16>, vector<8x256xbf16>, vector<8x256xf32> -> vector<8x256xf32>
    %cst_55 = arith.constant dense<0xFF800000> : vector<8xf32>
    %95 = vector.multi_reduction <maximumf>, %94, %cst_55 [1] : vector<8x256xf32> to vector<8xf32>
    %96 = vector.shape_cast %95 : vector<8xf32> to vector<8x1xf32>
    %97 = vector.broadcast %96 : vector<8x1xf32> to vector<8x256xf32>
    %98 = arith.subf %94, %97 : vector<8x256xf32>
    %99 = math.exp %98 : vector<8x256xf32>
    %cst_56 = arith.constant dense<0.000000e+00> : vector<8xf32>
    %100 = vector.multi_reduction <add>, %99, %cst_56 [1] : vector<8x256xf32> to vector<8xf32>
    %101 = vector.shape_cast %100 : vector<8xf32> to vector<8x1xf32>
    %102 = tpu.reciprocal %101 {approx = true} : vector<8x1xf32> -> vector<8x1xf32>
    %103 = vector.broadcast %102 : vector<8x1xf32> to vector<8x256xf32>
    %104 = arith.mulf %99, %103 : vector<8x256xf32>
    %105 = arith.truncf %104 : vector<8x256xf32> to vector<8x256xbf16>
    %c0_57 = arith.constant 0 : index
    %c3_58 = arith.constant 3 : index
    %c0_59 = arith.constant 0 : index
    %c0_60 = arith.constant 0 : index
    %106 = vector.load %arg4[%c0_57, %c3_58, %c0_59, %c0_60] : memref<1x4x256x8xbf16, #tpu.memory_space<vmem>>, vector<1x1x256x8xbf16>
    %107 = vector.shape_cast %106 : vector<1x1x256x8xbf16> to vector<256x8xbf16>
    %cst_61 = arith.constant dense<0.000000e+00> : vector<8x8xf32>
    %108 = tpu.matmul %105, %107, %cst_61 {dimension_numbers = #tpu.dot_dimension_numbers<[1], [0], [0], [1], [0, 0, 1, 1], [], []>} : vector<8x256xbf16>, vector<256x8xbf16>, vector<8x8xf32> -> vector<8x8xf32>
    %109 = arith.truncf %108 : vector<8x8xf32> to vector<8x8xbf16>
    %c0_62 = arith.constant 0 : index
    %c24 = arith.constant 24 : index
    %110 = vector.load %arg17[%c0_62, %c24] : memref<8x32xbf16, #tpu.memory_space<vmem>>, vector<8x8xbf16>
    tpu.vector_store %arg17[%c0_62, %c24], %109 {strides = array<i32>} : memref<8x32xbf16, #tpu.memory_space<vmem>>, vector<8x8xbf16>,
    %c0_63 = arith.constant 0 : index
    %c0_64 = arith.constant 0 : index
    %111 = vector.load %arg17[%c0_63, %c0_64] : memref<8x32xbf16, #tpu.memory_space<vmem>>, vector<8x32xbf16>
    %c0_65 = arith.constant 0 : index
    %c0_66 = arith.constant 0 : index
    %112 = vector.load %arg8[%c0_65, %c0_66] : memref<32x32xbf16, #tpu.memory_space<vmem>>, vector<32x32xbf16>
    %cst_67 = arith.constant dense<0.000000e+00> : vector<8x32xf32>
    %113 = tpu.matmul %111, %112, %cst_67 {dimension_numbers = #tpu.dot_dimension_numbers<[1], [0], [0], [1], [0, 0, 1, 1], [], []>} : vector<8x32xbf16>, vector<32x32xbf16>, vector<8x32xf32> -> vector<8x32xf32>
    %114 = arith.addf %2, %113 : vector<8x32xf32>
    %c0_68 = arith.constant 0 : index
    %c0_69 = arith.constant 0 : index
    %115 = vector.load %arg9[%c0_68, %c0_69] : memref<1x32xf32, #tpu.memory_space<vmem>>, vector<1x32xf32>
    %116 = vector.broadcast %115 : vector<1x32xf32> to vector<8x32xf32>
    %117 = arith.addf %114, %116 : vector<8x32xf32>
    %c0_70 = arith.constant 0 : index
    %c0_71 = arith.constant 0 : index
    %118 = vector.load %arg10[%c0_70, %c0_71] : memref<1x32xf32, #tpu.memory_space<vmem>>, vector<1x32xf32>
    %c0_72 = arith.constant 0 : index
    %c0_73 = arith.constant 0 : index
    %119 = vector.load %arg11[%c0_72, %c0_73] : memref<1x32xf32, #tpu.memory_space<vmem>>, vector<1x32xf32>
    %cst_74 = arith.constant dense<0.000000e+00> : vector<8xf32>
    %120 = vector.multi_reduction <add>, %117, %cst_74 [1] : vector<8x32xf32> to vector<8xf32>
    %121 = vector.shape_cast %120 : vector<8xf32> to vector<8x1xf32>
    %cst_75 = arith.constant 3.200000e+01 : f32
    %122 = vector.broadcast %cst_75 : f32 to vector<8x1xf32>
    %123 = arith.divf %121, %122 : vector<8x1xf32>
    %124 = vector.broadcast %123 : vector<8x1xf32> to vector<8x32xf32>
    %125 = arith.subf %117, %124 : vector<8x32xf32>
    %126 = arith.mulf %125, %125 : vector<8x32xf32>
    %cst_76 = arith.constant dense<0.000000e+00> : vector<8xf32>
    %127 = vector.multi_reduction <add>, %126, %cst_76 [1] : vector<8x32xf32> to vector<8xf32>
    %128 = vector.shape_cast %127 : vector<8xf32> to vector<8x1xf32>
    %cst_77 = arith.constant 3.200000e+01 : f32
    %129 = vector.broadcast %cst_77 : f32 to vector<8x1xf32>
    %130 = arith.divf %128, %129 : vector<8x1xf32>
    %131 = vector.broadcast %123 : vector<8x1xf32> to vector<8x32xf32>
    %132 = arith.subf %117, %131 : vector<8x32xf32>
    %cst_78 = arith.constant 9.99999974E-6 : f32
    %133 = vector.broadcast %cst_78 : f32 to vector<8x1xf32>
    %134 = arith.addf %130, %133 : vector<8x1xf32>
    %135 = math.rsqrt %134 : vector<8x1xf32>
    %136 = vector.broadcast %135 : vector<8x1xf32> to vector<8x32xf32>
    %137 = arith.mulf %132, %136 : vector<8x32xf32>
    %138 = vector.broadcast %118 : vector<1x32xf32> to vector<8x32xf32>
    %139 = arith.mulf %137, %138 : vector<8x32xf32>
    %140 = vector.broadcast %119 : vector<1x32xf32> to vector<8x32xf32>
    %141 = arith.addf %139, %140 : vector<8x32xf32>
    %142 = arith.truncf %141 : vector<8x32xf32> to vector<8x32xbf16>
    %c0_79 = arith.constant 0 : index
    %c0_80 = arith.constant 0 : index
    %143 = vector.load %arg12[%c0_79, %c0_80] : memref<32x128xbf16, #tpu.memory_space<vmem>>, vector<32x128xbf16>
    %cst_81 = arith.constant dense<0.000000e+00> : vector<8x128xf32>
    %144 = tpu.matmul %142, %143, %cst_81 {dimension_numbers = #tpu.dot_dimension_numbers<[1], [0], [0], [1], [0, 0, 1, 1], [], []>} : vector<8x32xbf16>, vector<32x128xbf16>, vector<8x128xf32> -> vector<8x128xf32>
    %c0_82 = arith.constant 0 : index
    %c0_83 = arith.constant 0 : index
    %145 = vector.load %arg13[%c0_82, %c0_83] : memref<1x128xf32, #tpu.memory_space<vmem>>, vector<1x128xf32>
    %146 = vector.broadcast %145 : vector<1x128xf32> to vector<8x128xf32>
    %147 = arith.addf %144, %146 : vector<8x128xf32>
    %cst_84 = arith.constant 5.000000e-01 : f32
    %148 = vector.broadcast %cst_84 : f32 to vector<8x128xf32>
    %149 = arith.mulf %148, %147 : vector<8x128xf32>
    %cst_85 = arith.constant 0.707106769 : f32
    %150 = vector.broadcast %cst_85 : f32 to vector<8x128xf32>
    %151 = arith.mulf %147, %150 : vector<8x128xf32>
    %cst_86 = arith.constant 0.000000e+00 : f32
    %152 = vector.broadcast %cst_86 : f32 to vector<8x128xf32>
    %153 = arith.cmpf oge, %151, %152 : vector<8x128xf32>
    %cst_87 = arith.constant 1.000000e+00 : f32
    %cst_88 = arith.constant -1.000000e+00 : f32
    %154 = vector.broadcast %cst_87 : f32 to vector<8x128xf32>
    %155 = vector.broadcast %cst_88 : f32 to vector<8x128xf32>
    %156 = arith.select %153, %154, %155 : vector<8x128xi1>, vector<8x128xf32>
    %157 = math.absf %151 : vector<8x128xf32>
    %cst_89 = arith.constant 0.327591091 : f32
    %158 = vector.broadcast %cst_89 : f32 to vector<8x128xf32>
    %159 = arith.mulf %158, %157 : vector<8x128xf32>
    %cst_90 = arith.constant 1.000000e+00 : f32
    %160 = vector.broadcast %cst_90 : f32 to vector<8x128xf32>
    %161 = arith.addf %160, %159 : vector<8x128xf32>
    %162 = tpu.reciprocal %161 {approx = true} : vector<8x128xf32> -> vector<8x128xf32>
    %cst_91 = arith.constant 1.06140542 : f32
    %163 = vector.broadcast %cst_91 : f32 to vector<8x128xf32>
    %164 = arith.mulf %163, %162 : vector<8x128xf32>
    %cst_92 = arith.constant -1.45315206 : f32
    %165 = vector.broadcast %cst_92 : f32 to vector<8x128xf32>
    %166 = arith.addf %164, %165 : vector<8x128xf32>
    %167 = arith.mulf %166, %162 : vector<8x128xf32>
    %cst_93 = arith.constant 1.42141378 : f32
    %168 = vector.broadcast %cst_93 : f32 to vector<8x128xf32>
    %169 = arith.addf %167, %168 : vector<8x128xf32>
    %170 = arith.mulf %169, %162 : vector<8x128xf32>
    %cst_94 = arith.constant -0.284496725 : f32
    %171 = vector.broadcast %cst_94 : f32 to vector<8x128xf32>
    %172 = arith.addf %170, %171 : vector<8x128xf32>
    %173 = arith.mulf %172, %162 : vector<8x128xf32>
    %cst_95 = arith.constant 0.254829586 : f32
    %174 = vector.broadcast %cst_95 : f32 to vector<8x128xf32>
    %175 = arith.addf %173, %174 : vector<8x128xf32>
    %176 = arith.mulf %175, %162 : vector<8x128xf32>
    %cst_96 = arith.constant 0.000000e+00 : f32
    %177 = vector.broadcast %cst_96 : f32 to vector<8x128xf32>
    %178 = arith.subf %177, %157 : vector<8x128xf32>
    %179 = arith.mulf %178, %157 : vector<8x128xf32>
    %180 = math.exp %179 : vector<8x128xf32>
    %181 = arith.mulf %176, %180 : vector<8x128xf32>
    %cst_97 = arith.constant 1.000000e+00 : f32
    %182 = vector.broadcast %cst_97 : f32 to vector<8x128xf32>
    %183 = arith.subf %182, %181 : vector<8x128xf32>
    %184 = arith.mulf %156, %183 : vector<8x128xf32>
    %cst_98 = arith.constant 1.000000e+00 : f32
    %185 = vector.broadcast %cst_98 : f32 to vector<8x128xf32>
    %186 = arith.addf %185, %184 : vector<8x128xf32>
    %187 = arith.mulf %149, %186 : vector<8x128xf32>
    %188 = arith.truncf %187 : vector<8x128xf32> to vector<8x128xbf16>
    %c0_99 = arith.constant 0 : index
    %c0_100 = arith.constant 0 : index
    %189 = vector.load %arg14[%c0_99, %c0_100] : memref<128x32xbf16, #tpu.memory_space<vmem>>, vector<128x32xbf16>
    %cst_101 = arith.constant dense<0.000000e+00> : vector<8x32xf32>
    %190 = tpu.matmul %188, %189, %cst_101 {dimension_numbers = #tpu.dot_dimension_numbers<[1], [0], [0], [1], [0, 0, 1, 1], [], []>} : vector<8x128xbf16>, vector<128x32xbf16>, vector<8x32xf32> -> vector<8x32xf32>
    %c0_102 = arith.constant 0 : index
    %c0_103 = arith.constant 0 : index
    %191 = vector.load %arg15[%c0_102, %c0_103] : memref<1x32xf32, #tpu.memory_space<vmem>>, vector<1x32xf32>
    %192 = vector.broadcast %191 : vector<1x32xf32> to vector<8x32xf32>
    %193 = arith.addf %190, %192 : vector<8x32xf32>
    %194 = arith.addf %117, %193 : vector<8x32xf32>
    %cst_104 = arith.constant dense<0.000000e+00> : vector<32xf32>
    %195 = vector.multi_reduction <add>, %194, %cst_104 [0] : vector<8x32xf32> to vector<32xf32>
    %196 = vector.shape_cast %195 : vector<32xf32> to vector<1x32xf32>
    %c0_105 = arith.constant 0 : index
    %c0_106 = arith.constant 0 : index
    %c0_107 = arith.constant 0 : index
    %c0_108 = arith.constant 0 : index
    %197 = vector.load %arg16[%c0_105, %c0_106, %c0_107, %c0_108] : memref<1x1x1x32xf32, #tpu.memory_space<vmem>>, vector<1x1x1x32xf32>
    %198 = vector.shape_cast %197 : vector<1x1x1x32xf32> to vector<1x32xf32>
    %199 = vector.shape_cast %196 : vector<1x32xf32> to vector<1x1x1x32xf32>
    tpu.vector_store %arg16[%c0_105, %c0_106, %c0_107, %c0_108], %199 {strides = array<i32>} : memref<1x1x1x32xf32, #tpu.memory_space<vmem>>, vector<1x1x1x32xf32>,
    return
  }
  func.func @transform_0(%arg0: i32, %arg1: i32) -> (i32, i32, i32) {
    %c0_i32 = arith.constant 0 : i32
    %c0_i32_0 = arith.constant 0 : i32
    return %arg0, %arg1, %c0_i32 : i32, i32, i32
  }
  func.func @transform_1(%arg0: i32, %arg1: i32) -> (i32, i32, i32, i32) {
    %c0_i32 = arith.constant 0 : i32
    %c0_i32_0 = arith.constant 0 : i32
    %c0_i32_1 = arith.constant 0 : i32
    %c0_i32_2 = arith.constant 0 : i32
    return %arg0, %c0_i32, %c0_i32_0, %c0_i32_1 : i32, i32, i32, i32
  }
  func.func @transform_2(%arg0: i32, %arg1: i32) -> (i32, i32, i32, i32) {
    %c0_i32 = arith.constant 0 : i32
    %c0_i32_0 = arith.constant 0 : i32
    %c0_i32_1 = arith.constant 0 : i32
    %c0_i32_2 = arith.constant 0 : i32
    return %arg0, %c0_i32, %c0_i32_0, %c0_i32_1 : i32, i32, i32, i32
  }
  func.func @transform_3(%arg0: i32, %arg1: i32) -> (i32, i32) {
    %c0_i32 = arith.constant 0 : i32
    %c0_i32_0 = arith.constant 0 : i32
    %c0_i32_1 = arith.constant 0 : i32
    return %c0_i32, %c0_i32_0 : i32, i32
  }
  func.func @transform_4(%arg0: i32, %arg1: i32) -> (i32, i32) {
    %c0_i32 = arith.constant 0 : i32
    %c0_i32_0 = arith.constant 0 : i32
    %c0_i32_1 = arith.constant 0 : i32
    return %c0_i32, %c0_i32_0 : i32, i32
  }
  func.func @transform_5(%arg0: i32, %arg1: i32) -> (i32, i32) {
    %c0_i32 = arith.constant 0 : i32
    %c0_i32_0 = arith.constant 0 : i32
    %c0_i32_1 = arith.constant 0 : i32
    return %c0_i32, %c0_i32_0 : i32, i32
  }
  func.func @transform_6(%arg0: i32, %arg1: i32) -> (i32, i32) {
    %c0_i32 = arith.constant 0 : i32
    %c0_i32_0 = arith.constant 0 : i32
    %c0_i32_1 = arith.constant 0 : i32
    return %c0_i32, %c0_i32_0 : i32, i32
  }
  func.func @transform_7(%arg0: i32, %arg1: i32) -> (i32, i32) {
    %c0_i32 = arith.constant 0 : i32
    %c0_i32_0 = arith.constant 0 : i32
    %c0_i32_1 = arith.constant 0 : i32
    return %c0_i32, %c0_i32_0 : i32, i32
  }
  func.func @transform_8(%arg0: i32, %arg1: i32) -> (i32, i32) {
    %c0_i32 = arith.constant 0 : i32
    %c0_i32_0 = arith.constant 0 : i32
    %c0_i32_1 = arith.constant 0 : i32
    return %c0_i32, %c0_i32_0 : i32, i32
  }
  func.func @transform_9(%arg0: i32, %arg1: i32) -> (i32, i32) {
    %c0_i32 = arith.constant 0 : i32
    %c0_i32_0 = arith.constant 0 : i32
    %c0_i32_1 = arith.constant 0 : i32
    return %c0_i32, %c0_i32_0 : i32, i32
  }
  func.func @transform_10(%arg0: i32, %arg1: i32) -> (i32, i32) {
    %c0_i32 = arith.constant 0 : i32
    %c0_i32_0 = arith.constant 0 : i32
    %c0_i32_1 = arith.constant 0 : i32
    return %c0_i32, %c0_i32_0 : i32, i32
  }
  func.func @transform_11(%arg0: i32, %arg1: i32) -> (i32, i32) {
    %c0_i32 = arith.constant 0 : i32
    %c0_i32_0 = arith.constant 0 : i32
    %c0_i32_1 = arith.constant 0 : i32
    return %c0_i32, %c0_i32_0 : i32, i32
  }
  func.func @transform_12(%arg0: i32, %arg1: i32) -> (i32, i32) {
    %c0_i32 = arith.constant 0 : i32
    %c0_i32_0 = arith.constant 0 : i32
    %c0_i32_1 = arith.constant 0 : i32
    return %c0_i32, %c0_i32_0 : i32, i32
  }
  func.func @transform_13(%arg0: i32, %arg1: i32) -> (i32, i32) {
    %c0_i32 = arith.constant 0 : i32
    %c0_i32_0 = arith.constant 0 : i32
    %c0_i32_1 = arith.constant 0 : i32
    return %c0_i32, %c0_i32_0 : i32, i32
  }
  func.func @transform_14(%arg0: i32, %arg1: i32) -> (i32, i32, i32, i32) {
    %c0_i32 = arith.constant 0 : i32
    %c0_i32_0 = arith.constant 0 : i32
    %c0_i32_1 = arith.constant 0 : i32
    return %arg0, %arg1, %c0_i32, %c0_i32_0 : i32, i32, i32, i32
  }
}

module attributes {stable_mosaic.version = 11 : i64} {
  func.func @head_kernel(%arg0: i32, %arg1: memref<2x1x1x32xf32, #tpu.memory_space<vmem>>, %arg2: memref<32x2xbf16, #tpu.memory_space<vmem>>, %arg3: memref<1x2xf32, #tpu.memory_space<vmem>>, %arg4: memref<2x2xf32, #tpu.memory_space<vmem>>) attributes {dimension_semantics = [#tpu.dimension_semantics<arbitrary>], iteration_bounds = array<i64: 1>, scalar_prefetch = 0 : i64, scratch_operands = 0 : i64, tpu.core_type = #tpu.core_type<tc>, window_params = [{pipeline_mode = #tpu.pipeline_mode<synchronous>, transform_indices = @transform_0, window_bounds = array<i64: 2, 1, 1, 32>}, {pipeline_mode = #tpu.pipeline_mode<synchronous>, transform_indices = @transform_1, window_bounds = array<i64: 32, 2>}, {pipeline_mode = #tpu.pipeline_mode<synchronous>, transform_indices = @transform_2, window_bounds = array<i64: 1, 2>}, {pipeline_mode = #tpu.pipeline_mode<synchronous>, transform_indices = @transform_3, window_bounds = array<i64: 2, 2>}]} {
    %c0 = arith.constant 0 : index
    %c0_0 = arith.constant 0 : index
    %c0_1 = arith.constant 0 : index
    %c0_2 = arith.constant 0 : index
    %0 = vector.load %arg1[%c0, %c0_0, %c0_1, %c0_2] : memref<2x1x1x32xf32, #tpu.memory_space<vmem>>, vector<2x1x1x32xf32>
    %1 = vector.shape_cast %0 : vector<2x1x1x32xf32> to vector<2x1x32xf32>
    %cst = arith.constant dense<0.000000e+00> : vector<2x32xf32>
    %2 = vector.multi_reduction <add>, %1, %cst [1] : vector<2x1x32xf32> to vector<2x32xf32>
    %cst_3 = arith.constant 1.250000e-01 : f32
    %3 = vector.broadcast %cst_3 : f32 to vector<2x32xf32>
    %4 = arith.mulf %2, %3 : vector<2x32xf32>
    %5 = arith.truncf %4 : vector<2x32xf32> to vector<2x32xbf16>
    %c0_4 = arith.constant 0 : index
    %c0_5 = arith.constant 0 : index
    %6 = vector.load %arg2[%c0_4, %c0_5] : memref<32x2xbf16, #tpu.memory_space<vmem>>, vector<32x2xbf16>
    %cst_6 = arith.constant dense<0.000000e+00> : vector<2x2xf32>
    %7 = tpu.matmul %5, %6, %cst_6 {dimension_numbers = #tpu.dot_dimension_numbers<[1], [0], [0], [1], [0, 0, 1, 1], [], []>} : vector<2x32xbf16>, vector<32x2xbf16>, vector<2x2xf32> -> vector<2x2xf32>
    %c0_7 = arith.constant 0 : index
    %c0_8 = arith.constant 0 : index
    %8 = vector.load %arg3[%c0_7, %c0_8] : memref<1x2xf32, #tpu.memory_space<vmem>>, vector<1x2xf32>
    %9 = vector.broadcast %8 : vector<1x2xf32> to vector<2x2xf32>
    %10 = arith.addf %7, %9 : vector<2x2xf32>
    %c0_9 = arith.constant 0 : index
    %c0_10 = arith.constant 0 : index
    %11 = vector.load %arg4[%c0_9, %c0_10] : memref<2x2xf32, #tpu.memory_space<vmem>>, vector<2x2xf32>
    tpu.vector_store %arg4[%c0_9, %c0_10], %10 {strides = array<i32>} : memref<2x2xf32, #tpu.memory_space<vmem>>, vector<2x2xf32>,
    return
  }
  func.func @transform_0(%arg0: i32) -> (i32, i32, i32, i32) {
    %c0_i32 = arith.constant 0 : i32
    %c0_i32_0 = arith.constant 0 : i32
    %c0_i32_1 = arith.constant 0 : i32
    %c0_i32_2 = arith.constant 0 : i32
    %c0_i32_3 = arith.constant 0 : i32
    return %c0_i32, %c0_i32_0, %c0_i32_1, %c0_i32_2 : i32, i32, i32, i32
  }
  func.func @transform_1(%arg0: i32) -> (i32, i32) {
    %c0_i32 = arith.constant 0 : i32
    %c0_i32_0 = arith.constant 0 : i32
    %c0_i32_1 = arith.constant 0 : i32
    return %c0_i32, %c0_i32_0 : i32, i32
  }
  func.func @transform_2(%arg0: i32) -> (i32, i32) {
    %c0_i32 = arith.constant 0 : i32
    %c0_i32_0 = arith.constant 0 : i32
    %c0_i32_1 = arith.constant 0 : i32
    return %c0_i32, %c0_i32_0 : i32, i32
  }
  func.func @transform_3(%arg0: i32) -> (i32, i32) {
    %c0_i32 = arith.constant 0 : i32
    %c0_i32_0 = arith.constant 0 : i32
    %c0_i32_1 = arith.constant 0 : i32
    return %c0_i32, %c0_i32_0 : i32, i32
  }
}

module attributes {stable_mosaic.version = 11 : i64} {
  func.func @attn_ffn_kernel(%arg0: i32, %arg1: i32, %arg2: memref<1x8x32xbf16, #tpu.memory_space<vmem>>, %arg3: memref<1x4x8x256xbf16, #tpu.memory_space<vmem>>, %arg4: memref<1x4x256x8xbf16, #tpu.memory_space<vmem>>, %arg5: memref<1x32xf32, #tpu.memory_space<vmem>>, %arg6: memref<1x32xf32, #tpu.memory_space<vmem>>, %arg7: memref<32x32xbf16, #tpu.memory_space<vmem>>, %arg8: memref<32x32xbf16, #tpu.memory_space<vmem>>, %arg9: memref<1x32xf32, #tpu.memory_space<vmem>>, %arg10: memref<1x32xf32, #tpu.memory_space<vmem>>, %arg11: memref<1x32xf32, #tpu.memory_space<vmem>>, %arg12: memref<32x128xbf16, #tpu.memory_space<vmem>>, %arg13: memref<1x128xf32, #tpu.memory_space<vmem>>, %arg14: memref<128x32xbf16, #tpu.memory_space<vmem>>, %arg15: memref<1x32xf32, #tpu.memory_space<vmem>>, %arg16: memref<1x8x32xbf16, #tpu.memory_space<vmem>>, %arg17: memref<8x32xbf16, #tpu.memory_space<vmem>>) attributes {dimension_semantics = [#tpu.dimension_semantics<parallel>, #tpu.dimension_semantics<parallel>], iteration_bounds = array<i64: 2, 1>, scalar_prefetch = 0 : i64, scratch_operands = 1 : i64, tpu.core_type = #tpu.core_type<tc>, window_params = [{transform_indices = @transform_0, window_bounds = array<i64: 1, 8, 32>}, {transform_indices = @transform_1, window_bounds = array<i64: 1, 4, 8, 256>}, {transform_indices = @transform_2, window_bounds = array<i64: 1, 4, 256, 8>}, {pipeline_mode = #tpu.pipeline_mode<synchronous>, transform_indices = @transform_3, window_bounds = array<i64: 1, 32>}, {pipeline_mode = #tpu.pipeline_mode<synchronous>, transform_indices = @transform_4, window_bounds = array<i64: 1, 32>}, {pipeline_mode = #tpu.pipeline_mode<synchronous>, transform_indices = @transform_5, window_bounds = array<i64: 32, 32>}, {pipeline_mode = #tpu.pipeline_mode<synchronous>, transform_indices = @transform_6, window_bounds = array<i64: 32, 32>}, {pipeline_mode = #tpu.pipeline_mode<synchronous>, transform_indices = @transform_7, window_bounds = array<i64: 1, 32>}, {pipeline_mode = #tpu.pipeline_mode<synchronous>, transform_indices = @transform_8, window_bounds = array<i64: 1, 32>}, {pipeline_mode = #tpu.pipeline_mode<synchronous>, transform_indices = @transform_9, window_bounds = array<i64: 1, 32>}, {pipeline_mode = #tpu.pipeline_mode<synchronous>, transform_indices = @transform_10, window_bounds = array<i64: 32, 128>}, {pipeline_mode = #tpu.pipeline_mode<synchronous>, transform_indices = @transform_11, window_bounds = array<i64: 1, 128>}, {pipeline_mode = #tpu.pipeline_mode<synchronous>, transform_indices = @transform_12, window_bounds = array<i64: 128, 32>}, {pipeline_mode = #tpu.pipeline_mode<synchronous>, transform_indices = @transform_13, window_bounds = array<i64: 1, 32>}, {transform_indices = @transform_14, window_bounds = array<i64: 1, 8, 32>}]} {
    %c0 = arith.constant 0 : index
    %c0_0 = arith.constant 0 : index
    %c0_1 = arith.constant 0 : index
    %0 = vector.load %arg2[%c0, %c0_0, %c0_1] : memref<1x8x32xbf16, #tpu.memory_space<vmem>>, vector<1x8x32xbf16>
    %1 = vector.shape_cast %0 : vector<1x8x32xbf16> to vector<8x32xbf16>
    %2 = arith.extf %1 : vector<8x32xbf16> to vector<8x32xf32>
    %c0_2 = arith.constant 0 : index
    %c0_3 = arith.constant 0 : index
    %3 = vector.load %arg5[%c0_2, %c0_3] : memref<1x32xf32, #tpu.memory_space<vmem>>, vector<1x32xf32>
    %c0_4 = arith.constant 0 : index
    %c0_5 = arith.constant 0 : index
    %4 = vector.load %arg6[%c0_4, %c0_5] : memref<1x32xf32, #tpu.memory_space<vmem>>, vector<1x32xf32>
    %cst = arith.constant dense<0.000000e+00> : vector<8xf32>
    %5 = vector.multi_reduction <add>, %2, %cst [1] : vector<8x32xf32> to vector<8xf32>
    %6 = vector.shape_cast %5 : vector<8xf32> to vector<8x1xf32>
    %cst_6 = arith.constant 3.200000e+01 : f32
    %7 = vector.broadcast %cst_6 : f32 to vector<8x1xf32>
    %8 = arith.divf %6, %7 : vector<8x1xf32>
    %9 = vector.broadcast %8 : vector<8x1xf32> to vector<8x32xf32>
    %10 = arith.subf %2, %9 : vector<8x32xf32>
    %11 = arith.mulf %10, %10 : vector<8x32xf32>
    %cst_7 = arith.constant dense<0.000000e+00> : vector<8xf32>
    %12 = vector.multi_reduction <add>, %11, %cst_7 [1] : vector<8x32xf32> to vector<8xf32>
    %13 = vector.shape_cast %12 : vector<8xf32> to vector<8x1xf32>
    %cst_8 = arith.constant 3.200000e+01 : f32
    %14 = vector.broadcast %cst_8 : f32 to vector<8x1xf32>
    %15 = arith.divf %13, %14 : vector<8x1xf32>
    %16 = vector.broadcast %8 : vector<8x1xf32> to vector<8x32xf32>
    %17 = arith.subf %2, %16 : vector<8x32xf32>
    %cst_9 = arith.constant 9.99999974E-6 : f32
    %18 = vector.broadcast %cst_9 : f32 to vector<8x1xf32>
    %19 = arith.addf %15, %18 : vector<8x1xf32>
    %20 = math.rsqrt %19 : vector<8x1xf32>
    %21 = vector.broadcast %20 : vector<8x1xf32> to vector<8x32xf32>
    %22 = arith.mulf %17, %21 : vector<8x32xf32>
    %23 = vector.broadcast %3 : vector<1x32xf32> to vector<8x32xf32>
    %24 = arith.mulf %22, %23 : vector<8x32xf32>
    %25 = vector.broadcast %4 : vector<1x32xf32> to vector<8x32xf32>
    %26 = arith.addf %24, %25 : vector<8x32xf32>
    %27 = arith.truncf %26 : vector<8x32xf32> to vector<8x32xbf16>
    %c0_10 = arith.constant 0 : index
    %c0_11 = arith.constant 0 : index
    %28 = vector.load %arg7[%c0_10, %c0_11] : memref<32x32xbf16, #tpu.memory_space<vmem>>, vector<32x32xbf16>
    %cst_12 = arith.constant dense<0.000000e+00> : vector<8x32xf32>
    %29 = tpu.matmul %27, %28, %cst_12 {dimension_numbers = #tpu.dot_dimension_numbers<[1], [0], [0], [1], [0, 0, 1, 1], [], []>} : vector<8x32xbf16>, vector<32x32xbf16>, vector<8x32xf32> -> vector<8x32xf32>
    %30 = arith.truncf %29 : vector<8x32xf32> to vector<8x32xbf16>
    %31 = vector.extract_strided_slice %30 {offsets = [0, 0], sizes = [8, 8], strides = [1, 1]} : vector<8x32xbf16> to vector<8x8xbf16>
    %c0_13 = arith.constant 0 : index
    %c0_14 = arith.constant 0 : index
    %c0_15 = arith.constant 0 : index
    %c0_16 = arith.constant 0 : index
    %32 = vector.load %arg3[%c0_13, %c0_14, %c0_15, %c0_16] : memref<1x4x8x256xbf16, #tpu.memory_space<vmem>>, vector<1x1x8x256xbf16>
    %33 = vector.shape_cast %32 : vector<1x1x8x256xbf16> to vector<8x256xbf16>
    %cst_17 = arith.constant dense<0.000000e+00> : vector<8x256xf32>
    %34 = tpu.matmul %31, %33, %cst_17 {dimension_numbers = #tpu.dot_dimension_numbers<[1], [0], [0], [1], [0, 0, 1, 1], [], []>} : vector<8x8xbf16>, vector<8x256xbf16>, vector<8x256xf32> -> vector<8x256xf32>
    %cst_18 = arith.constant dense<0xFF800000> : vector<8xf32>
    %35 = vector.multi_reduction <maximumf>, %34, %cst_18 [1] : vector<8x256xf32> to vector<8xf32>
    %36 = vector.shape_cast %35 : vector<8xf32> to vector<8x1xf32>
    %37 = vector.broadcast %36 : vector<8x1xf32> to vector<8x256xf32>
    %38 = arith.subf %34, %37 : vector<8x256xf32>
    %39 = math.exp %38 : vector<8x256xf32>
    %cst_19 = arith.constant dense<0.000000e+00> : vector<8xf32>
    %40 = vector.multi_reduction <add>, %39, %cst_19 [1] : vector<8x256xf32> to vector<8xf32>
    %41 = vector.shape_cast %40 : vector<8xf32> to vector<8x1xf32>
    %42 = tpu.reciprocal %41 {approx = true} : vector<8x1xf32> -> vector<8x1xf32>
    %43 = vector.broadcast %42 : vector<8x1xf32> to vector<8x256xf32>
    %44 = arith.mulf %39, %43 : vector<8x256xf32>
    %45 = arith.truncf %44 : vector<8x256xf32> to vector<8x256xbf16>
    %c0_20 = arith.constant 0 : index
    %c0_21 = arith.constant 0 : index
    %c0_22 = arith.constant 0 : index
    %c0_23 = arith.constant 0 : index
    %46 = vector.load %arg4[%c0_20, %c0_21, %c0_22, %c0_23] : memref<1x4x256x8xbf16, #tpu.memory_space<vmem>>, vector<1x1x256x8xbf16>
    %47 = vector.shape_cast %46 : vector<1x1x256x8xbf16> to vector<256x8xbf16>
    %cst_24 = arith.constant dense<0.000000e+00> : vector<8x8xf32>
    %48 = tpu.matmul %45, %47, %cst_24 {dimension_numbers = #tpu.dot_dimension_numbers<[1], [0], [0], [1], [0, 0, 1, 1], [], []>} : vector<8x256xbf16>, vector<256x8xbf16>, vector<8x8xf32> -> vector<8x8xf32>
    %49 = arith.truncf %48 : vector<8x8xf32> to vector<8x8xbf16>
    %c0_25 = arith.constant 0 : index
    %c0_26 = arith.constant 0 : index
    %50 = vector.load %arg17[%c0_25, %c0_26] : memref<8x32xbf16, #tpu.memory_space<vmem>>, vector<8x8xbf16>
    tpu.vector_store %arg17[%c0_25, %c0_26], %49 {strides = array<i32>} : memref<8x32xbf16, #tpu.memory_space<vmem>>, vector<8x8xbf16>,
    %51 = vector.extract_strided_slice %30 {offsets = [0, 8], sizes = [8, 8], strides = [1, 1]} : vector<8x32xbf16> to vector<8x8xbf16>
    %c0_27 = arith.constant 0 : index
    %c1 = arith.constant 1 : index
    %c0_28 = arith.constant 0 : index
    %c0_29 = arith.constant 0 : index
    %52 = vector.load %arg3[%c0_27, %c1, %c0_28, %c0_29] : memref<1x4x8x256xbf16, #tpu.memory_space<vmem>>, vector<1x1x8x256xbf16>
    %53 = vector.shape_cast %52 : vector<1x1x8x256xbf16> to vector<8x256xbf16>
    %cst_30 = arith.constant dense<0.000000e+00> : vector<8x256xf32>
    %54 = tpu.matmul %51, %53, %cst_30 {dimension_numbers = #tpu.dot_dimension_numbers<[1], [0], [0], [1], [0, 0, 1, 1], [], []>} : vector<8x8xbf16>, vector<8x256xbf16>, vector<8x256xf32> -> vector<8x256xf32>
    %cst_31 = arith.constant dense<0xFF800000> : vector<8xf32>
    %55 = vector.multi_reduction <maximumf>, %54, %cst_31 [1] : vector<8x256xf32> to vector<8xf32>
    %56 = vector.shape_cast %55 : vector<8xf32> to vector<8x1xf32>
    %57 = vector.broadcast %56 : vector<8x1xf32> to vector<8x256xf32>
    %58 = arith.subf %54, %57 : vector<8x256xf32>
    %59 = math.exp %58 : vector<8x256xf32>
    %cst_32 = arith.constant dense<0.000000e+00> : vector<8xf32>
    %60 = vector.multi_reduction <add>, %59, %cst_32 [1] : vector<8x256xf32> to vector<8xf32>
    %61 = vector.shape_cast %60 : vector<8xf32> to vector<8x1xf32>
    %62 = tpu.reciprocal %61 {approx = true} : vector<8x1xf32> -> vector<8x1xf32>
    %63 = vector.broadcast %62 : vector<8x1xf32> to vector<8x256xf32>
    %64 = arith.mulf %59, %63 : vector<8x256xf32>
    %65 = arith.truncf %64 : vector<8x256xf32> to vector<8x256xbf16>
    %c0_33 = arith.constant 0 : index
    %c1_34 = arith.constant 1 : index
    %c0_35 = arith.constant 0 : index
    %c0_36 = arith.constant 0 : index
    %66 = vector.load %arg4[%c0_33, %c1_34, %c0_35, %c0_36] : memref<1x4x256x8xbf16, #tpu.memory_space<vmem>>, vector<1x1x256x8xbf16>
    %67 = vector.shape_cast %66 : vector<1x1x256x8xbf16> to vector<256x8xbf16>
    %cst_37 = arith.constant dense<0.000000e+00> : vector<8x8xf32>
    %68 = tpu.matmul %65, %67, %cst_37 {dimension_numbers = #tpu.dot_dimension_numbers<[1], [0], [0], [1], [0, 0, 1, 1], [], []>} : vector<8x256xbf16>, vector<256x8xbf16>, vector<8x8xf32> -> vector<8x8xf32>
    %69 = arith.truncf %68 : vector<8x8xf32> to vector<8x8xbf16>
    %c0_38 = arith.constant 0 : index
    %c8 = arith.constant 8 : index
    %70 = vector.load %arg17[%c0_38, %c8] : memref<8x32xbf16, #tpu.memory_space<vmem>>, vector<8x8xbf16>
    tpu.vector_store %arg17[%c0_38, %c8], %69 {strides = array<i32>} : memref<8x32xbf16, #tpu.memory_space<vmem>>, vector<8x8xbf16>,
    %71 = vector.extract_strided_slice %30 {offsets = [0, 16], sizes = [8, 8], strides = [1, 1]} : vector<8x32xbf16> to vector<8x8xbf16>
    %c0_39 = arith.constant 0 : index
    %c2 = arith.constant 2 : index
    %c0_40 = arith.constant 0 : index
    %c0_41 = arith.constant 0 : index
    %72 = vector.load %arg3[%c0_39, %c2, %c0_40, %c0_41] : memref<1x4x8x256xbf16, #tpu.memory_space<vmem>>, vector<1x1x8x256xbf16>
    %73 = vector.shape_cast %72 : vector<1x1x8x256xbf16> to vector<8x256xbf16>
    %cst_42 = arith.constant dense<0.000000e+00> : vector<8x256xf32>
    %74 = tpu.matmul %71, %73, %cst_42 {dimension_numbers = #tpu.dot_dimension_numbers<[1], [0], [0], [1], [0, 0, 1, 1], [], []>} : vector<8x8xbf16>, vector<8x256xbf16>, vector<8x256xf32> -> vector<8x256xf32>
    %cst_43 = arith.constant dense<0xFF800000> : vector<8xf32>
    %75 = vector.multi_reduction <maximumf>, %74, %cst_43 [1] : vector<8x256xf32> to vector<8xf32>
    %76 = vector.shape_cast %75 : vector<8xf32> to vector<8x1xf32>
    %77 = vector.broadcast %76 : vector<8x1xf32> to vector<8x256xf32>
    %78 = arith.subf %74, %77 : vector<8x256xf32>
    %79 = math.exp %78 : vector<8x256xf32>
    %cst_44 = arith.constant dense<0.000000e+00> : vector<8xf32>
    %80 = vector.multi_reduction <add>, %79, %cst_44 [1] : vector<8x256xf32> to vector<8xf32>
    %81 = vector.shape_cast %80 : vector<8xf32> to vector<8x1xf32>
    %82 = tpu.reciprocal %81 {approx = true} : vector<8x1xf32> -> vector<8x1xf32>
    %83 = vector.broadcast %82 : vector<8x1xf32> to vector<8x256xf32>
    %84 = arith.mulf %79, %83 : vector<8x256xf32>
    %85 = arith.truncf %84 : vector<8x256xf32> to vector<8x256xbf16>
    %c0_45 = arith.constant 0 : index
    %c2_46 = arith.constant 2 : index
    %c0_47 = arith.constant 0 : index
    %c0_48 = arith.constant 0 : index
    %86 = vector.load %arg4[%c0_45, %c2_46, %c0_47, %c0_48] : memref<1x4x256x8xbf16, #tpu.memory_space<vmem>>, vector<1x1x256x8xbf16>
    %87 = vector.shape_cast %86 : vector<1x1x256x8xbf16> to vector<256x8xbf16>
    %cst_49 = arith.constant dense<0.000000e+00> : vector<8x8xf32>
    %88 = tpu.matmul %85, %87, %cst_49 {dimension_numbers = #tpu.dot_dimension_numbers<[1], [0], [0], [1], [0, 0, 1, 1], [], []>} : vector<8x256xbf16>, vector<256x8xbf16>, vector<8x8xf32> -> vector<8x8xf32>
    %89 = arith.truncf %88 : vector<8x8xf32> to vector<8x8xbf16>
    %c0_50 = arith.constant 0 : index
    %c16 = arith.constant 16 : index
    %90 = vector.load %arg17[%c0_50, %c16] : memref<8x32xbf16, #tpu.memory_space<vmem>>, vector<8x8xbf16>
    tpu.vector_store %arg17[%c0_50, %c16], %89 {strides = array<i32>} : memref<8x32xbf16, #tpu.memory_space<vmem>>, vector<8x8xbf16>,
    %91 = vector.extract_strided_slice %30 {offsets = [0, 24], sizes = [8, 8], strides = [1, 1]} : vector<8x32xbf16> to vector<8x8xbf16>
    %c0_51 = arith.constant 0 : index
    %c3 = arith.constant 3 : index
    %c0_52 = arith.constant 0 : index
    %c0_53 = arith.constant 0 : index
    %92 = vector.load %arg3[%c0_51, %c3, %c0_52, %c0_53] : memref<1x4x8x256xbf16, #tpu.memory_space<vmem>>, vector<1x1x8x256xbf16>
    %93 = vector.shape_cast %92 : vector<1x1x8x256xbf16> to vector<8x256xbf16>
    %cst_54 = arith.constant dense<0.000000e+00> : vector<8x256xf32>
    %94 = tpu.matmul %91, %93, %cst_54 {dimension_numbers = #tpu.dot_dimension_numbers<[1], [0], [0], [1], [0, 0, 1, 1], [], []>} : vector<8x8xbf16>, vector<8x256xbf16>, vector<8x256xf32> -> vector<8x256xf32>
    %cst_55 = arith.constant dense<0xFF800000> : vector<8xf32>
    %95 = vector.multi_reduction <maximumf>, %94, %cst_55 [1] : vector<8x256xf32> to vector<8xf32>
    %96 = vector.shape_cast %95 : vector<8xf32> to vector<8x1xf32>
    %97 = vector.broadcast %96 : vector<8x1xf32> to vector<8x256xf32>
    %98 = arith.subf %94, %97 : vector<8x256xf32>
    %99 = math.exp %98 : vector<8x256xf32>
    %cst_56 = arith.constant dense<0.000000e+00> : vector<8xf32>
    %100 = vector.multi_reduction <add>, %99, %cst_56 [1] : vector<8x256xf32> to vector<8xf32>
    %101 = vector.shape_cast %100 : vector<8xf32> to vector<8x1xf32>
    %102 = tpu.reciprocal %101 {approx = true} : vector<8x1xf32> -> vector<8x1xf32>
    %103 = vector.broadcast %102 : vector<8x1xf32> to vector<8x256xf32>
    %104 = arith.mulf %99, %103 : vector<8x256xf32>
    %105 = arith.truncf %104 : vector<8x256xf32> to vector<8x256xbf16>
    %c0_57 = arith.constant 0 : index
    %c3_58 = arith.constant 3 : index
    %c0_59 = arith.constant 0 : index
    %c0_60 = arith.constant 0 : index
    %106 = vector.load %arg4[%c0_57, %c3_58, %c0_59, %c0_60] : memref<1x4x256x8xbf16, #tpu.memory_space<vmem>>, vector<1x1x256x8xbf16>
    %107 = vector.shape_cast %106 : vector<1x1x256x8xbf16> to vector<256x8xbf16>
    %cst_61 = arith.constant dense<0.000000e+00> : vector<8x8xf32>
    %108 = tpu.matmul %105, %107, %cst_61 {dimension_numbers = #tpu.dot_dimension_numbers<[1], [0], [0], [1], [0, 0, 1, 1], [], []>} : vector<8x256xbf16>, vector<256x8xbf16>, vector<8x8xf32> -> vector<8x8xf32>
    %109 = arith.truncf %108 : vector<8x8xf32> to vector<8x8xbf16>
    %c0_62 = arith.constant 0 : index
    %c24 = arith.constant 24 : index
    %110 = vector.load %arg17[%c0_62, %c24] : memref<8x32xbf16, #tpu.memory_space<vmem>>, vector<8x8xbf16>
    tpu.vector_store %arg17[%c0_62, %c24], %109 {strides = array<i32>} : memref<8x32xbf16, #tpu.memory_space<vmem>>, vector<8x8xbf16>,
    %c0_63 = arith.constant 0 : index
    %c0_64 = arith.constant 0 : index
    %111 = vector.load %arg17[%c0_63, %c0_64] : memref<8x32xbf16, #tpu.memory_space<vmem>>, vector<8x32xbf16>
    %c0_65 = arith.constant 0 : index
    %c0_66 = arith.constant 0 : index
    %112 = vector.load %arg8[%c0_65, %c0_66] : memref<32x32xbf16, #tpu.memory_space<vmem>>, vector<32x32xbf16>
    %cst_67 = arith.constant dense<0.000000e+00> : vector<8x32xf32>
    %113 = tpu.matmul %111, %112, %cst_67 {dimension_numbers = #tpu.dot_dimension_numbers<[1], [0], [0], [1], [0, 0, 1, 1], [], []>} : vector<8x32xbf16>, vector<32x32xbf16>, vector<8x32xf32> -> vector<8x32xf32>
    %114 = arith.addf %2, %113 : vector<8x32xf32>
    %c0_68 = arith.constant 0 : index
    %c0_69 = arith.constant 0 : index
    %115 = vector.load %arg9[%c0_68, %c0_69] : memref<1x32xf32, #tpu.memory_space<vmem>>, vector<1x32xf32>
    %116 = vector.broadcast %115 : vector<1x32xf32> to vector<8x32xf32>
    %117 = arith.addf %114, %116 : vector<8x32xf32>
    %c0_70 = arith.constant 0 : index
    %c0_71 = arith.constant 0 : index
    %118 = vector.load %arg10[%c0_70, %c0_71] : memref<1x32xf32, #tpu.memory_space<vmem>>, vector<1x32xf32>
    %c0_72 = arith.constant 0 : index
    %c0_73 = arith.constant 0 : index
    %119 = vector.load %arg11[%c0_72, %c0_73] : memref<1x32xf32, #tpu.memory_space<vmem>>, vector<1x32xf32>
    %cst_74 = arith.constant dense<0.000000e+00> : vector<8xf32>
    %120 = vector.multi_reduction <add>, %117, %cst_74 [1] : vector<8x32xf32> to vector<8xf32>
    %121 = vector.shape_cast %120 : vector<8xf32> to vector<8x1xf32>
    %cst_75 = arith.constant 3.200000e+01 : f32
    %122 = vector.broadcast %cst_75 : f32 to vector<8x1xf32>
    %123 = arith.divf %121, %122 : vector<8x1xf32>
    %124 = vector.broadcast %123 : vector<8x1xf32> to vector<8x32xf32>
    %125 = arith.subf %117, %124 : vector<8x32xf32>
    %126 = arith.mulf %125, %125 : vector<8x32xf32>
    %cst_76 = arith.constant dense<0.000000e+00> : vector<8xf32>
    %127 = vector.multi_reduction <add>, %126, %cst_76 [1] : vector<8x32xf32> to vector<8xf32>
    %128 = vector.shape_cast %127 : vector<8xf32> to vector<8x1xf32>
    %cst_77 = arith.constant 3.200000e+01 : f32
    %129 = vector.broadcast %cst_77 : f32 to vector<8x1xf32>
    %130 = arith.divf %128, %129 : vector<8x1xf32>
    %131 = vector.broadcast %123 : vector<8x1xf32> to vector<8x32xf32>
    %132 = arith.subf %117, %131 : vector<8x32xf32>
    %cst_78 = arith.constant 9.99999974E-6 : f32
    %133 = vector.broadcast %cst_78 : f32 to vector<8x1xf32>
    %134 = arith.addf %130, %133 : vector<8x1xf32>
    %135 = math.rsqrt %134 : vector<8x1xf32>
    %136 = vector.broadcast %135 : vector<8x1xf32> to vector<8x32xf32>
    %137 = arith.mulf %132, %136 : vector<8x32xf32>
    %138 = vector.broadcast %118 : vector<1x32xf32> to vector<8x32xf32>
    %139 = arith.mulf %137, %138 : vector<8x32xf32>
    %140 = vector.broadcast %119 : vector<1x32xf32> to vector<8x32xf32>
    %141 = arith.addf %139, %140 : vector<8x32xf32>
    %142 = arith.truncf %141 : vector<8x32xf32> to vector<8x32xbf16>
    %c0_79 = arith.constant 0 : index
    %c0_80 = arith.constant 0 : index
    %143 = vector.load %arg12[%c0_79, %c0_80] : memref<32x128xbf16, #tpu.memory_space<vmem>>, vector<32x128xbf16>
    %cst_81 = arith.constant dense<0.000000e+00> : vector<8x128xf32>
    %144 = tpu.matmul %142, %143, %cst_81 {dimension_numbers = #tpu.dot_dimension_numbers<[1], [0], [0], [1], [0, 0, 1, 1], [], []>} : vector<8x32xbf16>, vector<32x128xbf16>, vector<8x128xf32> -> vector<8x128xf32>
    %c0_82 = arith.constant 0 : index
    %c0_83 = arith.constant 0 : index
    %145 = vector.load %arg13[%c0_82, %c0_83] : memref<1x128xf32, #tpu.memory_space<vmem>>, vector<1x128xf32>
    %146 = vector.broadcast %145 : vector<1x128xf32> to vector<8x128xf32>
    %147 = arith.addf %144, %146 : vector<8x128xf32>
    %cst_84 = arith.constant 5.000000e-01 : f32
    %148 = vector.broadcast %cst_84 : f32 to vector<8x128xf32>
    %149 = arith.mulf %148, %147 : vector<8x128xf32>
    %cst_85 = arith.constant 0.707106769 : f32
    %150 = vector.broadcast %cst_85 : f32 to vector<8x128xf32>
    %151 = arith.mulf %147, %150 : vector<8x128xf32>
    %cst_86 = arith.constant 0.000000e+00 : f32
    %152 = vector.broadcast %cst_86 : f32 to vector<8x128xf32>
    %153 = arith.cmpf oge, %151, %152 : vector<8x128xf32>
    %cst_87 = arith.constant 1.000000e+00 : f32
    %cst_88 = arith.constant -1.000000e+00 : f32
    %154 = vector.broadcast %cst_87 : f32 to vector<8x128xf32>
    %155 = vector.broadcast %cst_88 : f32 to vector<8x128xf32>
    %156 = arith.select %153, %154, %155 : vector<8x128xi1>, vector<8x128xf32>
    %157 = math.absf %151 : vector<8x128xf32>
    %cst_89 = arith.constant 0.327591091 : f32
    %158 = vector.broadcast %cst_89 : f32 to vector<8x128xf32>
    %159 = arith.mulf %158, %157 : vector<8x128xf32>
    %cst_90 = arith.constant 1.000000e+00 : f32
    %160 = vector.broadcast %cst_90 : f32 to vector<8x128xf32>
    %161 = arith.addf %160, %159 : vector<8x128xf32>
    %162 = tpu.reciprocal %161 {approx = true} : vector<8x128xf32> -> vector<8x128xf32>
    %cst_91 = arith.constant 1.06140542 : f32
    %163 = vector.broadcast %cst_91 : f32 to vector<8x128xf32>
    %164 = arith.mulf %163, %162 : vector<8x128xf32>
    %cst_92 = arith.constant -1.45315206 : f32
    %165 = vector.broadcast %cst_92 : f32 to vector<8x128xf32>
    %166 = arith.addf %164, %165 : vector<8x128xf32>
    %167 = arith.mulf %166, %162 : vector<8x128xf32>
    %cst_93 = arith.constant 1.42141378 : f32
    %168 = vector.broadcast %cst_93 : f32 to vector<8x128xf32>
    %169 = arith.addf %167, %168 : vector<8x128xf32>
    %170 = arith.mulf %169, %162 : vector<8x128xf32>
    %cst_94 = arith.constant -0.284496725 : f32
    %171 = vector.broadcast %cst_94 : f32 to vector<8x128xf32>
    %172 = arith.addf %170, %171 : vector<8x128xf32>
    %173 = arith.mulf %172, %162 : vector<8x128xf32>
    %cst_95 = arith.constant 0.254829586 : f32
    %174 = vector.broadcast %cst_95 : f32 to vector<8x128xf32>
    %175 = arith.addf %173, %174 : vector<8x128xf32>
    %176 = arith.mulf %175, %162 : vector<8x128xf32>
    %cst_96 = arith.constant 0.000000e+00 : f32
    %177 = vector.broadcast %cst_96 : f32 to vector<8x128xf32>
    %178 = arith.subf %177, %157 : vector<8x128xf32>
    %179 = arith.mulf %178, %157 : vector<8x128xf32>
    %180 = math.exp %179 : vector<8x128xf32>
    %181 = arith.mulf %176, %180 : vector<8x128xf32>
    %cst_97 = arith.constant 1.000000e+00 : f32
    %182 = vector.broadcast %cst_97 : f32 to vector<8x128xf32>
    %183 = arith.subf %182, %181 : vector<8x128xf32>
    %184 = arith.mulf %156, %183 : vector<8x128xf32>
    %cst_98 = arith.constant 1.000000e+00 : f32
    %185 = vector.broadcast %cst_98 : f32 to vector<8x128xf32>
    %186 = arith.addf %185, %184 : vector<8x128xf32>
    %187 = arith.mulf %149, %186 : vector<8x128xf32>
    %188 = arith.truncf %187 : vector<8x128xf32> to vector<8x128xbf16>
    %c0_99 = arith.constant 0 : index
    %c0_100 = arith.constant 0 : index
    %189 = vector.load %arg14[%c0_99, %c0_100] : memref<128x32xbf16, #tpu.memory_space<vmem>>, vector<128x32xbf16>
    %cst_101 = arith.constant dense<0.000000e+00> : vector<8x32xf32>
    %190 = tpu.matmul %188, %189, %cst_101 {dimension_numbers = #tpu.dot_dimension_numbers<[1], [0], [0], [1], [0, 0, 1, 1], [], []>} : vector<8x128xbf16>, vector<128x32xbf16>, vector<8x32xf32> -> vector<8x32xf32>
    %c0_102 = arith.constant 0 : index
    %c0_103 = arith.constant 0 : index
    %191 = vector.load %arg15[%c0_102, %c0_103] : memref<1x32xf32, #tpu.memory_space<vmem>>, vector<1x32xf32>
    %192 = vector.broadcast %191 : vector<1x32xf32> to vector<8x32xf32>
    %193 = arith.addf %190, %192 : vector<8x32xf32>
    %194 = arith.addf %117, %193 : vector<8x32xf32>
    %195 = arith.truncf %194 : vector<8x32xf32> to vector<8x32xbf16>
    %c0_104 = arith.constant 0 : index
    %c0_105 = arith.constant 0 : index
    %c0_106 = arith.constant 0 : index
    %196 = vector.load %arg16[%c0_104, %c0_105, %c0_106] : memref<1x8x32xbf16, #tpu.memory_space<vmem>>, vector<1x8x32xbf16>
    %197 = vector.shape_cast %196 : vector<1x8x32xbf16> to vector<8x32xbf16>
    %198 = vector.shape_cast %195 : vector<8x32xbf16> to vector<1x8x32xbf16>
    tpu.vector_store %arg16[%c0_104, %c0_105, %c0_106], %198 {strides = array<i32>} : memref<1x8x32xbf16, #tpu.memory_space<vmem>>, vector<1x8x32xbf16>,
    return
  }
  func.func @transform_0(%arg0: i32, %arg1: i32) -> (i32, i32, i32) {
    %c0_i32 = arith.constant 0 : i32
    %c0_i32_0 = arith.constant 0 : i32
    return %arg0, %arg1, %c0_i32 : i32, i32, i32
  }
  func.func @transform_1(%arg0: i32, %arg1: i32) -> (i32, i32, i32, i32) {
    %c0_i32 = arith.constant 0 : i32
    %c0_i32_0 = arith.constant 0 : i32
    %c0_i32_1 = arith.constant 0 : i32
    %c0_i32_2 = arith.constant 0 : i32
    return %arg0, %c0_i32, %c0_i32_0, %c0_i32_1 : i32, i32, i32, i32
  }
  func.func @transform_2(%arg0: i32, %arg1: i32) -> (i32, i32, i32, i32) {
    %c0_i32 = arith.constant 0 : i32
    %c0_i32_0 = arith.constant 0 : i32
    %c0_i32_1 = arith.constant 0 : i32
    %c0_i32_2 = arith.constant 0 : i32
    return %arg0, %c0_i32, %c0_i32_0, %c0_i32_1 : i32, i32, i32, i32
  }
  func.func @transform_3(%arg0: i32, %arg1: i32) -> (i32, i32) {
    %c0_i32 = arith.constant 0 : i32
    %c0_i32_0 = arith.constant 0 : i32
    %c0_i32_1 = arith.constant 0 : i32
    return %c0_i32, %c0_i32_0 : i32, i32
  }
  func.func @transform_4(%arg0: i32, %arg1: i32) -> (i32, i32) {
    %c0_i32 = arith.constant 0 : i32
    %c0_i32_0 = arith.constant 0 : i32
    %c0_i32_1 = arith.constant 0 : i32
    return %c0_i32, %c0_i32_0 : i32, i32
  }
  func.func @transform_5(%arg0: i32, %arg1: i32) -> (i32, i32) {
    %c0_i32 = arith.constant 0 : i32
    %c0_i32_0 = arith.constant 0 : i32
    %c0_i32_1 = arith.constant 0 : i32
    return %c0_i32, %c0_i32_0 : i32, i32
  }
  func.func @transform_6(%arg0: i32, %arg1: i32) -> (i32, i32) {
    %c0_i32 = arith.constant 0 : i32
    %c0_i32_0 = arith.constant 0 : i32
    %c0_i32_1 = arith.constant 0 : i32
    return %c0_i32, %c0_i32_0 : i32, i32
  }
  func.func @transform_7(%arg0: i32, %arg1: i32) -> (i32, i32) {
    %c0_i32 = arith.constant 0 : i32
    %c0_i32_0 = arith.constant 0 : i32
    %c0_i32_1 = arith.constant 0 : i32
    return %c0_i32, %c0_i32_0 : i32, i32
  }
  func.func @transform_8(%arg0: i32, %arg1: i32) -> (i32, i32) {
    %c0_i32 = arith.constant 0 : i32
    %c0_i32_0 = arith.constant 0 : i32
    %c0_i32_1 = arith.constant 0 : i32
    return %c0_i32, %c0_i32_0 : i32, i32
  }
  func.func @transform_9(%arg0: i32, %arg1: i32) -> (i32, i32) {
    %c0_i32 = arith.constant 0 : i32
    %c0_i32_0 = arith.constant 0 : i32
    %c0_i32_1 = arith.constant 0 : i32
    return %c0_i32, %c0_i32_0 : i32, i32
  }
  func.func @transform_10(%arg0: i32, %arg1: i32) -> (i32, i32) {
    %c0_i32 = arith.constant 0 : i32
    %c0_i32_0 = arith.constant 0 : i32
    %c0_i32_1 = arith.constant 0 : i32
    return %c0_i32, %c0_i32_0 : i32, i32
  }
  func.func @transform_11(%arg0: i32, %arg1: i32) -> (i32, i32) {
    %c0_i32 = arith.constant 0 : i32
    %c0_i32_0 = arith.constant 0 : i32
    %c0_i32_1 = arith.constant 0 : i32
    return %c0_i32, %c0_i32_0 : i32, i32
  }
  func.func @transform_12(%arg0: i32, %arg1: i32) -> (i32, i32) {
    %c0_i32 = arith.constant 0 : i32
    %c0_i32_0 = arith.constant 0 : i32
    %c0_i32_1 = arith.constant 0 : i32
    return %c0_i32, %c0_i32_0 : i32, i32
  }
  func.func @transform_13(%arg0: i32, %arg1: i32) -> (i32, i32) {
    %c0_i32 = arith.constant 0 : i32
    %c0_i32_0 = arith.constant 0 : i32
    %c0_i32_1 = arith.constant 0 : i32
    return %c0_i32, %c0_i32_0 : i32, i32
  }
  func.func @transform_14(%arg0: i32, %arg1: i32) -> (i32, i32, i32) {
    %c0_i32 = arith.constant 0 : i32
    %c0_i32_0 = arith.constant 0 : i32
    return %arg0, %arg1, %c0_i32 : i32, i32, i32
  }
}

</mosaic_0001>

<llo_original>
// kernel: linformer_forward.9
$region0: #{linformer_forward.9}
  #allocation0 [shape = 'u32[]', space=smem, size = 0x4, offset = 0x4, fixed_abs, tag = 'smem constant byte address 0x4 - core index']
  #allocation1 [shape = 'u32[144,128]{1,0:T(1,128)}', space=vmem, size = 0x12000, scoped, tag = 'internal scratch']
  %s0 = inlined_call_operand.vmem [shape: f32[2,1,1,32], index: 0, kind: input, shape index: {}]
  %s1 = inlined_call_operand.vmem [shape: bf16[32,2], index: 1, kind: input, shape index: {}]
  %s2 = inlined_call_operand.vmem [shape: f32[1,2], index: 2, kind: input, shape index: {}]
  %s3 = inlined_call_operand.hbm [shape: f32[2,2], index: 3, kind: output, shape index: {}]
  %s4 = sld [smem:[#allocation0]]
  $region22: #{linformer_forward.9} parent=0
    _
  %s6 = ssub.s32 1, %s4
  %s7 = scalar_select 0, %s6, %s4
  $region1: #{linformer_forward.9} parent=0
    #allocation2 [shape = 'u8[1024]{0}', space=vmem, size = 0x400, scoped, tag = 'output window, operand 0, single buffered']
    #allocation3 [shape = 's32[1]{0}', space=sflag, size = 0x4, scoped, tag = 'scoped memory for linformer_forward.9']
    %8 = vsyncpa [#allocation3], 0
    // Predicated region
    $region2: #{linformer_forward.9} parent=1 // pred_check
      _
    $region3: #{linformer_forward.9} parent=1 // pred_check_branch
      %10 = sbr.rel (0) target = $region5
    $region4: #{linformer_forward.9} parent=1 // pred_region
      _
    $region5: #{linformer_forward.9} parent=1 // pred_fallthru
      _
    // Predicated region
    $region6: #{linformer_forward.9} parent=1 // pred_check
      _
    $region7: #{linformer_forward.9} parent=1 // pred_check_branch
      %12 = sbr.rel (0) target = $region9
    $region8: #{linformer_forward.9} parent=1 // pred_region
      _
    $region9: #{linformer_forward.9} parent=1 // pred_fallthru
      _
    // Predicated region
    $region10: #{linformer_forward.9} parent=1 // pred_check
      _
    $region11: #{linformer_forward.9} parent=1 // pred_check_branch
      %14 = sbr.rel (0) target = $region13
    $region12: #{linformer_forward.9} parent=1 // pred_region
      _
    $region13: #{linformer_forward.9} parent=1 // pred_fallthru
      _
    %v16 = vld [vmem:[%s0] sm:$0x1]
    %v17 = vld [vmem:[%s0 + $0x1] sm:$0x1]
    %v18 = vadd.f32 %v16, 0.0
    %v19 = vadd.f32 %v17, 0.0
    %v20 = vmul.f32 %v18, 0.125
    %v21 = vmul.f32 %v19, 0.125
    %v22 = vpack.c.bf16 %v20, %v20
    %v23 = vpack.c.bf16 %v21, %v21
    %v24 = vld [vmem:[%s1] sm:$0xf]
    %v25 = vld [vmem:[%s1 + $0x4] sm:$0xf]
    %v26 = vld [vmem:[%s1 + $0x8] sm:$0xf]
    %v27 = vld [vmem:[%s1 + $0xc] sm:$0xf]
    %v28 = vld [vmem:[%s2] sm:$0x1]
    %v30 = vlaneseq
    %v31 = vshrl.u32 %v30, 7
    %v32 = vsub.s32 0, %v31
    %v33 = vrot.slane %v28, %v32
    %v37 = vunpack.c.l.b16 %v22
    %v38 = vunpack.c.l.b16 %v23
    %v39 = vrot.slane %v38, 7
    %vm40 = vcmask 1041409
    %v41 = vsel %vm40, %v39, %v37
    %v42 = vpack.c.b16 %v41, %v41
    %v47 = vunpack.c.l.b16 %v24
    %v48 = vunpack.c.l.b16 %v25
    %v49 = vunpack.c.l.b16 %v26
    %v50 = vunpack.c.l.b16 %v27
    %v51 = vpack.c.b16 %v48, %v47
    %v52 = vpack.c.b16 %v50, %v49
    %vm55 = vcmask 261120
    %v57 = vsel %vm55, %v42, 0
    %59 = vmatprep.subr.bf16.mxu0 0
    %60 = vmatpush1.bf16.msra.mxu0 %v51
    %61 = vmatprep.subr.bf16.mxu0 0
    %62 = vmatpush1.bf16.msra.mxu0 %v52
    %63 = vmatprep.subr.bf16.mxu0 0
    %64 = vmatpush1.bf16.msra.mxu0 0
    %65 = vmatprep.subr.bf16.mxu0 0
    %66 = vmatpush1.bf16.msra.mxu0 0
    %67 = vmatprep.subr.bf16.mxu0 0
    %68 = vmatpush1.bf16.msra.mxu0 0
    %69 = vmatprep.subr.bf16.mxu0 0
    %70 = vmatpush1.bf16.msra.mxu0 0
    %71 = vmatprep.subr.bf16.mxu0 0
    %72 = vmatpush1.bf16.msra.mxu0 0
    %73 = vmatprep.subr.bf16.mxu0 0
    %74 = vmatpush1.bf16.msra.mxu0 0
    %75 = vmatprep.subr.bf16.mxu0 0
    %76 = vmatpush1.bf16.msra.mxu0 0
    %77 = vmatprep.subr.bf16.mxu0 0
    %78 = vmatpush1.bf16.msra.mxu0 0
    %79 = vmatprep.subr.bf16.mxu0 0
    %80 = vmatpush1.bf16.msra.mxu0 0
    %81 = vmatprep.subr.bf16.mxu0 0
    %82 = vmatpush1.bf16.msra.mxu0 0
    %83 = vmatprep.subr.bf16.mxu0 0
    %84 = vmatpush1.bf16.msra.mxu0 0
    %85 = vmatprep.subr.bf16.mxu0 0
    %86 = vmatpush1.bf16.msra.mxu0 0
    %87 = vmatprep.subr.bf16.mxu0 0
    %88 = vmatpush1.bf16.msra.mxu0 0
    %89 = vmatprep.subr.bf16.mxu0 0
    %90 = vmatpush1.bf16.msra.mxu0 0
    %91 = vmatprep.mubr.bf16.mxu0 0
    %92 = vmatmul.mubr.bf16.gmra.mrb[0].mxu0 %v57
    %v93 = vpop.f32.mrb[0].mxu0
    %v94 = vadd.f32 %v33, %v93
    %v95 = vpop.f32.mrb[0].mxu0
    %v96 = vpop.f32.mrb[0].mxu0
    %v97 = vpop.f32.mrb[0].mxu0
    %98 = vdwg.mxu0
    %vm99 = vcmask 9216
    %100 = vst.msk [vmem:[#allocation2] sm:$0x3] %vm99, %v94
    // Predicated region
    $region14: #{linformer_forward.9} parent=1 // pred_check
      _
    $region15: #{linformer_forward.9} parent=1 // pred_check_branch
      %102 = sbr.rel (0) target = $region17
    $region16: #{linformer_forward.9} parent=1 // pred_region
      %s104 = ssub.s32 32, 32
      %105 = vsyncadd [#allocation3], %s104
      %s107 = sshll.u32 [#allocation2], 4
      %s108 = int_to_ptr.vmem [resolvable:$true] %s107
      %110 = dma.vmem_to_hbm [thread:$0]  %s108, 32, %s3, [#allocation3]
    $region17: #{linformer_forward.9} parent=1 // pred_fallthru
      _
    // Predicated region
    $region18: #{linformer_forward.9} parent=1 // pred_check
      _
    $region19: #{linformer_forward.9} parent=1 // pred_check_branch
      %112 = sbr.rel (0) target = $region21
    $region20: #{linformer_forward.9} parent=1 // pred_region
      %113 = dma.done [#allocation3], 32
    $region21: #{linformer_forward.9} parent=1 // pred_fallthru
      _
    %114 = vsyncpa [#allocation3], 1

// kernel: linformer_forward.8
$region0: #{linformer_forward.8}
  #allocation0 [shape = 'u32[]', space=smem, size = 0x4, offset = 0x4, fixed_abs, tag = 'smem constant byte address 0x4 - core index']
  #allocation1 [shape = 'u32[144,128]{1,0:T(1,128)}', space=vmem, size = 0x12000, scoped, tag = 'internal scratch']
  #allocation2 [shape = 'bf16[8,32]{1,0:T(8,128)(2,1)}', space=vmem, size = 0x800, scoped, tag = 'scratch operand']
  %s0 = inlined_call_operand.vmem [shape: bf16[2,8,32], index: 0, kind: input, shape index: {}]
  %s1 = inlined_call_operand.vmem [shape: bf16[2,4,8,256], index: 1, kind: input, shape index: {}]
  %s2 = inlined_call_operand.vmem [shape: bf16[2,4,256,8], index: 2, kind: input, shape index: {}]
  %s3 = inlined_call_operand.vmem [shape: f32[1,32], index: 3, kind: input, shape index: {}]
  %s4 = inlined_call_operand.vmem [shape: f32[1,32], index: 4, kind: input, shape index: {}]
  %s5 = inlined_call_operand.vmem [shape: bf16[32,32], index: 5, kind: input, shape index: {}]
  %s6 = inlined_call_operand.vmem [shape: bf16[32,32], index: 6, kind: input, shape index: {}]
  %s7 = inlined_call_operand.vmem [shape: f32[1,32], index: 7, kind: input, shape index: {}]
  %s8 = inlined_call_operand.vmem [shape: f32[1,32], index: 8, kind: input, shape index: {}]
  %s9 = inlined_call_operand.vmem [shape: f32[1,32], index: 9, kind: input, shape index: {}]
  %s10 = inlined_call_operand.vmem [shape: bf16[32,128], index: 10, kind: input, shape index: {}]
  %s11 = inlined_call_operand.vmem [shape: f32[1,128], index: 11, kind: input, shape index: {}]
  %s12 = inlined_call_operand.vmem [shape: bf16[128,32], index: 12, kind: input, shape index: {}]
  %s13 = inlined_call_operand.vmem [shape: f32[1,32], index: 13, kind: input, shape index: {}]
  %s14 = inlined_call_operand.vmem [shape: f32[2,1,1,32], index: 14, kind: output, shape index: {}]
  %s15 = sld [smem:[#allocation0]]
  $region89: #{linformer_forward.8} parent=0
    _
  %s17 = ssub.s32 1, %s15
  %s18 = scalar_select 0, %s17, %s15
  loop: start=0, step=1, limit=4
  $region2: #{linformer_forward.8} parent=0 // loop_pre_header
    _
  $region3: #{linformer_forward.8} parent=0 // loop_header
    %s20 = sphi 0, %s24
    %p21 = scmp.ge.s32.totalorder %s20, 4
    %s27 = sphi 0, %s39
    %s28 = sphi 0, %s35
    %s29 = sphi 0, %s27
    %s30 = sphi 0, %s28
    %s31 = sphi 0, %s29
    %s32 = sphi 0, %s30
    %s44 = sphi 0, %s46
    %s47 = sphi 0, %s44
    %s48 = sphi 0, %s47
    %s64 = sphi 0, %s48
    %s70 = sphi 0, %s72
    %s73 = sphi 0, %s70
    %s74 = sphi 0, %s73
    %s90 = sphi 0, %s74
    %s96 = sphi 0, %s98
    %s99 = sphi 0, %s96
    %s100 = sphi 0, %s99
    %s116 = sphi 0, %s100
    %s120 = sphi 0, %s120
    %s122 = sphi 0, %s120
    %s123 = sphi 0, %s122
    %s137 = sphi 0, %s123
    %s141 = sphi 0, %s141
    %s143 = sphi 0, %s141
    %s144 = sphi 0, %s143
    %s158 = sphi 0, %s144
    %s162 = sphi 0, %s162
    %s164 = sphi 0, %s162
    %s165 = sphi 0, %s164
    %s179 = sphi 0, %s165
    %s183 = sphi 0, %s183
    %s185 = sphi 0, %s183
    %s186 = sphi 0, %s185
    %s200 = sphi 0, %s186
    %s204 = sphi 0, %s204
    %s206 = sphi 0, %s204
    %s207 = sphi 0, %s206
    %s221 = sphi 0, %s207
    %s225 = sphi 0, %s225
    %s227 = sphi 0, %s225
    %s228 = sphi 0, %s227
    %s242 = sphi 0, %s228
    %s246 = sphi 0, %s246
    %s248 = sphi 0, %s246
    %s249 = sphi 0, %s248
    %s263 = sphi 0, %s249
    %s267 = sphi 0, %s267
    %s269 = sphi 0, %s267
    %s270 = sphi 0, %s269
    %s284 = sphi 0, %s270
    %s288 = sphi 0, %s288
    %s290 = sphi 0, %s288
    %s291 = sphi 0, %s290
    %s305 = sphi 0, %s291
    %s309 = sphi 0, %s309
    %s311 = sphi 0, %s309
    %s312 = sphi 0, %s311
    %s326 = sphi 0, %s312
    %s330 = sphi 0, %s330
    %s332 = sphi 0, %s330
    %s333 = sphi 0, %s332
    %s347 = sphi 0, %s333
    %s355 = sphi 0, %s357
    %s358 = sphi 0, %s355
    %s359 = sphi 0, %s358
    %s375 = sphi 0, %s359
  $region4: #{linformer_forward.8} parent=0 // loop_header_branch
    %23 = sbr.rel (%p21) target = $region8
  $region5: #{linformer_forward.8} parent=0 // loop_body
    %s25 = ssub.s32 %s20, 1
    %s26 = ssub.s32 %s20, 2
    %s33 = sadd.s32 1, %s28
    %p34 = scmp.ge.s32.totalorder %s33, 1
    %s35 = scalar_select %p34, 0, %s33
    %s36 = sadd.s32 1, %s27
    %s37 = scalar_select %p34, %s36, %s27
    %p38 = scmp.ge.s32.totalorder %s37, 2
    %s39 = scalar_select %p38, 0, %s37
    %s40 = ssub.s32 %s27, %s39
    %s41 = ssub.s32 %s28, %s35
    %s42 = sor.u32 %s40, %s41
    %p43 = scmp.eq.s32.totalorder %s42, 0
    %s45 = sadd.s32 %s44, 1
    %s46 = scalar_select %p43, %s44, %s45
    %p49 = pneg %p43
    %p50 = scmp.eq.s32.totalorder %s20, 1
    %p51 = por %p49, %p50
    %p52 = scmp.ne.s32.totalorder %s44, %s47
    %p53 = scmp.eq.s32.totalorder %s20, 0
    %p54 = por %p52, %p53
    %p55 = scmp.ne.s32.totalorder %s44, %s47
    %p56 = scmp.eq.s32.totalorder %s25, 1
    %p57 = por %p55, %p56
    %p58 = scmp.ne.s32.totalorder %s47, %s48
    %p59 = scmp.eq.s32.totalorder %s25, 0
    %p60 = por %p58, %p59
    %p61 = scmp.ne.s32.totalorder %s47, %s48
    %p62 = scmp.eq.s32.totalorder %s26, 1
    %p63 = por %p61, %p62
    %p65 = scmp.ne.s32.totalorder %s48, %s64
    %p66 = scmp.eq.s32.totalorder %s26, 0
    %p67 = por %p65, %p66
    %s68 = ssub.s32 %s27, %s39
    %p69 = scmp.eq.s32.totalorder %s68, 0
    %s71 = sadd.s32 %s70, 1
    %s72 = scalar_select %p69, %s70, %s71
    %p75 = pneg %p69
    %p76 = scmp.eq.s32.totalorder %s20, 1
    %p77 = por %p75, %p76
    %p78 = scmp.ne.s32.totalorder %s70, %s73
    %p79 = scmp.eq.s32.totalorder %s20, 0
    %p80 = por %p78, %p79
    %p81 = scmp.ne.s32.totalorder %s70, %s73
    %p82 = scmp.eq.s32.totalorder %s25, 1
    %p83 = por %p81, %p82
    %p84 = scmp.ne.s32.totalorder %s73, %s74
    %p85 = scmp.eq.s32.totalorder %s25, 0
    %p86 = por %p84, %p85
    %p87 = scmp.ne.s32.totalorder %s73, %s74
    %p88 = scmp.eq.s32.totalorder %s26, 1
    %p89 = por %p87, %p88
    %p91 = scmp.ne.s32.totalorder %s74, %s90
    %p92 = scmp.eq.s32.totalorder %s26, 0
    %p93 = por %p91, %p92
    %s94 = ssub.s32 %s27, %s39
    %p95 = scmp.eq.s32.totalorder %s94, 0
    %s97 = sadd.s32 %s96, 1
    %s98 = scalar_select %p95, %s96, %s97
    %p101 = pneg %p95
    %p102 = scmp.eq.s32.totalorder %s20, 1
    %p103 = por %p101, %p102
    %p104 = scmp.ne.s32.totalorder %s96, %s99
    %p105 = scmp.eq.s32.totalorder %s20, 0
    %p106 = por %p104, %p105
    %p107 = scmp.ne.s32.totalorder %s96, %s99
    %p108 = scmp.eq.s32.totalorder %s25, 1
    %p109 = por %p107, %p108
    %p110 = scmp.ne.s32.totalorder %s99, %s100
    %p111 = scmp.eq.s32.totalorder %s25, 0
    %p112 = por %p110, %p111
    %p113 = scmp.ne.s32.totalorder %s99, %s100
    %p114 = scmp.eq.s32.totalorder %s26, 1
    %p115 = por %p113, %p114
    %p117 = scmp.ne.s32.totalorder %s100, %s116
    %p118 = scmp.eq.s32.totalorder %s26, 0
    %p119 = por %p117, %p118
    %s121 = sadd.s32 %s120, 1
    %p124 = scmp.eq.s32.totalorder %s20, 1
    %p125 = scmp.ne.s32.totalorder %s120, %s122
    %p126 = scmp.eq.s32.totalorder %s20, 0
    %p127 = por %p125, %p126
    %p128 = scmp.ne.s32.totalorder %s120, %s122
    %p129 = scmp.eq.s32.totalorder %s25, 1
    %p130 = por %p128, %p129
    %p131 = scmp.ne.s32.totalorder %s122, %s123
    %p132 = scmp.eq.s32.totalorder %s25, 0
    %p133 = por %p131, %p132
    %p134 = scmp.ne.s32.totalorder %s122, %s123
    %p135 = scmp.eq.s32.totalorder %s26, 1
    %p136 = por %p134, %p135
    %p138 = scmp.ne.s32.totalorder %s123, %s137
    %p139 = scmp.eq.s32.totalorder %s26, 0
    %p140 = por %p138, %p139
    %s142 = sadd.s32 %s141, 1
    %p145 = scmp.eq.s32.totalorder %s20, 1
    %p146 = scmp.ne.s32.totalorder %s141, %s143
    %p147 = scmp.eq.s32.totalorder %s20, 0
    %p148 = por %p146, %p147
    %p149 = scmp.ne.s32.totalorder %s141, %s143
    %p150 = scmp.eq.s32.totalorder %s25, 1
    %p151 = por %p149, %p150
    %p152 = scmp.ne.s32.totalorder %s143, %s144
    %p153 = scmp.eq.s32.totalorder %s25, 0
    %p154 = por %p152, %p153
    %p155 = scmp.ne.s32.totalorder %s143, %s144
    %p156 = scmp.eq.s32.totalorder %s26, 1
    %p157 = por %p155, %p156
    %p159 = scmp.ne.s32.totalorder %s144, %s158
    %p160 = scmp.eq.s32.totalorder %s26, 0
    %p161 = por %p159, %p160
    %s163 = sadd.s32 %s162, 1
    %p166 = scmp.eq.s32.totalorder %s20, 1
    %p167 = scmp.ne.s32.totalorder %s162, %s164
    %p168 = scmp.eq.s32.totalorder %s20, 0
    %p169 = por %p167, %p168
    %p170 = scmp.ne.s32.totalorder %s162, %s164
    %p171 = scmp.eq.s32.totalorder %s25, 1
    %p172 = por %p170, %p171
    %p173 = scmp.ne.s32.totalorder %s164, %s165
    %p174 = scmp.eq.s32.totalorder %s25, 0
    %p175 = por %p173, %p174
    %p176 = scmp.ne.s32.totalorder %s164, %s165
    %p177 = scmp.eq.s32.totalorder %s26, 1
    %p178 = por %p176, %p177
    %p180 = scmp.ne.s32.totalorder %s165, %s179
    %p181 = scmp.eq.s32.totalorder %s26, 0
    %p182 = por %p180, %p181
    %s184 = sadd.s32 %s183, 1
    %p187 = scmp.eq.s32.totalorder %s20, 1
    %p188 = scmp.ne.s32.totalorder %s183, %s185
    %p189 = scmp.eq.s32.totalorder %s20, 0
    %p190 = por %p188, %p189
    %p191 = scmp.ne.s32.totalorder %s183, %s185
    %p192 = scmp.eq.s32.totalorder %s25, 1
    %p193 = por %p191, %p192
    %p194 = scmp.ne.s32.totalorder %s185, %s186
    %p195 = scmp.eq.s32.totalorder %s25, 0
    %p196 = por %p194, %p195
    %p197 = scmp.ne.s32.totalorder %s185, %s186
    %p198 = scmp.eq.s32.totalorder %s26, 1
    %p199 = por %p197, %p198
    %p201 = scmp.ne.s32.totalorder %s186, %s200
    %p202 = scmp.eq.s32.totalorder %s26, 0
    %p203 = por %p201, %p202
    %s205 = sadd.s32 %s204, 1
    %p208 = scmp.eq.s32.totalorder %s20, 1
    %p209 = scmp.ne.s32.totalorder %s204, %s206
    %p210 = scmp.eq.s32.totalorder %s20, 0
    %p211 = por %p209, %p210
    %p212 = scmp.ne.s32.totalorder %s204, %s206
    %p213 = scmp.eq.s32.totalorder %s25, 1
    %p214 = por %p212, %p213
    %p215 = scmp.ne.s32.totalorder %s206, %s207
    %p216 = scmp.eq.s32.totalorder %s25, 0
    %p217 = por %p215, %p216
    %p218 = scmp.ne.s32.totalorder %s206, %s207
    %p219 = scmp.eq.s32.totalorder %s26, 1
    %p220 = por %p218, %p219
    %p222 = scmp.ne.s32.totalorder %s207, %s221
    %p223 = scmp.eq.s32.totalorder %s26, 0
    %p224 = por %p222, %p223
    %s226 = sadd.s32 %s225, 1
    %p229 = scmp.eq.s32.totalorder %s20, 1
    %p230 = scmp.ne.s32.totalorder %s225, %s227
    %p231 = scmp.eq.s32.totalorder %s20, 0
    %p232 = por %p230, %p231
    %p233 = scmp.ne.s32.totalorder %s225, %s227
    %p234 = scmp.eq.s32.totalorder %s25, 1
    %p235 = por %p233, %p234
    %p236 = scmp.ne.s32.totalorder %s227, %s228
    %p237 = scmp.eq.s32.totalorder %s25, 0
    %p238 = por %p236, %p237
    %p239 = scmp.ne.s32.totalorder %s227, %s228
    %p240 = scmp.eq.s32.totalorder %s26, 1
    %p241 = por %p239, %p240
    %p243 = scmp.ne.s32.totalorder %s228, %s242
    %p244 = scmp.eq.s32.totalorder %s26, 0
    %p245 = por %p243, %p244
    %s247 = sadd.s32 %s246, 1
    %p250 = scmp.eq.s32.totalorder %s20, 1
    %p251 = scmp.ne.s32.totalorder %s246, %s248
    %p252 = scmp.eq.s32.totalorder %s20, 0
    %p253 = por %p251, %p252
    %p254 = scmp.ne.s32.totalorder %s246, %s248
    %p255 = scmp.eq.s32.totalorder %s25, 1
    %p256 = por %p254, %p255
    %p257 = scmp.ne.s32.totalorder %s248, %s249
    %p258 = scmp.eq.s32.totalorder %s25, 0
    %p259 = por %p257, %p258
    %p260 = scmp.ne.s32.totalorder %s248, %s249
    %p261 = scmp.eq.s32.totalorder %s26, 1
    %p262 = por %p260, %p261
    %p264 = scmp.ne.s32.totalorder %s249, %s263
    %p265 = scmp.eq.s32.totalorder %s26, 0
    %p266 = por %p264, %p265
    %s268 = sadd.s32 %s267, 1
    %p271 = scmp.eq.s32.totalorder %s20, 1
    %p272 = scmp.ne.s32.totalorder %s267, %s269
    %p273 = scmp.eq.s32.totalorder %s20, 0
    %p274 = por %p272, %p273
    %p275 = scmp.ne.s32.totalorder %s267, %s269
    %p276 = scmp.eq.s32.totalorder %s25, 1
    %p277 = por %p275, %p276
    %p278 = scmp.ne.s32.totalorder %s269, %s270
    %p279 = scmp.eq.s32.totalorder %s25, 0
    %p280 = por %p278, %p279
    %p281 = scmp.ne.s32.totalorder %s269, %s270
    %p282 = scmp.eq.s32.totalorder %s26, 1
    %p283 = por %p281, %p282
    %p285 = scmp.ne.s32.totalorder %s270, %s284
    %p286 = scmp.eq.s32.totalorder %s26, 0
    %p287 = por %p285, %p286
    %s289 = sadd.s32 %s288, 1
    %p292 = scmp.eq.s32.totalorder %s20, 1
    %p293 = scmp.ne.s32.totalorder %s288, %s290
    %p294 = scmp.eq.s32.totalorder %s20, 0
    %p295 = por %p293, %p294
    %p296 = scmp.ne.s32.totalorder %s288, %s290
    %p297 = scmp.eq.s32.totalorder %s25, 1
    %p298 = por %p296, %p297
    %p299 = scmp.ne.s32.totalorder %s290, %s291
    %p300 = scmp.eq.s32.totalorder %s25, 0
    %p301 = por %p299, %p300
    %p302 = scmp.ne.s32.totalorder %s290, %s291
    %p303 = scmp.eq.s32.totalorder %s26, 1
    %p304 = por %p302, %p303
    %p306 = scmp.ne.s32.totalorder %s291, %s305
    %p307 = scmp.eq.s32.totalorder %s26, 0
    %p308 = por %p306, %p307
    %s310 = sadd.s32 %s309, 1
    %p313 = scmp.eq.s32.totalorder %s20, 1
    %p314 = scmp.ne.s32.totalorder %s309, %s311
    %p315 = scmp.eq.s32.totalorder %s20, 0
    %p316 = por %p314, %p315
    %p317 = scmp.ne.s32.totalorder %s309, %s311
    %p318 = scmp.eq.s32.totalorder %s25, 1
    %p319 = por %p317, %p318
    %p320 = scmp.ne.s32.totalorder %s311, %s312
    %p321 = scmp.eq.s32.totalorder %s25, 0
    %p322 = por %p320, %p321
    %p323 = scmp.ne.s32.totalorder %s311, %s312
    %p324 = scmp.eq.s32.totalorder %s26, 1
    %p325 = por %p323, %p324
    %p327 = scmp.ne.s32.totalorder %s312, %s326
    %p328 = scmp.eq.s32.totalorder %s26, 0
    %p329 = por %p327, %p328
    %s331 = sadd.s32 %s330, 1
    %p334 = scmp.eq.s32.totalorder %s20, 1
    %p335 = scmp.ne.s32.totalorder %s330, %s332
    %p336 = scmp.eq.s32.totalorder %s20, 0
    %p337 = por %p335, %p336
    %p338 = scmp.ne.s32.totalorder %s330, %s332
    %p339 = scmp.eq.s32.totalorder %s25, 1
    %p340 = por %p338, %p339
    %p341 = scmp.ne.s32.totalorder %s332, %s333
    %p342 = scmp.eq.s32.totalorder %s25, 0
    %p343 = por %p341, %p342
    %p344 = scmp.ne.s32.totalorder %s332, %s333
    %p345 = scmp.eq.s32.totalorder %s26, 1
    %p346 = por %p344, %p345
    %p348 = scmp.ne.s32.totalorder %s333, %s347
    %p349 = scmp.eq.s32.totalorder %s26, 0
    %p350 = por %p348, %p349
    %s351 = ssub.s32 %s27, %s39
    %s352 = ssub.s32 %s28, %s35
    %s353 = sor.u32 %s351, %s352
    %p354 = scmp.eq.s32.totalorder %s353, 0
    %s356 = sadd.s32 %s355, 1
    %s357 = scalar_select %p354, %s355, %s356
    %p360 = pneg %p354
    %p361 = scmp.eq.s32.totalorder %s20, 1
    %p362 = por %p360, %p361
    %p363 = scmp.ne.s32.totalorder %s355, %s358
    %p364 = scmp.eq.s32.totalorder %s20, 0
    %p365 = por %p363, %p364
    %p366 = scmp.ne.s32.totalorder %s355, %s358
    %p367 = scmp.eq.s32.totalorder %s25, 1
    %p368 = por %p366, %p367
    %p369 = scmp.ne.s32.totalorder %s358, %s359
    %p370 = scmp.eq.s32.totalorder %s25, 0
    %p371 = por %p369, %p370
    %p372 = scmp.ne.s32.totalorder %s358, %s359
    %p373 = scmp.eq.s32.totalorder %s26, 1
    %p374 = por %p372, %p373
    %p376 = scmp.ne.s32.totalorder %s359, %s375
    %p377 = scmp.eq.s32.totalorder %s26, 0
    %p378 = por %p376, %p377
    %p379 = scmp.le.s32.totalorder 1, %s20
    %p380 = scmp.lt.s32.totalorder %s20, 3
    %p381 = pnand %p379, %p380
    %p382 = pneg %p381
    // Predicated region
    $region9: #{linformer_forward.8} parent=5 // pred_check
      _
    $region10: #{linformer_forward.8} parent=5 // pred_check_branch
      %384 = sbr.rel (%p381) target = $region12
    $region11: #{linformer_forward.8} parent=5 // pred_region
      %s385 = ssub.s32 %s20, 1
      // Predicated region
      $region13: #{linformer_forward.8} parent=11 // pred_check
        %p386 = pneg %p133
      $region14: #{linformer_forward.8} parent=11 // pred_check_branch
        %388 = sbr.rel (%p386) target = $region16
      $region15: #{linformer_forward.8} parent=11 // pred_region
        _
      $region16: #{linformer_forward.8} parent=11 // pred_fallthru
        _
      // Predicated region
      $region17: #{linformer_forward.8} parent=11 // pred_check
        %p389 = pneg %p154
      $region18: #{linformer_forward.8} parent=11 // pred_check_branch
        %391 = sbr.rel (%p389) target = $region20
      $region19: #{linformer_forward.8} parent=11 // pred_region
        _
      $region20: #{linformer_forward.8} parent=11 // pred_fallthru
        _
      // Predicated region
      $region21: #{linformer_forward.8} parent=11 // pred_check
        %p392 = pneg %p175
      $region22: #{linformer_forward.8} parent=11 // pred_check_branch
        %394 = sbr.rel (%p392) target = $region24
      $region23: #{linformer_forward.8} parent=11 // pred_region
        _
      $region24: #{linformer_forward.8} parent=11 // pred_fallthru
        _
      // Predicated region
      $region25: #{linformer_forward.8} parent=11 // pred_check
        %p395 = pneg %p196
      $region26: #{linformer_forward.8} parent=11 // pred_check_branch
        %397 = sbr.rel (%p395) target = $region28
      $region27: #{linformer_forward.8} parent=11 // pred_region
        _
      $region28: #{linformer_forward.8} parent=11 // pred_fallthru
        _
      // Predicated region
      $region29: #{linformer_forward.8} parent=11 // pred_check
        %p398 = pneg %p217
      $region30: #{linformer_forward.8} parent=11 // pred_check_branch
        %400 = sbr.rel (%p398) target = $region32
      $region31: #{linformer_forward.8} parent=11 // pred_region
        _
      $region32: #{linformer_forward.8} parent=11 // pred_fallthru
        _
      // Predicated region
      $region33: #{linformer_forward.8} parent=11 // pred_check
        %p401 = pneg %p238
      $region34: #{linformer_forward.8} parent=11 // pred_check_branch
        %403 = sbr.rel (%p401) target = $region36
      $region35: #{linformer_forward.8} parent=11 // pred_region
        _
      $region36: #{linformer_forward.8} parent=11 // pred_fallthru
        _
      // Predicated region
      $region37: #{linformer_forward.8} parent=11 // pred_check
        %p404 = pneg %p259
      $region38: #{linformer_forward.8} parent=11 // pred_check_branch
        %406 = sbr.rel (%p404) target = $region40
      $region39: #{linformer_forward.8} parent=11 // pred_region
        _
      $region40: #{linformer_forward.8} parent=11 // pred_fallthru
        _
      // Predicated region
      $region41: #{linformer_forward.8} parent=11 // pred_check
        %p407 = pneg %p280
      $region42: #{linformer_forward.8} parent=11 // pred_check_branch
        %409 = sbr.rel (%p407) target = $region44
      $region43: #{linformer_forward.8} parent=11 // pred_region
        _
      $region44: #{linformer_forward.8} parent=11 // pred_fallthru
        _
      // Predicated region
      $region45: #{linformer_forward.8} parent=11 // pred_check
        %p410 = pneg %p301
      $region46: #{linformer_forward.8} parent=11 // pred_check_branch
        %412 = sbr.rel (%p410) target = $region48
      $region47: #{linformer_forward.8} parent=11 // pred_region
        _
      $region48: #{linformer_forward.8} parent=11 // pred_fallthru
        _
      // Predicated region
      $region49: #{linformer_forward.8} parent=11 // pred_check
        %p413 = pneg %p322
      $region50: #{linformer_forward.8} parent=11 // pred_check_branch
        %415 = sbr.rel (%p413) target = $region52
      $region51: #{linformer_forward.8} parent=11 // pred_region
        _
      $region52: #{linformer_forward.8} parent=11 // pred_fallthru
        _
      // Predicated region
      $region53: #{linformer_forward.8} parent=11 // pred_check
        %p416 = pneg %p343
      $region54: #{linformer_forward.8} parent=11 // pred_check_branch
        %418 = sbr.rel (%p416) target = $region56
      $region55: #{linformer_forward.8} parent=11 // pred_region
        _
      $region56: #{linformer_forward.8} parent=11 // pred_fallthru
        _
    $region12: #{linformer_forward.8} parent=5 // pred_fallthru
      _
    %p419 = scmp.lt.s32.totalorder %s20, 2
    // Predicated region
    $region57: #{linformer_forward.8} parent=5 // pred_check
      %p420 = pneg %p419
    $region58: #{linformer_forward.8} parent=5 // pred_check_branch
      %422 = sbr.rel (%p420) target = $region60
    $region59: #{linformer_forward.8} parent=5 // pred_region
      // Predicated region
      $region61: #{linformer_forward.8} parent=59 // pred_check
        %p423 = pneg %p54
      $region62: #{linformer_forward.8} parent=59 // pred_check_branch
        %425 = sbr.rel (%p423) target = $region64
      $region63: #{linformer_forward.8} parent=59 // pred_region
        %p426 = scmp.lt.s32.totalorder %s27, 1
        %s427 = scalar_select %p426, %s27, 1
        %p428 = scmp.lt.s32.totalorder %s28, 0
        %s429 = scalar_select %p428, %s28, 0
        %s430 = sadd.s32 %s429, %s427
        %s431 = smul.addr %s430, 4
        %s432 = scalar_lea.vmem %s0, %s431
      $region64: #{linformer_forward.8} parent=59 // pred_fallthru
        _
      // Predicated region
      $region65: #{linformer_forward.8} parent=59 // pred_check
        %p433 = pneg %p80
      $region66: #{linformer_forward.8} parent=59 // pred_check_branch
        %435 = sbr.rel (%p433) target = $region68
      $region67: #{linformer_forward.8} parent=59 // pred_region
        %p436 = scmp.lt.s32.totalorder %s27, 1
        %s437 = scalar_select %p436, %s27, 1
        %s438 = smul.addr %s437, 8
        %s439 = smul.addr %s438, 4
        %s440 = scalar_lea.vmem %s1, %s439
      $region68: #{linformer_forward.8} parent=59 // pred_fallthru
        _
      // Predicated region
      $region69: #{linformer_forward.8} parent=59 // pred_check
        %p441 = pneg %p106
      $region70: #{linformer_forward.8} parent=59 // pred_check_branch
        %443 = sbr.rel (%p441) target = $region72
      $region71: #{linformer_forward.8} parent=59 // pred_region
        %p444 = scmp.lt.s32.totalorder %s27, 1
        %s445 = scalar_select %p444, %s27, 1
        %s446 = smul.addr %s445, 128
        %s447 = smul.addr %s446, 4
        %s448 = scalar_lea.vmem %s2, %s447
      $region72: #{linformer_forward.8} parent=59 // pred_fallthru
        _
    $region60: #{linformer_forward.8} parent=5 // pred_fallthru
      _
    %p449 = scmp.le.s32.totalorder 1, %s20
    %p450 = scmp.lt.s32.totalorder %s20, 3
    %p451 = pnand %p449, %p450
    %p452 = pneg %p451
    // Predicated region
    $region73: #{linformer_forward.8} parent=5 // pred_check
      _
    $region74: #{linformer_forward.8} parent=5 // pred_check_branch
      %454 = sbr.rel (%p451) target = $region76
    $region75: #{linformer_forward.8} parent=5 // pred_region
      %s455 = ssub.s32 %s20, 1
      %p456 = scmp.lt.s32.totalorder %s29, 1
      %s457 = scalar_select %p456, %s29, 1
      %p458 = scmp.lt.s32.totalorder %s30, 0
      %s459 = scalar_select %p458, %s30, 0
      %s460 = sadd.s32 %s459, %s457
      %s461 = smul.addr %s460, 4
      %s462 = scalar_lea.vmem %s0, %s461
      %p463 = pneg %p60
      %p464 = pneg %p57
      %p465 = scmp.lt.s32.totalorder %s29, 1
      %s466 = scalar_select %p465, %s29, 1
      %s467 = smul.addr %s466, 8
      %s468 = smul.addr %s467, 4
      %s469 = scalar_lea.vmem %s1, %s468
      %p470 = pneg %p86
      %p471 = pneg %p83
      %p472 = scmp.lt.s32.totalorder %s29, 1
      %s473 = scalar_select %p472, %s29, 1
      %s474 = smul.addr %s473, 128
      %s475 = smul.addr %s474, 4
      %s476 = scalar_lea.vmem %s2, %s475
      %p477 = pneg %p112
      %p478 = pneg %p109
      %p479 = pneg %p133
      %p480 = pneg %p130
      %p481 = pneg %p154
      %p482 = pneg %p151
      %p483 = pneg %p175
      %p484 = pneg %p172
      %p485 = pneg %p196
      %p486 = pneg %p193
      %p487 = pneg %p217
      %p488 = pneg %p214
      %p489 = pneg %p238
      %p490 = pneg %p235
      %p491 = pneg %p259
      %p492 = pneg %p256
      %p493 = pneg %p280
      %p494 = pneg %p277
      %p495 = pneg %p301
      %p496 = pneg %p298
      %p497 = pneg %p322
      %p498 = pneg %p319
      %p499 = pneg %p343
      %p500 = pneg %p340
      %p501 = pneg %p371
      %p502 = pneg %p368
      %p503 = scmp.lt.s32.totalorder %s29, 1
      %s504 = scalar_select %p503, %s29, 1
      %p505 = scmp.lt.s32.totalorder %s30, 0
      %s506 = scalar_select %p505, %s30, 0
      %s507 = sadd.s32 %s506, %s504
      %s508 = scalar_lea.vmem %s14, %s507
      %p509 = scmp.lt.s32.totalorder %s29, 1
      %s510 = scalar_select %p509, %s29, 1
      %p511 = scmp.lt.s32.totalorder %s30, 0
      %s512 = scalar_select %p511, %s30, 0
      %s513 = sadd.s32 %s512, %s510
      %s514 = smul.addr %s513, 4
      %s515 = scalar_lea.vmem %s0, %s514
      %p516 = scmp.lt.s32.totalorder %s29, 1
      %s517 = scalar_select %p516, %s29, 1
      %s518 = smul.addr %s517, 8
      %s519 = smul.addr %s518, 4
      %s520 = scalar_lea.vmem %s1, %s519
      %p521 = scmp.lt.s32.totalorder %s29, 1
      %s522 = scalar_select %p521, %s29, 1
      %s523 = smul.addr %s522, 128
      %s524 = smul.addr %s523, 4
      %s525 = scalar_lea.vmem %s2, %s524
      %p526 = scmp.lt.s32.totalorder %s29, 1
      %s527 = scalar_select %p526, %s29, 1
      %p528 = scmp.lt.s32.totalorder %s30, 0
      %s529 = scalar_select %p528, %s30, 0
      %s530 = sadd.s32 %s529, %s527
      %s531 = scalar_lea.vmem %s14, %s530
      %v533 = vld [vmem:[%s515] sm:$0xf]
      %v534 = vunpack.c.l.bf16 %v533
      %v535 = vld [vmem:[%s3] sm:$0x1]
      %v536 = vld [vmem:[%s4] sm:$0x1]
      %vm537 = vcmask 261120
      %v538 = vsel %vm537, %v534, 0.0
      %539 = vadd.xlane.f32.xlu0 %v538
      %v540 = vpop.xlane.xlu0 %539
      %v541 = vrcp.pop 32.0
      %v542 = vmul.f32 %v540, %v541
      %v543 = vsub.f32 %v534, %v542
      %v544 = vmul.f32 %v543, %v543
      %v545 = vsel %vm537, %v544, 0.0
      %546 = vadd.xlane.f32.xlu0 %v545
      %v547 = vpop.xlane.xlu0 %546
      %v548 = vmul.f32 %v547, %v541
      %v549 = vadd.f32 %v548, 1e-05
      %v550 = vrsqrt.pop %v549
      %v551 = vmul.f32 %v543, %v550
      %v553 = vlaneseq
      %v554 = vshrl.u32 %v553, 7
      %v555 = vsub.s32 0, %v554
      %v556 = vrot.slane %v535, %v555
      %v558 = vmul.f32 %v551, %v556
      %v560 = vlaneseq
      %v561 = vshrl.u32 %v560, 7
      %v562 = vsub.s32 0, %v561
      %v563 = vrot.slane %v536, %v562
      %v565 = vadd.f32 %v558, %v563
      %v566 = vpack.c.bf16 %v565, %v565
      %v567 = vld [vmem:[%s5] sm:$0xf]
      %v568 = vld [vmem:[%s5 + $0x4] sm:$0xf]
      %v569 = vld [vmem:[%s5 + $0x8] sm:$0xf]
      %v570 = vld [vmem:[%s5 + $0xc] sm:$0xf]
      %v575 = vunpack.c.l.b16 %v567
      %v576 = vunpack.c.l.b16 %v568
      %v577 = vunpack.c.l.b16 %v569
      %v578 = vunpack.c.l.b16 %v570
      %v579 = vpack.c.b16 %v576, %v575
      %v580 = vpack.c.b16 %v578, %v577
      %v584 = vsel %vm537, %v566, 0
      %586 = vmatprep.subr.bf16.mxu0 0
      %587 = vmatpush1.bf16.msra.mxu0 %v579
      %588 = vmatprep.subr.bf16.mxu0 0
      %589 = vmatpush1.bf16.msra.mxu0 %v580
      %590 = vmatprep.subr.bf16.mxu0 0
      %591 = vmatpush1.bf16.msra.mxu0 0
      %592 = vmatprep.subr.bf16.mxu0 0
      %593 = vmatpush1.bf16.msra.mxu0 0
      %594 = vmatprep.subr.bf16.mxu0 0
      %595 = vmatpush1.bf16.msra.mxu0 0
      %596 = vmatprep.subr.bf16.mxu0 0
      %597 = vmatpush1.bf16.msra.mxu0 0
      %598 = vmatprep.subr.bf16.mxu0 0
      %599 = vmatpush1.bf16.msra.mxu0 0
      %600 = vmatprep.subr.bf16.mxu0 0
      %601 = vmatpush1.bf16.msra.mxu0 0
      %602 = vmatprep.subr.bf16.mxu0 0
      %603 = vmatpush1.bf16.msra.mxu0 0
      %604 = vmatprep.subr.bf16.mxu0 0
      %605 = vmatpush1.bf16.msra.mxu0 0
      %606 = vmatprep.subr.bf16.mxu0 0
      %607 = vmatpush1.bf16.msra.mxu0 0
      %608 = vmatprep.subr.bf16.mxu0 0
      %609 = vmatpush1.bf16.msra.mxu0 0
      %610 = vmatprep.subr.bf16.mxu0 0
      %611 = vmatpush1.bf16.msra.mxu0 0
      %612 = vmatprep.subr.bf16.mxu0 0
      %613 = vmatpush1.bf16.msra.mxu0 0
      %614 = vmatprep.subr.bf16.mxu0 0
      %615 = vmatpush1.bf16.msra.mxu0 0
      %616 = vmatprep.subr.bf16.mxu0 0
      %617 = vmatpush1.bf16.msra.mxu0 0
      %618 = vmatprep.mubr.bf16.mxu0 0
      %619 = vmatmul.mubr.bf16.gmra.mrb[0].mxu0 %v584
      %v620 = vpop.f32.mrb[0].mxu0
      %v621 = vadd.f32 0.0, %v620
      %v622 = vpop.f32.mrb[0].mxu0
      %v623 = vpop.f32.mrb[0].mxu0
      %v624 = vpop.f32.mrb[0].mxu0
      %625 = vdwg.mxu0
      %v626 = vpack.c.bf16 %v621, %v621
      %v627 = vld [vmem:[%s520] sm:$0xff]
      %v629 = vunpack.c.l.b16 %v627
      %v630 = vunpack.c.h.b16 %v627
      %v631 = vpack.c.b16 %v629, %v629
      %v632 = vpack.c.b16 %v630, %v630
      %vm633 = vcmask 64512
      %v635 = vsel %vm633, %v626, 0
      %vm637 = vcmask 1043456
      %v639 = vsel %vm637, %v631, 0
      %v642 = vsel %vm637, %v632, 0
      %644 = vmatprep.subr.bf16.mxu0 %v642
      %645 = vmatpush1.bf16.msra.mxu0 %v639
      %646 = vmatprep.subr.bf16.mxu0 0
      %647 = vmatpush1.bf16.msra.mxu0 0
      %648 = vmatprep.subr.bf16.mxu0 0
      %649 = vmatpush1.bf16.msra.mxu0 0
      %650 = vmatprep.subr.bf16.mxu0 0
      %651 = vmatpush1.bf16.msra.mxu0 0
      %652 = vmatprep.subr.bf16.mxu0 0
      %653 = vmatpush1.bf16.msra.mxu0 0
      %654 = vmatprep.subr.bf16.mxu0 0
      %655 = vmatpush1.bf16.msra.mxu0 0
      %656 = vmatprep.subr.bf16.mxu0 0
      %657 = vmatpush1.bf16.msra.mxu0 0
      %658 = vmatprep.subr.bf16.mxu0 0
      %659 = vmatpush1.bf16.msra.mxu0 0
      %660 = vmatprep.subr.bf16.mxu0 0
      %661 = vmatpush1.bf16.msra.mxu0 0
      %662 = vmatprep.subr.bf16.mxu0 0
      %663 = vmatpush1.bf16.msra.mxu0 0
      %664 = vmatprep.subr.bf16.mxu0 0
      %665 = vmatpush1.bf16.msra.mxu0 0
      %666 = vmatprep.subr.bf16.mxu0 0
      %667 = vmatpush1.bf16.msra.mxu0 0
      %668 = vmatprep.subr.bf16.mxu0 0
      %669 = vmatpush1.bf16.msra.mxu0 0
      %670 = vmatprep.subr.bf16.mxu0 0
      %671 = vmatpush1.bf16.msra.mxu0 0
      %672 = vmatprep.subr.bf16.mxu0 0
      %673 = vmatpush1.bf16.msra.mxu0 0
      %674 = vmatprep.subr.bf16.mxu0 0
      %675 = vmatpush1.bf16.msra.mxu0 0
      %676 = vmatprep.mubr.bf16.mxu0 0
      %677 = vmatmul.mubr.bf16.gmra.mrb[0].mxu0 %v635
      %v678 = vpop.f32.mrb[0].mxu0
      %v679 = vadd.f32 0.0, %v678
      %v680 = vpop.f32.mrb[0].mxu0
      %v681 = vadd.f32 0.0, %v680
      %v682 = vpop.f32.mrb[0].mxu0
      %v683 = vpop.f32.mrb[0].mxu0
      %684 = vdwg.mxu0
      %v685 = vmax.f32 %v679, %v681
      %686 = vmax.xlane.f32.xlu0 %v685
      %v687 = vpop.xlane.xlu0 %686
      %v688 = vsub.f32 %v679, %v687
      %v689 = vsub.f32 %v681, %v687
      %v690 = vmul.f32 %v688, 1.442695
      %v691 = vpow.pop %v690
      %v692 = vmul.f32 %v689, 1.442695
      %v693 = vpow.pop %v692
      %v694 = vadd.f32 %v691, %v693
      %695 = vadd.xlane.f32.xlu0 %v694
      %v696 = vpop.xlane.xlu0 %695
      %v697 = vrcp.pop %v696
      %v698 = vmul.f32 %v691, %v697
      %v699 = vmul.f32 %v693, %v697
      %v700 = vpack.c.bf16 %v698, %v698
      %v701 = vpack.c.bf16 %v699, %v699
      %v702 = vld [vmem:[%s525] sm:$0xf]
      %v703 = vld [vmem:[%s525 + $0x4] sm:$0xf]
      %v704 = vld [vmem:[%s525 + $0x8] sm:$0xf]
      %v705 = vld [vmem:[%s525 + $0xc] sm:$0xf]
      %v706 = vld [vmem:[%s525 + $0x10] sm:$0xf]
      %v707 = vld [vmem:[%s525 + $0x14] sm:$0xf]
      %v708 = vld [vmem:[%s525 + $0x18] sm:$0xf]
      %v709 = vld [vmem:[%s525 + $0x1c] sm:$0xf]
      %v710 = vld [vmem:[%s525 + $0x20] sm:$0xf]
      %v711 = vld [vmem:[%s525 + $0x24] sm:$0xf]
      %v712 = vld [vmem:[%s525 + $0x28] sm:$0xf]
      %v713 = vld [vmem:[%s525 + $0x2c] sm:$0xf]
      %v714 = vld [vmem:[%s525 + $0x30] sm:$0xf]
      %v715 = vld [vmem:[%s525 + $0x34] sm:$0xf]
      %v716 = vld [vmem:[%s525 + $0x38] sm:$0xf]
      %v717 = vld [vmem:[%s525 + $0x3c] sm:$0xf]
      %v718 = vld [vmem:[%s525 + $0x40] sm:$0xf]
      %v719 = vld [vmem:[%s525 + $0x44] sm:$0xf]
      %v720 = vld [vmem:[%s525 + $0x48] sm:$0xf]
      %v721 = vld [vmem:[%s525 + $0x4c] sm:$0xf]
      %v722 = vld [vmem:[%s525 + $0x50] sm:$0xf]
      %v723 = vld [vmem:[%s525 + $0x54] sm:$0xf]
      %v724 = vld [vmem:[%s525 + $0x58] sm:$0xf]
      %v725 = vld [vmem:[%s525 + $0x5c] sm:$0xf]
      %v726 = vld [vmem:[%s525 + $0x60] sm:$0xf]
      %v727 = vld [vmem:[%s525 + $0x64] sm:$0xf]
      %v728 = vld [vmem:[%s525 + $0x68] sm:$0xf]
      %v729 = vld [vmem:[%s525 + $0x6c] sm:$0xf]
      %v730 = vld [vmem:[%s525 + $0x70] sm:$0xf]
      %v731 = vld [vmem:[%s525 + $0x74] sm:$0xf]
      %v732 = vld [vmem:[%s525 + $0x78] sm:$0xf]
      %v733 = vld [vmem:[%s525 + $0x7c] sm:$0xf]
      %v766 = vunpack.c.l.b16 %v702
      %v767 = vunpack.c.l.b16 %v703
      %v768 = vunpack.c.l.b16 %v704
      %v769 = vunpack.c.l.b16 %v705
      %v770 = vunpack.c.l.b16 %v706
      %v771 = vunpack.c.l.b16 %v707
      %v772 = vunpack.c.l.b16 %v708
      %v773 = vunpack.c.l.b16 %v709
      %v774 = vunpack.c.l.b16 %v710
      %v775 = vunpack.c.l.b16 %v711
      %v776 = vunpack.c.l.b16 %v712
      %v777 = vunpack.c.l.b16 %v713
      %v778 = vunpack.c.l.b16 %v714
      %v779 = vunpack.c.l.b16 %v715
      %v780 = vunpack.c.l.b16 %v716
      %v781 = vunpack.c.l.b16 %v717
      %v782 = vunpack.c.l.b16 %v718
      %v783 = vunpack.c.l.b16 %v719
      %v784 = vunpack.c.l.b16 %v720
      %v785 = vunpack.c.l.b16 %v721
      %v786 = vunpack.c.l.b16 %v722
      %v787 = vunpack.c.l.b16 %v723
      %v788 = vunpack.c.l.b16 %v724
      %v789 = vunpack.c.l.b16 %v725
      %v790 = vunpack.c.l.b16 %v726
      %v791 = vunpack.c.l.b16 %v727
      %v792 = vunpack.c.l.b16 %v728
      %v793 = vunpack.c.l.b16 %v729
      %v794 = vunpack.c.l.b16 %v730
      %v795 = vunpack.c.l.b16 %v731
      %v796 = vunpack.c.l.b16 %v732
      %v797 = vunpack.c.l.b16 %v733
      %v798 = vpack.c.b16 %v767, %v766
      %v799 = vpack.c.b16 %v769, %v768
      %v800 = vpack.c.b16 %v771, %v770
      %v801 = vpack.c.b16 %v773, %v772
      %v802 = vpack.c.b16 %v775, %v774
      %v803 = vpack.c.b16 %v777, %v776
      %v804 = vpack.c.b16 %v779, %v778
      %v805 = vpack.c.b16 %v781, %v780
      %v806 = vpack.c.b16 %v783, %v782
      %v807 = vpack.c.b16 %v785, %v784
      %v808 = vpack.c.b16 %v787, %v786
      %v809 = vpack.c.b16 %v789, %v788
      %v810 = vpack.c.b16 %v791, %v790
      %v811 = vpack.c.b16 %v793, %v792
      %v812 = vpack.c.b16 %v795, %v794
      %v813 = vpack.c.b16 %v797, %v796
      %830 = vmatprep.subr.bf16.mxu0 0
      %831 = vmatpush1.bf16.msra.mxu0 %v798
      %832 = vmatprep.subr.bf16.mxu0 0
      %833 = vmatpush1.bf16.msra.mxu0 %v799
      %834 = vmatprep.subr.bf16.mxu0 0
      %835 = vmatpush1.bf16.msra.mxu0 %v800
      %836 = vmatprep.subr.bf16.mxu0 0
      %837 = vmatpush1.bf16.msra.mxu0 %v801
      %838 = vmatprep.subr.bf16.mxu0 0
      %839 = vmatpush1.bf16.msra.mxu0 %v802
      %840 = vmatprep.subr.bf16.mxu0 0
      %841 = vmatpush1.bf16.msra.mxu0 %v803
      %842 = vmatprep.subr.bf16.mxu0 0
      %843 = vmatpush1.bf16.msra.mxu0 %v804
      %844 = vmatprep.subr.bf16.mxu0 0
      %845 = vmatpush1.bf16.msra.mxu0 %v805
      %846 = vmatprep.subr.bf16.mxu0 0
      %847 = vmatpush1.bf16.msra.mxu0 %v806
      %848 = vmatprep.subr.bf16.mxu0 0
      %849 = vmatpush1.bf16.msra.mxu0 %v807
      %850 = vmatprep.subr.bf16.mxu0 0
      %851 = vmatpush1.bf16.msra.mxu0 %v808
      %852 = vmatprep.subr.bf16.mxu0 0
      %853 = vmatpush1.bf16.msra.mxu0 %v809
      %854 = vmatprep.subr.bf16.mxu0 0
      %855 = vmatpush1.bf16.msra.mxu0 %v810
      %856 = vmatprep.subr.bf16.mxu0 0
      %857 = vmatpush1.bf16.msra.mxu0 %v811
      %858 = vmatprep.subr.bf16.mxu0 0
      %859 = vmatpush1.bf16.msra.mxu0 %v812
      %860 = vmatprep.subr.bf16.mxu0 0
      %861 = vmatpush1.bf16.msra.mxu0 %v813
      %862 = vmatprep.mubr.bf16.mxu0 %v701
      %863 = vmatmul.mubr.bf16.gmra.mrb[0].mxu0 %v700
      %v864 = vpop.f32.mrb[0].mxu0
      %v865 = vadd.f32 0.0, %v864
      %v866 = vpop.f32.mrb[0].mxu0
      %v867 = vpop.f32.mrb[0].mxu0
      %v868 = vpop.f32.mrb[0].mxu0
      %869 = vdwg.mxu0
      %v870 = vpack.c.bf16 %v865, %v865
      %vm871 = vcmask 60416
      %872 = vst.msk [vmem:[#allocation2] sm:$0xf] %vm871, %v870
      %s873 = scalar_lea.vmem %s520, 8
      %v874 = vld [vmem:[%s873] sm:$0xff]
      %876 = vrot.lane.b32.xlu0 %v626, 120
      %v877 = vpop.permute.xlu0 %876
      %v879 = vunpack.c.l.b16 %v874
      %v880 = vunpack.c.h.b16 %v874
      %v881 = vpack.c.b16 %v879, %v879
      %v882 = vpack.c.b16 %v880, %v880
      %v884 = vsel %vm633, %v877, 0
      %v887 = vsel %vm637, %v881, 0
      %v890 = vsel %vm637, %v882, 0
      %892 = vmatprep.subr.bf16.mxu0 %v890
      %893 = vmatpush1.bf16.msra.mxu0 %v887
      %894 = vmatprep.subr.bf16.mxu0 0
      %895 = vmatpush1.bf16.msra.mxu0 0
      %896 = vmatprep.subr.bf16.mxu0 0
      %897 = vmatpush1.bf16.msra.mxu0 0
      %898 = vmatprep.subr.bf16.mxu0 0
      %899 = vmatpush1.bf16.msra.mxu0 0
      %900 = vmatprep.subr.bf16.mxu0 0
      %901 = vmatpush1.bf16.msra.mxu0 0
      %902 = vmatprep.subr.bf16.mxu0 0
      %903 = vmatpush1.bf16.msra.mxu0 0
      %904 = vmatprep.subr.bf16.mxu0 0
      %905 = vmatpush1.bf16.msra.mxu0 0
      %906 = vmatprep.subr.bf16.mxu0 0
      %907 = vmatpush1.bf16.msra.mxu0 0
      %908 = vmatprep.subr.bf16.mxu0 0
      %909 = vmatpush1.bf16.msra.mxu0 0
      %910 = vmatprep.subr.bf16.mxu0 0
      %911 = vmatpush1.bf16.msra.mxu0 0
      %912 = vmatprep.subr.bf16.mxu0 0
      %913 = vmatpush1.bf16.msra.mxu0 0
      %914 = vmatprep.subr.bf16.mxu0 0
      %915 = vmatpush1.bf16.msra.mxu0 0
      %916 = vmatprep.subr.bf16.mxu0 0
      %917 = vmatpush1.bf16.msra.mxu0 0
      %918 = vmatprep.subr.bf16.mxu0 0
      %919 = vmatpush1.bf16.msra.mxu0 0
      %920 = vmatprep.subr.bf16.mxu0 0
      %921 = vmatpush1.bf16.msra.mxu0 0
      %922 = vmatprep.subr.bf16.mxu0 0
      %923 = vmatpush1.bf16.msra.mxu0 0
      %924 = vmatprep.mubr.bf16.mxu0 0
      %925 = vmatmul.mubr.bf16.gmra.mrb[0].mxu0 %v884
      %v926 = vpop.f32.mrb[0].mxu0
      %v927 = vadd.f32 0.0, %v926
      %v928 = vpop.f32.mrb[0].mxu0
      %v929 = vadd.f32 0.0, %v928
      %v930 = vpop.f32.mrb[0].mxu0
      %v931 = vpop.f32.mrb[0].mxu0
      %932 = vdwg.mxu0
      %v933 = vmax.f32 %v927, %v929
      %934 = vmax.xlane.f32.xlu0 %v933
      %v935 = vpop.xlane.xlu0 %934
      %v936 = vsub.f32 %v927, %v935
      %v937 = vsub.f32 %v929, %v935
      %v938 = vmul.f32 %v936, 1.442695
      %v939 = vpow.pop %v938
      %v940 = vmul.f32 %v937, 1.442695
      %v941 = vpow.pop %v940
      %v942 = vadd.f32 %v939, %v941
      %943 = vadd.xlane.f32.xlu0 %v942
      %v944 = vpop.xlane.xlu0 %943
      %v945 = vrcp.pop %v944
      %v946 = vmul.f32 %v939, %v945
      %v947 = vmul.f32 %v941, %v945
      %v948 = vpack.c.bf16 %v946, %v946
      %v949 = vpack.c.bf16 %v947, %v947
      %s950 = scalar_lea.vmem %s525, 128
      %v951 = vld [vmem:[%s950] sm:$0xf]
      %v952 = vld [vmem:[%s950 + $0x4] sm:$0xf]
      %v953 = vld [vmem:[%s950 + $0x8] sm:$0xf]
      %v954 = vld [vmem:[%s950 + $0xc] sm:$0xf]
      %v955 = vld [vmem:[%s950 + $0x10] sm:$0xf]
      %v956 = vld [vmem:[%s950 + $0x14] sm:$0xf]
      %v957 = vld [vmem:[%s950 + $0x18] sm:$0xf]
      %v958 = vld [vmem:[%s950 + $0x1c] sm:$0xf]
      %v959 = vld [vmem:[%s950 + $0x20] sm:$0xf]
      %v960 = vld [vmem:[%s950 + $0x24] sm:$0xf]
      %v961 = vld [vmem:[%s950 + $0x28] sm:$0xf]
      %v962 = vld [vmem:[%s950 + $0x2c] sm:$0xf]
      %v963 = vld [vmem:[%s950 + $0x30] sm:$0xf]
      %v964 = vld [vmem:[%s950 + $0x34] sm:$0xf]
      %v965 = vld [vmem:[%s950 + $0x38] sm:$0xf]
      %v966 = vld [vmem:[%s950 + $0x3c] sm:$0xf]
      %v967 = vld [vmem:[%s950 + $0x40] sm:$0xf]
      %v968 = vld [vmem:[%s950 + $0x44] sm:$0xf]
      %v969 = vld [vmem:[%s950 + $0x48] sm:$0xf]
      %v970 = vld [vmem:[%s950 + $0x4c] sm:$0xf]
      %v971 = vld [vmem:[%s950 + $0x50] sm:$0xf]
      %v972 = vld [vmem:[%s950 + $0x54] sm:$0xf]
      %v973 = vld [vmem:[%s950 + $0x58] sm:$0xf]
      %v974 = vld [vmem:[%s950 + $0x5c] sm:$0xf]
      %v975 = vld [vmem:[%s950 + $0x60] sm:$0xf]
      %v976 = vld [vmem:[%s950 + $0x64] sm:$0xf]
      %v977 = vld [vmem:[%s950 + $0x68] sm:$0xf]
      %v978 = vld [vmem:[%s950 + $0x6c] sm:$0xf]
      %v979 = vld [vmem:[%s950 + $0x70] sm:$0xf]
      %v980 = vld [vmem:[%s950 + $0x74] sm:$0xf]
      %v981 = vld [vmem:[%s950 + $0x78] sm:$0xf]
      %v982 = vld [vmem:[%s950 + $0x7c] sm:$0xf]
      %v1015 = vunpack.c.l.b16 %v951
      %v1016 = vunpack.c.l.b16 %v952
      %v1017 = vunpack.c.l.b16 %v953
      %v1018 = vunpack.c.l.b16 %v954
      %v1019 = vunpack.c.l.b16 %v955
      %v1020 = vunpack.c.l.b16 %v956
      %v1021 = vunpack.c.l.b16 %v957
      %v1022 = vunpack.c.l.b16 %v958
      %v1023 = vunpack.c.l.b16 %v959
      %v1024 = vunpack.c.l.b16 %v960
      %v1025 = vunpack.c.l.b16 %v961
      %v1026 = vunpack.c.l.b16 %v962
      %v1027 = vunpack.c.l.b16 %v963
      %v1028 = vunpack.c.l.b16 %v964
      %v1029 = vunpack.c.l.b16 %v965
      %v1030 = vunpack.c.l.b16 %v966
      %v1031 = vunpack.c.l.b16 %v967
      %v1032 = vunpack.c.l.b16 %v968
      %v1033 = vunpack.c.l.b16 %v969
      %v1034 = vunpack.c.l.b16 %v970
      %v1035 = vunpack.c.l.b16 %v971
      %v1036 = vunpack.c.l.b16 %v972
      %v1037 = vunpack.c.l.b16 %v973
      %v1038 = vunpack.c.l.b16 %v974
      %v1039 = vunpack.c.l.b16 %v975
      %v1040 = vunpack.c.l.b16 %v976
      %v1041 = vunpack.c.l.b16 %v977
      %v1042 = vunpack.c.l.b16 %v978
      %v1043 = vunpack.c.l.b16 %v979
      %v1044 = vunpack.c.l.b16 %v980
      %v1045 = vunpack.c.l.b16 %v981
      %v1046 = vunpack.c.l.b16 %v982
      %v1047 = vpack.c.b16 %v1016, %v1015
      %v1048 = vpack.c.b16 %v1018, %v1017
      %v1049 = vpack.c.b16 %v1020, %v1019
      %v1050 = vpack.c.b16 %v1022, %v1021
      %v1051 = vpack.c.b16 %v1024, %v1023
      %v1052 = vpack.c.b16 %v1026, %v1025
      %v1053 = vpack.c.b16 %v1028, %v1027
      %v1054 = vpack.c.b16 %v1030, %v1029
      %v1055 = vpack.c.b16 %v1032, %v1031
      %v1056 = vpack.c.b16 %v1034, %v1033
      %v1057 = vpack.c.b16 %v1036, %v1035
      %v1058 = vpack.c.b16 %v1038, %v1037
      %v1059 = vpack.c.b16 %v1040, %v1039
      %v1060 = vpack.c.b16 %v1042, %v1041
      %v1061 = vpack.c.b16 %v1044, %v1043
      %v1062 = vpack.c.b16 %v1046, %v1045
      %1079 = vmatprep.subr.bf16.mxu0 0
      %1080 = vmatpush1.bf16.msra.mxu0 %v1047
      %1081 = vmatprep.subr.bf16.mxu0 0
      %1082 = vmatpush1.bf16.msra.mxu0 %v1048
      %1083 = vmatprep.subr.bf16.mxu0 0
      %1084 = vmatpush1.bf16.msra.mxu0 %v1049
      %1085 = vmatprep.subr.bf16.mxu0 0
      %1086 = vmatpush1.bf16.msra.mxu0 %v1050
      %1087 = vmatprep.subr.bf16.mxu0 0
      %1088 = vmatpush1.bf16.msra.mxu0 %v1051
      %1089 = vmatprep.subr.bf16.mxu0 0
      %1090 = vmatpush1.bf16.msra.mxu0 %v1052
      %1091 = vmatprep.subr.bf16.mxu0 0
      %1092 = vmatpush1.bf16.msra.mxu0 %v1053
      %1093 = vmatprep.subr.bf16.mxu0 0
      %1094 = vmatpush1.bf16.msra.mxu0 %v1054
      %1095 = vmatprep.subr.bf16.mxu0 0
      %1096 = vmatpush1.bf16.msra.mxu0 %v1055
      %1097 = vmatprep.subr.bf16.mxu0 0
      %1098 = vmatpush1.bf16.msra.mxu0 %v1056
      %1099 = vmatprep.subr.bf16.mxu0 0
      %1100 = vmatpush1.bf16.msra.mxu0 %v1057
      %1101 = vmatprep.subr.bf16.mxu0 0
      %1102 = vmatpush1.bf16.msra.mxu0 %v1058
      %1103 = vmatprep.subr.bf16.mxu0 0
      %1104 = vmatpush1.bf16.msra.mxu0 %v1059
      %1105 = vmatprep.subr.bf16.mxu0 0
      %1106 = vmatpush1.bf16.msra.mxu0 %v1060
      %1107 = vmatprep.subr.bf16.mxu0 0
      %1108 = vmatpush1.bf16.msra.mxu0 %v1061
      %1109 = vmatprep.subr.bf16.mxu0 0
      %1110 = vmatpush1.bf16.msra.mxu0 %v1062
      %1111 = vmatprep.mubr.bf16.mxu0 %v949
      %1112 = vmatmul.mubr.bf16.gmra.mrb[0].mxu0 %v948
      %v1113 = vpop.f32.mrb[0].mxu0
      %v1114 = vadd.f32 0.0, %v1113
      %v1115 = vpop.f32.mrb[0].mxu0
      %v1116 = vpop.f32.mrb[0].mxu0
      %v1117 = vpop.f32.mrb[0].mxu0
      %1118 = vdwg.mxu0
      %v1119 = vpack.c.bf16 %v1114, %v1114
      %v1121 = vunpack.c.l.b16 %v1119
      %v1122 = vpack.c.b16 %v1121, %v1121
      %1123 = vrot.lane.b32.xlu0 %v1122, 8
      %v1124 = vpop.permute.xlu0 %1123
      %vm1126 = vcmask 126016
      %1127 = vst.msk [vmem:[#allocation2] sm:$0xf] %vm1126, %v1124
      %s1128 = scalar_lea.vmem %s520, 16
      %v1129 = vld [vmem:[%s1128] sm:$0xff]
      %1130 = vrot.lane.b32.xlu0 %v626, 112
      %v1131 = vpop.permute.xlu0 %1130
      %v1133 = vunpack.c.l.b16 %v1129
      %v1134 = vunpack.c.h.b16 %v1129
      %v1135 = vpack.c.b16 %v1133, %v1133
      %v1136 = vpack.c.b16 %v1134, %v1134
      %v1138 = vsel %vm633, %v1131, 0
      %v1141 = vsel %vm637, %v1135, 0
      %v1144 = vsel %vm637, %v1136, 0
      %1146 = vmatprep.subr.bf16.mxu0 %v1144
      %1147 = vmatpush1.bf16.msra.mxu0 %v1141
      %1148 = vmatprep.subr.bf16.mxu0 0
      %1149 = vmatpush1.bf16.msra.mxu0 0
      %1150 = vmatprep.subr.bf16.mxu0 0
      %1151 = vmatpush1.bf16.msra.mxu0 0
      %1152 = vmatprep.subr.bf16.mxu0 0
      %1153 = vmatpush1.bf16.msra.mxu0 0
      %1154 = vmatprep.subr.bf16.mxu0 0
      %1155 = vmatpush1.bf16.msra.mxu0 0
      %1156 = vmatprep.subr.bf16.mxu0 0
      %1157 = vmatpush1.bf16.msra.mxu0 0
      %1158 = vmatprep.subr.bf16.mxu0 0
      %1159 = vmatpush1.bf16.msra.mxu0 0
      %1160 = vmatprep.subr.bf16.mxu0 0
      %1161 = vmatpush1.bf16.msra.mxu0 0
      %1162 = vmatprep.subr.bf16.mxu0 0
      %1163 = vmatpush1.bf16.msra.mxu0 0
      %1164 = vmatprep.subr.bf16.mxu0 0
      %1165 = vmatpush1.bf16.msra.mxu0 0
      %1166 = vmatprep.subr.bf16.mxu0 0
      %1167 = vmatpush1.bf16.msra.mxu0 0
      %1168 = vmatprep.subr.bf16.mxu0 0
      %1169 = vmatpush1.bf16.msra.mxu0 0
      %1170 = vmatprep.subr.bf16.mxu0 0
      %1171 = vmatpush1.bf16.msra.mxu0 0
      %1172 = vmatprep.subr.bf16.mxu0 0
      %1173 = vmatpush1.bf16.msra.mxu0 0
      %1174 = vmatprep.subr.bf16.mxu0 0
      %1175 = vmatpush1.bf16.msra.mxu0 0
      %1176 = vmatprep.subr.bf16.mxu0 0
      %1177 = vmatpush1.bf16.msra.mxu0 0
      %1178 = vmatprep.mubr.bf16.mxu0 0
      %1179 = vmatmul.mubr.bf16.gmra.mrb[0].mxu0 %v1138
      %v1180 = vpop.f32.mrb[0].mxu0
      %v1181 = vadd.f32 0.0, %v1180
      %v1182 = vpop.f32.mrb[0].mxu0
      %v1183 = vadd.f32 0.0, %v1182
      %v1184 = vpop.f32.mrb[0].mxu0
      %v1185 = vpop.f32.mrb[0].mxu0
      %1186 = vdwg.mxu0
      %v1187 = vmax.f32 %v1181, %v1183
      %1188 = vmax.xlane.f32.xlu0 %v1187
      %v1189 = vpop.xlane.xlu0 %1188
      %v1190 = vsub.f32 %v1181, %v1189
      %v1191 = vsub.f32 %v1183, %v1189
      %v1192 = vmul.f32 %v1190, 1.442695
      %v1193 = vpow.pop %v1192
      %v1194 = vmul.f32 %v1191, 1.442695
      %v1195 = vpow.pop %v1194
      %v1196 = vadd.f32 %v1193, %v1195
      %1197 = vadd.xlane.f32.xlu0 %v1196
      %v1198 = vpop.xlane.xlu0 %1197
      %v1199 = vrcp.pop %v1198
      %v1200 = vmul.f32 %v1193, %v1199
      %v1201 = vmul.f32 %v1195, %v1199
      %v1202 = vpack.c.bf16 %v1200, %v1200
      %v1203 = vpack.c.bf16 %v1201, %v1201
      %s1204 = scalar_lea.vmem %s525, 256
      %v1205 = vld [vmem:[%s1204] sm:$0xf]
      %v1206 = vld [vmem:[%s1204 + $0x4] sm:$0xf]
      %v1207 = vld [vmem:[%s1204 + $0x8] sm:$0xf]
      %v1208 = vld [vmem:[%s1204 + $0xc] sm:$0xf]
      %v1209 = vld [vmem:[%s1204 + $0x10] sm:$0xf]
      %v1210 = vld [vmem:[%s1204 + $0x14] sm:$0xf]
      %v1211 = vld [vmem:[%s1204 + $0x18] sm:$0xf]
      %v1212 = vld [vmem:[%s1204 + $0x1c] sm:$0xf]
      %v1213 = vld [vmem:[%s1204 + $0x20] sm:$0xf]
      %v1214 = vld [vmem:[%s1204 + $0x24] sm:$0xf]
      %v1215 = vld [vmem:[%s1204 + $0x28] sm:$0xf]
      %v1216 = vld [vmem:[%s1204 + $0x2c] sm:$0xf]
      %v1217 = vld [vmem:[%s1204 + $0x30] sm:$0xf]
      %v1218 = vld [vmem:[%s1204 + $0x34] sm:$0xf]
      %v1219 = vld [vmem:[%s1204 + $0x38] sm:$0xf]
      %v1220 = vld [vmem:[%s1204 + $0x3c] sm:$0xf]
      %v1221 = vld [vmem:[%s1204 + $0x40] sm:$0xf]
      %v1222 = vld [vmem:[%s1204 + $0x44] sm:$0xf]
      %v1223 = vld [vmem:[%s1204 + $0x48] sm:$0xf]
      %v1224 = vld [vmem:[%s1204 + $0x4c] sm:$0xf]
      %v1225 = vld [vmem:[%s1204 + $0x50] sm:$0xf]
      %v1226 = vld [vmem:[%s1204 + $0x54] sm:$0xf]
      %v1227 = vld [vmem:[%s1204 + $0x58] sm:$0xf]
      %v1228 = vld [vmem:[%s1204 + $0x5c] sm:$0xf]
      %v1229 = vld [vmem:[%s1204 + $0x60] sm:$0xf]
      %v1230 = vld [vmem:[%s1204 + $0x64] sm:$0xf]
      %v1231 = vld [vmem:[%s1204 + $0x68] sm:$0xf]
      %v1232 = vld [vmem:[%s1204 + $0x6c] sm:$0xf]
      %v1233 = vld [vmem:[%s1204 + $0x70] sm:$0xf]
      %v1234 = vld [vmem:[%s1204 + $0x74] sm:$0xf]
      %v1235 = vld [vmem:[%s1204 + $0x78] sm:$0xf]
      %v1236 = vld [vmem:[%s1204 + $0x7c] sm:$0xf]
      %v1269 = vunpack.c.l.b16 %v1205
      %v1270 = vunpack.c.l.b16 %v1206
      %v1271 = vunpack.c.l.b16 %v1207
      %v1272 = vunpack.c.l.b16 %v1208
      %v1273 = vunpack.c.l.b16 %v1209
      %v1274 = vunpack.c.l.b16 %v1210
      %v1275 = vunpack.c.l.b16 %v1211
      %v1276 = vunpack.c.l.b16 %v1212
      %v1277 = vunpack.c.l.b16 %v1213
      %v1278 = vunpack.c.l.b16 %v1214
      %v1279 = vunpack.c.l.b16 %v1215
      %v1280 = vunpack.c.l.b16 %v1216
      %v1281 = vunpack.c.l.b16 %v1217
      %v1282 = vunpack.c.l.b16 %v1218
      %v1283 = vunpack.c.l.b16 %v1219
      %v1284 = vunpack.c.l.b16 %v1220
      %v1285 = vunpack.c.l.b16 %v1221
      %v1286 = vunpack.c.l.b16 %v1222
      %v1287 = vunpack.c.l.b16 %v1223
      %v1288 = vunpack.c.l.b16 %v1224
      %v1289 = vunpack.c.l.b16 %v1225
      %v1290 = vunpack.c.l.b16 %v1226
      %v1291 = vunpack.c.l.b16 %v1227
      %v1292 = vunpack.c.l.b16 %v1228
      %v1293 = vunpack.c.l.b16 %v1229
      %v1294 = vunpack.c.l.b16 %v1230
      %v1295 = vunpack.c.l.b16 %v1231
      %v1296 = vunpack.c.l.b16 %v1232
      %v1297 = vunpack.c.l.b16 %v1233
      %v1298 = vunpack.c.l.b16 %v1234
      %v1299 = vunpack.c.l.b16 %v1235
      %v1300 = vunpack.c.l.b16 %v1236
      %v1301 = vpack.c.b16 %v1270, %v1269
      %v1302 = vpack.c.b16 %v1272, %v1271
      %v1303 = vpack.c.b16 %v1274, %v1273
      %v1304 = vpack.c.b16 %v1276, %v1275
      %v1305 = vpack.c.b16 %v1278, %v1277
      %v1306 = vpack.c.b16 %v1280, %v1279
      %v1307 = vpack.c.b16 %v1282, %v1281
      %v1308 = vpack.c.b16 %v1284, %v1283
      %v1309 = vpack.c.b16 %v1286, %v1285
      %v1310 = vpack.c.b16 %v1288, %v1287
      %v1311 = vpack.c.b16 %v1290, %v1289
      %v1312 = vpack.c.b16 %v1292, %v1291
      %v1313 = vpack.c.b16 %v1294, %v1293
      %v1314 = vpack.c.b16 %v1296, %v1295
      %v1315 = vpack.c.b16 %v1298, %v1297
      %v1316 = vpack.c.b16 %v1300, %v1299
      %1333 = vmatprep.subr.bf16.mxu0 0
      %1334 = vmatpush1.bf16.msra.mxu0 %v1301
      %1335 = vmatprep.subr.bf16.mxu0 0
      %1336 = vmatpush1.bf16.msra.mxu0 %v1302
      %1337 = vmatprep.subr.bf16.mxu0 0
      %1338 = vmatpush1.bf16.msra.mxu0 %v1303
      %1339 = vmatprep.subr.bf16.mxu0 0
      %1340 = vmatpush1.bf16.msra.mxu0 %v1304
      %1341 = vmatprep.subr.bf16.mxu0 0
      %1342 = vmatpush1.bf16.msra.mxu0 %v1305
      %1343 = vmatprep.subr.bf16.mxu0 0
      %1344 = vmatpush1.bf16.msra.mxu0 %v1306
      %1345 = vmatprep.subr.bf16.mxu0 0
      %1346 = vmatpush1.bf16.msra.mxu0 %v1307
      %1347 = vmatprep.subr.bf16.mxu0 0
      %1348 = vmatpush1.bf16.msra.mxu0 %v1308
      %1349 = vmatprep.subr.bf16.mxu0 0
      %1350 = vmatpush1.bf16.msra.mxu0 %v1309
      %1351 = vmatprep.subr.bf16.mxu0 0
      %1352 = vmatpush1.bf16.msra.mxu0 %v1310
      %1353 = vmatprep.subr.bf16.mxu0 0
      %1354 = vmatpush1.bf16.msra.mxu0 %v1311
      %1355 = vmatprep.subr.bf16.mxu0 0
      %1356 = vmatpush1.bf16.msra.mxu0 %v1312
      %1357 = vmatprep.subr.bf16.mxu0 0
      %1358 = vmatpush1.bf16.msra.mxu0 %v1313
      %1359 = vmatprep.subr.bf16.mxu0 0
      %1360 = vmatpush1.bf16.msra.mxu0 %v1314
      %1361 = vmatprep.subr.bf16.mxu0 0
      %1362 = vmatpush1.bf16.msra.mxu0 %v1315
      %1363 = vmatprep.subr.bf16.mxu0 0
      %1364 = vmatpush1.bf16.msra.mxu0 %v1316
      %1365 = vmatprep.mubr.bf16.mxu0 %v1203
      %1366 = vmatmul.mubr.bf16.gmra.mrb[0].mxu0 %v1202
      %v1367 = vpop.f32.mrb[0].mxu0
      %v1368 = vadd.f32 0.0, %v1367
      %v1369 = vpop.f32.mrb[0].mxu0
      %v1370 = vpop.f32.mrb[0].mxu0
      %v1371 = vpop.f32.mrb[0].mxu0
      %1372 = vdwg.mxu0
      %v1373 = vpack.c.bf16 %v1368, %v1368
      %v1375 = vunpack.c.l.b16 %v1373
      %v1376 = vpack.c.b16 %v1375, %v1375
      %1377 = vrot.lane.b32.xlu0 %v1376, 16
      %v1378 = vpop.permute.xlu0 %1377
      %vm1380 = vcmask 191616
      %1381 = vst.msk [vmem:[#allocation2] sm:$0xf] %vm1380, %v1378
      %s1382 = scalar_lea.vmem %s520, 24
      %v1383 = vld [vmem:[%s1382] sm:$0xff]
      %1384 = vrot.lane.b32.xlu0 %v626, 104
      %v1385 = vpop.permute.xlu0 %1384
      %v1387 = vunpack.c.l.b16 %v1383
      %v1388 = vunpack.c.h.b16 %v1383
      %v1389 = vpack.c.b16 %v1387, %v1387
      %v1390 = vpack.c.b16 %v1388, %v1388
      %v1392 = vsel %vm633, %v1385, 0
      %v1395 = vsel %vm637, %v1389, 0
      %v1398 = vsel %vm637, %v1390, 0
      %1400 = vmatprep.subr.bf16.mxu0 %v1398
      %1401 = vmatpush1.bf16.msra.mxu0 %v1395
      %1402 = vmatprep.subr.bf16.mxu0 0
      %1403 = vmatpush1.bf16.msra.mxu0 0
      %1404 = vmatprep.subr.bf16.mxu0 0
      %1405 = vmatpush1.bf16.msra.mxu0 0
      %1406 = vmatprep.subr.bf16.mxu0 0
      %1407 = vmatpush1.bf16.msra.mxu0 0
      %1408 = vmatprep.subr.bf16.mxu0 0
      %1409 = vmatpush1.bf16.msra.mxu0 0
      %1410 = vmatprep.subr.bf16.mxu0 0
      %1411 = vmatpush1.bf16.msra.mxu0 0
      %1412 = vmatprep.subr.bf16.mxu0 0
      %1413 = vmatpush1.bf16.msra.mxu0 0
      %1414 = vmatprep.subr.bf16.mxu0 0
      %1415 = vmatpush1.bf16.msra.mxu0 0
      %1416 = vmatprep.subr.bf16.mxu0 0
      %1417 = vmatpush1.bf16.msra.mxu0 0
      %1418 = vmatprep.subr.bf16.mxu0 0
      %1419 = vmatpush1.bf16.msra.mxu0 0
      %1420 = vmatprep.subr.bf16.mxu0 0
      %1421 = vmatpush1.bf16.msra.mxu0 0
      %1422 = vmatprep.subr.bf16.mxu0 0
      %1423 = vmatpush1.bf16.msra.mxu0 0
      %1424 = vmatprep.subr.bf16.mxu0 0
      %1425 = vmatpush1.bf16.msra.mxu0 0
      %1426 = vmatprep.subr.bf16.mxu0 0
      %1427 = vmatpush1.bf16.msra.mxu0 0
      %1428 = vmatprep.subr.bf16.mxu0 0
      %1429 = vmatpush1.bf16.msra.mxu0 0
      %1430 = vmatprep.subr.bf16.mxu0 0
      %1431 = vmatpush1.bf16.msra.mxu0 0
      %1432 = vmatprep.mubr.bf16.mxu0 0
      %1433 = vmatmul.mubr.bf16.gmra.mrb[0].mxu0 %v1392
      %v1434 = vpop.f32.mrb[0].mxu0
      %v1435 = vadd.f32 0.0, %v1434
      %v1436 = vpop.f32.mrb[0].mxu0
      %v1437 = vadd.f32 0.0, %v1436
      %v1438 = vpop.f32.mrb[0].mxu0
      %v1439 = vpop.f32.mrb[0].mxu0
      %1440 = vdwg.mxu0
      %v1441 = vmax.f32 %v1435, %v1437
      %1442 = vmax.xlane.f32.xlu0 %v1441
      %v1443 = vpop.xlane.xlu0 %1442
      %v1444 = vsub.f32 %v1435, %v1443
      %v1445 = vsub.f32 %v1437, %v1443
      %v1446 = vmul.f32 %v1444, 1.442695
      %v1447 = vpow.pop %v1446
      %v1448 = vmul.f32 %v1445, 1.442695
      %v1449 = vpow.pop %v1448
      %v1450 = vadd.f32 %v1447, %v1449
      %1451 = vadd.xlane.f32.xlu0 %v1450
      %v1452 = vpop.xlane.xlu0 %1451
      %v1453 = vrcp.pop %v1452
      %v1454 = vmul.f32 %v1447, %v1453
      %v1455 = vmul.f32 %v1449, %v1453
      %v1456 = vpack.c.bf16 %v1454, %v1454
      %v1457 = vpack.c.bf16 %v1455, %v1455
      %s1458 = scalar_lea.vmem %s525, 384
      %v1459 = vld [vmem:[%s1458] sm:$0xf]
      %v1460 = vld [vmem:[%s1458 + $0x4] sm:$0xf]
      %v1461 = vld [vmem:[%s1458 + $0x8] sm:$0xf]
      %v1462 = vld [vmem:[%s1458 + $0xc] sm:$0xf]
      %v1463 = vld [vmem:[%s1458 + $0x10] sm:$0xf]
      %v1464 = vld [vmem:[%s1458 + $0x14] sm:$0xf]
      %v1465 = vld [vmem:[%s1458 + $0x18] sm:$0xf]
      %v1466 = vld [vmem:[%s1458 + $0x1c] sm:$0xf]
      %v1467 = vld [vmem:[%s1458 + $0x20] sm:$0xf]
      %v1468 = vld [vmem:[%s1458 + $0x24] sm:$0xf]
      %v1469 = vld [vmem:[%s1458 + $0x28] sm:$0xf]
      %v1470 = vld [vmem:[%s1458 + $0x2c] sm:$0xf]
      %v1471 = vld [vmem:[%s1458 + $0x30] sm:$0xf]
      %v1472 = vld [vmem:[%s1458 + $0x34] sm:$0xf]
      %v1473 = vld [vmem:[%s1458 + $0x38] sm:$0xf]
      %v1474 = vld [vmem:[%s1458 + $0x3c] sm:$0xf]
      %v1475 = vld [vmem:[%s1458 + $0x40] sm:$0xf]
      %v1476 = vld [vmem:[%s1458 + $0x44] sm:$0xf]
      %v1477 = vld [vmem:[%s1458 + $0x48] sm:$0xf]
      %v1478 = vld [vmem:[%s1458 + $0x4c] sm:$0xf]
      %v1479 = vld [vmem:[%s1458 + $0x50] sm:$0xf]
      %v1480 = vld [vmem:[%s1458 + $0x54] sm:$0xf]
      %v1481 = vld [vmem:[%s1458 + $0x58] sm:$0xf]
      %v1482 = vld [vmem:[%s1458 + $0x5c] sm:$0xf]
      %v1483 = vld [vmem:[%s1458 + $0x60] sm:$0xf]
      %v1484 = vld [vmem:[%s1458 + $0x64] sm:$0xf]
      %v1485 = vld [vmem:[%s1458 + $0x68] sm:$0xf]
      %v1486 = vld [vmem:[%s1458 + $0x6c] sm:$0xf]
      %v1487 = vld [vmem:[%s1458 + $0x70] sm:$0xf]
      %v1488 = vld [vmem:[%s1458 + $0x74] sm:$0xf]
      %v1489 = vld [vmem:[%s1458 + $0x78] sm:$0xf]
      %v1490 = vld [vmem:[%s1458 + $0x7c] sm:$0xf]
      %v1523 = vunpack.c.l.b16 %v1459
      %v1524 = vunpack.c.l.b16 %v1460
      %v1525 = vunpack.c.l.b16 %v1461
      %v1526 = vunpack.c.l.b16 %v1462
      %v1527 = vunpack.c.l.b16 %v1463
      %v1528 = vunpack.c.l.b16 %v1464
      %v1529 = vunpack.c.l.b16 %v1465
      %v1530 = vunpack.c.l.b16 %v1466
      %v1531 = vunpack.c.l.b16 %v1467
      %v1532 = vunpack.c.l.b16 %v1468
      %v1533 = vunpack.c.l.b16 %v1469
      %v1534 = vunpack.c.l.b16 %v1470
      %v1535 = vunpack.c.l.b16 %v1471
      %v1536 = vunpack.c.l.b16 %v1472
      %v1537 = vunpack.c.l.b16 %v1473
      %v1538 = vunpack.c.l.b16 %v1474
      %v1539 = vunpack.c.l.b16 %v1475
      %v1540 = vunpack.c.l.b16 %v1476
      %v1541 = vunpack.c.l.b16 %v1477
      %v1542 = vunpack.c.l.b16 %v1478
      %v1543 = vunpack.c.l.b16 %v1479
      %v1544 = vunpack.c.l.b16 %v1480
      %v1545 = vunpack.c.l.b16 %v1481
      %v1546 = vunpack.c.l.b16 %v1482
      %v1547 = vunpack.c.l.b16 %v1483
      %v1548 = vunpack.c.l.b16 %v1484
      %v1549 = vunpack.c.l.b16 %v1485
      %v1550 = vunpack.c.l.b16 %v1486
      %v1551 = vunpack.c.l.b16 %v1487
      %v1552 = vunpack.c.l.b16 %v1488
      %v1553 = vunpack.c.l.b16 %v1489
      %v1554 = vunpack.c.l.b16 %v1490
      %v1555 = vpack.c.b16 %v1524, %v1523
      %v1556 = vpack.c.b16 %v1526, %v1525
      %v1557 = vpack.c.b16 %v1528, %v1527
      %v1558 = vpack.c.b16 %v1530, %v1529
      %v1559 = vpack.c.b16 %v1532, %v1531
      %v1560 = vpack.c.b16 %v1534, %v1533
      %v1561 = vpack.c.b16 %v1536, %v1535
      %v1562 = vpack.c.b16 %v1538, %v1537
      %v1563 = vpack.c.b16 %v1540, %v1539
      %v1564 = vpack.c.b16 %v1542, %v1541
      %v1565 = vpack.c.b16 %v1544, %v1543
      %v1566 = vpack.c.b16 %v1546, %v1545
      %v1567 = vpack.c.b16 %v1548, %v1547
      %v1568 = vpack.c.b16 %v1550, %v1549
      %v1569 = vpack.c.b16 %v1552, %v1551
      %v1570 = vpack.c.b16 %v1554, %v1553
      %1587 = vmatprep.subr.bf16.mxu0 0
      %1588 = vmatpush1.bf16.msra.mxu0 %v1555
      %1589 = vmatprep.subr.bf16.mxu0 0
      %1590 = vmatpush1.bf16.msra.mxu0 %v1556
      %1591 = vmatprep.subr.bf16.mxu0 0
      %1592 = vmatpush1.bf16.msra.mxu0 %v1557
      %1593 = vmatprep.subr.bf16.mxu0 0
      %1594 = vmatpush1.bf16.msra.mxu0 %v1558
      %1595 = vmatprep.subr.bf16.mxu0 0
      %1596 = vmatpush1.bf16.msra.mxu0 %v1559
      %1597 = vmatprep.subr.bf16.mxu0 0
      %1598 = vmatpush1.bf16.msra.mxu0 %v1560
      %1599 = vmatprep.subr.bf16.mxu0 0
      %1600 = vmatpush1.bf16.msra.mxu0 %v1561
      %1601 = vmatprep.subr.bf16.mxu0 0
      %1602 = vmatpush1.bf16.msra.mxu0 %v1562
      %1603 = vmatprep.subr.bf16.mxu0 0
      %1604 = vmatpush1.bf16.msra.mxu0 %v1563
      %1605 = vmatprep.subr.bf16.mxu0 0
      %1606 = vmatpush1.bf16.msra.mxu0 %v1564
      %1607 = vmatprep.subr.bf16.mxu0 0
      %1608 = vmatpush1.bf16.msra.mxu0 %v1565
      %1609 = vmatprep.subr.bf16.mxu0 0
      %1610 = vmatpush1.bf16.msra.mxu0 %v1566
      %1611 = vmatprep.subr.bf16.mxu0 0
      %1612 = vmatpush1.bf16.msra.mxu0 %v1567
      %1613 = vmatprep.subr.bf16.mxu0 0
      %1614 = vmatpush1.bf16.msra.mxu0 %v1568
      %1615 = vmatprep.subr.bf16.mxu0 0
      %1616 = vmatpush1.bf16.msra.mxu0 %v1569
      %1617 = vmatprep.subr.bf16.mxu0 0
      %1618 = vmatpush1.bf16.msra.mxu0 %v1570
      %1619 = vmatprep.mubr.bf16.mxu0 %v1457
      %1620 = vmatmul.mubr.bf16.gmra.mrb[0].mxu0 %v1456
      %v1621 = vpop.f32.mrb[0].mxu0
      %v1622 = vadd.f32 0.0, %v1621
      %v1623 = vpop.f32.mrb[0].mxu0
      %v1624 = vpop.f32.mrb[0].mxu0
      %v1625 = vpop.f32.mrb[0].mxu0
      %1626 = vdwg.mxu0
      %v1627 = vpack.c.bf16 %v1622, %v1622
      %v1629 = vunpack.c.l.b16 %v1627
      %v1630 = vpack.c.b16 %v1629, %v1629
      %1631 = vrot.lane.b32.xlu0 %v1630, 24
      %v1632 = vpop.permute.xlu0 %1631
      %vm1634 = vcmask 257216
      %1635 = vst.msk [vmem:[#allocation2] sm:$0xf] %vm1634, %v1632
      %v1636 = vld [vmem:[#allocation2] sm:$0xf]
      %v1637 = vld [vmem:[%s6] sm:$0xf]
      %v1638 = vld [vmem:[%s6 + $0x4] sm:$0xf]
      %v1639 = vld [vmem:[%s6 + $0x8] sm:$0xf]
      %v1640 = vld [vmem:[%s6 + $0xc] sm:$0xf]
      %v1645 = vunpack.c.l.b16 %v1637
      %v1646 = vunpack.c.l.b16 %v1638
      %v1647 = vunpack.c.l.b16 %v1639
      %v1648 = vunpack.c.l.b16 %v1640
      %v1649 = vpack.c.b16 %v1646, %v1645
      %v1650 = vpack.c.b16 %v1648, %v1647
      %v1654 = vsel %vm537, %v1636, 0
      %1656 = vmatprep.subr.bf16.mxu0 0
      %1657 = vmatpush1.bf16.msra.mxu0 %v1649
      %1658 = vmatprep.subr.bf16.mxu0 0
      %1659 = vmatpush1.bf16.msra.mxu0 %v1650
      %1660 = vmatprep.subr.bf16.mxu0 0
      %1661 = vmatpush1.bf16.msra.mxu0 0
      %1662 = vmatprep.subr.bf16.mxu0 0
      %1663 = vmatpush1.bf16.msra.mxu0 0
      %1664 = vmatprep.subr.bf16.mxu0 0
      %1665 = vmatpush1.bf16.msra.mxu0 0
      %1666 = vmatprep.subr.bf16.mxu0 0
      %1667 = vmatpush1.bf16.msra.mxu0 0
      %1668 = vmatprep.subr.bf16.mxu0 0
      %1669 = vmatpush1.bf16.msra.mxu0 0
      %1670 = vmatprep.subr.bf16.mxu0 0
      %1671 = vmatpush1.bf16.msra.mxu0 0
      %1672 = vmatprep.subr.bf16.mxu0 0
      %1673 = vmatpush1.bf16.msra.mxu0 0
      %1674 = vmatprep.subr.bf16.mxu0 0
      %1675 = vmatpush1.bf16.msra.mxu0 0
      %1676 = vmatprep.subr.bf16.mxu0 0
      %1677 = vmatpush1.bf16.msra.mxu0 0
      %1678 = vmatprep.subr.bf16.mxu0 0
      %1679 = vmatpush1.bf16.msra.mxu0 0
      %1680 = vmatprep.subr.bf16.mxu0 0
      %1681 = vmatpush1.bf16.msra.mxu0 0
      %1682 = vmatprep.subr.bf16.mxu0 0
      %1683 = vmatpush1.bf16.msra.mxu0 0
      %1684 = vmatprep.subr.bf16.mxu0 0
      %1685 = vmatpush1.bf16.msra.mxu0 0
      %1686 = vmatprep.subr.bf16.mxu0 0
      %1687 = vmatpush1.bf16.msra.mxu0 0
      %1688 = vmatprep.mubr.bf16.mxu0 0
      %1689 = vmatmul.mubr.bf16.gmra.mrb[0].mxu0 %v1654
      %v1690 = vpop.f32.mrb[0].mxu0
      %v1691 = vadd.f32 0.0, %v1690
      %v1692 = vpop.f32.mrb[0].mxu0
      %v1693 = vpop.f32.mrb[0].mxu0
      %v1694 = vpop.f32.mrb[0].mxu0
      %1695 = vdwg.mxu0
      %v1696 = vadd.f32 %v534, %v1691
      %v1697 = vld [vmem:[%s7] sm:$0x1]
      %v1699 = vlaneseq
      %v1700 = vshrl.u32 %v1699, 7
      %v1701 = vsub.s32 0, %v1700
      %v1702 = vrot.slane %v1697, %v1701
      %v1704 = vadd.f32 %v1696, %v1702
      %v1705 = vld [vmem:[%s8] sm:$0x1]
      %v1706 = vld [vmem:[%s9] sm:$0x1]
      %v1707 = vsel %vm537, %v1704, 0.0
      %1708 = vadd.xlane.f32.xlu0 %v1707
      %v1709 = vpop.xlane.xlu0 %1708
      %v1710 = vmul.f32 %v1709, %v541
      %v1711 = vsub.f32 %v1704, %v1710
      %v1712 = vmul.f32 %v1711, %v1711
      %v1713 = vsel %vm537, %v1712, 0.0
      %1714 = vadd.xlane.f32.xlu0 %v1713
      %v1715 = vpop.xlane.xlu0 %1714
      %v1716 = vmul.f32 %v1715, %v541
      %v1717 = vadd.f32 %v1716, 1e-05
      %v1718 = vrsqrt.pop %v1717
      %v1719 = vmul.f32 %v1711, %v1718
      %v1721 = vlaneseq
      %v1722 = vshrl.u32 %v1721, 7
      %v1723 = vsub.s32 0, %v1722
      %v1724 = vrot.slane %v1705, %v1723
      %v1726 = vmul.f32 %v1719, %v1724
      %v1728 = vlaneseq
      %v1729 = vshrl.u32 %v1728, 7
      %v1730 = vsub.s32 0, %v1729
      %v1731 = vrot.slane %v1706, %v1730
      %v1733 = vadd.f32 %v1726, %v1731
      %v1734 = vpack.c.bf16 %v1733, %v1733
      %v1735 = vld [vmem:[%s10] sm:$0xf]
      %v1736 = vld [vmem:[%s10 + $0x4] sm:$0xf]
      %v1737 = vld [vmem:[%s10 + $0x8] sm:$0xf]
      %v1738 = vld [vmem:[%s10 + $0xc] sm:$0xf]
      %v1739 = vld [vmem:[%s11] sm:$0x1]
      %v1741 = vlaneseq
      %v1742 = vshrl.u32 %v1741, 7
      %v1743 = vsub.s32 0, %v1742
      %v1744 = vrot.slane %v1739, %v1743
      %v1750 = vunpack.c.l.b16 %v1735
      %v1751 = vunpack.c.l.b16 %v1736
      %v1752 = vunpack.c.l.b16 %v1737
      %v1753 = vunpack.c.l.b16 %v1738
      %v1754 = vpack.c.b16 %v1751, %v1750
      %v1755 = vpack.c.b16 %v1753, %v1752
      %v1759 = vsel %vm537, %v1734, 0
      %1761 = vmatprep.subr.bf16.mxu0 0
      %1762 = vmatpush1.bf16.msra.mxu0 %v1754
      %1763 = vmatprep.subr.bf16.mxu0 0
      %1764 = vmatpush1.bf16.msra.mxu0 %v1755
      %1765 = vmatprep.subr.bf16.mxu0 0
      %1766 = vmatpush1.bf16.msra.mxu0 0
      %1767 = vmatprep.subr.bf16.mxu0 0
      %1768 = vmatpush1.bf16.msra.mxu0 0
      %1769 = vmatprep.subr.bf16.mxu0 0
      %1770 = vmatpush1.bf16.msra.mxu0 0
      %1771 = vmatprep.subr.bf16.mxu0 0
      %1772 = vmatpush1.bf16.msra.mxu0 0
      %1773 = vmatprep.subr.bf16.mxu0 0
      %1774 = vmatpush1.bf16.msra.mxu0 0
      %1775 = vmatprep.subr.bf16.mxu0 0
      %1776 = vmatpush1.bf16.msra.mxu0 0
      %1777 = vmatprep.subr.bf16.mxu0 0
      %1778 = vmatpush1.bf16.msra.mxu0 0
      %1779 = vmatprep.subr.bf16.mxu0 0
      %1780 = vmatpush1.bf16.msra.mxu0 0
      %1781 = vmatprep.subr.bf16.mxu0 0
      %1782 = vmatpush1.bf16.msra.mxu0 0
      %1783 = vmatprep.subr.bf16.mxu0 0
      %1784 = vmatpush1.bf16.msra.mxu0 0
      %1785 = vmatprep.subr.bf16.mxu0 0
      %1786 = vmatpush1.bf16.msra.mxu0 0
      %1787 = vmatprep.subr.bf16.mxu0 0
      %1788 = vmatpush1.bf16.msra.mxu0 0
      %1789 = vmatprep.subr.bf16.mxu0 0
      %1790 = vmatpush1.bf16.msra.mxu0 0
      %1791 = vmatprep.subr.bf16.mxu0 0
      %1792 = vmatpush1.bf16.msra.mxu0 0
      %1793 = vmatprep.mubr.bf16.mxu0 0
      %1794 = vmatmul.mubr.bf16.gmra.mrb[0].mxu0 %v1759
      %v1795 = vpop.f32.mrb[0].mxu0
      %v1796 = vadd.f32 %v1744, %v1795
      %v1797 = vpop.f32.mrb[0].mxu0
      %v1798 = vpop.f32.mrb[0].mxu0
      %v1799 = vpop.f32.mrb[0].mxu0
      %1800 = vdwg.mxu0
      %v1801 = vmul.f32 %v1796, 0.5
      %v1802 = vmul.f32 %v1796, 0.70710677
      %vm1803 = vcmp.ge.f32.partialorder %v1802, 0.0
      %v1804 = vsel %vm1803, 1.0, -1.0
      %v1805 = vand.u32 2147483647, %v1802
      %v1806 = vmul.f32 %v1805, 0.3275911
      %v1807 = vadd.f32 %v1806, 1.0
      %v1808 = vrcp.pop %v1807
      %v1809 = vmul.f32 %v1808, 1.0614054
      %v1810 = vadd.f32 %v1809, -1.4531521
      %v1811 = vmul.f32 %v1810, %v1808
      %v1812 = vadd.f32 %v1811, 1.4214138
      %v1813 = vmul.f32 %v1812, %v1808
      %v1814 = vadd.f32 %v1813, -0.28449672
      %v1815 = vmul.f32 %v1814, %v1808
      %v1816 = vadd.f32 %v1815, 0.2548296
      %v1817 = vmul.f32 %v1816, %v1808
      %v1818 = vsub.f32 0.0, %v1805
      %v1819 = vmul.f32 %v1818, %v1805
      %v1820 = vmul.f32 %v1819, 1.442695
      %v1821 = vpow.pop %v1820
      %v1822 = vmul.f32 %v1817, %v1821
      %v1823 = vsub.f32 1.0, %v1822
      %v1824 = vmul.f32 %v1804, %v1823
      %v1825 = vadd.f32 %v1824, 1.0
      %v1826 = vmul.f32 %v1801, %v1825
      %v1827 = vpack.c.bf16 %v1826, %v1826
      %v1828 = vld [vmem:[%s12] sm:$0xf]
      %v1829 = vld [vmem:[%s12 + $0x4] sm:$0xf]
      %v1830 = vld [vmem:[%s12 + $0x8] sm:$0xf]
      %v1831 = vld [vmem:[%s12 + $0xc] sm:$0xf]
      %v1832 = vld [vmem:[%s12 + $0x10] sm:$0xf]
      %v1833 = vld [vmem:[%s12 + $0x14] sm:$0xf]
      %v1834 = vld [vmem:[%s12 + $0x18] sm:$0xf]
      %v1835 = vld [vmem:[%s12 + $0x1c] sm:$0xf]
      %v1836 = vld [vmem:[%s12 + $0x20] sm:$0xf]
      %v1837 = vld [vmem:[%s12 + $0x24] sm:$0xf]
      %v1838 = vld [vmem:[%s12 + $0x28] sm:$0xf]
      %v1839 = vld [vmem:[%s12 + $0x2c] sm:$0xf]
      %v1840 = vld [vmem:[%s12 + $0x30] sm:$0xf]
      %v1841 = vld [vmem:[%s12 + $0x34] sm:$0xf]
      %v1842 = vld [vmem:[%s12 + $0x38] sm:$0xf]
      %v1843 = vld [vmem:[%s12 + $0x3c] sm:$0xf]
      %v1844 = vld [vmem:[%s13] sm:$0x1]
      %v1846 = vlaneseq
      %v1847 = vshrl.u32 %v1846, 7
      %v1848 = vsub.s32 0, %v1847
      %v1849 = vrot.slane %v1844, %v1848
      %v1867 = vunpack.c.l.b16 %v1828
      %v1868 = vunpack.c.l.b16 %v1829
      %v1869 = vunpack.c.l.b16 %v1830
      %v1870 = vunpack.c.l.b16 %v1831
      %v1871 = vunpack.c.l.b16 %v1832
      %v1872 = vunpack.c.l.b16 %v1833
      %v1873 = vunpack.c.l.b16 %v1834
      %v1874 = vunpack.c.l.b16 %v1835
      %v1875 = vunpack.c.l.b16 %v1836
      %v1876 = vunpack.c.l.b16 %v1837
      %v1877 = vunpack.c.l.b16 %v1838
      %v1878 = vunpack.c.l.b16 %v1839
      %v1879 = vunpack.c.l.b16 %v1840
      %v1880 = vunpack.c.l.b16 %v1841
      %v1881 = vunpack.c.l.b16 %v1842
      %v1882 = vunpack.c.l.b16 %v1843
      %v1883 = vpack.c.b16 %v1868, %v1867
      %v1884 = vpack.c.b16 %v1870, %v1869
      %v1885 = vpack.c.b16 %v1872, %v1871
      %v1886 = vpack.c.b16 %v1874, %v1873
      %v1887 = vpack.c.b16 %v1876, %v1875
      %v1888 = vpack.c.b16 %v1878, %v1877
      %v1889 = vpack.c.b16 %v1880, %v1879
      %v1890 = vpack.c.b16 %v1882, %v1881
      %1899 = vmatprep.subr.bf16.mxu0 0
      %1900 = vmatpush1.bf16.msra.mxu0 %v1883
      %1901 = vmatprep.subr.bf16.mxu0 0
      %1902 = vmatpush1.bf16.msra.mxu0 %v1884
      %1903 = vmatprep.subr.bf16.mxu0 0
      %1904 = vmatpush1.bf16.msra.mxu0 %v1885
      %1905 = vmatprep.subr.bf16.mxu0 0
      %1906 = vmatpush1.bf16.msra.mxu0 %v1886
      %1907 = vmatprep.subr.bf16.mxu0 0
      %1908 = vmatpush1.bf16.msra.mxu0 %v1887
      %1909 = vmatprep.subr.bf16.mxu0 0
      %1910 = vmatpush1.bf16.msra.mxu0 %v1888
      %1911 = vmatprep.subr.bf16.mxu0 0
      %1912 = vmatpush1.bf16.msra.mxu0 %v1889
      %1913 = vmatprep.subr.bf16.mxu0 0
      %1914 = vmatpush1.bf16.msra.mxu0 %v1890
      %1915 = vmatprep.subr.bf16.mxu0 0
      %1916 = vmatpush1.bf16.msra.mxu0 0
      %1917 = vmatprep.subr.bf16.mxu0 0
      %1918 = vmatpush1.bf16.msra.mxu0 0
      %1919 = vmatprep.subr.bf16.mxu0 0
      %1920 = vmatpush1.bf16.msra.mxu0 0
      %1921 = vmatprep.subr.bf16.mxu0 0
      %1922 = vmatpush1.bf16.msra.mxu0 0
      %1923 = vmatprep.subr.bf16.mxu0 0
      %1924 = vmatpush1.bf16.msra.mxu0 0
      %1925 = vmatprep.subr.bf16.mxu0 0
      %1926 = vmatpush1.bf16.msra.mxu0 0
      %1927 = vmatprep.subr.bf16.mxu0 0
      %1928 = vmatpush1.bf16.msra.mxu0 0
      %1929 = vmatprep.subr.bf16.mxu0 0
      %1930 = vmatpush1.bf16.msra.mxu0 0
      %1931 = vmatprep.mubr.bf16.mxu0 0
      %1932 = vmatmul.mubr.bf16.gmra.mrb[0].mxu0 %v1827
      %v1933 = vpop.f32.mrb[0].mxu0
      %v1934 = vadd.f32 %v1849, %v1933
      %v1935 = vpop.f32.mrb[0].mxu0
      %v1936 = vpop.f32.mrb[0].mxu0
      %v1937 = vpop.f32.mrb[0].mxu0
      %1938 = vdwg.mxu0
      %v1939 = vadd.f32 %v1704, %v1934
      %v1940 = vsel %vm537, %v1939, 0.0
      %v1941 = vrot.slane %v1940, 4
      %v1942 = vadd.f32 %v1940, %v1941
      %v1943 = vrot.slane %v1942, 2
      %v1944 = vadd.f32 %v1942, %v1943
      %v1945 = vrot.slane %v1944, 1
      %v1946 = vadd.f32 %v1944, %v1945
      %vm1947 = vcmask 253952
      %1948 = vst.msk [vmem:[%s531] sm:$0x1] %vm1947, %v1946
      %p1949 = scmp.lt.s32.totalorder %s29, 1
      %s1950 = scalar_select %p1949, %s29, 1
      %p1951 = scmp.lt.s32.totalorder %s30, 0
      %s1952 = scalar_select %p1951, %s30, 0
      %s1953 = sadd.s32 %s1952, %s1950
      %s1954 = scalar_lea.vmem %s14, %s1953
      // Predicated region
      $region77: #{linformer_forward.8} parent=75 // pred_check
        %p1955 = pneg %p368
      $region78: #{linformer_forward.8} parent=75 // pred_check_branch
        %1957 = sbr.rel (%p1955) target = $region80
      $region79: #{linformer_forward.8} parent=75 // pred_region
        _
      $region80: #{linformer_forward.8} parent=75 // pred_fallthru
        _
    $region76: #{linformer_forward.8} parent=5 // pred_fallthru
      _
    %p1958 = scmp.le.s32.totalorder 2, %s20
    // Predicated region
    $region81: #{linformer_forward.8} parent=5 // pred_check
      %p1959 = pneg %p1958
    $region82: #{linformer_forward.8} parent=5 // pred_check_branch
      %1961 = sbr.rel (%p1959) target = $region84
    $region83: #{linformer_forward.8} parent=5 // pred_region
      %s1962 = ssub.s32 %s20, 2
      // Predicated region
      $region85: #{linformer_forward.8} parent=83 // pred_check
        %p1963 = pneg %p374
      $region86: #{linformer_forward.8} parent=83 // pred_check_branch
        %1965 = sbr.rel (%p1963) target = $region88
      $region87: #{linformer_forward.8} parent=83 // pred_region
        %p1966 = scmp.lt.s32.totalorder %s31, 1
        %s1967 = scalar_select %p1966, %s31, 1
        %p1968 = scmp.lt.s32.totalorder %s32, 0
        %s1969 = scalar_select %p1968, %s32, 0
        %s1970 = sadd.s32 %s1969, %s1967
        %s1971 = scalar_lea.vmem %s14, %s1970
      $region88: #{linformer_forward.8} parent=83 // pred_fallthru
        _
    $region84: #{linformer_forward.8} parent=5 // pred_fallthru
      _
  $region6: #{linformer_forward.8} parent=0 // loop_footer
    %s24 = sadd.s32 1, %s20
  $region7: #{linformer_forward.8} parent=0 // loop_footer_branch
    %19 = sbr.rel target = $region3
  $region8: #{linformer_forward.8} parent=0 // loop_exit
    _

// kernel: linformer_forward.5
$region0: #{linformer_forward.5}
  #allocation0 [shape = 'u32[]', space=smem, size = 0x4, offset = 0x4, fixed_abs, tag = 'smem constant byte address 0x4 - core index']
  #allocation1 [shape = 'u32[144,128]{1,0:T(1,128)}', space=vmem, size = 0x12000, scoped, tag = 'internal scratch']
  %s0 = inlined_call_operand.vmem [shape: bf16[2,8,32], index: 0, kind: input, shape index: {}]
  %s1 = inlined_call_operand.vmem [shape: f32[1,32], index: 1, kind: input, shape index: {}]
  %s2 = inlined_call_operand.vmem [shape: f32[1,32], index: 2, kind: input, shape index: {}]
  %s3 = inlined_call_operand.vmem [shape: bf16[32,64], index: 3, kind: input, shape index: {}]
  %s4 = inlined_call_operand.vmem [shape: bf16[256,8], index: 4, kind: input, shape index: {}]
  %s5 = inlined_call_operand.vmem [shape: bf16[256,8], index: 5, kind: input, shape index: {}]
  %s6 = inlined_call_operand.vmem [shape: bf16[2,4,8,256], index: 6, kind: output, shape index: {0}]
  %s7 = inlined_call_operand.vmem [shape: bf16[2,4,256,8], index: 7, kind: output, shape index: {1}]
  %8 = xla_tuple %s6, %s7
  %s9 = sld [smem:[#allocation0]]
  $region65: #{linformer_forward.5} parent=0
    _
  %s11 = ssub.s32 1, %s9
  %s12 = scalar_select 0, %s11, %s9
  loop: start=0, step=1, limit=4
  $region2: #{linformer_forward.5} parent=0 // loop_pre_header
    _
  $region3: #{linformer_forward.5} parent=0 // loop_header
    %s14 = sphi 0, %s18
    %p15 = scmp.ge.s32.totalorder %s14, 4
    %s24 = sphi 0, %s26
    %s27 = sphi 0, %s24
    %s28 = sphi 0, %s27
    %s44 = sphi 0, %s28
    %s48 = sphi 0, %s48
    %s50 = sphi 0, %s48
    %s51 = sphi 0, %s50
    %s65 = sphi 0, %s51
    %s69 = sphi 0, %s69
    %s71 = sphi 0, %s69
    %s72 = sphi 0, %s71
    %s86 = sphi 0, %s72
    %s90 = sphi 0, %s90
    %s92 = sphi 0, %s90
    %s93 = sphi 0, %s92
    %s107 = sphi 0, %s93
    %s111 = sphi 0, %s111
    %s113 = sphi 0, %s111
    %s114 = sphi 0, %s113
    %s128 = sphi 0, %s114
    %s132 = sphi 0, %s132
    %s134 = sphi 0, %s132
    %s135 = sphi 0, %s134
    %s149 = sphi 0, %s135
    %s155 = sphi 0, %s157
    %s158 = sphi 0, %s155
    %s159 = sphi 0, %s158
    %s175 = sphi 0, %s159
    %s181 = sphi 0, %s183
    %s184 = sphi 0, %s181
    %s185 = sphi 0, %s184
    %s201 = sphi 0, %s185
  $region4: #{linformer_forward.5} parent=0 // loop_header_branch
    %17 = sbr.rel (%p15) target = $region8
  $region5: #{linformer_forward.5} parent=0 // loop_body
    %s19 = ssub.s32 %s14, 1
    %s20 = ssub.s32 %s14, 2
    %s21 = sadd.s32 %s14, 1
    %s22 = ssub.s32 %s14, %s21
    %p23 = scmp.eq.s32.totalorder %s22, 0
    %s25 = sadd.s32 %s24, 1
    %s26 = scalar_select %p23, %s24, %s25
    %p29 = pneg %p23
    %p30 = scmp.eq.s32.totalorder %s14, 1
    %p31 = por %p29, %p30
    %p32 = scmp.ne.s32.totalorder %s24, %s27
    %p33 = scmp.eq.s32.totalorder %s14, 0
    %p34 = por %p32, %p33
    %p35 = scmp.ne.s32.totalorder %s24, %s27
    %p36 = scmp.eq.s32.totalorder %s19, 1
    %p37 = por %p35, %p36
    %p38 = scmp.ne.s32.totalorder %s27, %s28
    %p39 = scmp.eq.s32.totalorder %s19, 0
    %p40 = por %p38, %p39
    %p41 = scmp.ne.s32.totalorder %s27, %s28
    %p42 = scmp.eq.s32.totalorder %s20, 1
    %p43 = por %p41, %p42
    %p45 = scmp.ne.s32.totalorder %s28, %s44
    %p46 = scmp.eq.s32.totalorder %s20, 0
    %p47 = por %p45, %p46
    %s49 = sadd.s32 %s48, 1
    %p52 = scmp.eq.s32.totalorder %s14, 1
    %p53 = scmp.ne.s32.totalorder %s48, %s50
    %p54 = scmp.eq.s32.totalorder %s14, 0
    %p55 = por %p53, %p54
    %p56 = scmp.ne.s32.totalorder %s48, %s50
    %p57 = scmp.eq.s32.totalorder %s19, 1
    %p58 = por %p56, %p57
    %p59 = scmp.ne.s32.totalorder %s50, %s51
    %p60 = scmp.eq.s32.totalorder %s19, 0
    %p61 = por %p59, %p60
    %p62 = scmp.ne.s32.totalorder %s50, %s51
    %p63 = scmp.eq.s32.totalorder %s20, 1
    %p64 = por %p62, %p63
    %p66 = scmp.ne.s32.totalorder %s51, %s65
    %p67 = scmp.eq.s32.totalorder %s20, 0
    %p68 = por %p66, %p67
    %s70 = sadd.s32 %s69, 1
    %p73 = scmp.eq.s32.totalorder %s14, 1
    %p74 = scmp.ne.s32.totalorder %s69, %s71
    %p75 = scmp.eq.s32.totalorder %s14, 0
    %p76 = por %p74, %p75
    %p77 = scmp.ne.s32.totalorder %s69, %s71
    %p78 = scmp.eq.s32.totalorder %s19, 1
    %p79 = por %p77, %p78
    %p80 = scmp.ne.s32.totalorder %s71, %s72
    %p81 = scmp.eq.s32.totalorder %s19, 0
    %p82 = por %p80, %p81
    %p83 = scmp.ne.s32.totalorder %s71, %s72
    %p84 = scmp.eq.s32.totalorder %s20, 1
    %p85 = por %p83, %p84
    %p87 = scmp.ne.s32.totalorder %s72, %s86
    %p88 = scmp.eq.s32.totalorder %s20, 0
    %p89 = por %p87, %p88
    %s91 = sadd.s32 %s90, 1
    %p94 = scmp.eq.s32.totalorder %s14, 1
    %p95 = scmp.ne.s32.totalorder %s90, %s92
    %p96 = scmp.eq.s32.totalorder %s14, 0
    %p97 = por %p95, %p96
    %p98 = scmp.ne.s32.totalorder %s90, %s92
    %p99 = scmp.eq.s32.totalorder %s19, 1
    %p100 = por %p98, %p99
    %p101 = scmp.ne.s32.totalorder %s92, %s93
    %p102 = scmp.eq.s32.totalorder %s19, 0
    %p103 = por %p101, %p102
    %p104 = scmp.ne.s32.totalorder %s92, %s93
    %p105 = scmp.eq.s32.totalorder %s20, 1
    %p106 = por %p104, %p105
    %p108 = scmp.ne.s32.totalorder %s93, %s107
    %p109 = scmp.eq.s32.totalorder %s20, 0
    %p110 = por %p108, %p109
    %s112 = sadd.s32 %s111, 1
    %p115 = scmp.eq.s32.totalorder %s14, 1
    %p116 = scmp.ne.s32.totalorder %s111, %s113
    %p117 = scmp.eq.s32.totalorder %s14, 0
    %p118 = por %p116, %p117
    %p119 = scmp.ne.s32.totalorder %s111, %s113
    %p120 = scmp.eq.s32.totalorder %s19, 1
    %p121 = por %p119, %p120
    %p122 = scmp.ne.s32.totalorder %s113, %s114
    %p123 = scmp.eq.s32.totalorder %s19, 0
    %p124 = por %p122, %p123
    %p125 = scmp.ne.s32.totalorder %s113, %s114
    %p126 = scmp.eq.s32.totalorder %s20, 1
    %p127 = por %p125, %p126
    %p129 = scmp.ne.s32.totalorder %s114, %s128
    %p130 = scmp.eq.s32.totalorder %s20, 0
    %p131 = por %p129, %p130
    %s133 = sadd.s32 %s132, 1
    %p136 = scmp.eq.s32.totalorder %s14, 1
    %p137 = scmp.ne.s32.totalorder %s132, %s134
    %p138 = scmp.eq.s32.totalorder %s14, 0
    %p139 = por %p137, %p138
    %p140 = scmp.ne.s32.totalorder %s132, %s134
    %p141 = scmp.eq.s32.totalorder %s19, 1
    %p142 = por %p140, %p141
    %p143 = scmp.ne.s32.totalorder %s134, %s135
    %p144 = scmp.eq.s32.totalorder %s19, 0
    %p145 = por %p143, %p144
    %p146 = scmp.ne.s32.totalorder %s134, %s135
    %p147 = scmp.eq.s32.totalorder %s20, 1
    %p148 = por %p146, %p147
    %p150 = scmp.ne.s32.totalorder %s135, %s149
    %p151 = scmp.eq.s32.totalorder %s20, 0
    %p152 = por %p150, %p151
    %s153 = ssub.s32 %s14, %s21
    %p154 = scmp.eq.s32.totalorder %s153, 0
    %s156 = sadd.s32 %s155, 1
    %s157 = scalar_select %p154, %s155, %s156
    %p160 = pneg %p154
    %p161 = scmp.eq.s32.totalorder %s14, 1
    %p162 = por %p160, %p161
    %p163 = scmp.ne.s32.totalorder %s155, %s158
    %p164 = scmp.eq.s32.totalorder %s14, 0
    %p165 = por %p163, %p164
    %p166 = scmp.ne.s32.totalorder %s155, %s158
    %p167 = scmp.eq.s32.totalorder %s19, 1
    %p168 = por %p166, %p167
    %p169 = scmp.ne.s32.totalorder %s158, %s159
    %p170 = scmp.eq.s32.totalorder %s19, 0
    %p171 = por %p169, %p170
    %p172 = scmp.ne.s32.totalorder %s158, %s159
    %p173 = scmp.eq.s32.totalorder %s20, 1
    %p174 = por %p172, %p173
    %p176 = scmp.ne.s32.totalorder %s159, %s175
    %p177 = scmp.eq.s32.totalorder %s20, 0
    %p178 = por %p176, %p177
    %s179 = ssub.s32 %s14, %s21
    %p180 = scmp.eq.s32.totalorder %s179, 0
    %s182 = sadd.s32 %s181, 1
    %s183 = scalar_select %p180, %s181, %s182
    %p186 = pneg %p180
    %p187 = scmp.eq.s32.totalorder %s14, 1
    %p188 = por %p186, %p187
    %p189 = scmp.ne.s32.totalorder %s181, %s184
    %p190 = scmp.eq.s32.totalorder %s14, 0
    %p191 = por %p189, %p190
    %p192 = scmp.ne.s32.totalorder %s181, %s184
    %p193 = scmp.eq.s32.totalorder %s19, 1
    %p194 = por %p192, %p193
    %p195 = scmp.ne.s32.totalorder %s184, %s185
    %p196 = scmp.eq.s32.totalorder %s19, 0
    %p197 = por %p195, %p196
    %p198 = scmp.ne.s32.totalorder %s184, %s185
    %p199 = scmp.eq.s32.totalorder %s20, 1
    %p200 = por %p198, %p199
    %p202 = scmp.ne.s32.totalorder %s185, %s201
    %p203 = scmp.eq.s32.totalorder %s20, 0
    %p204 = por %p202, %p203
    %p205 = scmp.le.s32.totalorder 1, %s14
    %p206 = scmp.lt.s32.totalorder %s14, 3
    %p207 = pnand %p205, %p206
    %p208 = pneg %p207
    // Predicated region
    $region9: #{linformer_forward.5} parent=5 // pred_check
      _
    $region10: #{linformer_forward.5} parent=5 // pred_check_branch
      %210 = sbr.rel (%p207) target = $region12
    $region11: #{linformer_forward.5} parent=5 // pred_region
      %s211 = ssub.s32 %s14, 1
      // Predicated region
      $region13: #{linformer_forward.5} parent=11 // pred_check
        %p212 = pneg %p61
      $region14: #{linformer_forward.5} parent=11 // pred_check_branch
        %214 = sbr.rel (%p212) target = $region16
      $region15: #{linformer_forward.5} parent=11 // pred_region
        _
      $region16: #{linformer_forward.5} parent=11 // pred_fallthru
        _
      // Predicated region
      $region17: #{linformer_forward.5} parent=11 // pred_check
        %p215 = pneg %p82
      $region18: #{linformer_forward.5} parent=11 // pred_check_branch
        %217 = sbr.rel (%p215) target = $region20
      $region19: #{linformer_forward.5} parent=11 // pred_region
        _
      $region20: #{linformer_forward.5} parent=11 // pred_fallthru
        _
      // Predicated region
      $region21: #{linformer_forward.5} parent=11 // pred_check
        %p218 = pneg %p103
      $region22: #{linformer_forward.5} parent=11 // pred_check_branch
        %220 = sbr.rel (%p218) target = $region24
      $region23: #{linformer_forward.5} parent=11 // pred_region
        _
      $region24: #{linformer_forward.5} parent=11 // pred_fallthru
        _
      // Predicated region
      $region25: #{linformer_forward.5} parent=11 // pred_check
        %p221 = pneg %p124
      $region26: #{linformer_forward.5} parent=11 // pred_check_branch
        %223 = sbr.rel (%p221) target = $region28
      $region27: #{linformer_forward.5} parent=11 // pred_region
        _
      $region28: #{linformer_forward.5} parent=11 // pred_fallthru
        _
      // Predicated region
      $region29: #{linformer_forward.5} parent=11 // pred_check
        %p224 = pneg %p145
      $region30: #{linformer_forward.5} parent=11 // pred_check_branch
        %226 = sbr.rel (%p224) target = $region32
      $region31: #{linformer_forward.5} parent=11 // pred_region
        _
      $region32: #{linformer_forward.5} parent=11 // pred_fallthru
        _
    $region12: #{linformer_forward.5} parent=5 // pred_fallthru
      _
    %p227 = scmp.lt.s32.totalorder %s14, 2
    // Predicated region
    $region33: #{linformer_forward.5} parent=5 // pred_check
      %p228 = pneg %p227
    $region34: #{linformer_forward.5} parent=5 // pred_check_branch
      %230 = sbr.rel (%p228) target = $region36
    $region35: #{linformer_forward.5} parent=5 // pred_region
      // Predicated region
      $region37: #{linformer_forward.5} parent=35 // pred_check
        %p231 = pneg %p34
      $region38: #{linformer_forward.5} parent=35 // pred_check_branch
        %233 = sbr.rel (%p231) target = $region40
      $region39: #{linformer_forward.5} parent=35 // pred_region
        %p234 = scmp.lt.s32.totalorder %s14, 1
        %s235 = scalar_select %p234, %s14, 1
        %s236 = smul.addr %s235, 4
        %s237 = scalar_lea.vmem %s0, %s236
      $region40: #{linformer_forward.5} parent=35 // pred_fallthru
        _
    $region36: #{linformer_forward.5} parent=5 // pred_fallthru
      _
    %p238 = scmp.le.s32.totalorder 1, %s14
    %p239 = scmp.lt.s32.totalorder %s14, 3
    %p240 = pnand %p238, %p239
    %p241 = pneg %p240
    // Predicated region
    $region41: #{linformer_forward.5} parent=5 // pred_check
      _
    $region42: #{linformer_forward.5} parent=5 // pred_check_branch
      %243 = sbr.rel (%p240) target = $region44
    $region43: #{linformer_forward.5} parent=5 // pred_region
      %s244 = ssub.s32 %s14, 1
      %p245 = scmp.lt.s32.totalorder %s19, 1
      %s246 = scalar_select %p245, %s19, 1
      %s247 = smul.addr %s246, 4
      %s248 = scalar_lea.vmem %s0, %s247
      %p249 = pneg %p40
      %p250 = pneg %p37
      %p251 = pneg %p61
      %p252 = pneg %p58
      %p253 = pneg %p82
      %p254 = pneg %p79
      %p255 = pneg %p103
      %p256 = pneg %p100
      %p257 = pneg %p124
      %p258 = pneg %p121
      %p259 = pneg %p145
      %p260 = pneg %p142
      %p261 = pneg %p171
      %p262 = pneg %p168
      %p263 = scmp.lt.s32.totalorder %s19, 1
      %s264 = scalar_select %p263, %s19, 1
      %s265 = smul.addr %s264, 8
      %s266 = smul.addr %s265, 4
      %s267 = scalar_lea.vmem %s6, %s266
      %p268 = pneg %p197
      %p269 = pneg %p194
      %p270 = scmp.lt.s32.totalorder %s19, 1
      %s271 = scalar_select %p270, %s19, 1
      %s272 = smul.addr %s271, 128
      %s273 = smul.addr %s272, 4
      %s274 = scalar_lea.vmem %s7, %s273
      %p275 = scmp.lt.s32.totalorder %s19, 1
      %s276 = scalar_select %p275, %s19, 1
      %s277 = smul.addr %s276, 4
      %s278 = scalar_lea.vmem %s0, %s277
      %p279 = scmp.lt.s32.totalorder %s19, 1
      %s280 = scalar_select %p279, %s19, 1
      %s281 = smul.addr %s280, 8
      %s282 = smul.addr %s281, 4
      %s283 = scalar_lea.vmem %s6, %s282
      %p284 = scmp.lt.s32.totalorder %s19, 1
      %s285 = scalar_select %p284, %s19, 1
      %s286 = smul.addr %s285, 128
      %s287 = smul.addr %s286, 4
      %s288 = scalar_lea.vmem %s7, %s287
      %v290 = vld [vmem:[%s278] sm:$0xf]
      %v291 = vunpack.c.l.bf16 %v290
      %v292 = vld [vmem:[%s1] sm:$0x1]
      %v293 = vld [vmem:[%s2] sm:$0x1]
      %vm294 = vcmask 261120
      %v295 = vsel %vm294, %v291, 0.0
      %296 = vadd.xlane.f32.xlu0 %v295
      %v297 = vpop.xlane.xlu0 %296
      %v298 = vrcp.pop 32.0
      %v299 = vmul.f32 %v297, %v298
      %v300 = vsub.f32 %v291, %v299
      %v301 = vmul.f32 %v300, %v300
      %v302 = vsel %vm294, %v301, 0.0
      %303 = vadd.xlane.f32.xlu0 %v302
      %v304 = vpop.xlane.xlu0 %303
      %v305 = vmul.f32 %v304, %v298
      %v306 = vadd.f32 %v305, 1e-05
      %v307 = vrsqrt.pop %v306
      %v308 = vmul.f32 %v300, %v307
      %v310 = vlaneseq
      %v311 = vshrl.u32 %v310, 7
      %v312 = vsub.s32 0, %v311
      %v313 = vrot.slane %v292, %v312
      %v315 = vmul.f32 %v308, %v313
      %v317 = vlaneseq
      %v318 = vshrl.u32 %v317, 7
      %v319 = vsub.s32 0, %v318
      %v320 = vrot.slane %v293, %v319
      %v322 = vadd.f32 %v315, %v320
      %v323 = vpack.c.bf16 %v322, %v322
      %v324 = vld [vmem:[%s3] sm:$0xf]
      %v325 = vld [vmem:[%s3 + $0x4] sm:$0xf]
      %v326 = vld [vmem:[%s3 + $0x8] sm:$0xf]
      %v327 = vld [vmem:[%s3 + $0xc] sm:$0xf]
      %v332 = vunpack.c.l.b16 %v324
      %v333 = vunpack.c.l.b16 %v325
      %v334 = vunpack.c.l.b16 %v326
      %v335 = vunpack.c.l.b16 %v327
      %v336 = vpack.c.b16 %v333, %v332
      %v337 = vpack.c.b16 %v335, %v334
      %v341 = vsel %vm294, %v323, 0
      %343 = vmatprep.subr.bf16.mxu0 0
      %344 = vmatpush1.bf16.msra.mxu0 %v336
      %345 = vmatprep.subr.bf16.mxu0 0
      %346 = vmatpush1.bf16.msra.mxu0 %v337
      %347 = vmatprep.subr.bf16.mxu0 0
      %348 = vmatpush1.bf16.msra.mxu0 0
      %349 = vmatprep.subr.bf16.mxu0 0
      %350 = vmatpush1.bf16.msra.mxu0 0
      %351 = vmatprep.subr.bf16.mxu0 0
      %352 = vmatpush1.bf16.msra.mxu0 0
      %353 = vmatprep.subr.bf16.mxu0 0
      %354 = vmatpush1.bf16.msra.mxu0 0
      %355 = vmatprep.subr.bf16.mxu0 0
      %356 = vmatpush1.bf16.msra.mxu0 0
      %357 = vmatprep.subr.bf16.mxu0 0
      %358 = vmatpush1.bf16.msra.mxu0 0
      %359 = vmatprep.subr.bf16.mxu0 0
      %360 = vmatpush1.bf16.msra.mxu0 0
      %361 = vmatprep.subr.bf16.mxu0 0
      %362 = vmatpush1.bf16.msra.mxu0 0
      %363 = vmatprep.subr.bf16.mxu0 0
      %364 = vmatpush1.bf16.msra.mxu0 0
      %365 = vmatprep.subr.bf16.mxu0 0
      %366 = vmatpush1.bf16.msra.mxu0 0
      %367 = vmatprep.subr.bf16.mxu0 0
      %368 = vmatpush1.bf16.msra.mxu0 0
      %369 = vmatprep.subr.bf16.mxu0 0
      %370 = vmatpush1.bf16.msra.mxu0 0
      %371 = vmatprep.subr.bf16.mxu0 0
      %372 = vmatpush1.bf16.msra.mxu0 0
      %373 = vmatprep.subr.bf16.mxu0 0
      %374 = vmatpush1.bf16.msra.mxu0 0
      %375 = vmatprep.mubr.bf16.mxu0 0
      %376 = vmatmul.mubr.bf16.gmra.mrb[0].mxu0 %v341
      %v377 = vpop.f32.mrb[0].mxu0
      %v378 = vadd.f32 0.0, %v377
      %v379 = vpop.f32.mrb[0].mxu0
      %v380 = vpop.f32.mrb[0].mxu0
      %v381 = vpop.f32.mrb[0].mxu0
      %382 = vdwg.mxu0
      %v383 = vpack.c.bf16 %v378, %v378
      %v384 = vld [vmem:[%s4] sm:$0xf]
      %v385 = vld [vmem:[%s4 + $0x4] sm:$0xf]
      %v386 = vld [vmem:[%s4 + $0x8] sm:$0xf]
      %v387 = vld [vmem:[%s4 + $0xc] sm:$0xf]
      %v388 = vld [vmem:[%s4 + $0x10] sm:$0xf]
      %v389 = vld [vmem:[%s4 + $0x14] sm:$0xf]
      %v390 = vld [vmem:[%s4 + $0x18] sm:$0xf]
      %v391 = vld [vmem:[%s4 + $0x1c] sm:$0xf]
      %v392 = vld [vmem:[%s4 + $0x20] sm:$0xf]
      %v393 = vld [vmem:[%s4 + $0x24] sm:$0xf]
      %v394 = vld [vmem:[%s4 + $0x28] sm:$0xf]
      %v395 = vld [vmem:[%s4 + $0x2c] sm:$0xf]
      %v396 = vld [vmem:[%s4 + $0x30] sm:$0xf]
      %v397 = vld [vmem:[%s4 + $0x34] sm:$0xf]
      %v398 = vld [vmem:[%s4 + $0x38] sm:$0xf]
      %v399 = vld [vmem:[%s4 + $0x3c] sm:$0xf]
      %v400 = vld [vmem:[%s4 + $0x40] sm:$0xf]
      %v401 = vld [vmem:[%s4 + $0x44] sm:$0xf]
      %v402 = vld [vmem:[%s4 + $0x48] sm:$0xf]
      %v403 = vld [vmem:[%s4 + $0x4c] sm:$0xf]
      %v404 = vld [vmem:[%s4 + $0x50] sm:$0xf]
      %v405 = vld [vmem:[%s4 + $0x54] sm:$0xf]
      %v406 = vld [vmem:[%s4 + $0x58] sm:$0xf]
      %v407 = vld [vmem:[%s4 + $0x5c] sm:$0xf]
      %v408 = vld [vmem:[%s4 + $0x60] sm:$0xf]
      %v409 = vld [vmem:[%s4 + $0x64] sm:$0xf]
      %v410 = vld [vmem:[%s4 + $0x68] sm:$0xf]
      %v411 = vld [vmem:[%s4 + $0x6c] sm:$0xf]
      %v412 = vld [vmem:[%s4 + $0x70] sm:$0xf]
      %v413 = vld [vmem:[%s4 + $0x74] sm:$0xf]
      %v414 = vld [vmem:[%s4 + $0x78] sm:$0xf]
      %v415 = vld [vmem:[%s4 + $0x7c] sm:$0xf]
      %v448 = vunpack.c.l.b16 %v384
      %v449 = vunpack.c.l.b16 %v385
      %v450 = vunpack.c.l.b16 %v386
      %v451 = vunpack.c.l.b16 %v387
      %v452 = vunpack.c.l.b16 %v388
      %v453 = vunpack.c.l.b16 %v389
      %v454 = vunpack.c.l.b16 %v390
      %v455 = vunpack.c.l.b16 %v391
      %v456 = vunpack.c.l.b16 %v392
      %v457 = vunpack.c.l.b16 %v393
      %v458 = vunpack.c.l.b16 %v394
      %v459 = vunpack.c.l.b16 %v395
      %v460 = vunpack.c.l.b16 %v396
      %v461 = vunpack.c.l.b16 %v397
      %v462 = vunpack.c.l.b16 %v398
      %v463 = vunpack.c.l.b16 %v399
      %v464 = vunpack.c.l.b16 %v400
      %v465 = vunpack.c.l.b16 %v401
      %v466 = vunpack.c.l.b16 %v402
      %v467 = vunpack.c.l.b16 %v403
      %v468 = vunpack.c.l.b16 %v404
      %v469 = vunpack.c.l.b16 %v405
      %v470 = vunpack.c.l.b16 %v406
      %v471 = vunpack.c.l.b16 %v407
      %v472 = vunpack.c.l.b16 %v408
      %v473 = vunpack.c.l.b16 %v409
      %v474 = vunpack.c.l.b16 %v410
      %v475 = vunpack.c.l.b16 %v411
      %v476 = vunpack.c.l.b16 %v412
      %v477 = vunpack.c.l.b16 %v413
      %v478 = vunpack.c.l.b16 %v414
      %v479 = vunpack.c.l.b16 %v415
      %v480 = vpack.c.b16 %v449, %v448
      %v481 = vpack.c.b16 %v451, %v450
      %v482 = vpack.c.b16 %v453, %v452
      %v483 = vpack.c.b16 %v455, %v454
      %v484 = vpack.c.b16 %v457, %v456
      %v485 = vpack.c.b16 %v459, %v458
      %v486 = vpack.c.b16 %v461, %v460
      %v487 = vpack.c.b16 %v463, %v462
      %v488 = vpack.c.b16 %v465, %v464
      %v489 = vpack.c.b16 %v467, %v466
      %v490 = vpack.c.b16 %v469, %v468
      %v491 = vpack.c.b16 %v471, %v470
      %v492 = vpack.c.b16 %v473, %v472
      %v493 = vpack.c.b16 %v475, %v474
      %v494 = vpack.c.b16 %v477, %v476
      %v495 = vpack.c.b16 %v479, %v478
      %vm496 = vcmask 64512
      %v498 = vsel %vm496, %v480, 0
      %v501 = vsel %vm496, %v481, 0
      %v504 = vsel %vm496, %v482, 0
      %v507 = vsel %vm496, %v483, 0
      %v510 = vsel %vm496, %v484, 0
      %v513 = vsel %vm496, %v485, 0
      %v516 = vsel %vm496, %v486, 0
      %v519 = vsel %vm496, %v487, 0
      %v522 = vsel %vm496, %v488, 0
      %v525 = vsel %vm496, %v489, 0
      %v528 = vsel %vm496, %v490, 0
      %v531 = vsel %vm496, %v491, 0
      %v534 = vsel %vm496, %v492, 0
      %v537 = vsel %vm496, %v493, 0
      %v540 = vsel %vm496, %v494, 0
      %v543 = vsel %vm496, %v495, 0
      %vm545 = vcmask 1043456
      %v547 = vsel %vm545, %v383, 0
      %549 = vmatprep.subr.bf16.mxu0 0
      %550 = vmatpush1.bf16.msra.mxu0 %v547
      %551 = vmatprep.subr.bf16.mxu0 0
      %552 = vmatpush1.bf16.msra.mxu0 0
      %553 = vmatprep.subr.bf16.mxu0 0
      %554 = vmatpush1.bf16.msra.mxu0 0
      %555 = vmatprep.subr.bf16.mxu0 0
      %556 = vmatpush1.bf16.msra.mxu0 0
      %557 = vmatprep.subr.bf16.mxu0 0
      %558 = vmatpush1.bf16.msra.mxu0 0
      %559 = vmatprep.subr.bf16.mxu0 0
      %560 = vmatpush1.bf16.msra.mxu0 0
      %561 = vmatprep.subr.bf16.mxu0 0
      %562 = vmatpush1.bf16.msra.mxu0 0
      %563 = vmatprep.subr.bf16.mxu0 0
      %564 = vmatpush1.bf16.msra.mxu0 0
      %565 = vmatprep.subr.bf16.mxu0 0
      %566 = vmatpush1.bf16.msra.mxu0 0
      %567 = vmatprep.subr.bf16.mxu0 0
      %568 = vmatpush1.bf16.msra.mxu0 0
      %569 = vmatprep.subr.bf16.mxu0 0
      %570 = vmatpush1.bf16.msra.mxu0 0
      %571 = vmatprep.subr.bf16.mxu0 0
      %572 = vmatpush1.bf16.msra.mxu0 0
      %573 = vmatprep.subr.bf16.mxu0 0
      %574 = vmatpush1.bf16.msra.mxu0 0
      %575 = vmatprep.subr.bf16.mxu0 0
      %576 = vmatpush1.bf16.msra.mxu0 0
      %577 = vmatprep.subr.bf16.mxu0 0
      %578 = vmatpush1.bf16.msra.mxu0 0
      %579 = vmatprep.subr.bf16.mxu0 0
      %580 = vmatpush1.bf16.msra.mxu0 0
      %581 = vmatprep.mubr.bf16.mxu0 0
      %582 = vmatmul.mubr.bf16.gmra.mrb[0].mxu0 %v498
      %v583 = vpop.f32.mrb[0].mxu0
      %v584 = vadd.f32 0.0, %v583
      %v585 = vpop.f32.mrb[0].mxu0
      %v586 = vpop.f32.mrb[0].mxu0
      %v587 = vadd.f32 0.0, %v586
      %v588 = vpop.f32.mrb[0].mxu0
      %589 = vmatprep.mubr.bf16.mxu0 0
      %590 = vmatmul.mubr.bf16.gmra.mrb[0].mxu0 %v501
      %v591 = vpop.f32.mrb[0].mxu0
      %v592 = vadd.f32 0.0, %v591
      %v593 = vpop.f32.mrb[0].mxu0
      %v594 = vpop.f32.mrb[0].mxu0
      %v595 = vadd.f32 0.0, %v594
      %v596 = vpop.f32.mrb[0].mxu0
      %597 = vmatprep.mubr.bf16.mxu0 0
      %598 = vmatmul.mubr.bf16.gmra.mrb[0].mxu0 %v504
      %v599 = vpop.f32.mrb[0].mxu0
      %v600 = vadd.f32 0.0, %v599
      %v601 = vpop.f32.mrb[0].mxu0
      %v602 = vpop.f32.mrb[0].mxu0
      %v603 = vadd.f32 0.0, %v602
      %v604 = vpop.f32.mrb[0].mxu0
      %605 = vmatprep.mubr.bf16.mxu0 0
      %606 = vmatmul.mubr.bf16.gmra.mrb[0].mxu0 %v507
      %v607 = vpop.f32.mrb[0].mxu0
      %v608 = vadd.f32 0.0, %v607
      %v609 = vpop.f32.mrb[0].mxu0
      %v610 = vpop.f32.mrb[0].mxu0
      %v611 = vadd.f32 0.0, %v610
      %v612 = vpop.f32.mrb[0].mxu0
      %613 = vmatprep.mubr.bf16.mxu0 0
      %614 = vmatmul.mubr.bf16.gmra.mrb[0].mxu0 %v510
      %v615 = vpop.f32.mrb[0].mxu0
      %v616 = vadd.f32 0.0, %v615
      %v617 = vpop.f32.mrb[0].mxu0
      %v618 = vpop.f32.mrb[0].mxu0
      %v619 = vadd.f32 0.0, %v618
      %v620 = vpop.f32.mrb[0].mxu0
      %621 = vmatprep.mubr.bf16.mxu0 0
      %622 = vmatmul.mubr.bf16.gmra.mrb[0].mxu0 %v513
      %v623 = vpop.f32.mrb[0].mxu0
      %v624 = vadd.f32 0.0, %v623
      %v625 = vpop.f32.mrb[0].mxu0
      %v626 = vpop.f32.mrb[0].mxu0
      %v627 = vadd.f32 0.0, %v626
      %v628 = vpop.f32.mrb[0].mxu0
      %629 = vmatprep.mubr.bf16.mxu0 0
      %630 = vmatmul.mubr.bf16.gmra.mrb[0].mxu0 %v516
      %v631 = vpop.f32.mrb[0].mxu0
      %v632 = vadd.f32 0.0, %v631
      %v633 = vpop.f32.mrb[0].mxu0
      %v634 = vpop.f32.mrb[0].mxu0
      %v635 = vadd.f32 0.0, %v634
      %v636 = vpop.f32.mrb[0].mxu0
      %637 = vmatprep.mubr.bf16.mxu0 0
      %638 = vmatmul.mubr.bf16.gmra.mrb[0].mxu0 %v519
      %v639 = vpop.f32.mrb[0].mxu0
      %v640 = vadd.f32 0.0, %v639
      %v641 = vpop.f32.mrb[0].mxu0
      %v642 = vpop.f32.mrb[0].mxu0
      %v643 = vadd.f32 0.0, %v642
      %v644 = vpop.f32.mrb[0].mxu0
      %645 = vmatprep.mubr.bf16.mxu0 0
      %646 = vmatmul.mubr.bf16.gmra.mrb[0].mxu0 %v522
      %v647 = vpop.f32.mrb[0].mxu0
      %v648 = vadd.f32 0.0, %v647
      %v649 = vpop.f32.mrb[0].mxu0
      %v650 = vpop.f32.mrb[0].mxu0
      %v651 = vadd.f32 0.0, %v650
      %v652 = vpop.f32.mrb[0].mxu0
      %653 = vmatprep.mubr.bf16.mxu0 0
      %654 = vmatmul.mubr.bf16.gmra.mrb[0].mxu0 %v525
      %v655 = vpop.f32.mrb[0].mxu0
      %v656 = vadd.f32 0.0, %v655
      %v657 = vpop.f32.mrb[0].mxu0
      %v658 = vpop.f32.mrb[0].mxu0
      %v659 = vadd.f32 0.0, %v658
      %v660 = vpop.f32.mrb[0].mxu0
      %661 = vmatprep.mubr.bf16.mxu0 0
      %662 = vmatmul.mubr.bf16.gmra.mrb[0].mxu0 %v528
      %v663 = vpop.f32.mrb[0].mxu0
      %v664 = vadd.f32 0.0, %v663
      %v665 = vpop.f32.mrb[0].mxu0
      %v666 = vpop.f32.mrb[0].mxu0
      %v667 = vadd.f32 0.0, %v666
      %v668 = vpop.f32.mrb[0].mxu0
      %669 = vmatprep.mubr.bf16.mxu0 0
      %670 = vmatmul.mubr.bf16.gmra.mrb[0].mxu0 %v531
      %v671 = vpop.f32.mrb[0].mxu0
      %v672 = vadd.f32 0.0, %v671
      %v673 = vpop.f32.mrb[0].mxu0
      %v674 = vpop.f32.mrb[0].mxu0
      %v675 = vadd.f32 0.0, %v674
      %v676 = vpop.f32.mrb[0].mxu0
      %677 = vmatprep.mubr.bf16.mxu0 0
      %678 = vmatmul.mubr.bf16.gmra.mrb[0].mxu0 %v534
      %v679 = vpop.f32.mrb[0].mxu0
      %v680 = vadd.f32 0.0, %v679
      %v681 = vpop.f32.mrb[0].mxu0
      %v682 = vpop.f32.mrb[0].mxu0
      %v683 = vadd.f32 0.0, %v682
      %v684 = vpop.f32.mrb[0].mxu0
      %685 = vmatprep.mubr.bf16.mxu0 0
      %686 = vmatmul.mubr.bf16.gmra.mrb[0].mxu0 %v537
      %v687 = vpop.f32.mrb[0].mxu0
      %v688 = vadd.f32 0.0, %v687
      %v689 = vpop.f32.mrb[0].mxu0
      %v690 = vpop.f32.mrb[0].mxu0
      %v691 = vadd.f32 0.0, %v690
      %v692 = vpop.f32.mrb[0].mxu0
      %693 = vmatprep.mubr.bf16.mxu0 0
      %694 = vmatmul.mubr.bf16.gmra.mrb[0].mxu0 %v540
      %v695 = vpop.f32.mrb[0].mxu0
      %v696 = vadd.f32 0.0, %v695
      %v697 = vpop.f32.mrb[0].mxu0
      %v698 = vpop.f32.mrb[0].mxu0
      %v699 = vadd.f32 0.0, %v698
      %v700 = vpop.f32.mrb[0].mxu0
      %701 = vmatprep.mubr.bf16.mxu0 0
      %702 = vmatmul.mubr.bf16.gmra.mrb[0].mxu0 %v543
      %v703 = vpop.f32.mrb[0].mxu0
      %v704 = vadd.f32 0.0, %v703
      %v705 = vpop.f32.mrb[0].mxu0
      %v706 = vpop.f32.mrb[0].mxu0
      %v707 = vadd.f32 0.0, %v706
      %v708 = vpop.f32.mrb[0].mxu0
      %709 = vdwg.mxu0
      %v710 = vld [vmem:[%s5] sm:$0xf]
      %v711 = vld [vmem:[%s5 + $0x4] sm:$0xf]
      %v712 = vld [vmem:[%s5 + $0x8] sm:$0xf]
      %v713 = vld [vmem:[%s5 + $0xc] sm:$0xf]
      %v714 = vld [vmem:[%s5 + $0x10] sm:$0xf]
      %v715 = vld [vmem:[%s5 + $0x14] sm:$0xf]
      %v716 = vld [vmem:[%s5 + $0x18] sm:$0xf]
      %v717 = vld [vmem:[%s5 + $0x1c] sm:$0xf]
      %v718 = vld [vmem:[%s5 + $0x20] sm:$0xf]
      %v719 = vld [vmem:[%s5 + $0x24] sm:$0xf]
      %v720 = vld [vmem:[%s5 + $0x28] sm:$0xf]
      %v721 = vld [vmem:[%s5 + $0x2c] sm:$0xf]
      %v722 = vld [vmem:[%s5 + $0x30] sm:$0xf]
      %v723 = vld [vmem:[%s5 + $0x34] sm:$0xf]
      %v724 = vld [vmem:[%s5 + $0x38] sm:$0xf]
      %v725 = vld [vmem:[%s5 + $0x3c] sm:$0xf]
      %v726 = vld [vmem:[%s5 + $0x40] sm:$0xf]
      %v727 = vld [vmem:[%s5 + $0x44] sm:$0xf]
      %v728 = vld [vmem:[%s5 + $0x48] sm:$0xf]
      %v729 = vld [vmem:[%s5 + $0x4c] sm:$0xf]
      %v730 = vld [vmem:[%s5 + $0x50] sm:$0xf]
      %v731 = vld [vmem:[%s5 + $0x54] sm:$0xf]
      %v732 = vld [vmem:[%s5 + $0x58] sm:$0xf]
      %v733 = vld [vmem:[%s5 + $0x5c] sm:$0xf]
      %v734 = vld [vmem:[%s5 + $0x60] sm:$0xf]
      %v735 = vld [vmem:[%s5 + $0x64] sm:$0xf]
      %v736 = vld [vmem:[%s5 + $0x68] sm:$0xf]
      %v737 = vld [vmem:[%s5 + $0x6c] sm:$0xf]
      %v738 = vld [vmem:[%s5 + $0x70] sm:$0xf]
      %v739 = vld [vmem:[%s5 + $0x74] sm:$0xf]
      %v740 = vld [vmem:[%s5 + $0x78] sm:$0xf]
      %v741 = vld [vmem:[%s5 + $0x7c] sm:$0xf]
      %v774 = vunpack.c.l.b16 %v710
      %v775 = vunpack.c.l.b16 %v711
      %v776 = vunpack.c.l.b16 %v712
      %v777 = vunpack.c.l.b16 %v713
      %v778 = vunpack.c.l.b16 %v714
      %v779 = vunpack.c.l.b16 %v715
      %v780 = vunpack.c.l.b16 %v716
      %v781 = vunpack.c.l.b16 %v717
      %v782 = vunpack.c.l.b16 %v718
      %v783 = vunpack.c.l.b16 %v719
      %v784 = vunpack.c.l.b16 %v720
      %v785 = vunpack.c.l.b16 %v721
      %v786 = vunpack.c.l.b16 %v722
      %v787 = vunpack.c.l.b16 %v723
      %v788 = vunpack.c.l.b16 %v724
      %v789 = vunpack.c.l.b16 %v725
      %v790 = vunpack.c.l.b16 %v726
      %v791 = vunpack.c.l.b16 %v727
      %v792 = vunpack.c.l.b16 %v728
      %v793 = vunpack.c.l.b16 %v729
      %v794 = vunpack.c.l.b16 %v730
      %v795 = vunpack.c.l.b16 %v731
      %v796 = vunpack.c.l.b16 %v732
      %v797 = vunpack.c.l.b16 %v733
      %v798 = vunpack.c.l.b16 %v734
      %v799 = vunpack.c.l.b16 %v735
      %v800 = vunpack.c.l.b16 %v736
      %v801 = vunpack.c.l.b16 %v737
      %v802 = vunpack.c.l.b16 %v738
      %v803 = vunpack.c.l.b16 %v739
      %v804 = vunpack.c.l.b16 %v740
      %v805 = vunpack.c.l.b16 %v741
      %v806 = vpack.c.b16 %v775, %v774
      %v807 = vpack.c.b16 %v777, %v776
      %v808 = vpack.c.b16 %v779, %v778
      %v809 = vpack.c.b16 %v781, %v780
      %v810 = vpack.c.b16 %v783, %v782
      %v811 = vpack.c.b16 %v785, %v784
      %v812 = vpack.c.b16 %v787, %v786
      %v813 = vpack.c.b16 %v789, %v788
      %v814 = vpack.c.b16 %v791, %v790
      %v815 = vpack.c.b16 %v793, %v792
      %v816 = vpack.c.b16 %v795, %v794
      %v817 = vpack.c.b16 %v797, %v796
      %v818 = vpack.c.b16 %v799, %v798
      %v819 = vpack.c.b16 %v801, %v800
      %v820 = vpack.c.b16 %v803, %v802
      %v821 = vpack.c.b16 %v805, %v804
      %823 = vrot.lane.b32.xlu0 %v383, 96
      %v824 = vpop.permute.xlu0 %823
      %v826 = vsel %vm496, %v806, 0
      %v829 = vsel %vm496, %v807, 0
      %v832 = vsel %vm496, %v808, 0
      %v835 = vsel %vm496, %v809, 0
      %v838 = vsel %vm496, %v810, 0
      %v841 = vsel %vm496, %v811, 0
      %v844 = vsel %vm496, %v812, 0
      %v847 = vsel %vm496, %v813, 0
      %v850 = vsel %vm496, %v814, 0
      %v853 = vsel %vm496, %v815, 0
      %v856 = vsel %vm496, %v816, 0
      %v859 = vsel %vm496, %v817, 0
      %v862 = vsel %vm496, %v818, 0
      %v865 = vsel %vm496, %v819, 0
      %v868 = vsel %vm496, %v820, 0
      %v871 = vsel %vm496, %v821, 0
      %v874 = vsel %vm545, %v824, 0
      %876 = vmatprep.subr.bf16.mxu0 0
      %877 = vmatpush1.bf16.msra.mxu0 %v874
      %878 = vmatprep.subr.bf16.mxu0 0
      %879 = vmatpush1.bf16.msra.mxu0 0
      %880 = vmatprep.subr.bf16.mxu0 0
      %881 = vmatpush1.bf16.msra.mxu0 0
      %882 = vmatprep.subr.bf16.mxu0 0
      %883 = vmatpush1.bf16.msra.mxu0 0
      %884 = vmatprep.subr.bf16.mxu0 0
      %885 = vmatpush1.bf16.msra.mxu0 0
      %886 = vmatprep.subr.bf16.mxu0 0
      %887 = vmatpush1.bf16.msra.mxu0 0
      %888 = vmatprep.subr.bf16.mxu0 0
      %889 = vmatpush1.bf16.msra.mxu0 0
      %890 = vmatprep.subr.bf16.mxu0 0
      %891 = vmatpush1.bf16.msra.mxu0 0
      %892 = vmatprep.subr.bf16.mxu0 0
      %893 = vmatpush1.bf16.msra.mxu0 0
      %894 = vmatprep.subr.bf16.mxu0 0
      %895 = vmatpush1.bf16.msra.mxu0 0
      %896 = vmatprep.subr.bf16.mxu0 0
      %897 = vmatpush1.bf16.msra.mxu0 0
      %898 = vmatprep.subr.bf16.mxu0 0
      %899 = vmatpush1.bf16.msra.mxu0 0
      %900 = vmatprep.subr.bf16.mxu0 0
      %901 = vmatpush1.bf16.msra.mxu0 0
      %902 = vmatprep.subr.bf16.mxu0 0
      %903 = vmatpush1.bf16.msra.mxu0 0
      %904 = vmatprep.subr.bf16.mxu0 0
      %905 = vmatpush1.bf16.msra.mxu0 0
      %906 = vmatprep.subr.bf16.mxu0 0
      %907 = vmatpush1.bf16.msra.mxu0 0
      %908 = vmatprep.mubr.bf16.mxu0 0
      %909 = vmatmul.mubr.bf16.gmra.mrb[0].mxu0 %v826
      %v910 = vpop.f32.mrb[0].mxu0
      %v911 = vadd.f32 0.0, %v910
      %v912 = vpop.f32.mrb[0].mxu0
      %v913 = vpop.f32.mrb[0].mxu0
      %v914 = vadd.f32 0.0, %v913
      %v915 = vpop.f32.mrb[0].mxu0
      %916 = vmatprep.mubr.bf16.mxu0 0
      %917 = vmatmul.mubr.bf16.gmra.mrb[0].mxu0 %v829
      %v918 = vpop.f32.mrb[0].mxu0
      %v919 = vadd.f32 0.0, %v918
      %v920 = vpop.f32.mrb[0].mxu0
      %v921 = vpop.f32.mrb[0].mxu0
      %v922 = vadd.f32 0.0, %v921
      %v923 = vpop.f32.mrb[0].mxu0
      %924 = vmatprep.mubr.bf16.mxu0 0
      %925 = vmatmul.mubr.bf16.gmra.mrb[0].mxu0 %v832
      %v926 = vpop.f32.mrb[0].mxu0
      %v927 = vadd.f32 0.0, %v926
      %v928 = vpop.f32.mrb[0].mxu0
      %v929 = vpop.f32.mrb[0].mxu0
      %v930 = vadd.f32 0.0, %v929
      %v931 = vpop.f32.mrb[0].mxu0
      %932 = vmatprep.mubr.bf16.mxu0 0
      %933 = vmatmul.mubr.bf16.gmra.mrb[0].mxu0 %v835
      %v934 = vpop.f32.mrb[0].mxu0
      %v935 = vadd.f32 0.0, %v934
      %v936 = vpop.f32.mrb[0].mxu0
      %v937 = vpop.f32.mrb[0].mxu0
      %v938 = vadd.f32 0.0, %v937
      %v939 = vpop.f32.mrb[0].mxu0
      %940 = vmatprep.mubr.bf16.mxu0 0
      %941 = vmatmul.mubr.bf16.gmra.mrb[0].mxu0 %v838
      %v942 = vpop.f32.mrb[0].mxu0
      %v943 = vadd.f32 0.0, %v942
      %v944 = vpop.f32.mrb[0].mxu0
      %v945 = vpop.f32.mrb[0].mxu0
      %v946 = vadd.f32 0.0, %v945
      %v947 = vpop.f32.mrb[0].mxu0
      %948 = vmatprep.mubr.bf16.mxu0 0
      %949 = vmatmul.mubr.bf16.gmra.mrb[0].mxu0 %v841
      %v950 = vpop.f32.mrb[0].mxu0
      %v951 = vadd.f32 0.0, %v950
      %v952 = vpop.f32.mrb[0].mxu0
      %v953 = vpop.f32.mrb[0].mxu0
      %v954 = vadd.f32 0.0, %v953
      %v955 = vpop.f32.mrb[0].mxu0
      %956 = vmatprep.mubr.bf16.mxu0 0
      %957 = vmatmul.mubr.bf16.gmra.mrb[0].mxu0 %v844
      %v958 = vpop.f32.mrb[0].mxu0
      %v959 = vadd.f32 0.0, %v958
      %v960 = vpop.f32.mrb[0].mxu0
      %v961 = vpop.f32.mrb[0].mxu0
      %v962 = vadd.f32 0.0, %v961
      %v963 = vpop.f32.mrb[0].mxu0
      %964 = vmatprep.mubr.bf16.mxu0 0
      %965 = vmatmul.mubr.bf16.gmra.mrb[0].mxu0 %v847
      %v966 = vpop.f32.mrb[0].mxu0
      %v967 = vadd.f32 0.0, %v966
      %v968 = vpop.f32.mrb[0].mxu0
      %v969 = vpop.f32.mrb[0].mxu0
      %v970 = vadd.f32 0.0, %v969
      %v971 = vpop.f32.mrb[0].mxu0
      %972 = vmatprep.mubr.bf16.mxu0 0
      %973 = vmatmul.mubr.bf16.gmra.mrb[0].mxu0 %v850
      %v974 = vpop.f32.mrb[0].mxu0
      %v975 = vadd.f32 0.0, %v974
      %v976 = vpop.f32.mrb[0].mxu0
      %v977 = vpop.f32.mrb[0].mxu0
      %v978 = vadd.f32 0.0, %v977
      %v979 = vpop.f32.mrb[0].mxu0
      %980 = vmatprep.mubr.bf16.mxu0 0
      %981 = vmatmul.mubr.bf16.gmra.mrb[0].mxu0 %v853
      %v982 = vpop.f32.mrb[0].mxu0
      %v983 = vadd.f32 0.0, %v982
      %v984 = vpop.f32.mrb[0].mxu0
      %v985 = vpop.f32.mrb[0].mxu0
      %v986 = vadd.f32 0.0, %v985
      %v987 = vpop.f32.mrb[0].mxu0
      %988 = vmatprep.mubr.bf16.mxu0 0
      %989 = vmatmul.mubr.bf16.gmra.mrb[0].mxu0 %v856
      %v990 = vpop.f32.mrb[0].mxu0
      %v991 = vadd.f32 0.0, %v990
      %v992 = vpop.f32.mrb[0].mxu0
      %v993 = vpop.f32.mrb[0].mxu0
      %v994 = vadd.f32 0.0, %v993
      %v995 = vpop.f32.mrb[0].mxu0
      %996 = vmatprep.mubr.bf16.mxu0 0
      %997 = vmatmul.mubr.bf16.gmra.mrb[0].mxu0 %v859
      %v998 = vpop.f32.mrb[0].mxu0
      %v999 = vadd.f32 0.0, %v998
      %v1000 = vpop.f32.mrb[0].mxu0
      %v1001 = vpop.f32.mrb[0].mxu0
      %v1002 = vadd.f32 0.0, %v1001
      %v1003 = vpop.f32.mrb[0].mxu0
      %1004 = vmatprep.mubr.bf16.mxu0 0
      %1005 = vmatmul.mubr.bf16.gmra.mrb[0].mxu0 %v862
      %v1006 = vpop.f32.mrb[0].mxu0
      %v1007 = vadd.f32 0.0, %v1006
      %v1008 = vpop.f32.mrb[0].mxu0
      %v1009 = vpop.f32.mrb[0].mxu0
      %v1010 = vadd.f32 0.0, %v1009
      %v1011 = vpop.f32.mrb[0].mxu0
      %1012 = vmatprep.mubr.bf16.mxu0 0
      %1013 = vmatmul.mubr.bf16.gmra.mrb[0].mxu0 %v865
      %v1014 = vpop.f32.mrb[0].mxu0
      %v1015 = vadd.f32 0.0, %v1014
      %v1016 = vpop.f32.mrb[0].mxu0
      %v1017 = vpop.f32.mrb[0].mxu0
      %v1018 = vadd.f32 0.0, %v1017
      %v1019 = vpop.f32.mrb[0].mxu0
      %1020 = vmatprep.mubr.bf16.mxu0 0
      %1021 = vmatmul.mubr.bf16.gmra.mrb[0].mxu0 %v868
      %v1022 = vpop.f32.mrb[0].mxu0
      %v1023 = vadd.f32 0.0, %v1022
      %v1024 = vpop.f32.mrb[0].mxu0
      %v1025 = vpop.f32.mrb[0].mxu0
      %v1026 = vadd.f32 0.0, %v1025
      %v1027 = vpop.f32.mrb[0].mxu0
      %1028 = vmatprep.mubr.bf16.mxu0 0
      %1029 = vmatmul.mubr.bf16.gmra.mrb[0].mxu0 %v871
      %v1030 = vpop.f32.mrb[0].mxu0
      %v1031 = vadd.f32 0.0, %v1030
      %v1032 = vpop.f32.mrb[0].mxu0
      %v1033 = vpop.f32.mrb[0].mxu0
      %v1034 = vadd.f32 0.0, %v1033
      %v1035 = vpop.f32.mrb[0].mxu0
      %1036 = vdwg.mxu0
      %1037 = vxpose.xlu0.b32.start [1/16] %v584, 128
      %1038 = vxpose.xlu0.b32.cont [2/16] %v587, 128
      %1039 = vxpose.xlu0.b32.cont [3/16] %v592, 128
      %1040 = vxpose.xlu0.b32.cont [4/16] %v595, 128
      %1041 = vxpose.xlu0.b32.cont [5/16] %v600, 128
      %1042 = vxpose.xlu0.b32.cont [6/16] %v603, 128
      %1043 = vxpose.xlu0.b32.cont [7/16] %v608, 128
      %1044 = vxpose.xlu0.b32.cont [8/16] %v611, 128
      %1045 = vxpose.xlu0.b32.cont [9/16] %v616, 128
      %1046 = vxpose.xlu0.b32.cont [10/16] %v619, 128
      %1047 = vxpose.xlu0.b32.cont [11/16] %v624, 128
      %1048 = vxpose.xlu0.b32.cont [12/16] %v627, 128
      %1049 = vxpose.xlu0.b32.cont [13/16] %v632, 128
      %1050 = vxpose.xlu0.b32.cont [14/16] %v635, 128
      %1051 = vxpose.xlu0.b32.cont [15/16] %v640, 128
      %1052 = vxpose.xlu0.b32.end [16/16] %v643, 128
      %v1053 = vpop.trf.xlu0
      %v1054 = vpop.trf.xlu0
      %v1055 = vpop.trf.xlu0
      %v1056 = vpop.trf.xlu0
      %v1057 = vpop.trf.xlu0
      %v1058 = vpop.trf.xlu0
      %v1059 = vpop.trf.xlu0
      %v1060 = vpop.trf.xlu0
      %v1061 = vpop.trf.xlu0
      %v1062 = vpop.trf.xlu0
      %v1063 = vpop.trf.xlu0
      %v1064 = vpop.trf.xlu0
      %v1065 = vpop.trf.xlu0
      %v1066 = vpop.trf.xlu0
      %v1067 = vpop.trf.xlu0
      %v1068 = vpop.trf.xlu0
      %1069 = vxpose.xlu0.b32.start [1/16] %v648, 128
      %1070 = vxpose.xlu0.b32.cont [2/16] %v651, 128
      %1071 = vxpose.xlu0.b32.cont [3/16] %v656, 128
      %1072 = vxpose.xlu0.b32.cont [4/16] %v659, 128
      %1073 = vxpose.xlu0.b32.cont [5/16] %v664, 128
      %1074 = vxpose.xlu0.b32.cont [6/16] %v667, 128
      %1075 = vxpose.xlu0.b32.cont [7/16] %v672, 128
      %1076 = vxpose.xlu0.b32.cont [8/16] %v675, 128
      %1077 = vxpose.xlu0.b32.cont [9/16] %v680, 128
      %1078 = vxpose.xlu0.b32.cont [10/16] %v683, 128
      %1079 = vxpose.xlu0.b32.cont [11/16] %v688, 128
      %1080 = vxpose.xlu0.b32.cont [12/16] %v691, 128
      %1081 = vxpose.xlu0.b32.cont [13/16] %v696, 128
      %1082 = vxpose.xlu0.b32.cont [14/16] %v699, 128
      %1083 = vxpose.xlu0.b32.cont [15/16] %v704, 128
      %1084 = vxpose.xlu0.b32.end [16/16] %v707, 128
      %v1085 = vpop.trf.xlu0
      %v1086 = vpop.trf.xlu0
      %v1087 = vpop.trf.xlu0
      %v1088 = vpop.trf.xlu0
      %v1089 = vpop.trf.xlu0
      %v1090 = vpop.trf.xlu0
      %v1091 = vpop.trf.xlu0
      %v1092 = vpop.trf.xlu0
      %v1093 = vpop.trf.xlu0
      %v1094 = vpop.trf.xlu0
      %v1095 = vpop.trf.xlu0
      %v1096 = vpop.trf.xlu0
      %v1097 = vpop.trf.xlu0
      %v1098 = vpop.trf.xlu0
      %v1099 = vpop.trf.xlu0
      %v1100 = vpop.trf.xlu0
      %v1101 = vpack.c.bf16 %v1053, %v1053
      %v1102 = vpack.c.bf16 %v1085, %v1085
      %v1105 = vunpack.c.l.b16 %v1101
      %v1106 = vunpack.c.l.b16 %v1102
      %v1107 = vpack.c.b16 %v1106, %v1105
      %1109 = vst [vmem:[%s283] sm:$0xff] %v1107
      %v1110 = vpack.c.bf16 %v914, %v911
      %v1111 = vpack.c.bf16 %v922, %v919
      %v1112 = vpack.c.bf16 %v930, %v927
      %v1113 = vpack.c.bf16 %v938, %v935
      %v1114 = vpack.c.bf16 %v946, %v943
      %v1115 = vpack.c.bf16 %v954, %v951
      %v1116 = vpack.c.bf16 %v962, %v959
      %v1117 = vpack.c.bf16 %v970, %v967
      %v1118 = vpack.c.bf16 %v978, %v975
      %v1119 = vpack.c.bf16 %v986, %v983
      %v1120 = vpack.c.bf16 %v994, %v991
      %v1121 = vpack.c.bf16 %v1002, %v999
      %v1122 = vpack.c.bf16 %v1010, %v1007
      %v1123 = vpack.c.bf16 %v1018, %v1015
      %v1124 = vpack.c.bf16 %v1026, %v1023
      %v1125 = vpack.c.bf16 %v1034, %v1031
      %v1142 = vunpack.c.l.b16 %v1110
      %v1143 = vunpack.c.h.b16 %v1110
      %v1144 = vunpack.c.l.b16 %v1111
      %v1145 = vunpack.c.h.b16 %v1111
      %v1146 = vunpack.c.l.b16 %v1112
      %v1147 = vunpack.c.h.b16 %v1112
      %v1148 = vunpack.c.l.b16 %v1113
      %v1149 = vunpack.c.h.b16 %v1113
      %v1150 = vunpack.c.l.b16 %v1114
      %v1151 = vunpack.c.h.b16 %v1114
      %v1152 = vunpack.c.l.b16 %v1115
      %v1153 = vunpack.c.h.b16 %v1115
      %v1154 = vunpack.c.l.b16 %v1116
      %v1155 = vunpack.c.h.b16 %v1116
      %v1156 = vunpack.c.l.b16 %v1117
      %v1157 = vunpack.c.h.b16 %v1117
      %v1158 = vunpack.c.l.b16 %v1118
      %v1159 = vunpack.c.h.b16 %v1118
      %v1160 = vunpack.c.l.b16 %v1119
      %v1161 = vunpack.c.h.b16 %v1119
      %v1162 = vunpack.c.l.b16 %v1120
      %v1163 = vunpack.c.h.b16 %v1120
      %v1164 = vunpack.c.l.b16 %v1121
      %v1165 = vunpack.c.h.b16 %v1121
      %v1166 = vunpack.c.l.b16 %v1122
      %v1167 = vunpack.c.h.b16 %v1122
      %v1168 = vunpack.c.l.b16 %v1123
      %v1169 = vunpack.c.h.b16 %v1123
      %v1170 = vunpack.c.l.b16 %v1124
      %v1171 = vunpack.c.h.b16 %v1124
      %v1172 = vunpack.c.l.b16 %v1125
      %v1173 = vunpack.c.h.b16 %v1125
      %v1174 = vpack.c.b16 %v1142, %v1142
      %v1175 = vpack.c.b16 %v1143, %v1143
      %v1176 = vpack.c.b16 %v1144, %v1144
      %v1177 = vpack.c.b16 %v1145, %v1145
      %v1178 = vpack.c.b16 %v1146, %v1146
      %v1179 = vpack.c.b16 %v1147, %v1147
      %v1180 = vpack.c.b16 %v1148, %v1148
      %v1181 = vpack.c.b16 %v1149, %v1149
      %v1182 = vpack.c.b16 %v1150, %v1150
      %v1183 = vpack.c.b16 %v1151, %v1151
      %v1184 = vpack.c.b16 %v1152, %v1152
      %v1185 = vpack.c.b16 %v1153, %v1153
      %v1186 = vpack.c.b16 %v1154, %v1154
      %v1187 = vpack.c.b16 %v1155, %v1155
      %v1188 = vpack.c.b16 %v1156, %v1156
      %v1189 = vpack.c.b16 %v1157, %v1157
      %v1190 = vpack.c.b16 %v1158, %v1158
      %v1191 = vpack.c.b16 %v1159, %v1159
      %v1192 = vpack.c.b16 %v1160, %v1160
      %v1193 = vpack.c.b16 %v1161, %v1161
      %v1194 = vpack.c.b16 %v1162, %v1162
      %v1195 = vpack.c.b16 %v1163, %v1163
      %v1196 = vpack.c.b16 %v1164, %v1164
      %v1197 = vpack.c.b16 %v1165, %v1165
      %v1198 = vpack.c.b16 %v1166, %v1166
      %v1199 = vpack.c.b16 %v1167, %v1167
      %v1200 = vpack.c.b16 %v1168, %v1168
      %v1201 = vpack.c.b16 %v1169, %v1169
      %v1202 = vpack.c.b16 %v1170, %v1170
      %v1203 = vpack.c.b16 %v1171, %v1171
      %v1204 = vpack.c.b16 %v1172, %v1172
      %v1205 = vpack.c.b16 %v1173, %v1173
      %vm1238 = vcmask 60416
      %1239 = vst.msk [vmem:[%s288] sm:$0xf] %vm1238, %v1174
      %1240 = vst.msk [vmem:[%s288 + $0x4] sm:$0xf] %vm1238, %v1175
      %1241 = vst.msk [vmem:[%s288 + $0x8] sm:$0xf] %vm1238, %v1176
      %1242 = vst.msk [vmem:[%s288 + $0xc] sm:$0xf] %vm1238, %v1177
      %1243 = vst.msk [vmem:[%s288 + $0x10] sm:$0xf] %vm1238, %v1178
      %1244 = vst.msk [vmem:[%s288 + $0x14] sm:$0xf] %vm1238, %v1179
      %1245 = vst.msk [vmem:[%s288 + $0x18] sm:$0xf] %vm1238, %v1180
      %1246 = vst.msk [vmem:[%s288 + $0x1c] sm:$0xf] %vm1238, %v1181
      %1247 = vst.msk [vmem:[%s288 + $0x20] sm:$0xf] %vm1238, %v1182
      %1248 = vst.msk [vmem:[%s288 + $0x24] sm:$0xf] %vm1238, %v1183
      %1249 = vst.msk [vmem:[%s288 + $0x28] sm:$0xf] %vm1238, %v1184
      %1250 = vst.msk [vmem:[%s288 + $0x2c] sm:$0xf] %vm1238, %v1185
      %1251 = vst.msk [vmem:[%s288 + $0x30] sm:$0xf] %vm1238, %v1186
      %1252 = vst.msk [vmem:[%s288 + $0x34] sm:$0xf] %vm1238, %v1187
      %1253 = vst.msk [vmem:[%s288 + $0x38] sm:$0xf] %vm1238, %v1188
      %1254 = vst.msk [vmem:[%s288 + $0x3c] sm:$0xf] %vm1238, %v1189
      %1255 = vst.msk [vmem:[%s288 + $0x40] sm:$0xf] %vm1238, %v1190
      %1256 = vst.msk [vmem:[%s288 + $0x44] sm:$0xf] %vm1238, %v1191
      %1257 = vst.msk [vmem:[%s288 + $0x48] sm:$0xf] %vm1238, %v1192
      %1258 = vst.msk [vmem:[%s288 + $0x4c] sm:$0xf] %vm1238, %v1193
      %1259 = vst.msk [vmem:[%s288 + $0x50] sm:$0xf] %vm1238, %v1194
      %1260 = vst.msk [vmem:[%s288 + $0x54] sm:$0xf] %vm1238, %v1195
      %1261 = vst.msk [vmem:[%s288 + $0x58] sm:$0xf] %vm1238, %v1196
      %1262 = vst.msk [vmem:[%s288 + $0x5c] sm:$0xf] %vm1238, %v1197
      %1263 = vst.msk [vmem:[%s288 + $0x60] sm:$0xf] %vm1238, %v1198
      %1264 = vst.msk [vmem:[%s288 + $0x64] sm:$0xf] %vm1238, %v1199
      %1265 = vst.msk [vmem:[%s288 + $0x68] sm:$0xf] %vm1238, %v1200
      %1266 = vst.msk [vmem:[%s288 + $0x6c] sm:$0xf] %vm1238, %v1201
      %1267 = vst.msk [vmem:[%s288 + $0x70] sm:$0xf] %vm1238, %v1202
      %1268 = vst.msk [vmem:[%s288 + $0x74] sm:$0xf] %vm1238, %v1203
      %1269 = vst.msk [vmem:[%s288 + $0x78] sm:$0xf] %vm1238, %v1204
      %1270 = vst.msk [vmem:[%s288 + $0x7c] sm:$0xf] %vm1238, %v1205
      %1303 = vrot.lane.b32.xlu0 %v584, 120
      %v1304 = vpop.permute.xlu0 %1303
      %1305 = vrot.lane.b32.xlu0 %v587, 120
      %v1306 = vpop.permute.xlu0 %1305
      %1307 = vrot.lane.b32.xlu0 %v592, 120
      %v1308 = vpop.permute.xlu0 %1307
      %1309 = vrot.lane.b32.xlu0 %v595, 120
      %v1310 = vpop.permute.xlu0 %1309
      %1311 = vrot.lane.b32.xlu0 %v600, 120
      %v1312 = vpop.permute.xlu0 %1311
      %1313 = vrot.lane.b32.xlu0 %v603, 120
      %v1314 = vpop.permute.xlu0 %1313
      %1315 = vrot.lane.b32.xlu0 %v608, 120
      %v1316 = vpop.permute.xlu0 %1315
      %1317 = vrot.lane.b32.xlu0 %v611, 120
      %v1318 = vpop.permute.xlu0 %1317
      %1319 = vrot.lane.b32.xlu0 %v616, 120
      %v1320 = vpop.permute.xlu0 %1319
      %1321 = vrot.lane.b32.xlu0 %v619, 120
      %v1322 = vpop.permute.xlu0 %1321
      %1323 = vrot.lane.b32.xlu0 %v624, 120
      %v1324 = vpop.permute.xlu0 %1323
      %1325 = vrot.lane.b32.xlu0 %v627, 120
      %v1326 = vpop.permute.xlu0 %1325
      %1327 = vrot.lane.b32.xlu0 %v632, 120
      %v1328 = vpop.permute.xlu0 %1327
      %1329 = vrot.lane.b32.xlu0 %v635, 120
      %v1330 = vpop.permute.xlu0 %1329
      %1331 = vrot.lane.b32.xlu0 %v640, 120
      %v1332 = vpop.permute.xlu0 %1331
      %1333 = vrot.lane.b32.xlu0 %v643, 120
      %v1334 = vpop.permute.xlu0 %1333
      %1335 = vrot.lane.b32.xlu0 %v648, 120
      %v1336 = vpop.permute.xlu0 %1335
      %1337 = vrot.lane.b32.xlu0 %v651, 120
      %v1338 = vpop.permute.xlu0 %1337
      %1339 = vrot.lane.b32.xlu0 %v656, 120
      %v1340 = vpop.permute.xlu0 %1339
      %1341 = vrot.lane.b32.xlu0 %v659, 120
      %v1342 = vpop.permute.xlu0 %1341
      %1343 = vrot.lane.b32.xlu0 %v664, 120
      %v1344 = vpop.permute.xlu0 %1343
      %1345 = vrot.lane.b32.xlu0 %v667, 120
      %v1346 = vpop.permute.xlu0 %1345
      %1347 = vrot.lane.b32.xlu0 %v672, 120
      %v1348 = vpop.permute.xlu0 %1347
      %1349 = vrot.lane.b32.xlu0 %v675, 120
      %v1350 = vpop.permute.xlu0 %1349
      %1351 = vrot.lane.b32.xlu0 %v680, 120
      %v1352 = vpop.permute.xlu0 %1351
      %1353 = vrot.lane.b32.xlu0 %v683, 120
      %v1354 = vpop.permute.xlu0 %1353
      %1355 = vrot.lane.b32.xlu0 %v688, 120
      %v1356 = vpop.permute.xlu0 %1355
      %1357 = vrot.lane.b32.xlu0 %v691, 120
      %v1358 = vpop.permute.xlu0 %1357
      %1359 = vrot.lane.b32.xlu0 %v696, 120
      %v1360 = vpop.permute.xlu0 %1359
      %1361 = vrot.lane.b32.xlu0 %v699, 120
      %v1362 = vpop.permute.xlu0 %1361
      %1363 = vrot.lane.b32.xlu0 %v704, 120
      %v1364 = vpop.permute.xlu0 %1363
      %1365 = vrot.lane.b32.xlu0 %v707, 120
      %v1366 = vpop.permute.xlu0 %1365
      %1399 = vxpose.xlu0.b32.start [1/16] %v1304, 128
      %1400 = vxpose.xlu0.b32.cont [2/16] %v1306, 128
      %1401 = vxpose.xlu0.b32.cont [3/16] %v1308, 128
      %1402 = vxpose.xlu0.b32.cont [4/16] %v1310, 128
      %1403 = vxpose.xlu0.b32.cont [5/16] %v1312, 128
      %1404 = vxpose.xlu0.b32.cont [6/16] %v1314, 128
      %1405 = vxpose.xlu0.b32.cont [7/16] %v1316, 128
      %1406 = vxpose.xlu0.b32.cont [8/16] %v1318, 128
      %1407 = vxpose.xlu0.b32.cont [9/16] %v1320, 128
      %1408 = vxpose.xlu0.b32.cont [10/16] %v1322, 128
      %1409 = vxpose.xlu0.b32.cont [11/16] %v1324, 128
      %1410 = vxpose.xlu0.b32.cont [12/16] %v1326, 128
      %1411 = vxpose.xlu0.b32.cont [13/16] %v1328, 128
      %1412 = vxpose.xlu0.b32.cont [14/16] %v1330, 128
      %1413 = vxpose.xlu0.b32.cont [15/16] %v1332, 128
      %1414 = vxpose.xlu0.b32.end [16/16] %v1334, 128
      %v1415 = vpop.trf.xlu0
      %v1416 = vpop.trf.xlu0
      %v1417 = vpop.trf.xlu0
      %v1418 = vpop.trf.xlu0
      %v1419 = vpop.trf.xlu0
      %v1420 = vpop.trf.xlu0
      %v1421 = vpop.trf.xlu0
      %v1422 = vpop.trf.xlu0
      %v1423 = vpop.trf.xlu0
      %v1424 = vpop.trf.xlu0
      %v1425 = vpop.trf.xlu0
      %v1426 = vpop.trf.xlu0
      %v1427 = vpop.trf.xlu0
      %v1428 = vpop.trf.xlu0
      %v1429 = vpop.trf.xlu0
      %v1430 = vpop.trf.xlu0
      %1431 = vxpose.xlu0.b32.start [1/16] %v1336, 128
      %1432 = vxpose.xlu0.b32.cont [2/16] %v1338, 128
      %1433 = vxpose.xlu0.b32.cont [3/16] %v1340, 128
      %1434 = vxpose.xlu0.b32.cont [4/16] %v1342, 128
      %1435 = vxpose.xlu0.b32.cont [5/16] %v1344, 128
      %1436 = vxpose.xlu0.b32.cont [6/16] %v1346, 128
      %1437 = vxpose.xlu0.b32.cont [7/16] %v1348, 128
      %1438 = vxpose.xlu0.b32.cont [8/16] %v1350, 128
      %1439 = vxpose.xlu0.b32.cont [9/16] %v1352, 128
      %1440 = vxpose.xlu0.b32.cont [10/16] %v1354, 128
      %1441 = vxpose.xlu0.b32.cont [11/16] %v1356, 128
      %1442 = vxpose.xlu0.b32.cont [12/16] %v1358, 128
      %1443 = vxpose.xlu0.b32.cont [13/16] %v1360, 128
      %1444 = vxpose.xlu0.b32.cont [14/16] %v1362, 128
      %1445 = vxpose.xlu0.b32.cont [15/16] %v1364, 128
      %1446 = vxpose.xlu0.b32.end [16/16] %v1366, 128
      %v1447 = vpop.trf.xlu0
      %v1448 = vpop.trf.xlu0
      %v1449 = vpop.trf.xlu0
      %v1450 = vpop.trf.xlu0
      %v1451 = vpop.trf.xlu0
      %v1452 = vpop.trf.xlu0
      %v1453 = vpop.trf.xlu0
      %v1454 = vpop.trf.xlu0
      %v1455 = vpop.trf.xlu0
      %v1456 = vpop.trf.xlu0
      %v1457 = vpop.trf.xlu0
      %v1458 = vpop.trf.xlu0
      %v1459 = vpop.trf.xlu0
      %v1460 = vpop.trf.xlu0
      %v1461 = vpop.trf.xlu0
      %v1462 = vpop.trf.xlu0
      %v1463 = vpack.c.bf16 %v1415, %v1415
      %v1464 = vpack.c.bf16 %v1447, %v1447
      %v1467 = vunpack.c.l.b16 %v1463
      %v1468 = vunpack.c.l.b16 %v1464
      %v1469 = vpack.c.b16 %v1468, %v1467
      %s1471 = scalar_lea.vmem %s283, 8
      %1472 = vst [vmem:[%s1471] sm:$0xff] %v1469
      %1473 = vrot.lane.b32.xlu0 %v1174, 120
      %v1474 = vpop.permute.xlu0 %1473
      %1475 = vrot.lane.b32.xlu0 %v1175, 120
      %v1476 = vpop.permute.xlu0 %1475
      %1477 = vrot.lane.b32.xlu0 %v1176, 120
      %v1478 = vpop.permute.xlu0 %1477
      %1479 = vrot.lane.b32.xlu0 %v1177, 120
      %v1480 = vpop.permute.xlu0 %1479
      %1481 = vrot.lane.b32.xlu0 %v1178, 120
      %v1482 = vpop.permute.xlu0 %1481
      %1483 = vrot.lane.b32.xlu0 %v1179, 120
      %v1484 = vpop.permute.xlu0 %1483
      %1485 = vrot.lane.b32.xlu0 %v1180, 120
      %v1486 = vpop.permute.xlu0 %1485
      %1487 = vrot.lane.b32.xlu0 %v1181, 120
      %v1488 = vpop.permute.xlu0 %1487
      %1489 = vrot.lane.b32.xlu0 %v1182, 120
      %v1490 = vpop.permute.xlu0 %1489
      %1491 = vrot.lane.b32.xlu0 %v1183, 120
      %v1492 = vpop.permute.xlu0 %1491
      %1493 = vrot.lane.b32.xlu0 %v1184, 120
      %v1494 = vpop.permute.xlu0 %1493
      %1495 = vrot.lane.b32.xlu0 %v1185, 120
      %v1496 = vpop.permute.xlu0 %1495
      %1497 = vrot.lane.b32.xlu0 %v1186, 120
      %v1498 = vpop.permute.xlu0 %1497
      %1499 = vrot.lane.b32.xlu0 %v1187, 120
      %v1500 = vpop.permute.xlu0 %1499
      %1501 = vrot.lane.b32.xlu0 %v1188, 120
      %v1502 = vpop.permute.xlu0 %1501
      %1503 = vrot.lane.b32.xlu0 %v1189, 120
      %v1504 = vpop.permute.xlu0 %1503
      %1505 = vrot.lane.b32.xlu0 %v1190, 120
      %v1506 = vpop.permute.xlu0 %1505
      %1507 = vrot.lane.b32.xlu0 %v1191, 120
      %v1508 = vpop.permute.xlu0 %1507
      %1509 = vrot.lane.b32.xlu0 %v1192, 120
      %v1510 = vpop.permute.xlu0 %1509
      %1511 = vrot.lane.b32.xlu0 %v1193, 120
      %v1512 = vpop.permute.xlu0 %1511
      %1513 = vrot.lane.b32.xlu0 %v1194, 120
      %v1514 = vpop.permute.xlu0 %1513
      %1515 = vrot.lane.b32.xlu0 %v1195, 120
      %v1516 = vpop.permute.xlu0 %1515
      %1517 = vrot.lane.b32.xlu0 %v1196, 120
      %v1518 = vpop.permute.xlu0 %1517
      %1519 = vrot.lane.b32.xlu0 %v1197, 120
      %v1520 = vpop.permute.xlu0 %1519
      %1521 = vrot.lane.b32.xlu0 %v1198, 120
      %v1522 = vpop.permute.xlu0 %1521
      %1523 = vrot.lane.b32.xlu0 %v1199, 120
      %v1524 = vpop.permute.xlu0 %1523
      %1525 = vrot.lane.b32.xlu0 %v1200, 120
      %v1526 = vpop.permute.xlu0 %1525
      %1527 = vrot.lane.b32.xlu0 %v1201, 120
      %v1528 = vpop.permute.xlu0 %1527
      %1529 = vrot.lane.b32.xlu0 %v1202, 120
      %v1530 = vpop.permute.xlu0 %1529
      %1531 = vrot.lane.b32.xlu0 %v1203, 120
      %v1532 = vpop.permute.xlu0 %1531
      %1533 = vrot.lane.b32.xlu0 %v1204, 120
      %v1534 = vpop.permute.xlu0 %1533
      %1535 = vrot.lane.b32.xlu0 %v1205, 120
      %v1536 = vpop.permute.xlu0 %1535
      %s1569 = scalar_lea.vmem %s288, 128
      %1570 = vst.msk [vmem:[%s1569] sm:$0xf] %vm1238, %v1474
      %1571 = vst.msk [vmem:[%s1569 + $0x4] sm:$0xf] %vm1238, %v1476
      %1572 = vst.msk [vmem:[%s1569 + $0x8] sm:$0xf] %vm1238, %v1478
      %1573 = vst.msk [vmem:[%s1569 + $0xc] sm:$0xf] %vm1238, %v1480
      %1574 = vst.msk [vmem:[%s1569 + $0x10] sm:$0xf] %vm1238, %v1482
      %1575 = vst.msk [vmem:[%s1569 + $0x14] sm:$0xf] %vm1238, %v1484
      %1576 = vst.msk [vmem:[%s1569 + $0x18] sm:$0xf] %vm1238, %v1486
      %1577 = vst.msk [vmem:[%s1569 + $0x1c] sm:$0xf] %vm1238, %v1488
      %1578 = vst.msk [vmem:[%s1569 + $0x20] sm:$0xf] %vm1238, %v1490
      %1579 = vst.msk [vmem:[%s1569 + $0x24] sm:$0xf] %vm1238, %v1492
      %1580 = vst.msk [vmem:[%s1569 + $0x28] sm:$0xf] %vm1238, %v1494
      %1581 = vst.msk [vmem:[%s1569 + $0x2c] sm:$0xf] %vm1238, %v1496
      %1582 = vst.msk [vmem:[%s1569 + $0x30] sm:$0xf] %vm1238, %v1498
      %1583 = vst.msk [vmem:[%s1569 + $0x34] sm:$0xf] %vm1238, %v1500
      %1584 = vst.msk [vmem:[%s1569 + $0x38] sm:$0xf] %vm1238, %v1502
      %1585 = vst.msk [vmem:[%s1569 + $0x3c] sm:$0xf] %vm1238, %v1504
      %1586 = vst.msk [vmem:[%s1569 + $0x40] sm:$0xf] %vm1238, %v1506
      %1587 = vst.msk [vmem:[%s1569 + $0x44] sm:$0xf] %vm1238, %v1508
      %1588 = vst.msk [vmem:[%s1569 + $0x48] sm:$0xf] %vm1238, %v1510
      %1589 = vst.msk [vmem:[%s1569 + $0x4c] sm:$0xf] %vm1238, %v1512
      %1590 = vst.msk [vmem:[%s1569 + $0x50] sm:$0xf] %vm1238, %v1514
      %1591 = vst.msk [vmem:[%s1569 + $0x54] sm:$0xf] %vm1238, %v1516
      %1592 = vst.msk [vmem:[%s1569 + $0x58] sm:$0xf] %vm1238, %v1518
      %1593 = vst.msk [vmem:[%s1569 + $0x5c] sm:$0xf] %vm1238, %v1520
      %1594 = vst.msk [vmem:[%s1569 + $0x60] sm:$0xf] %vm1238, %v1522
      %1595 = vst.msk [vmem:[%s1569 + $0x64] sm:$0xf] %vm1238, %v1524
      %1596 = vst.msk [vmem:[%s1569 + $0x68] sm:$0xf] %vm1238, %v1526
      %1597 = vst.msk [vmem:[%s1569 + $0x6c] sm:$0xf] %vm1238, %v1528
      %1598 = vst.msk [vmem:[%s1569 + $0x70] sm:$0xf] %vm1238, %v1530
      %1599 = vst.msk [vmem:[%s1569 + $0x74] sm:$0xf] %vm1238, %v1532
      %1600 = vst.msk [vmem:[%s1569 + $0x78] sm:$0xf] %vm1238, %v1534
      %1601 = vst.msk [vmem:[%s1569 + $0x7c] sm:$0xf] %vm1238, %v1536
      %1602 = vrot.lane.b32.xlu0 %v584, 112
      %v1603 = vpop.permute.xlu0 %1602
      %1604 = vrot.lane.b32.xlu0 %v587, 112
      %v1605 = vpop.permute.xlu0 %1604
      %1606 = vrot.lane.b32.xlu0 %v592, 112
      %v1607 = vpop.permute.xlu0 %1606
      %1608 = vrot.lane.b32.xlu0 %v595, 112
      %v1609 = vpop.permute.xlu0 %1608
      %1610 = vrot.lane.b32.xlu0 %v600, 112
      %v1611 = vpop.permute.xlu0 %1610
      %1612 = vrot.lane.b32.xlu0 %v603, 112
      %v1613 = vpop.permute.xlu0 %1612
      %1614 = vrot.lane.b32.xlu0 %v608, 112
      %v1615 = vpop.permute.xlu0 %1614
      %1616 = vrot.lane.b32.xlu0 %v611, 112
      %v1617 = vpop.permute.xlu0 %1616
      %1618 = vrot.lane.b32.xlu0 %v616, 112
      %v1619 = vpop.permute.xlu0 %1618
      %1620 = vrot.lane.b32.xlu0 %v619, 112
      %v1621 = vpop.permute.xlu0 %1620
      %1622 = vrot.lane.b32.xlu0 %v624, 112
      %v1623 = vpop.permute.xlu0 %1622
      %1624 = vrot.lane.b32.xlu0 %v627, 112
      %v1625 = vpop.permute.xlu0 %1624
      %1626 = vrot.lane.b32.xlu0 %v632, 112
      %v1627 = vpop.permute.xlu0 %1626
      %1628 = vrot.lane.b32.xlu0 %v635, 112
      %v1629 = vpop.permute.xlu0 %1628
      %1630 = vrot.lane.b32.xlu0 %v640, 112
      %v1631 = vpop.permute.xlu0 %1630
      %1632 = vrot.lane.b32.xlu0 %v643, 112
      %v1633 = vpop.permute.xlu0 %1632
      %1634 = vrot.lane.b32.xlu0 %v648, 112
      %v1635 = vpop.permute.xlu0 %1634
      %1636 = vrot.lane.b32.xlu0 %v651, 112
      %v1637 = vpop.permute.xlu0 %1636
      %1638 = vrot.lane.b32.xlu0 %v656, 112
      %v1639 = vpop.permute.xlu0 %1638
      %1640 = vrot.lane.b32.xlu0 %v659, 112
      %v1641 = vpop.permute.xlu0 %1640
      %1642 = vrot.lane.b32.xlu0 %v664, 112
      %v1643 = vpop.permute.xlu0 %1642
      %1644 = vrot.lane.b32.xlu0 %v667, 112
      %v1645 = vpop.permute.xlu0 %1644
      %1646 = vrot.lane.b32.xlu0 %v672, 112
      %v1647 = vpop.permute.xlu0 %1646
      %1648 = vrot.lane.b32.xlu0 %v675, 112
      %v1649 = vpop.permute.xlu0 %1648
      %1650 = vrot.lane.b32.xlu0 %v680, 112
      %v1651 = vpop.permute.xlu0 %1650
      %1652 = vrot.lane.b32.xlu0 %v683, 112
      %v1653 = vpop.permute.xlu0 %1652
      %1654 = vrot.lane.b32.xlu0 %v688, 112
      %v1655 = vpop.permute.xlu0 %1654
      %1656 = vrot.lane.b32.xlu0 %v691, 112
      %v1657 = vpop.permute.xlu0 %1656
      %1658 = vrot.lane.b32.xlu0 %v696, 112
      %v1659 = vpop.permute.xlu0 %1658
      %1660 = vrot.lane.b32.xlu0 %v699, 112
      %v1661 = vpop.permute.xlu0 %1660
      %1662 = vrot.lane.b32.xlu0 %v704, 112
      %v1663 = vpop.permute.xlu0 %1662
      %1664 = vrot.lane.b32.xlu0 %v707, 112
      %v1665 = vpop.permute.xlu0 %1664
      %1698 = vxpose.xlu0.b32.start [1/16] %v1603, 128
      %1699 = vxpose.xlu0.b32.cont [2/16] %v1605, 128
      %1700 = vxpose.xlu0.b32.cont [3/16] %v1607, 128
      %1701 = vxpose.xlu0.b32.cont [4/16] %v1609, 128
      %1702 = vxpose.xlu0.b32.cont [5/16] %v1611, 128
      %1703 = vxpose.xlu0.b32.cont [6/16] %v1613, 128
      %1704 = vxpose.xlu0.b32.cont [7/16] %v1615, 128
      %1705 = vxpose.xlu0.b32.cont [8/16] %v1617, 128
      %1706 = vxpose.xlu0.b32.cont [9/16] %v1619, 128
      %1707 = vxpose.xlu0.b32.cont [10/16] %v1621, 128
      %1708 = vxpose.xlu0.b32.cont [11/16] %v1623, 128
      %1709 = vxpose.xlu0.b32.cont [12/16] %v1625, 128
      %1710 = vxpose.xlu0.b32.cont [13/16] %v1627, 128
      %1711 = vxpose.xlu0.b32.cont [14/16] %v1629, 128
      %1712 = vxpose.xlu0.b32.cont [15/16] %v1631, 128
      %1713 = vxpose.xlu0.b32.end [16/16] %v1633, 128
      %v1714 = vpop.trf.xlu0
      %v1715 = vpop.trf.xlu0
      %v1716 = vpop.trf.xlu0
      %v1717 = vpop.trf.xlu0
      %v1718 = vpop.trf.xlu0
      %v1719 = vpop.trf.xlu0
      %v1720 = vpop.trf.xlu0
      %v1721 = vpop.trf.xlu0
      %v1722 = vpop.trf.xlu0
      %v1723 = vpop.trf.xlu0
      %v1724 = vpop.trf.xlu0
      %v1725 = vpop.trf.xlu0
      %v1726 = vpop.trf.xlu0
      %v1727 = vpop.trf.xlu0
      %v1728 = vpop.trf.xlu0
      %v1729 = vpop.trf.xlu0
      %1730 = vxpose.xlu0.b32.start [1/16] %v1635, 128
      %1731 = vxpose.xlu0.b32.cont [2/16] %v1637, 128
      %1732 = vxpose.xlu0.b32.cont [3/16] %v1639, 128
      %1733 = vxpose.xlu0.b32.cont [4/16] %v1641, 128
      %1734 = vxpose.xlu0.b32.cont [5/16] %v1643, 128
      %1735 = vxpose.xlu0.b32.cont [6/16] %v1645, 128
      %1736 = vxpose.xlu0.b32.cont [7/16] %v1647, 128
      %1737 = vxpose.xlu0.b32.cont [8/16] %v1649, 128
      %1738 = vxpose.xlu0.b32.cont [9/16] %v1651, 128
      %1739 = vxpose.xlu0.b32.cont [10/16] %v1653, 128
      %1740 = vxpose.xlu0.b32.cont [11/16] %v1655, 128
      %1741 = vxpose.xlu0.b32.cont [12/16] %v1657, 128
      %1742 = vxpose.xlu0.b32.cont [13/16] %v1659, 128
      %1743 = vxpose.xlu0.b32.cont [14/16] %v1661, 128
      %1744 = vxpose.xlu0.b32.cont [15/16] %v1663, 128
      %1745 = vxpose.xlu0.b32.end [16/16] %v1665, 128
      %v1746 = vpop.trf.xlu0
      %v1747 = vpop.trf.xlu0
      %v1748 = vpop.trf.xlu0
      %v1749 = vpop.trf.xlu0
      %v1750 = vpop.trf.xlu0
      %v1751 = vpop.trf.xlu0
      %v1752 = vpop.trf.xlu0
      %v1753 = vpop.trf.xlu0
      %v1754 = vpop.trf.xlu0
      %v1755 = vpop.trf.xlu0
      %v1756 = vpop.trf.xlu0
      %v1757 = vpop.trf.xlu0
      %v1758 = vpop.trf.xlu0
      %v1759 = vpop.trf.xlu0
      %v1760 = vpop.trf.xlu0
      %v1761 = vpop.trf.xlu0
      %v1762 = vpack.c.bf16 %v1714, %v1714
      %v1763 = vpack.c.bf16 %v1746, %v1746
      %v1766 = vunpack.c.l.b16 %v1762
      %v1767 = vunpack.c.l.b16 %v1763
      %v1768 = vpack.c.b16 %v1767, %v1766
      %s1770 = scalar_lea.vmem %s283, 16
      %1771 = vst [vmem:[%s1770] sm:$0xff] %v1768
      %1772 = vrot.lane.b32.xlu0 %v1174, 112
      %v1773 = vpop.permute.xlu0 %1772
      %1774 = vrot.lane.b32.xlu0 %v1175, 112
      %v1775 = vpop.permute.xlu0 %1774
      %1776 = vrot.lane.b32.xlu0 %v1176, 112
      %v1777 = vpop.permute.xlu0 %1776
      %1778 = vrot.lane.b32.xlu0 %v1177, 112
      %v1779 = vpop.permute.xlu0 %1778
      %1780 = vrot.lane.b32.xlu0 %v1178, 112
      %v1781 = vpop.permute.xlu0 %1780
      %1782 = vrot.lane.b32.xlu0 %v1179, 112
      %v1783 = vpop.permute.xlu0 %1782
      %1784 = vrot.lane.b32.xlu0 %v1180, 112
      %v1785 = vpop.permute.xlu0 %1784
      %1786 = vrot.lane.b32.xlu0 %v1181, 112
      %v1787 = vpop.permute.xlu0 %1786
      %1788 = vrot.lane.b32.xlu0 %v1182, 112
      %v1789 = vpop.permute.xlu0 %1788
      %1790 = vrot.lane.b32.xlu0 %v1183, 112
      %v1791 = vpop.permute.xlu0 %1790
      %1792 = vrot.lane.b32.xlu0 %v1184, 112
      %v1793 = vpop.permute.xlu0 %1792
      %1794 = vrot.lane.b32.xlu0 %v1185, 112
      %v1795 = vpop.permute.xlu0 %1794
      %1796 = vrot.lane.b32.xlu0 %v1186, 112
      %v1797 = vpop.permute.xlu0 %1796
      %1798 = vrot.lane.b32.xlu0 %v1187, 112
      %v1799 = vpop.permute.xlu0 %1798
      %1800 = vrot.lane.b32.xlu0 %v1188, 112
      %v1801 = vpop.permute.xlu0 %1800
      %1802 = vrot.lane.b32.xlu0 %v1189, 112
      %v1803 = vpop.permute.xlu0 %1802
      %1804 = vrot.lane.b32.xlu0 %v1190, 112
      %v1805 = vpop.permute.xlu0 %1804
      %1806 = vrot.lane.b32.xlu0 %v1191, 112
      %v1807 = vpop.permute.xlu0 %1806
      %1808 = vrot.lane.b32.xlu0 %v1192, 112
      %v1809 = vpop.permute.xlu0 %1808
      %1810 = vrot.lane.b32.xlu0 %v1193, 112
      %v1811 = vpop.permute.xlu0 %1810
      %1812 = vrot.lane.b32.xlu0 %v1194, 112
      %v1813 = vpop.permute.xlu0 %1812
      %1814 = vrot.lane.b32.xlu0 %v1195, 112
      %v1815 = vpop.permute.xlu0 %1814
      %1816 = vrot.lane.b32.xlu0 %v1196, 112
      %v1817 = vpop.permute.xlu0 %1816
      %1818 = vrot.lane.b32.xlu0 %v1197, 112
      %v1819 = vpop.permute.xlu0 %1818
      %1820 = vrot.lane.b32.xlu0 %v1198, 112
      %v1821 = vpop.permute.xlu0 %1820
      %1822 = vrot.lane.b32.xlu0 %v1199, 112
      %v1823 = vpop.permute.xlu0 %1822
      %1824 = vrot.lane.b32.xlu0 %v1200, 112
      %v1825 = vpop.permute.xlu0 %1824
      %1826 = vrot.lane.b32.xlu0 %v1201, 112
      %v1827 = vpop.permute.xlu0 %1826
      %1828 = vrot.lane.b32.xlu0 %v1202, 112
      %v1829 = vpop.permute.xlu0 %1828
      %1830 = vrot.lane.b32.xlu0 %v1203, 112
      %v1831 = vpop.permute.xlu0 %1830
      %1832 = vrot.lane.b32.xlu0 %v1204, 112
      %v1833 = vpop.permute.xlu0 %1832
      %1834 = vrot.lane.b32.xlu0 %v1205, 112
      %v1835 = vpop.permute.xlu0 %1834
      %s1868 = scalar_lea.vmem %s288, 256
      %1869 = vst.msk [vmem:[%s1868] sm:$0xf] %vm1238, %v1773
      %1870 = vst.msk [vmem:[%s1868 + $0x4] sm:$0xf] %vm1238, %v1775
      %1871 = vst.msk [vmem:[%s1868 + $0x8] sm:$0xf] %vm1238, %v1777
      %1872 = vst.msk [vmem:[%s1868 + $0xc] sm:$0xf] %vm1238, %v1779
      %1873 = vst.msk [vmem:[%s1868 + $0x10] sm:$0xf] %vm1238, %v1781
      %1874 = vst.msk [vmem:[%s1868 + $0x14] sm:$0xf] %vm1238, %v1783
      %1875 = vst.msk [vmem:[%s1868 + $0x18] sm:$0xf] %vm1238, %v1785
      %1876 = vst.msk [vmem:[%s1868 + $0x1c] sm:$0xf] %vm1238, %v1787
      %1877 = vst.msk [vmem:[%s1868 + $0x20] sm:$0xf] %vm1238, %v1789
      %1878 = vst.msk [vmem:[%s1868 + $0x24] sm:$0xf] %vm1238, %v1791
      %1879 = vst.msk [vmem:[%s1868 + $0x28] sm:$0xf] %vm1238, %v1793
      %1880 = vst.msk [vmem:[%s1868 + $0x2c] sm:$0xf] %vm1238, %v1795
      %1881 = vst.msk [vmem:[%s1868 + $0x30] sm:$0xf] %vm1238, %v1797
      %1882 = vst.msk [vmem:[%s1868 + $0x34] sm:$0xf] %vm1238, %v1799
      %1883 = vst.msk [vmem:[%s1868 + $0x38] sm:$0xf] %vm1238, %v1801
      %1884 = vst.msk [vmem:[%s1868 + $0x3c] sm:$0xf] %vm1238, %v1803
      %1885 = vst.msk [vmem:[%s1868 + $0x40] sm:$0xf] %vm1238, %v1805
      %1886 = vst.msk [vmem:[%s1868 + $0x44] sm:$0xf] %vm1238, %v1807
      %1887 = vst.msk [vmem:[%s1868 + $0x48] sm:$0xf] %vm1238, %v1809
      %1888 = vst.msk [vmem:[%s1868 + $0x4c] sm:$0xf] %vm1238, %v1811
      %1889 = vst.msk [vmem:[%s1868 + $0x50] sm:$0xf] %vm1238, %v1813
      %1890 = vst.msk [vmem:[%s1868 + $0x54] sm:$0xf] %vm1238, %v1815
      %1891 = vst.msk [vmem:[%s1868 + $0x58] sm:$0xf] %vm1238, %v1817
      %1892 = vst.msk [vmem:[%s1868 + $0x5c] sm:$0xf] %vm1238, %v1819
      %1893 = vst.msk [vmem:[%s1868 + $0x60] sm:$0xf] %vm1238, %v1821
      %1894 = vst.msk [vmem:[%s1868 + $0x64] sm:$0xf] %vm1238, %v1823
      %1895 = vst.msk [vmem:[%s1868 + $0x68] sm:$0xf] %vm1238, %v1825
      %1896 = vst.msk [vmem:[%s1868 + $0x6c] sm:$0xf] %vm1238, %v1827
      %1897 = vst.msk [vmem:[%s1868 + $0x70] sm:$0xf] %vm1238, %v1829
      %1898 = vst.msk [vmem:[%s1868 + $0x74] sm:$0xf] %vm1238, %v1831
      %1899 = vst.msk [vmem:[%s1868 + $0x78] sm:$0xf] %vm1238, %v1833
      %1900 = vst.msk [vmem:[%s1868 + $0x7c] sm:$0xf] %vm1238, %v1835
      %1901 = vrot.lane.b32.xlu0 %v584, 104
      %v1902 = vpop.permute.xlu0 %1901
      %1903 = vrot.lane.b32.xlu0 %v587, 104
      %v1904 = vpop.permute.xlu0 %1903
      %1905 = vrot.lane.b32.xlu0 %v592, 104
      %v1906 = vpop.permute.xlu0 %1905
      %1907 = vrot.lane.b32.xlu0 %v595, 104
      %v1908 = vpop.permute.xlu0 %1907
      %1909 = vrot.lane.b32.xlu0 %v600, 104
      %v1910 = vpop.permute.xlu0 %1909
      %1911 = vrot.lane.b32.xlu0 %v603, 104
      %v1912 = vpop.permute.xlu0 %1911
      %1913 = vrot.lane.b32.xlu0 %v608, 104
      %v1914 = vpop.permute.xlu0 %1913
      %1915 = vrot.lane.b32.xlu0 %v611, 104
      %v1916 = vpop.permute.xlu0 %1915
      %1917 = vrot.lane.b32.xlu0 %v616, 104
      %v1918 = vpop.permute.xlu0 %1917
      %1919 = vrot.lane.b32.xlu0 %v619, 104
      %v1920 = vpop.permute.xlu0 %1919
      %1921 = vrot.lane.b32.xlu0 %v624, 104
      %v1922 = vpop.permute.xlu0 %1921
      %1923 = vrot.lane.b32.xlu0 %v627, 104
      %v1924 = vpop.permute.xlu0 %1923
      %1925 = vrot.lane.b32.xlu0 %v632, 104
      %v1926 = vpop.permute.xlu0 %1925
      %1927 = vrot.lane.b32.xlu0 %v635, 104
      %v1928 = vpop.permute.xlu0 %1927
      %1929 = vrot.lane.b32.xlu0 %v640, 104
      %v1930 = vpop.permute.xlu0 %1929
      %1931 = vrot.lane.b32.xlu0 %v643, 104
      %v1932 = vpop.permute.xlu0 %1931
      %1933 = vrot.lane.b32.xlu0 %v648, 104
      %v1934 = vpop.permute.xlu0 %1933
      %1935 = vrot.lane.b32.xlu0 %v651, 104
      %v1936 = vpop.permute.xlu0 %1935
      %1937 = vrot.lane.b32.xlu0 %v656, 104
      %v1938 = vpop.permute.xlu0 %1937
      %1939 = vrot.lane.b32.xlu0 %v659, 104
      %v1940 = vpop.permute.xlu0 %1939
      %1941 = vrot.lane.b32.xlu0 %v664, 104
      %v1942 = vpop.permute.xlu0 %1941
      %1943 = vrot.lane.b32.xlu0 %v667, 104
      %v1944 = vpop.permute.xlu0 %1943
      %1945 = vrot.lane.b32.xlu0 %v672, 104
      %v1946 = vpop.permute.xlu0 %1945
      %1947 = vrot.lane.b32.xlu0 %v675, 104
      %v1948 = vpop.permute.xlu0 %1947
      %1949 = vrot.lane.b32.xlu0 %v680, 104
      %v1950 = vpop.permute.xlu0 %1949
      %1951 = vrot.lane.b32.xlu0 %v683, 104
      %v1952 = vpop.permute.xlu0 %1951
      %1953 = vrot.lane.b32.xlu0 %v688, 104
      %v1954 = vpop.permute.xlu0 %1953
      %1955 = vrot.lane.b32.xlu0 %v691, 104
      %v1956 = vpop.permute.xlu0 %1955
      %1957 = vrot.lane.b32.xlu0 %v696, 104
      %v1958 = vpop.permute.xlu0 %1957
      %1959 = vrot.lane.b32.xlu0 %v699, 104
      %v1960 = vpop.permute.xlu0 %1959
      %1961 = vrot.lane.b32.xlu0 %v704, 104
      %v1962 = vpop.permute.xlu0 %1961
      %1963 = vrot.lane.b32.xlu0 %v707, 104
      %v1964 = vpop.permute.xlu0 %1963
      %1997 = vxpose.xlu0.b32.start [1/16] %v1902, 128
      %1998 = vxpose.xlu0.b32.cont [2/16] %v1904, 128
      %1999 = vxpose.xlu0.b32.cont [3/16] %v1906, 128
      %2000 = vxpose.xlu0.b32.cont [4/16] %v1908, 128
      %2001 = vxpose.xlu0.b32.cont [5/16] %v1910, 128
      %2002 = vxpose.xlu0.b32.cont [6/16] %v1912, 128
      %2003 = vxpose.xlu0.b32.cont [7/16] %v1914, 128
      %2004 = vxpose.xlu0.b32.cont [8/16] %v1916, 128
      %2005 = vxpose.xlu0.b32.cont [9/16] %v1918, 128
      %2006 = vxpose.xlu0.b32.cont [10/16] %v1920, 128
      %2007 = vxpose.xlu0.b32.cont [11/16] %v1922, 128
      %2008 = vxpose.xlu0.b32.cont [12/16] %v1924, 128
      %2009 = vxpose.xlu0.b32.cont [13/16] %v1926, 128
      %2010 = vxpose.xlu0.b32.cont [14/16] %v1928, 128
      %2011 = vxpose.xlu0.b32.cont [15/16] %v1930, 128
      %2012 = vxpose.xlu0.b32.end [16/16] %v1932, 128
      %v2013 = vpop.trf.xlu0
      %v2014 = vpop.trf.xlu0
      %v2015 = vpop.trf.xlu0
      %v2016 = vpop.trf.xlu0
      %v2017 = vpop.trf.xlu0
      %v2018 = vpop.trf.xlu0
      %v2019 = vpop.trf.xlu0
      %v2020 = vpop.trf.xlu0
      %v2021 = vpop.trf.xlu0
      %v2022 = vpop.trf.xlu0
      %v2023 = vpop.trf.xlu0
      %v2024 = vpop.trf.xlu0
      %v2025 = vpop.trf.xlu0
      %v2026 = vpop.trf.xlu0
      %v2027 = vpop.trf.xlu0
      %v2028 = vpop.trf.xlu0
      %2029 = vxpose.xlu0.b32.start [1/16] %v1934, 128
      %2030 = vxpose.xlu0.b32.cont [2/16] %v1936, 128
      %2031 = vxpose.xlu0.b32.cont [3/16] %v1938, 128
      %2032 = vxpose.xlu0.b32.cont [4/16] %v1940, 128
      %2033 = vxpose.xlu0.b32.cont [5/16] %v1942, 128
      %2034 = vxpose.xlu0.b32.cont [6/16] %v1944, 128
      %2035 = vxpose.xlu0.b32.cont [7/16] %v1946, 128
      %2036 = vxpose.xlu0.b32.cont [8/16] %v1948, 128
      %2037 = vxpose.xlu0.b32.cont [9/16] %v1950, 128
      %2038 = vxpose.xlu0.b32.cont [10/16] %v1952, 128
      %2039 = vxpose.xlu0.b32.cont [11/16] %v1954, 128
      %2040 = vxpose.xlu0.b32.cont [12/16] %v1956, 128
      %2041 = vxpose.xlu0.b32.cont [13/16] %v1958, 128
      %2042 = vxpose.xlu0.b32.cont [14/16] %v1960, 128
      %2043 = vxpose.xlu0.b32.cont [15/16] %v1962, 128
      %2044 = vxpose.xlu0.b32.end [16/16] %v1964, 128
      %v2045 = vpop.trf.xlu0
      %v2046 = vpop.trf.xlu0
      %v2047 = vpop.trf.xlu0
      %v2048 = vpop.trf.xlu0
      %v2049 = vpop.trf.xlu0
      %v2050 = vpop.trf.xlu0
      %v2051 = vpop.trf.xlu0
      %v2052 = vpop.trf.xlu0
      %v2053 = vpop.trf.xlu0
      %v2054 = vpop.trf.xlu0
      %v2055 = vpop.trf.xlu0
      %v2056 = vpop.trf.xlu0
      %v2057 = vpop.trf.xlu0
      %v2058 = vpop.trf.xlu0
      %v2059 = vpop.trf.xlu0
      %v2060 = vpop.trf.xlu0
      %v2061 = vpack.c.bf16 %v2013, %v2013
      %v2062 = vpack.c.bf16 %v2045, %v2045
      %v2065 = vunpack.c.l.b16 %v2061
      %v2066 = vunpack.c.l.b16 %v2062
      %v2067 = vpack.c.b16 %v2066, %v2065
      %s2069 = scalar_lea.vmem %s283, 24
      %2070 = vst [vmem:[%s2069] sm:$0xff] %v2067
      %2071 = vrot.lane.b32.xlu0 %v1174, 104
      %v2072 = vpop.permute.xlu0 %2071
      %2073 = vrot.lane.b32.xlu0 %v1175, 104
      %v2074 = vpop.permute.xlu0 %2073
      %2075 = vrot.lane.b32.xlu0 %v1176, 104
      %v2076 = vpop.permute.xlu0 %2075
      %2077 = vrot.lane.b32.xlu0 %v1177, 104
      %v2078 = vpop.permute.xlu0 %2077
      %2079 = vrot.lane.b32.xlu0 %v1178, 104
      %v2080 = vpop.permute.xlu0 %2079
      %2081 = vrot.lane.b32.xlu0 %v1179, 104
      %v2082 = vpop.permute.xlu0 %2081
      %2083 = vrot.lane.b32.xlu0 %v1180, 104
      %v2084 = vpop.permute.xlu0 %2083
      %2085 = vrot.lane.b32.xlu0 %v1181, 104
      %v2086 = vpop.permute.xlu0 %2085
      %2087 = vrot.lane.b32.xlu0 %v1182, 104
      %v2088 = vpop.permute.xlu0 %2087
      %2089 = vrot.lane.b32.xlu0 %v1183, 104
      %v2090 = vpop.permute.xlu0 %2089
      %2091 = vrot.lane.b32.xlu0 %v1184, 104
      %v2092 = vpop.permute.xlu0 %2091
      %2093 = vrot.lane.b32.xlu0 %v1185, 104
      %v2094 = vpop.permute.xlu0 %2093
      %2095 = vrot.lane.b32.xlu0 %v1186, 104
      %v2096 = vpop.permute.xlu0 %2095
      %2097 = vrot.lane.b32.xlu0 %v1187, 104
      %v2098 = vpop.permute.xlu0 %2097
      %2099 = vrot.lane.b32.xlu0 %v1188, 104
      %v2100 = vpop.permute.xlu0 %2099
      %2101 = vrot.lane.b32.xlu0 %v1189, 104
      %v2102 = vpop.permute.xlu0 %2101
      %2103 = vrot.lane.b32.xlu0 %v1190, 104
      %v2104 = vpop.permute.xlu0 %2103
      %2105 = vrot.lane.b32.xlu0 %v1191, 104
      %v2106 = vpop.permute.xlu0 %2105
      %2107 = vrot.lane.b32.xlu0 %v1192, 104
      %v2108 = vpop.permute.xlu0 %2107
      %2109 = vrot.lane.b32.xlu0 %v1193, 104
      %v2110 = vpop.permute.xlu0 %2109
      %2111 = vrot.lane.b32.xlu0 %v1194, 104
      %v2112 = vpop.permute.xlu0 %2111
      %2113 = vrot.lane.b32.xlu0 %v1195, 104
      %v2114 = vpop.permute.xlu0 %2113
      %2115 = vrot.lane.b32.xlu0 %v1196, 104
      %v2116 = vpop.permute.xlu0 %2115
      %2117 = vrot.lane.b32.xlu0 %v1197, 104
      %v2118 = vpop.permute.xlu0 %2117
      %2119 = vrot.lane.b32.xlu0 %v1198, 104
      %v2120 = vpop.permute.xlu0 %2119
      %2121 = vrot.lane.b32.xlu0 %v1199, 104
      %v2122 = vpop.permute.xlu0 %2121
      %2123 = vrot.lane.b32.xlu0 %v1200, 104
      %v2124 = vpop.permute.xlu0 %2123
      %2125 = vrot.lane.b32.xlu0 %v1201, 104
      %v2126 = vpop.permute.xlu0 %2125
      %2127 = vrot.lane.b32.xlu0 %v1202, 104
      %v2128 = vpop.permute.xlu0 %2127
      %2129 = vrot.lane.b32.xlu0 %v1203, 104
      %v2130 = vpop.permute.xlu0 %2129
      %2131 = vrot.lane.b32.xlu0 %v1204, 104
      %v2132 = vpop.permute.xlu0 %2131
      %2133 = vrot.lane.b32.xlu0 %v1205, 104
      %v2134 = vpop.permute.xlu0 %2133
      %s2167 = scalar_lea.vmem %s288, 384
      %2168 = vst.msk [vmem:[%s2167] sm:$0xf] %vm1238, %v2072
      %2169 = vst.msk [vmem:[%s2167 + $0x4] sm:$0xf] %vm1238, %v2074
      %2170 = vst.msk [vmem:[%s2167 + $0x8] sm:$0xf] %vm1238, %v2076
      %2171 = vst.msk [vmem:[%s2167 + $0xc] sm:$0xf] %vm1238, %v2078
      %2172 = vst.msk [vmem:[%s2167 + $0x10] sm:$0xf] %vm1238, %v2080
      %2173 = vst.msk [vmem:[%s2167 + $0x14] sm:$0xf] %vm1238, %v2082
      %2174 = vst.msk [vmem:[%s2167 + $0x18] sm:$0xf] %vm1238, %v2084
      %2175 = vst.msk [vmem:[%s2167 + $0x1c] sm:$0xf] %vm1238, %v2086
      %2176 = vst.msk [vmem:[%s2167 + $0x20] sm:$0xf] %vm1238, %v2088
      %2177 = vst.msk [vmem:[%s2167 + $0x24] sm:$0xf] %vm1238, %v2090
      %2178 = vst.msk [vmem:[%s2167 + $0x28] sm:$0xf] %vm1238, %v2092
      %2179 = vst.msk [vmem:[%s2167 + $0x2c] sm:$0xf] %vm1238, %v2094
      %2180 = vst.msk [vmem:[%s2167 + $0x30] sm:$0xf] %vm1238, %v2096
      %2181 = vst.msk [vmem:[%s2167 + $0x34] sm:$0xf] %vm1238, %v2098
      %2182 = vst.msk [vmem:[%s2167 + $0x38] sm:$0xf] %vm1238, %v2100
      %2183 = vst.msk [vmem:[%s2167 + $0x3c] sm:$0xf] %vm1238, %v2102
      %2184 = vst.msk [vmem:[%s2167 + $0x40] sm:$0xf] %vm1238, %v2104
      %2185 = vst.msk [vmem:[%s2167 + $0x44] sm:$0xf] %vm1238, %v2106
      %2186 = vst.msk [vmem:[%s2167 + $0x48] sm:$0xf] %vm1238, %v2108
      %2187 = vst.msk [vmem:[%s2167 + $0x4c] sm:$0xf] %vm1238, %v2110
      %2188 = vst.msk [vmem:[%s2167 + $0x50] sm:$0xf] %vm1238, %v2112
      %2189 = vst.msk [vmem:[%s2167 + $0x54] sm:$0xf] %vm1238, %v2114
      %2190 = vst.msk [vmem:[%s2167 + $0x58] sm:$0xf] %vm1238, %v2116
      %2191 = vst.msk [vmem:[%s2167 + $0x5c] sm:$0xf] %vm1238, %v2118
      %2192 = vst.msk [vmem:[%s2167 + $0x60] sm:$0xf] %vm1238, %v2120
      %2193 = vst.msk [vmem:[%s2167 + $0x64] sm:$0xf] %vm1238, %v2122
      %2194 = vst.msk [vmem:[%s2167 + $0x68] sm:$0xf] %vm1238, %v2124
      %2195 = vst.msk [vmem:[%s2167 + $0x6c] sm:$0xf] %vm1238, %v2126
      %2196 = vst.msk [vmem:[%s2167 + $0x70] sm:$0xf] %vm1238, %v2128
      %2197 = vst.msk [vmem:[%s2167 + $0x74] sm:$0xf] %vm1238, %v2130
      %2198 = vst.msk [vmem:[%s2167 + $0x78] sm:$0xf] %vm1238, %v2132
      %2199 = vst.msk [vmem:[%s2167 + $0x7c] sm:$0xf] %vm1238, %v2134
      %p2200 = scmp.lt.s32.totalorder %s19, 1
      %s2201 = scalar_select %p2200, %s19, 1
      %s2202 = smul.addr %s2201, 8
      %s2203 = smul.addr %s2202, 4
      %s2204 = scalar_lea.vmem %s6, %s2203
      %p2205 = scmp.lt.s32.totalorder %s19, 1
      %s2206 = scalar_select %p2205, %s19, 1
      %s2207 = smul.addr %s2206, 128
      %s2208 = smul.addr %s2207, 4
      %s2209 = scalar_lea.vmem %s7, %s2208
      // Predicated region
      $region45: #{linformer_forward.5} parent=43 // pred_check
        %p2210 = pneg %p168
      $region46: #{linformer_forward.5} parent=43 // pred_check_branch
        %2212 = sbr.rel (%p2210) target = $region48
      $region47: #{linformer_forward.5} parent=43 // pred_region
        _
      $region48: #{linformer_forward.5} parent=43 // pred_fallthru
        _
      // Predicated region
      $region49: #{linformer_forward.5} parent=43 // pred_check
        %p2213 = pneg %p194
      $region50: #{linformer_forward.5} parent=43 // pred_check_branch
        %2215 = sbr.rel (%p2213) target = $region52
      $region51: #{linformer_forward.5} parent=43 // pred_region
        _
      $region52: #{linformer_forward.5} parent=43 // pred_fallthru
        _
    $region44: #{linformer_forward.5} parent=5 // pred_fallthru
      _
    %p2216 = scmp.le.s32.totalorder 2, %s14
    // Predicated region
    $region53: #{linformer_forward.5} parent=5 // pred_check
      %p2217 = pneg %p2216
    $region54: #{linformer_forward.5} parent=5 // pred_check_branch
      %2219 = sbr.rel (%p2217) target = $region56
    $region55: #{linformer_forward.5} parent=5 // pred_region
      %s2220 = ssub.s32 %s14, 2
      // Predicated region
      $region57: #{linformer_forward.5} parent=55 // pred_check
        %p2221 = pneg %p174
      $region58: #{linformer_forward.5} parent=55 // pred_check_branch
        %2223 = sbr.rel (%p2221) target = $region60
      $region59: #{linformer_forward.5} parent=55 // pred_region
        %p2224 = scmp.lt.s32.totalorder %s20, 1
        %s2225 = scalar_select %p2224, %s20, 1
        %s2226 = smul.addr %s2225, 8
        %s2227 = smul.addr %s2226, 4
        %s2228 = scalar_lea.vmem %s6, %s2227
      $region60: #{linformer_forward.5} parent=55 // pred_fallthru
        _
      // Predicated region
      $region61: #{linformer_forward.5} parent=55 // pred_check
        %p2229 = pneg %p200
      $region62: #{linformer_forward.5} parent=55 // pred_check_branch
        %2231 = sbr.rel (%p2229) target = $region64
      $region63: #{linformer_forward.5} parent=55 // pred_region
        %p2232 = scmp.lt.s32.totalorder %s20, 1
        %s2233 = scalar_select %p2232, %s20, 1
        %s2234 = smul.addr %s2233, 128
        %s2235 = smul.addr %s2234, 4
        %s2236 = scalar_lea.vmem %s7, %s2235
      $region64: #{linformer_forward.5} parent=55 // pred_fallthru
        _
    $region56: #{linformer_forward.5} parent=5 // pred_fallthru
      _
  $region6: #{linformer_forward.5} parent=0 // loop_footer
    %s18 = sadd.s32 1, %s14
  $region7: #{linformer_forward.5} parent=0 // loop_footer_branch
    %13 = sbr.rel target = $region3
  $region8: #{linformer_forward.5} parent=0 // loop_exit
    _

// kernel: linformer_forward.6
$region0: #{linformer_forward.6}
  #allocation0 [shape = 'u32[]', space=smem, size = 0x4, offset = 0x4, fixed_abs, tag = 'smem constant byte address 0x4 - core index']
  #allocation1 [shape = 'u32[144,128]{1,0:T(1,128)}', space=vmem, size = 0x12000, scoped, tag = 'internal scratch']
  #allocation2 [shape = 'bf16[8,32]{1,0:T(8,128)(2,1)}', space=vmem, size = 0x800, scoped, tag = 'scratch operand']
  %s0 = inlined_call_operand.vmem [shape: bf16[2,8,32], index: 0, kind: input, shape index: {}]
  %s1 = inlined_call_operand.vmem [shape: bf16[2,4,8,256], index: 1, kind: input, shape index: {}]
  %s2 = inlined_call_operand.vmem [shape: bf16[2,4,256,8], index: 2, kind: input, shape index: {}]
  %s3 = inlined_call_operand.vmem [shape: f32[1,32], index: 3, kind: input, shape index: {}]
  %s4 = inlined_call_operand.vmem [shape: f32[1,32], index: 4, kind: input, shape index: {}]
  %s5 = inlined_call_operand.vmem [shape: bf16[32,32], index: 5, kind: input, shape index: {}]
  %s6 = inlined_call_operand.vmem [shape: bf16[32,32], index: 6, kind: input, shape index: {}]
  %s7 = inlined_call_operand.vmem [shape: f32[1,32], index: 7, kind: input, shape index: {}]
  %s8 = inlined_call_operand.vmem [shape: f32[1,32], index: 8, kind: input, shape index: {}]
  %s9 = inlined_call_operand.vmem [shape: f32[1,32], index: 9, kind: input, shape index: {}]
  %s10 = inlined_call_operand.vmem [shape: bf16[32,128], index: 10, kind: input, shape index: {}]
  %s11 = inlined_call_operand.vmem [shape: f32[1,128], index: 11, kind: input, shape index: {}]
  %s12 = inlined_call_operand.vmem [shape: bf16[128,32], index: 12, kind: input, shape index: {}]
  %s13 = inlined_call_operand.vmem [shape: f32[1,32], index: 13, kind: input, shape index: {}]
  %s14 = inlined_call_operand.vmem [shape: bf16[2,8,32], index: 14, kind: output, shape index: {}]
  %s15 = sld [smem:[#allocation0]]
  $region89: #{linformer_forward.6} parent=0
    _
  %s17 = ssub.s32 1, %s15
  %s18 = scalar_select 0, %s17, %s15
  loop: start=0, step=1, limit=4
  $region2: #{linformer_forward.6} parent=0 // loop_pre_header
    _
  $region3: #{linformer_forward.6} parent=0 // loop_header
    %s20 = sphi 0, %s24
    %p21 = scmp.ge.s32.totalorder %s20, 4
    %s27 = sphi 0, %s39
    %s28 = sphi 0, %s35
    %s29 = sphi 0, %s27
    %s30 = sphi 0, %s28
    %s31 = sphi 0, %s29
    %s32 = sphi 0, %s30
    %s44 = sphi 0, %s46
    %s47 = sphi 0, %s44
    %s48 = sphi 0, %s47
    %s64 = sphi 0, %s48
    %s70 = sphi 0, %s72
    %s73 = sphi 0, %s70
    %s74 = sphi 0, %s73
    %s90 = sphi 0, %s74
    %s96 = sphi 0, %s98
    %s99 = sphi 0, %s96
    %s100 = sphi 0, %s99
    %s116 = sphi 0, %s100
    %s120 = sphi 0, %s120
    %s122 = sphi 0, %s120
    %s123 = sphi 0, %s122
    %s137 = sphi 0, %s123
    %s141 = sphi 0, %s141
    %s143 = sphi 0, %s141
    %s144 = sphi 0, %s143
    %s158 = sphi 0, %s144
    %s162 = sphi 0, %s162
    %s164 = sphi 0, %s162
    %s165 = sphi 0, %s164
    %s179 = sphi 0, %s165
    %s183 = sphi 0, %s183
    %s185 = sphi 0, %s183
    %s186 = sphi 0, %s185
    %s200 = sphi 0, %s186
    %s204 = sphi 0, %s204
    %s206 = sphi 0, %s204
    %s207 = sphi 0, %s206
    %s221 = sphi 0, %s207
    %s225 = sphi 0, %s225
    %s227 = sphi 0, %s225
    %s228 = sphi 0, %s227
    %s242 = sphi 0, %s228
    %s246 = sphi 0, %s246
    %s248 = sphi 0, %s246
    %s249 = sphi 0, %s248
    %s263 = sphi 0, %s249
    %s267 = sphi 0, %s267
    %s269 = sphi 0, %s267
    %s270 = sphi 0, %s269
    %s284 = sphi 0, %s270
    %s288 = sphi 0, %s288
    %s290 = sphi 0, %s288
    %s291 = sphi 0, %s290
    %s305 = sphi 0, %s291
    %s309 = sphi 0, %s309
    %s311 = sphi 0, %s309
    %s312 = sphi 0, %s311
    %s326 = sphi 0, %s312
    %s330 = sphi 0, %s330
    %s332 = sphi 0, %s330
    %s333 = sphi 0, %s332
    %s347 = sphi 0, %s333
    %s355 = sphi 0, %s357
    %s358 = sphi 0, %s355
    %s359 = sphi 0, %s358
    %s375 = sphi 0, %s359
  $region4: #{linformer_forward.6} parent=0 // loop_header_branch
    %23 = sbr.rel (%p21) target = $region8
  $region5: #{linformer_forward.6} parent=0 // loop_body
    %s25 = ssub.s32 %s20, 1
    %s26 = ssub.s32 %s20, 2
    %s33 = sadd.s32 1, %s28
    %p34 = scmp.ge.s32.totalorder %s33, 1
    %s35 = scalar_select %p34, 0, %s33
    %s36 = sadd.s32 1, %s27
    %s37 = scalar_select %p34, %s36, %s27
    %p38 = scmp.ge.s32.totalorder %s37, 2
    %s39 = scalar_select %p38, 0, %s37
    %s40 = ssub.s32 %s27, %s39
    %s41 = ssub.s32 %s28, %s35
    %s42 = sor.u32 %s40, %s41
    %p43 = scmp.eq.s32.totalorder %s42, 0
    %s45 = sadd.s32 %s44, 1
    %s46 = scalar_select %p43, %s44, %s45
    %p49 = pneg %p43
    %p50 = scmp.eq.s32.totalorder %s20, 1
    %p51 = por %p49, %p50
    %p52 = scmp.ne.s32.totalorder %s44, %s47
    %p53 = scmp.eq.s32.totalorder %s20, 0
    %p54 = por %p52, %p53
    %p55 = scmp.ne.s32.totalorder %s44, %s47
    %p56 = scmp.eq.s32.totalorder %s25, 1
    %p57 = por %p55, %p56
    %p58 = scmp.ne.s32.totalorder %s47, %s48
    %p59 = scmp.eq.s32.totalorder %s25, 0
    %p60 = por %p58, %p59
    %p61 = scmp.ne.s32.totalorder %s47, %s48
    %p62 = scmp.eq.s32.totalorder %s26, 1
    %p63 = por %p61, %p62
    %p65 = scmp.ne.s32.totalorder %s48, %s64
    %p66 = scmp.eq.s32.totalorder %s26, 0
    %p67 = por %p65, %p66
    %s68 = ssub.s32 %s27, %s39
    %p69 = scmp.eq.s32.totalorder %s68, 0
    %s71 = sadd.s32 %s70, 1
    %s72 = scalar_select %p69, %s70, %s71
    %p75 = pneg %p69
    %p76 = scmp.eq.s32.totalorder %s20, 1
    %p77 = por %p75, %p76
    %p78 = scmp.ne.s32.totalorder %s70, %s73
    %p79 = scmp.eq.s32.totalorder %s20, 0
    %p80 = por %p78, %p79
    %p81 = scmp.ne.s32.totalorder %s70, %s73
    %p82 = scmp.eq.s32.totalorder %s25, 1
    %p83 = por %p81, %p82
    %p84 = scmp.ne.s32.totalorder %s73, %s74
    %p85 = scmp.eq.s32.totalorder %s25, 0
    %p86 = por %p84, %p85
    %p87 = scmp.ne.s32.totalorder %s73, %s74
    %p88 = scmp.eq.s32.totalorder %s26, 1
    %p89 = por %p87, %p88
    %p91 = scmp.ne.s32.totalorder %s74, %s90
    %p92 = scmp.eq.s32.totalorder %s26, 0
    %p93 = por %p91, %p92
    %s94 = ssub.s32 %s27, %s39
    %p95 = scmp.eq.s32.totalorder %s94, 0
    %s97 = sadd.s32 %s96, 1
    %s98 = scalar_select %p95, %s96, %s97
    %p101 = pneg %p95
    %p102 = scmp.eq.s32.totalorder %s20, 1
    %p103 = por %p101, %p102
    %p104 = scmp.ne.s32.totalorder %s96, %s99
    %p105 = scmp.eq.s32.totalorder %s20, 0
    %p106 = por %p104, %p105
    %p107 = scmp.ne.s32.totalorder %s96, %s99
    %p108 = scmp.eq.s32.totalorder %s25, 1
    %p109 = por %p107, %p108
    %p110 = scmp.ne.s32.totalorder %s99, %s100
    %p111 = scmp.eq.s32.totalorder %s25, 0
    %p112 = por %p110, %p111
    %p113 = scmp.ne.s32.totalorder %s99, %s100
    %p114 = scmp.eq.s32.totalorder %s26, 1
    %p115 = por %p113, %p114
    %p117 = scmp.ne.s32.totalorder %s100, %s116
    %p118 = scmp.eq.s32.totalorder %s26, 0
    %p119 = por %p117, %p118
    %s121 = sadd.s32 %s120, 1
    %p124 = scmp.eq.s32.totalorder %s20, 1
    %p125 = scmp.ne.s32.totalorder %s120, %s122
    %p126 = scmp.eq.s32.totalorder %s20, 0
    %p127 = por %p125, %p126
    %p128 = scmp.ne.s32.totalorder %s120, %s122
    %p129 = scmp.eq.s32.totalorder %s25, 1
    %p130 = por %p128, %p129
    %p131 = scmp.ne.s32.totalorder %s122, %s123
    %p132 = scmp.eq.s32.totalorder %s25, 0
    %p133 = por %p131, %p132
    %p134 = scmp.ne.s32.totalorder %s122, %s123
    %p135 = scmp.eq.s32.totalorder %s26, 1
    %p136 = por %p134, %p135
    %p138 = scmp.ne.s32.totalorder %s123, %s137
    %p139 = scmp.eq.s32.totalorder %s26, 0
    %p140 = por %p138, %p139
    %s142 = sadd.s32 %s141, 1
    %p145 = scmp.eq.s32.totalorder %s20, 1
    %p146 = scmp.ne.s32.totalorder %s141, %s143
    %p147 = scmp.eq.s32.totalorder %s20, 0
    %p148 = por %p146, %p147
    %p149 = scmp.ne.s32.totalorder %s141, %s143
    %p150 = scmp.eq.s32.totalorder %s25, 1
    %p151 = por %p149, %p150
    %p152 = scmp.ne.s32.totalorder %s143, %s144
    %p153 = scmp.eq.s32.totalorder %s25, 0
    %p154 = por %p152, %p153
    %p155 = scmp.ne.s32.totalorder %s143, %s144
    %p156 = scmp.eq.s32.totalorder %s26, 1
    %p157 = por %p155, %p156
    %p159 = scmp.ne.s32.totalorder %s144, %s158
    %p160 = scmp.eq.s32.totalorder %s26, 0
    %p161 = por %p159, %p160
    %s163 = sadd.s32 %s162, 1
    %p166 = scmp.eq.s32.totalorder %s20, 1
    %p167 = scmp.ne.s32.totalorder %s162, %s164
    %p168 = scmp.eq.s32.totalorder %s20, 0
    %p169 = por %p167, %p168
    %p170 = scmp.ne.s32.totalorder %s162, %s164
    %p171 = scmp.eq.s32.totalorder %s25, 1
    %p172 = por %p170, %p171
    %p173 = scmp.ne.s32.totalorder %s164, %s165
    %p174 = scmp.eq.s32.totalorder %s25, 0
    %p175 = por %p173, %p174
    %p176 = scmp.ne.s32.totalorder %s164, %s165
    %p177 = scmp.eq.s32.totalorder %s26, 1
    %p178 = por %p176, %p177
    %p180 = scmp.ne.s32.totalorder %s165, %s179
    %p181 = scmp.eq.s32.totalorder %s26, 0
    %p182 = por %p180, %p181
    %s184 = sadd.s32 %s183, 1
    %p187 = scmp.eq.s32.totalorder %s20, 1
    %p188 = scmp.ne.s32.totalorder %s183, %s185
    %p189 = scmp.eq.s32.totalorder %s20, 0
    %p190 = por %p188, %p189
    %p191 = scmp.ne.s32.totalorder %s183, %s185
    %p192 = scmp.eq.s32.totalorder %s25, 1
    %p193 = por %p191, %p192
    %p194 = scmp.ne.s32.totalorder %s185, %s186
    %p195 = scmp.eq.s32.totalorder %s25, 0
    %p196 = por %p194, %p195
    %p197 = scmp.ne.s32.totalorder %s185, %s186
    %p198 = scmp.eq.s32.totalorder %s26, 1
    %p199 = por %p197, %p198
    %p201 = scmp.ne.s32.totalorder %s186, %s200
    %p202 = scmp.eq.s32.totalorder %s26, 0
    %p203 = por %p201, %p202
    %s205 = sadd.s32 %s204, 1
    %p208 = scmp.eq.s32.totalorder %s20, 1
    %p209 = scmp.ne.s32.totalorder %s204, %s206
    %p210 = scmp.eq.s32.totalorder %s20, 0
    %p211 = por %p209, %p210
    %p212 = scmp.ne.s32.totalorder %s204, %s206
    %p213 = scmp.eq.s32.totalorder %s25, 1
    %p214 = por %p212, %p213
    %p215 = scmp.ne.s32.totalorder %s206, %s207
    %p216 = scmp.eq.s32.totalorder %s25, 0
    %p217 = por %p215, %p216
    %p218 = scmp.ne.s32.totalorder %s206, %s207
    %p219 = scmp.eq.s32.totalorder %s26, 1
    %p220 = por %p218, %p219
    %p222 = scmp.ne.s32.totalorder %s207, %s221
    %p223 = scmp.eq.s32.totalorder %s26, 0
    %p224 = por %p222, %p223
    %s226 = sadd.s32 %s225, 1
    %p229 = scmp.eq.s32.totalorder %s20, 1
    %p230 = scmp.ne.s32.totalorder %s225, %s227
    %p231 = scmp.eq.s32.totalorder %s20, 0
    %p232 = por %p230, %p231
    %p233 = scmp.ne.s32.totalorder %s225, %s227
    %p234 = scmp.eq.s32.totalorder %s25, 1
    %p235 = por %p233, %p234
    %p236 = scmp.ne.s32.totalorder %s227, %s228
    %p237 = scmp.eq.s32.totalorder %s25, 0
    %p238 = por %p236, %p237
    %p239 = scmp.ne.s32.totalorder %s227, %s228
    %p240 = scmp.eq.s32.totalorder %s26, 1
    %p241 = por %p239, %p240
    %p243 = scmp.ne.s32.totalorder %s228, %s242
    %p244 = scmp.eq.s32.totalorder %s26, 0
    %p245 = por %p243, %p244
    %s247 = sadd.s32 %s246, 1
    %p250 = scmp.eq.s32.totalorder %s20, 1
    %p251 = scmp.ne.s32.totalorder %s246, %s248
    %p252 = scmp.eq.s32.totalorder %s20, 0
    %p253 = por %p251, %p252
    %p254 = scmp.ne.s32.totalorder %s246, %s248
    %p255 = scmp.eq.s32.totalorder %s25, 1
    %p256 = por %p254, %p255
    %p257 = scmp.ne.s32.totalorder %s248, %s249
    %p258 = scmp.eq.s32.totalorder %s25, 0
    %p259 = por %p257, %p258
    %p260 = scmp.ne.s32.totalorder %s248, %s249
    %p261 = scmp.eq.s32.totalorder %s26, 1
    %p262 = por %p260, %p261
    %p264 = scmp.ne.s32.totalorder %s249, %s263
    %p265 = scmp.eq.s32.totalorder %s26, 0
    %p266 = por %p264, %p265
    %s268 = sadd.s32 %s267, 1
    %p271 = scmp.eq.s32.totalorder %s20, 1
    %p272 = scmp.ne.s32.totalorder %s267, %s269
    %p273 = scmp.eq.s32.totalorder %s20, 0
    %p274 = por %p272, %p273
    %p275 = scmp.ne.s32.totalorder %s267, %s269
    %p276 = scmp.eq.s32.totalorder %s25, 1
    %p277 = por %p275, %p276
    %p278 = scmp.ne.s32.totalorder %s269, %s270
    %p279 = scmp.eq.s32.totalorder %s25, 0
    %p280 = por %p278, %p279
    %p281 = scmp.ne.s32.totalorder %s269, %s270
    %p282 = scmp.eq.s32.totalorder %s26, 1
    %p283 = por %p281, %p282
    %p285 = scmp.ne.s32.totalorder %s270, %s284
    %p286 = scmp.eq.s32.totalorder %s26, 0
    %p287 = por %p285, %p286
    %s289 = sadd.s32 %s288, 1
    %p292 = scmp.eq.s32.totalorder %s20, 1
    %p293 = scmp.ne.s32.totalorder %s288, %s290
    %p294 = scmp.eq.s32.totalorder %s20, 0
    %p295 = por %p293, %p294
    %p296 = scmp.ne.s32.totalorder %s288, %s290
    %p297 = scmp.eq.s32.totalorder %s25, 1
    %p298 = por %p296, %p297
    %p299 = scmp.ne.s32.totalorder %s290, %s291
    %p300 = scmp.eq.s32.totalorder %s25, 0
    %p301 = por %p299, %p300
    %p302 = scmp.ne.s32.totalorder %s290, %s291
    %p303 = scmp.eq.s32.totalorder %s26, 1
    %p304 = por %p302, %p303
    %p306 = scmp.ne.s32.totalorder %s291, %s305
    %p307 = scmp.eq.s32.totalorder %s26, 0
    %p308 = por %p306, %p307
    %s310 = sadd.s32 %s309, 1
    %p313 = scmp.eq.s32.totalorder %s20, 1
    %p314 = scmp.ne.s32.totalorder %s309, %s311
    %p315 = scmp.eq.s32.totalorder %s20, 0
    %p316 = por %p314, %p315
    %p317 = scmp.ne.s32.totalorder %s309, %s311
    %p318 = scmp.eq.s32.totalorder %s25, 1
    %p319 = por %p317, %p318
    %p320 = scmp.ne.s32.totalorder %s311, %s312
    %p321 = scmp.eq.s32.totalorder %s25, 0
    %p322 = por %p320, %p321
    %p323 = scmp.ne.s32.totalorder %s311, %s312
    %p324 = scmp.eq.s32.totalorder %s26, 1
    %p325 = por %p323, %p324
    %p327 = scmp.ne.s32.totalorder %s312, %s326
    %p328 = scmp.eq.s32.totalorder %s26, 0
    %p329 = por %p327, %p328
    %s331 = sadd.s32 %s330, 1
    %p334 = scmp.eq.s32.totalorder %s20, 1
    %p335 = scmp.ne.s32.totalorder %s330, %s332
    %p336 = scmp.eq.s32.totalorder %s20, 0
    %p337 = por %p335, %p336
    %p338 = scmp.ne.s32.totalorder %s330, %s332
    %p339 = scmp.eq.s32.totalorder %s25, 1
    %p340 = por %p338, %p339
    %p341 = scmp.ne.s32.totalorder %s332, %s333
    %p342 = scmp.eq.s32.totalorder %s25, 0
    %p343 = por %p341, %p342
    %p344 = scmp.ne.s32.totalorder %s332, %s333
    %p345 = scmp.eq.s32.totalorder %s26, 1
    %p346 = por %p344, %p345
    %p348 = scmp.ne.s32.totalorder %s333, %s347
    %p349 = scmp.eq.s32.totalorder %s26, 0
    %p350 = por %p348, %p349
    %s351 = ssub.s32 %s27, %s39
    %s352 = ssub.s32 %s28, %s35
    %s353 = sor.u32 %s351, %s352
    %p354 = scmp.eq.s32.totalorder %s353, 0
    %s356 = sadd.s32 %s355, 1
    %s357 = scalar_select %p354, %s355, %s356
    %p360 = pneg %p354
    %p361 = scmp.eq.s32.totalorder %s20, 1
    %p362 = por %p360, %p361
    %p363 = scmp.ne.s32.totalorder %s355, %s358
    %p364 = scmp.eq.s32.totalorder %s20, 0
    %p365 = por %p363, %p364
    %p366 = scmp.ne.s32.totalorder %s355, %s358
    %p367 = scmp.eq.s32.totalorder %s25, 1
    %p368 = por %p366, %p367
    %p369 = scmp.ne.s32.totalorder %s358, %s359
    %p370 = scmp.eq.s32.totalorder %s25, 0
    %p371 = por %p369, %p370
    %p372 = scmp.ne.s32.totalorder %s358, %s359
    %p373 = scmp.eq.s32.totalorder %s26, 1
    %p374 = por %p372, %p373
    %p376 = scmp.ne.s32.totalorder %s359, %s375
    %p377 = scmp.eq.s32.totalorder %s26, 0
    %p378 = por %p376, %p377
    %p379 = scmp.le.s32.totalorder 1, %s20
    %p380 = scmp.lt.s32.totalorder %s20, 3
    %p381 = pnand %p379, %p380
    %p382 = pneg %p381
    // Predicated region
    $region9: #{linformer_forward.6} parent=5 // pred_check
      _
    $region10: #{linformer_forward.6} parent=5 // pred_check_branch
      %384 = sbr.rel (%p381) target = $region12
    $region11: #{linformer_forward.6} parent=5 // pred_region
      %s385 = ssub.s32 %s20, 1
      // Predicated region
      $region13: #{linformer_forward.6} parent=11 // pred_check
        %p386 = pneg %p133
      $region14: #{linformer_forward.6} parent=11 // pred_check_branch
        %388 = sbr.rel (%p386) target = $region16
      $region15: #{linformer_forward.6} parent=11 // pred_region
        _
      $region16: #{linformer_forward.6} parent=11 // pred_fallthru
        _
      // Predicated region
      $region17: #{linformer_forward.6} parent=11 // pred_check
        %p389 = pneg %p154
      $region18: #{linformer_forward.6} parent=11 // pred_check_branch
        %391 = sbr.rel (%p389) target = $region20
      $region19: #{linformer_forward.6} parent=11 // pred_region
        _
      $region20: #{linformer_forward.6} parent=11 // pred_fallthru
        _
      // Predicated region
      $region21: #{linformer_forward.6} parent=11 // pred_check
        %p392 = pneg %p175
      $region22: #{linformer_forward.6} parent=11 // pred_check_branch
        %394 = sbr.rel (%p392) target = $region24
      $region23: #{linformer_forward.6} parent=11 // pred_region
        _
      $region24: #{linformer_forward.6} parent=11 // pred_fallthru
        _
      // Predicated region
      $region25: #{linformer_forward.6} parent=11 // pred_check
        %p395 = pneg %p196
      $region26: #{linformer_forward.6} parent=11 // pred_check_branch
        %397 = sbr.rel (%p395) target = $region28
      $region27: #{linformer_forward.6} parent=11 // pred_region
        _
      $region28: #{linformer_forward.6} parent=11 // pred_fallthru
        _
      // Predicated region
      $region29: #{linformer_forward.6} parent=11 // pred_check
        %p398 = pneg %p217
      $region30: #{linformer_forward.6} parent=11 // pred_check_branch
        %400 = sbr.rel (%p398) target = $region32
      $region31: #{linformer_forward.6} parent=11 // pred_region
        _
      $region32: #{linformer_forward.6} parent=11 // pred_fallthru
        _
      // Predicated region
      $region33: #{linformer_forward.6} parent=11 // pred_check
        %p401 = pneg %p238
      $region34: #{linformer_forward.6} parent=11 // pred_check_branch
        %403 = sbr.rel (%p401) target = $region36
      $region35: #{linformer_forward.6} parent=11 // pred_region
        _
      $region36: #{linformer_forward.6} parent=11 // pred_fallthru
        _
      // Predicated region
      $region37: #{linformer_forward.6} parent=11 // pred_check
        %p404 = pneg %p259
      $region38: #{linformer_forward.6} parent=11 // pred_check_branch
        %406 = sbr.rel (%p404) target = $region40
      $region39: #{linformer_forward.6} parent=11 // pred_region
        _
      $region40: #{linformer_forward.6} parent=11 // pred_fallthru
        _
      // Predicated region
      $region41: #{linformer_forward.6} parent=11 // pred_check
        %p407 = pneg %p280
      $region42: #{linformer_forward.6} parent=11 // pred_check_branch
        %409 = sbr.rel (%p407) target = $region44
      $region43: #{linformer_forward.6} parent=11 // pred_region
        _
      $region44: #{linformer_forward.6} parent=11 // pred_fallthru
        _
      // Predicated region
      $region45: #{linformer_forward.6} parent=11 // pred_check
        %p410 = pneg %p301
      $region46: #{linformer_forward.6} parent=11 // pred_check_branch
        %412 = sbr.rel (%p410) target = $region48
      $region47: #{linformer_forward.6} parent=11 // pred_region
        _
      $region48: #{linformer_forward.6} parent=11 // pred_fallthru
        _
      // Predicated region
      $region49: #{linformer_forward.6} parent=11 // pred_check
        %p413 = pneg %p322
      $region50: #{linformer_forward.6} parent=11 // pred_check_branch
        %415 = sbr.rel (%p413) target = $region52
      $region51: #{linformer_forward.6} parent=11 // pred_region
        _
      $region52: #{linformer_forward.6} parent=11 // pred_fallthru
        _
      // Predicated region
      $region53: #{linformer_forward.6} parent=11 // pred_check
        %p416 = pneg %p343
      $region54: #{linformer_forward.6} parent=11 // pred_check_branch
        %418 = sbr.rel (%p416) target = $region56
      $region55: #{linformer_forward.6} parent=11 // pred_region
        _
      $region56: #{linformer_forward.6} parent=11 // pred_fallthru
        _
    $region12: #{linformer_forward.6} parent=5 // pred_fallthru
      _
    %p419 = scmp.lt.s32.totalorder %s20, 2
    // Predicated region
    $region57: #{linformer_forward.6} parent=5 // pred_check
      %p420 = pneg %p419
    $region58: #{linformer_forward.6} parent=5 // pred_check_branch
      %422 = sbr.rel (%p420) target = $region60
    $region59: #{linformer_forward.6} parent=5 // pred_region
      // Predicated region
      $region61: #{linformer_forward.6} parent=59 // pred_check
        %p423 = pneg %p54
      $region62: #{linformer_forward.6} parent=59 // pred_check_branch
        %425 = sbr.rel (%p423) target = $region64
      $region63: #{linformer_forward.6} parent=59 // pred_region
        %p426 = scmp.lt.s32.totalorder %s27, 1
        %s427 = scalar_select %p426, %s27, 1
        %p428 = scmp.lt.s32.totalorder %s28, 0
        %s429 = scalar_select %p428, %s28, 0
        %s430 = sadd.s32 %s429, %s427
        %s431 = smul.addr %s430, 4
        %s432 = scalar_lea.vmem %s0, %s431
      $region64: #{linformer_forward.6} parent=59 // pred_fallthru
        _
      // Predicated region
      $region65: #{linformer_forward.6} parent=59 // pred_check
        %p433 = pneg %p80
      $region66: #{linformer_forward.6} parent=59 // pred_check_branch
        %435 = sbr.rel (%p433) target = $region68
      $region67: #{linformer_forward.6} parent=59 // pred_region
        %p436 = scmp.lt.s32.totalorder %s27, 1
        %s437 = scalar_select %p436, %s27, 1
        %s438 = smul.addr %s437, 8
        %s439 = smul.addr %s438, 4
        %s440 = scalar_lea.vmem %s1, %s439
      $region68: #{linformer_forward.6} parent=59 // pred_fallthru
        _
      // Predicated region
      $region69: #{linformer_forward.6} parent=59 // pred_check
        %p441 = pneg %p106
      $region70: #{linformer_forward.6} parent=59 // pred_check_branch
        %443 = sbr.rel (%p441) target = $region72
      $region71: #{linformer_forward.6} parent=59 // pred_region
        %p444 = scmp.lt.s32.totalorder %s27, 1
        %s445 = scalar_select %p444, %s27, 1
        %s446 = smul.addr %s445, 128
        %s447 = smul.addr %s446, 4
        %s448 = scalar_lea.vmem %s2, %s447
      $region72: #{linformer_forward.6} parent=59 // pred_fallthru
        _
    $region60: #{linformer_forward.6} parent=5 // pred_fallthru
      _
    %p449 = scmp.le.s32.totalorder 1, %s20
    %p450 = scmp.lt.s32.totalorder %s20, 3
    %p451 = pnand %p449, %p450
    %p452 = pneg %p451
    // Predicated region
    $region73: #{linformer_forward.6} parent=5 // pred_check
      _
    $region74: #{linformer_forward.6} parent=5 // pred_check_branch
      %454 = sbr.rel (%p451) target = $region76
    $region75: #{linformer_forward.6} parent=5 // pred_region
      %s455 = ssub.s32 %s20, 1
      %p456 = scmp.lt.s32.totalorder %s29, 1
      %s457 = scalar_select %p456, %s29, 1
      %p458 = scmp.lt.s32.totalorder %s30, 0
      %s459 = scalar_select %p458, %s30, 0
      %s460 = sadd.s32 %s459, %s457
      %s461 = smul.addr %s460, 4
      %s462 = scalar_lea.vmem %s0, %s461
      %p463 = pneg %p60
      %p464 = pneg %p57
      %p465 = scmp.lt.s32.totalorder %s29, 1
      %s466 = scalar_select %p465, %s29, 1
      %s467 = smul.addr %s466, 8
      %s468 = smul.addr %s467, 4
      %s469 = scalar_lea.vmem %s1, %s468
      %p470 = pneg %p86
      %p471 = pneg %p83
      %p472 = scmp.lt.s32.totalorder %s29, 1
      %s473 = scalar_select %p472, %s29, 1
      %s474 = smul.addr %s473, 128
      %s475 = smul.addr %s474, 4
      %s476 = scalar_lea.vmem %s2, %s475
      %p477 = pneg %p112
      %p478 = pneg %p109
      %p479 = pneg %p133
      %p480 = pneg %p130
      %p481 = pneg %p154
      %p482 = pneg %p151
      %p483 = pneg %p175
      %p484 = pneg %p172
      %p485 = pneg %p196
      %p486 = pneg %p193
      %p487 = pneg %p217
      %p488 = pneg %p214
      %p489 = pneg %p238
      %p490 = pneg %p235
      %p491 = pneg %p259
      %p492 = pneg %p256
      %p493 = pneg %p280
      %p494 = pneg %p277
      %p495 = pneg %p301
      %p496 = pneg %p298
      %p497 = pneg %p322
      %p498 = pneg %p319
      %p499 = pneg %p343
      %p500 = pneg %p340
      %p501 = pneg %p371
      %p502 = pneg %p368
      %p503 = scmp.lt.s32.totalorder %s29, 1
      %s504 = scalar_select %p503, %s29, 1
      %p505 = scmp.lt.s32.totalorder %s30, 0
      %s506 = scalar_select %p505, %s30, 0
      %s507 = sadd.s32 %s506, %s504
      %s508 = smul.addr %s507, 4
      %s509 = scalar_lea.vmem %s14, %s508
      %p510 = scmp.lt.s32.totalorder %s29, 1
      %s511 = scalar_select %p510, %s29, 1
      %p512 = scmp.lt.s32.totalorder %s30, 0
      %s513 = scalar_select %p512, %s30, 0
      %s514 = sadd.s32 %s513, %s511
      %s515 = smul.addr %s514, 4
      %s516 = scalar_lea.vmem %s0, %s515
      %p517 = scmp.lt.s32.totalorder %s29, 1
      %s518 = scalar_select %p517, %s29, 1
      %s519 = smul.addr %s518, 8
      %s520 = smul.addr %s519, 4
      %s521 = scalar_lea.vmem %s1, %s520
      %p522 = scmp.lt.s32.totalorder %s29, 1
      %s523 = scalar_select %p522, %s29, 1
      %s524 = smul.addr %s523, 128
      %s525 = smul.addr %s524, 4
      %s526 = scalar_lea.vmem %s2, %s525
      %p527 = scmp.lt.s32.totalorder %s29, 1
      %s528 = scalar_select %p527, %s29, 1
      %p529 = scmp.lt.s32.totalorder %s30, 0
      %s530 = scalar_select %p529, %s30, 0
      %s531 = sadd.s32 %s530, %s528
      %s532 = smul.addr %s531, 4
      %s533 = scalar_lea.vmem %s14, %s532
      %v535 = vld [vmem:[%s516] sm:$0xf]
      %v536 = vunpack.c.l.bf16 %v535
      %v537 = vld [vmem:[%s3] sm:$0x1]
      %v538 = vld [vmem:[%s4] sm:$0x1]
      %vm539 = vcmask 261120
      %v540 = vsel %vm539, %v536, 0.0
      %541 = vadd.xlane.f32.xlu0 %v540
      %v542 = vpop.xlane.xlu0 %541
      %v543 = vrcp.pop 32.0
      %v544 = vmul.f32 %v542, %v543
      %v545 = vsub.f32 %v536, %v544
      %v546 = vmul.f32 %v545, %v545
      %v547 = vsel %vm539, %v546, 0.0
      %548 = vadd.xlane.f32.xlu0 %v547
      %v549 = vpop.xlane.xlu0 %548
      %v550 = vmul.f32 %v549, %v543
      %v551 = vadd.f32 %v550, 1e-05
      %v552 = vrsqrt.pop %v551
      %v553 = vmul.f32 %v545, %v552
      %v555 = vlaneseq
      %v556 = vshrl.u32 %v555, 7
      %v557 = vsub.s32 0, %v556
      %v558 = vrot.slane %v537, %v557
      %v560 = vmul.f32 %v553, %v558
      %v562 = vlaneseq
      %v563 = vshrl.u32 %v562, 7
      %v564 = vsub.s32 0, %v563
      %v565 = vrot.slane %v538, %v564
      %v567 = vadd.f32 %v560, %v565
      %v568 = vpack.c.bf16 %v567, %v567
      %v569 = vld [vmem:[%s5] sm:$0xf]
      %v570 = vld [vmem:[%s5 + $0x4] sm:$0xf]
      %v571 = vld [vmem:[%s5 + $0x8] sm:$0xf]
      %v572 = vld [vmem:[%s5 + $0xc] sm:$0xf]
      %v577 = vunpack.c.l.b16 %v569
      %v578 = vunpack.c.l.b16 %v570
      %v579 = vunpack.c.l.b16 %v571
      %v580 = vunpack.c.l.b16 %v572
      %v581 = vpack.c.b16 %v578, %v577
      %v582 = vpack.c.b16 %v580, %v579
      %v586 = vsel %vm539, %v568, 0
      %588 = vmatprep.subr.bf16.mxu0 0
      %589 = vmatpush1.bf16.msra.mxu0 %v581
      %590 = vmatprep.subr.bf16.mxu0 0
      %591 = vmatpush1.bf16.msra.mxu0 %v582
      %592 = vmatprep.subr.bf16.mxu0 0
      %593 = vmatpush1.bf16.msra.mxu0 0
      %594 = vmatprep.subr.bf16.mxu0 0
      %595 = vmatpush1.bf16.msra.mxu0 0
      %596 = vmatprep.subr.bf16.mxu0 0
      %597 = vmatpush1.bf16.msra.mxu0 0
      %598 = vmatprep.subr.bf16.mxu0 0
      %599 = vmatpush1.bf16.msra.mxu0 0
      %600 = vmatprep.subr.bf16.mxu0 0
      %601 = vmatpush1.bf16.msra.mxu0 0
      %602 = vmatprep.subr.bf16.mxu0 0
      %603 = vmatpush1.bf16.msra.mxu0 0
      %604 = vmatprep.subr.bf16.mxu0 0
      %605 = vmatpush1.bf16.msra.mxu0 0
      %606 = vmatprep.subr.bf16.mxu0 0
      %607 = vmatpush1.bf16.msra.mxu0 0
      %608 = vmatprep.subr.bf16.mxu0 0
      %609 = vmatpush1.bf16.msra.mxu0 0
      %610 = vmatprep.subr.bf16.mxu0 0
      %611 = vmatpush1.bf16.msra.mxu0 0
      %612 = vmatprep.subr.bf16.mxu0 0
      %613 = vmatpush1.bf16.msra.mxu0 0
      %614 = vmatprep.subr.bf16.mxu0 0
      %615 = vmatpush1.bf16.msra.mxu0 0
      %616 = vmatprep.subr.bf16.mxu0 0
      %617 = vmatpush1.bf16.msra.mxu0 0
      %618 = vmatprep.subr.bf16.mxu0 0
      %619 = vmatpush1.bf16.msra.mxu0 0
      %620 = vmatprep.mubr.bf16.mxu0 0
      %621 = vmatmul.mubr.bf16.gmra.mrb[0].mxu0 %v586
      %v622 = vpop.f32.mrb[0].mxu0
      %v623 = vadd.f32 0.0, %v622
      %v624 = vpop.f32.mrb[0].mxu0
      %v625 = vpop.f32.mrb[0].mxu0
      %v626 = vpop.f32.mrb[0].mxu0
      %627 = vdwg.mxu0
      %v628 = vpack.c.bf16 %v623, %v623
      %v629 = vld [vmem:[%s521] sm:$0xff]
      %v631 = vunpack.c.l.b16 %v629
      %v632 = vunpack.c.h.b16 %v629
      %v633 = vpack.c.b16 %v631, %v631
      %v634 = vpack.c.b16 %v632, %v632
      %vm635 = vcmask 64512
      %v637 = vsel %vm635, %v628, 0
      %vm639 = vcmask 1043456
      %v641 = vsel %vm639, %v633, 0
      %v644 = vsel %vm639, %v634, 0
      %646 = vmatprep.subr.bf16.mxu0 %v644
      %647 = vmatpush1.bf16.msra.mxu0 %v641
      %648 = vmatprep.subr.bf16.mxu0 0
      %649 = vmatpush1.bf16.msra.mxu0 0
      %650 = vmatprep.subr.bf16.mxu0 0
      %651 = vmatpush1.bf16.msra.mxu0 0
      %652 = vmatprep.subr.bf16.mxu0 0
      %653 = vmatpush1.bf16.msra.mxu0 0
      %654 = vmatprep.subr.bf16.mxu0 0
      %655 = vmatpush1.bf16.msra.mxu0 0
      %656 = vmatprep.subr.bf16.mxu0 0
      %657 = vmatpush1.bf16.msra.mxu0 0
      %658 = vmatprep.subr.bf16.mxu0 0
      %659 = vmatpush1.bf16.msra.mxu0 0
      %660 = vmatprep.subr.bf16.mxu0 0
      %661 = vmatpush1.bf16.msra.mxu0 0
      %662 = vmatprep.subr.bf16.mxu0 0
      %663 = vmatpush1.bf16.msra.mxu0 0
      %664 = vmatprep.subr.bf16.mxu0 0
      %665 = vmatpush1.bf16.msra.mxu0 0
      %666 = vmatprep.subr.bf16.mxu0 0
      %667 = vmatpush1.bf16.msra.mxu0 0
      %668 = vmatprep.subr.bf16.mxu0 0
      %669 = vmatpush1.bf16.msra.mxu0 0
      %670 = vmatprep.subr.bf16.mxu0 0
      %671 = vmatpush1.bf16.msra.mxu0 0
      %672 = vmatprep.subr.bf16.mxu0 0
      %673 = vmatpush1.bf16.msra.mxu0 0
      %674 = vmatprep.subr.bf16.mxu0 0
      %675 = vmatpush1.bf16.msra.mxu0 0
      %676 = vmatprep.subr.bf16.mxu0 0
      %677 = vmatpush1.bf16.msra.mxu0 0
      %678 = vmatprep.mubr.bf16.mxu0 0
      %679 = vmatmul.mubr.bf16.gmra.mrb[0].mxu0 %v637
      %v680 = vpop.f32.mrb[0].mxu0
      %v681 = vadd.f32 0.0, %v680
      %v682 = vpop.f32.mrb[0].mxu0
      %v683 = vadd.f32 0.0, %v682
      %v684 = vpop.f32.mrb[0].mxu0
      %v685 = vpop.f32.mrb[0].mxu0
      %686 = vdwg.mxu0
      %v687 = vmax.f32 %v681, %v683
      %688 = vmax.xlane.f32.xlu0 %v687
      %v689 = vpop.xlane.xlu0 %688
      %v690 = vsub.f32 %v681, %v689
      %v691 = vsub.f32 %v683, %v689
      %v692 = vmul.f32 %v690, 1.442695
      %v693 = vpow.pop %v692
      %v694 = vmul.f32 %v691, 1.442695
      %v695 = vpow.pop %v694
      %v696 = vadd.f32 %v693, %v695
      %697 = vadd.xlane.f32.xlu0 %v696
      %v698 = vpop.xlane.xlu0 %697
      %v699 = vrcp.pop %v698
      %v700 = vmul.f32 %v693, %v699
      %v701 = vmul.f32 %v695, %v699
      %v702 = vpack.c.bf16 %v700, %v700
      %v703 = vpack.c.bf16 %v701, %v701
      %v704 = vld [vmem:[%s526] sm:$0xf]
      %v705 = vld [vmem:[%s526 + $0x4] sm:$0xf]
      %v706 = vld [vmem:[%s526 + $0x8] sm:$0xf]
      %v707 = vld [vmem:[%s526 + $0xc] sm:$0xf]
      %v708 = vld [vmem:[%s526 + $0x10] sm:$0xf]
      %v709 = vld [vmem:[%s526 + $0x14] sm:$0xf]
      %v710 = vld [vmem:[%s526 + $0x18] sm:$0xf]
      %v711 = vld [vmem:[%s526 + $0x1c] sm:$0xf]
      %v712 = vld [vmem:[%s526 + $0x20] sm:$0xf]
      %v713 = vld [vmem:[%s526 + $0x24] sm:$0xf]
      %v714 = vld [vmem:[%s526 + $0x28] sm:$0xf]
      %v715 = vld [vmem:[%s526 + $0x2c] sm:$0xf]
      %v716 = vld [vmem:[%s526 + $0x30] sm:$0xf]
      %v717 = vld [vmem:[%s526 + $0x34] sm:$0xf]
      %v718 = vld [vmem:[%s526 + $0x38] sm:$0xf]
      %v719 = vld [vmem:[%s526 + $0x3c] sm:$0xf]
      %v720 = vld [vmem:[%s526 + $0x40] sm:$0xf]
      %v721 = vld [vmem:[%s526 + $0x44] sm:$0xf]
      %v722 = vld [vmem:[%s526 + $0x48] sm:$0xf]
      %v723 = vld [vmem:[%s526 + $0x4c] sm:$0xf]
      %v724 = vld [vmem:[%s526 + $0x50] sm:$0xf]
      %v725 = vld [vmem:[%s526 + $0x54] sm:$0xf]
      %v726 = vld [vmem:[%s526 + $0x58] sm:$0xf]
      %v727 = vld [vmem:[%s526 + $0x5c] sm:$0xf]
      %v728 = vld [vmem:[%s526 + $0x60] sm:$0xf]
      %v729 = vld [vmem:[%s526 + $0x64] sm:$0xf]
      %v730 = vld [vmem:[%s526 + $0x68] sm:$0xf]
      %v731 = vld [vmem:[%s526 + $0x6c] sm:$0xf]
      %v732 = vld [vmem:[%s526 + $0x70] sm:$0xf]
      %v733 = vld [vmem:[%s526 + $0x74] sm:$0xf]
      %v734 = vld [vmem:[%s526 + $0x78] sm:$0xf]
      %v735 = vld [vmem:[%s526 + $0x7c] sm:$0xf]
      %v768 = vunpack.c.l.b16 %v704
      %v769 = vunpack.c.l.b16 %v705
      %v770 = vunpack.c.l.b16 %v706
      %v771 = vunpack.c.l.b16 %v707
      %v772 = vunpack.c.l.b16 %v708
      %v773 = vunpack.c.l.b16 %v709
      %v774 = vunpack.c.l.b16 %v710
      %v775 = vunpack.c.l.b16 %v711
      %v776 = vunpack.c.l.b16 %v712
      %v777 = vunpack.c.l.b16 %v713
      %v778 = vunpack.c.l.b16 %v714
      %v779 = vunpack.c.l.b16 %v715
      %v780 = vunpack.c.l.b16 %v716
      %v781 = vunpack.c.l.b16 %v717
      %v782 = vunpack.c.l.b16 %v718
      %v783 = vunpack.c.l.b16 %v719
      %v784 = vunpack.c.l.b16 %v720
      %v785 = vunpack.c.l.b16 %v721
      %v786 = vunpack.c.l.b16 %v722
      %v787 = vunpack.c.l.b16 %v723
      %v788 = vunpack.c.l.b16 %v724
      %v789 = vunpack.c.l.b16 %v725
      %v790 = vunpack.c.l.b16 %v726
      %v791 = vunpack.c.l.b16 %v727
      %v792 = vunpack.c.l.b16 %v728
      %v793 = vunpack.c.l.b16 %v729
      %v794 = vunpack.c.l.b16 %v730
      %v795 = vunpack.c.l.b16 %v731
      %v796 = vunpack.c.l.b16 %v732
      %v797 = vunpack.c.l.b16 %v733
      %v798 = vunpack.c.l.b16 %v734
      %v799 = vunpack.c.l.b16 %v735
      %v800 = vpack.c.b16 %v769, %v768
      %v801 = vpack.c.b16 %v771, %v770
      %v802 = vpack.c.b16 %v773, %v772
      %v803 = vpack.c.b16 %v775, %v774
      %v804 = vpack.c.b16 %v777, %v776
      %v805 = vpack.c.b16 %v779, %v778
      %v806 = vpack.c.b16 %v781, %v780
      %v807 = vpack.c.b16 %v783, %v782
      %v808 = vpack.c.b16 %v785, %v784
      %v809 = vpack.c.b16 %v787, %v786
      %v810 = vpack.c.b16 %v789, %v788
      %v811 = vpack.c.b16 %v791, %v790
      %v812 = vpack.c.b16 %v793, %v792
      %v813 = vpack.c.b16 %v795, %v794
      %v814 = vpack.c.b16 %v797, %v796
      %v815 = vpack.c.b16 %v799, %v798
      %832 = vmatprep.subr.bf16.mxu0 0
      %833 = vmatpush1.bf16.msra.mxu0 %v800
      %834 = vmatprep.subr.bf16.mxu0 0
      %835 = vmatpush1.bf16.msra.mxu0 %v801
      %836 = vmatprep.subr.bf16.mxu0 0
      %837 = vmatpush1.bf16.msra.mxu0 %v802
      %838 = vmatprep.subr.bf16.mxu0 0
      %839 = vmatpush1.bf16.msra.mxu0 %v803
      %840 = vmatprep.subr.bf16.mxu0 0
      %841 = vmatpush1.bf16.msra.mxu0 %v804
      %842 = vmatprep.subr.bf16.mxu0 0
      %843 = vmatpush1.bf16.msra.mxu0 %v805
      %844 = vmatprep.subr.bf16.mxu0 0
      %845 = vmatpush1.bf16.msra.mxu0 %v806
      %846 = vmatprep.subr.bf16.mxu0 0
      %847 = vmatpush1.bf16.msra.mxu0 %v807
      %848 = vmatprep.subr.bf16.mxu0 0
      %849 = vmatpush1.bf16.msra.mxu0 %v808
      %850 = vmatprep.subr.bf16.mxu0 0
      %851 = vmatpush1.bf16.msra.mxu0 %v809
      %852 = vmatprep.subr.bf16.mxu0 0
      %853 = vmatpush1.bf16.msra.mxu0 %v810
      %854 = vmatprep.subr.bf16.mxu0 0
      %855 = vmatpush1.bf16.msra.mxu0 %v811
      %856 = vmatprep.subr.bf16.mxu0 0
      %857 = vmatpush1.bf16.msra.mxu0 %v812
      %858 = vmatprep.subr.bf16.mxu0 0
      %859 = vmatpush1.bf16.msra.mxu0 %v813
      %860 = vmatprep.subr.bf16.mxu0 0
      %861 = vmatpush1.bf16.msra.mxu0 %v814
      %862 = vmatprep.subr.bf16.mxu0 0
      %863 = vmatpush1.bf16.msra.mxu0 %v815
      %864 = vmatprep.mubr.bf16.mxu0 %v703
      %865 = vmatmul.mubr.bf16.gmra.mrb[0].mxu0 %v702
      %v866 = vpop.f32.mrb[0].mxu0
      %v867 = vadd.f32 0.0, %v866
      %v868 = vpop.f32.mrb[0].mxu0
      %v869 = vpop.f32.mrb[0].mxu0
      %v870 = vpop.f32.mrb[0].mxu0
      %871 = vdwg.mxu0
      %v872 = vpack.c.bf16 %v867, %v867
      %vm873 = vcmask 60416
      %874 = vst.msk [vmem:[#allocation2] sm:$0xf] %vm873, %v872
      %s875 = scalar_lea.vmem %s521, 8
      %v876 = vld [vmem:[%s875] sm:$0xff]
      %878 = vrot.lane.b32.xlu0 %v628, 120
      %v879 = vpop.permute.xlu0 %878
      %v881 = vunpack.c.l.b16 %v876
      %v882 = vunpack.c.h.b16 %v876
      %v883 = vpack.c.b16 %v881, %v881
      %v884 = vpack.c.b16 %v882, %v882
      %v886 = vsel %vm635, %v879, 0
      %v889 = vsel %vm639, %v883, 0
      %v892 = vsel %vm639, %v884, 0
      %894 = vmatprep.subr.bf16.mxu0 %v892
      %895 = vmatpush1.bf16.msra.mxu0 %v889
      %896 = vmatprep.subr.bf16.mxu0 0
      %897 = vmatpush1.bf16.msra.mxu0 0
      %898 = vmatprep.subr.bf16.mxu0 0
      %899 = vmatpush1.bf16.msra.mxu0 0
      %900 = vmatprep.subr.bf16.mxu0 0
      %901 = vmatpush1.bf16.msra.mxu0 0
      %902 = vmatprep.subr.bf16.mxu0 0
      %903 = vmatpush1.bf16.msra.mxu0 0
      %904 = vmatprep.subr.bf16.mxu0 0
      %905 = vmatpush1.bf16.msra.mxu0 0
      %906 = vmatprep.subr.bf16.mxu0 0
      %907 = vmatpush1.bf16.msra.mxu0 0
      %908 = vmatprep.subr.bf16.mxu0 0
      %909 = vmatpush1.bf16.msra.mxu0 0
      %910 = vmatprep.subr.bf16.mxu0 0
      %911 = vmatpush1.bf16.msra.mxu0 0
      %912 = vmatprep.subr.bf16.mxu0 0
      %913 = vmatpush1.bf16.msra.mxu0 0
      %914 = vmatprep.subr.bf16.mxu0 0
      %915 = vmatpush1.bf16.msra.mxu0 0
      %916 = vmatprep.subr.bf16.mxu0 0
      %917 = vmatpush1.bf16.msra.mxu0 0
      %918 = vmatprep.subr.bf16.mxu0 0
      %919 = vmatpush1.bf16.msra.mxu0 0
      %920 = vmatprep.subr.bf16.mxu0 0
      %921 = vmatpush1.bf16.msra.mxu0 0
      %922 = vmatprep.subr.bf16.mxu0 0
      %923 = vmatpush1.bf16.msra.mxu0 0
      %924 = vmatprep.subr.bf16.mxu0 0
      %925 = vmatpush1.bf16.msra.mxu0 0
      %926 = vmatprep.mubr.bf16.mxu0 0
      %927 = vmatmul.mubr.bf16.gmra.mrb[0].mxu0 %v886
      %v928 = vpop.f32.mrb[0].mxu0
      %v929 = vadd.f32 0.0, %v928
      %v930 = vpop.f32.mrb[0].mxu0
      %v931 = vadd.f32 0.0, %v930
      %v932 = vpop.f32.mrb[0].mxu0
      %v933 = vpop.f32.mrb[0].mxu0
      %934 = vdwg.mxu0
      %v935 = vmax.f32 %v929, %v931
      %936 = vmax.xlane.f32.xlu0 %v935
      %v937 = vpop.xlane.xlu0 %936
      %v938 = vsub.f32 %v929, %v937
      %v939 = vsub.f32 %v931, %v937
      %v940 = vmul.f32 %v938, 1.442695
      %v941 = vpow.pop %v940
      %v942 = vmul.f32 %v939, 1.442695
      %v943 = vpow.pop %v942
      %v944 = vadd.f32 %v941, %v943
      %945 = vadd.xlane.f32.xlu0 %v944
      %v946 = vpop.xlane.xlu0 %945
      %v947 = vrcp.pop %v946
      %v948 = vmul.f32 %v941, %v947
      %v949 = vmul.f32 %v943, %v947
      %v950 = vpack.c.bf16 %v948, %v948
      %v951 = vpack.c.bf16 %v949, %v949
      %s952 = scalar_lea.vmem %s526, 128
      %v953 = vld [vmem:[%s952] sm:$0xf]
      %v954 = vld [vmem:[%s952 + $0x4] sm:$0xf]
      %v955 = vld [vmem:[%s952 + $0x8] sm:$0xf]
      %v956 = vld [vmem:[%s952 + $0xc] sm:$0xf]
      %v957 = vld [vmem:[%s952 + $0x10] sm:$0xf]
      %v958 = vld [vmem:[%s952 + $0x14] sm:$0xf]
      %v959 = vld [vmem:[%s952 + $0x18] sm:$0xf]
      %v960 = vld [vmem:[%s952 + $0x1c] sm:$0xf]
      %v961 = vld [vmem:[%s952 + $0x20] sm:$0xf]
      %v962 = vld [vmem:[%s952 + $0x24] sm:$0xf]
      %v963 = vld [vmem:[%s952 + $0x28] sm:$0xf]
      %v964 = vld [vmem:[%s952 + $0x2c] sm:$0xf]
      %v965 = vld [vmem:[%s952 + $0x30] sm:$0xf]
      %v966 = vld [vmem:[%s952 + $0x34] sm:$0xf]
      %v967 = vld [vmem:[%s952 + $0x38] sm:$0xf]
      %v968 = vld [vmem:[%s952 + $0x3c] sm:$0xf]
      %v969 = vld [vmem:[%s952 + $0x40] sm:$0xf]
      %v970 = vld [vmem:[%s952 + $0x44] sm:$0xf]
      %v971 = vld [vmem:[%s952 + $0x48] sm:$0xf]
      %v972 = vld [vmem:[%s952 + $0x4c] sm:$0xf]
      %v973 = vld [vmem:[%s952 + $0x50] sm:$0xf]
      %v974 = vld [vmem:[%s952 + $0x54] sm:$0xf]
      %v975 = vld [vmem:[%s952 + $0x58] sm:$0xf]
      %v976 = vld [vmem:[%s952 + $0x5c] sm:$0xf]
      %v977 = vld [vmem:[%s952 + $0x60] sm:$0xf]
      %v978 = vld [vmem:[%s952 + $0x64] sm:$0xf]
      %v979 = vld [vmem:[%s952 + $0x68] sm:$0xf]
      %v980 = vld [vmem:[%s952 + $0x6c] sm:$0xf]
      %v981 = vld [vmem:[%s952 + $0x70] sm:$0xf]
      %v982 = vld [vmem:[%s952 + $0x74] sm:$0xf]
      %v983 = vld [vmem:[%s952 + $0x78] sm:$0xf]
      %v984 = vld [vmem:[%s952 + $0x7c] sm:$0xf]
      %v1017 = vunpack.c.l.b16 %v953
      %v1018 = vunpack.c.l.b16 %v954
      %v1019 = vunpack.c.l.b16 %v955
      %v1020 = vunpack.c.l.b16 %v956
      %v1021 = vunpack.c.l.b16 %v957
      %v1022 = vunpack.c.l.b16 %v958
      %v1023 = vunpack.c.l.b16 %v959
      %v1024 = vunpack.c.l.b16 %v960
      %v1025 = vunpack.c.l.b16 %v961
      %v1026 = vunpack.c.l.b16 %v962
      %v1027 = vunpack.c.l.b16 %v963
      %v1028 = vunpack.c.l.b16 %v964
      %v1029 = vunpack.c.l.b16 %v965
      %v1030 = vunpack.c.l.b16 %v966
      %v1031 = vunpack.c.l.b16 %v967
      %v1032 = vunpack.c.l.b16 %v968
      %v1033 = vunpack.c.l.b16 %v969
      %v1034 = vunpack.c.l.b16 %v970
      %v1035 = vunpack.c.l.b16 %v971
      %v1036 = vunpack.c.l.b16 %v972
      %v1037 = vunpack.c.l.b16 %v973
      %v1038 = vunpack.c.l.b16 %v974
      %v1039 = vunpack.c.l.b16 %v975
      %v1040 = vunpack.c.l.b16 %v976
      %v1041 = vunpack.c.l.b16 %v977
      %v1042 = vunpack.c.l.b16 %v978
      %v1043 = vunpack.c.l.b16 %v979
      %v1044 = vunpack.c.l.b16 %v980
      %v1045 = vunpack.c.l.b16 %v981
      %v1046 = vunpack.c.l.b16 %v982
      %v1047 = vunpack.c.l.b16 %v983
      %v1048 = vunpack.c.l.b16 %v984
      %v1049 = vpack.c.b16 %v1018, %v1017
      %v1050 = vpack.c.b16 %v1020, %v1019
      %v1051 = vpack.c.b16 %v1022, %v1021
      %v1052 = vpack.c.b16 %v1024, %v1023
      %v1053 = vpack.c.b16 %v1026, %v1025
      %v1054 = vpack.c.b16 %v1028, %v1027
      %v1055 = vpack.c.b16 %v1030, %v1029
      %v1056 = vpack.c.b16 %v1032, %v1031
      %v1057 = vpack.c.b16 %v1034, %v1033
      %v1058 = vpack.c.b16 %v1036, %v1035
      %v1059 = vpack.c.b16 %v1038, %v1037
      %v1060 = vpack.c.b16 %v1040, %v1039
      %v1061 = vpack.c.b16 %v1042, %v1041
      %v1062 = vpack.c.b16 %v1044, %v1043
      %v1063 = vpack.c.b16 %v1046, %v1045
      %v1064 = vpack.c.b16 %v1048, %v1047
      %1081 = vmatprep.subr.bf16.mxu0 0
      %1082 = vmatpush1.bf16.msra.mxu0 %v1049
      %1083 = vmatprep.subr.bf16.mxu0 0
      %1084 = vmatpush1.bf16.msra.mxu0 %v1050
      %1085 = vmatprep.subr.bf16.mxu0 0
      %1086 = vmatpush1.bf16.msra.mxu0 %v1051
      %1087 = vmatprep.subr.bf16.mxu0 0
      %1088 = vmatpush1.bf16.msra.mxu0 %v1052
      %1089 = vmatprep.subr.bf16.mxu0 0
      %1090 = vmatpush1.bf16.msra.mxu0 %v1053
      %1091 = vmatprep.subr.bf16.mxu0 0
      %1092 = vmatpush1.bf16.msra.mxu0 %v1054
      %1093 = vmatprep.subr.bf16.mxu0 0
      %1094 = vmatpush1.bf16.msra.mxu0 %v1055
      %1095 = vmatprep.subr.bf16.mxu0 0
      %1096 = vmatpush1.bf16.msra.mxu0 %v1056
      %1097 = vmatprep.subr.bf16.mxu0 0
      %1098 = vmatpush1.bf16.msra.mxu0 %v1057
      %1099 = vmatprep.subr.bf16.mxu0 0
      %1100 = vmatpush1.bf16.msra.mxu0 %v1058
      %1101 = vmatprep.subr.bf16.mxu0 0
      %1102 = vmatpush1.bf16.msra.mxu0 %v1059
      %1103 = vmatprep.subr.bf16.mxu0 0
      %1104 = vmatpush1.bf16.msra.mxu0 %v1060
      %1105 = vmatprep.subr.bf16.mxu0 0
      %1106 = vmatpush1.bf16.msra.mxu0 %v1061
      %1107 = vmatprep.subr.bf16.mxu0 0
      %1108 = vmatpush1.bf16.msra.mxu0 %v1062
      %1109 = vmatprep.subr.bf16.mxu0 0
      %1110 = vmatpush1.bf16.msra.mxu0 %v1063
      %1111 = vmatprep.subr.bf16.mxu0 0
      %1112 = vmatpush1.bf16.msra.mxu0 %v1064
      %1113 = vmatprep.mubr.bf16.mxu0 %v951
      %1114 = vmatmul.mubr.bf16.gmra.mrb[0].mxu0 %v950
      %v1115 = vpop.f32.mrb[0].mxu0
      %v1116 = vadd.f32 0.0, %v1115
      %v1117 = vpop.f32.mrb[0].mxu0
      %v1118 = vpop.f32.mrb[0].mxu0
      %v1119 = vpop.f32.mrb[0].mxu0
      %1120 = vdwg.mxu0
      %v1121 = vpack.c.bf16 %v1116, %v1116
      %v1123 = vunpack.c.l.b16 %v1121
      %v1124 = vpack.c.b16 %v1123, %v1123
      %1125 = vrot.lane.b32.xlu0 %v1124, 8
      %v1126 = vpop.permute.xlu0 %1125
      %vm1128 = vcmask 126016
      %1129 = vst.msk [vmem:[#allocation2] sm:$0xf] %vm1128, %v1126
      %s1130 = scalar_lea.vmem %s521, 16
      %v1131 = vld [vmem:[%s1130] sm:$0xff]
      %1132 = vrot.lane.b32.xlu0 %v628, 112
      %v1133 = vpop.permute.xlu0 %1132
      %v1135 = vunpack.c.l.b16 %v1131
      %v1136 = vunpack.c.h.b16 %v1131
      %v1137 = vpack.c.b16 %v1135, %v1135
      %v1138 = vpack.c.b16 %v1136, %v1136
      %v1140 = vsel %vm635, %v1133, 0
      %v1143 = vsel %vm639, %v1137, 0
      %v1146 = vsel %vm639, %v1138, 0
      %1148 = vmatprep.subr.bf16.mxu0 %v1146
      %1149 = vmatpush1.bf16.msra.mxu0 %v1143
      %1150 = vmatprep.subr.bf16.mxu0 0
      %1151 = vmatpush1.bf16.msra.mxu0 0
      %1152 = vmatprep.subr.bf16.mxu0 0
      %1153 = vmatpush1.bf16.msra.mxu0 0
      %1154 = vmatprep.subr.bf16.mxu0 0
      %1155 = vmatpush1.bf16.msra.mxu0 0
      %1156 = vmatprep.subr.bf16.mxu0 0
      %1157 = vmatpush1.bf16.msra.mxu0 0
      %1158 = vmatprep.subr.bf16.mxu0 0
      %1159 = vmatpush1.bf16.msra.mxu0 0
      %1160 = vmatprep.subr.bf16.mxu0 0
      %1161 = vmatpush1.bf16.msra.mxu0 0
      %1162 = vmatprep.subr.bf16.mxu0 0
      %1163 = vmatpush1.bf16.msra.mxu0 0
      %1164 = vmatprep.subr.bf16.mxu0 0
      %1165 = vmatpush1.bf16.msra.mxu0 0
      %1166 = vmatprep.subr.bf16.mxu0 0
      %1167 = vmatpush1.bf16.msra.mxu0 0
      %1168 = vmatprep.subr.bf16.mxu0 0
      %1169 = vmatpush1.bf16.msra.mxu0 0
      %1170 = vmatprep.subr.bf16.mxu0 0
      %1171 = vmatpush1.bf16.msra.mxu0 0
      %1172 = vmatprep.subr.bf16.mxu0 0
      %1173 = vmatpush1.bf16.msra.mxu0 0
      %1174 = vmatprep.subr.bf16.mxu0 0
      %1175 = vmatpush1.bf16.msra.mxu0 0
      %1176 = vmatprep.subr.bf16.mxu0 0
      %1177 = vmatpush1.bf16.msra.mxu0 0
      %1178 = vmatprep.subr.bf16.mxu0 0
      %1179 = vmatpush1.bf16.msra.mxu0 0
      %1180 = vmatprep.mubr.bf16.mxu0 0
      %1181 = vmatmul.mubr.bf16.gmra.mrb[0].mxu0 %v1140
      %v1182 = vpop.f32.mrb[0].mxu0
      %v1183 = vadd.f32 0.0, %v1182
      %v1184 = vpop.f32.mrb[0].mxu0
      %v1185 = vadd.f32 0.0, %v1184
      %v1186 = vpop.f32.mrb[0].mxu0
      %v1187 = vpop.f32.mrb[0].mxu0
      %1188 = vdwg.mxu0
      %v1189 = vmax.f32 %v1183, %v1185
      %1190 = vmax.xlane.f32.xlu0 %v1189
      %v1191 = vpop.xlane.xlu0 %1190
      %v1192 = vsub.f32 %v1183, %v1191
      %v1193 = vsub.f32 %v1185, %v1191
      %v1194 = vmul.f32 %v1192, 1.442695
      %v1195 = vpow.pop %v1194
      %v1196 = vmul.f32 %v1193, 1.442695
      %v1197 = vpow.pop %v1196
      %v1198 = vadd.f32 %v1195, %v1197
      %1199 = vadd.xlane.f32.xlu0 %v1198
      %v1200 = vpop.xlane.xlu0 %1199
      %v1201 = vrcp.pop %v1200
      %v1202 = vmul.f32 %v1195, %v1201
      %v1203 = vmul.f32 %v1197, %v1201
      %v1204 = vpack.c.bf16 %v1202, %v1202
      %v1205 = vpack.c.bf16 %v1203, %v1203
      %s1206 = scalar_lea.vmem %s526, 256
      %v1207 = vld [vmem:[%s1206] sm:$0xf]
      %v1208 = vld [vmem:[%s1206 + $0x4] sm:$0xf]
      %v1209 = vld [vmem:[%s1206 + $0x8] sm:$0xf]
      %v1210 = vld [vmem:[%s1206 + $0xc] sm:$0xf]
      %v1211 = vld [vmem:[%s1206 + $0x10] sm:$0xf]
      %v1212 = vld [vmem:[%s1206 + $0x14] sm:$0xf]
      %v1213 = vld [vmem:[%s1206 + $0x18] sm:$0xf]
      %v1214 = vld [vmem:[%s1206 + $0x1c] sm:$0xf]
      %v1215 = vld [vmem:[%s1206 + $0x20] sm:$0xf]
      %v1216 = vld [vmem:[%s1206 + $0x24] sm:$0xf]
      %v1217 = vld [vmem:[%s1206 + $0x28] sm:$0xf]
      %v1218 = vld [vmem:[%s1206 + $0x2c] sm:$0xf]
      %v1219 = vld [vmem:[%s1206 + $0x30] sm:$0xf]
      %v1220 = vld [vmem:[%s1206 + $0x34] sm:$0xf]
      %v1221 = vld [vmem:[%s1206 + $0x38] sm:$0xf]
      %v1222 = vld [vmem:[%s1206 + $0x3c] sm:$0xf]
      %v1223 = vld [vmem:[%s1206 + $0x40] sm:$0xf]
      %v1224 = vld [vmem:[%s1206 + $0x44] sm:$0xf]
      %v1225 = vld [vmem:[%s1206 + $0x48] sm:$0xf]
      %v1226 = vld [vmem:[%s1206 + $0x4c] sm:$0xf]
      %v1227 = vld [vmem:[%s1206 + $0x50] sm:$0xf]
      %v1228 = vld [vmem:[%s1206 + $0x54] sm:$0xf]
      %v1229 = vld [vmem:[%s1206 + $0x58] sm:$0xf]
      %v1230 = vld [vmem:[%s1206 + $0x5c] sm:$0xf]
      %v1231 = vld [vmem:[%s1206 + $0x60] sm:$0xf]
      %v1232 = vld [vmem:[%s1206 + $0x64] sm:$0xf]
      %v1233 = vld [vmem:[%s1206 + $0x68] sm:$0xf]
      %v1234 = vld [vmem:[%s1206 + $0x6c] sm:$0xf]
      %v1235 = vld [vmem:[%s1206 + $0x70] sm:$0xf]
      %v1236 = vld [vmem:[%s1206 + $0x74] sm:$0xf]
      %v1237 = vld [vmem:[%s1206 + $0x78] sm:$0xf]
      %v1238 = vld [vmem:[%s1206 + $0x7c] sm:$0xf]
      %v1271 = vunpack.c.l.b16 %v1207
      %v1272 = vunpack.c.l.b16 %v1208
      %v1273 = vunpack.c.l.b16 %v1209
      %v1274 = vunpack.c.l.b16 %v1210
      %v1275 = vunpack.c.l.b16 %v1211
      %v1276 = vunpack.c.l.b16 %v1212
      %v1277 = vunpack.c.l.b16 %v1213
      %v1278 = vunpack.c.l.b16 %v1214
      %v1279 = vunpack.c.l.b16 %v1215
      %v1280 = vunpack.c.l.b16 %v1216
      %v1281 = vunpack.c.l.b16 %v1217
      %v1282 = vunpack.c.l.b16 %v1218
      %v1283 = vunpack.c.l.b16 %v1219
      %v1284 = vunpack.c.l.b16 %v1220
      %v1285 = vunpack.c.l.b16 %v1221
      %v1286 = vunpack.c.l.b16 %v1222
      %v1287 = vunpack.c.l.b16 %v1223
      %v1288 = vunpack.c.l.b16 %v1224
      %v1289 = vunpack.c.l.b16 %v1225
      %v1290 = vunpack.c.l.b16 %v1226
      %v1291 = vunpack.c.l.b16 %v1227
      %v1292 = vunpack.c.l.b16 %v1228
      %v1293 = vunpack.c.l.b16 %v1229
      %v1294 = vunpack.c.l.b16 %v1230
      %v1295 = vunpack.c.l.b16 %v1231
      %v1296 = vunpack.c.l.b16 %v1232
      %v1297 = vunpack.c.l.b16 %v1233
      %v1298 = vunpack.c.l.b16 %v1234
      %v1299 = vunpack.c.l.b16 %v1235
      %v1300 = vunpack.c.l.b16 %v1236
      %v1301 = vunpack.c.l.b16 %v1237
      %v1302 = vunpack.c.l.b16 %v1238
      %v1303 = vpack.c.b16 %v1272, %v1271
      %v1304 = vpack.c.b16 %v1274, %v1273
      %v1305 = vpack.c.b16 %v1276, %v1275
      %v1306 = vpack.c.b16 %v1278, %v1277
      %v1307 = vpack.c.b16 %v1280, %v1279
      %v1308 = vpack.c.b16 %v1282, %v1281
      %v1309 = vpack.c.b16 %v1284, %v1283
      %v1310 = vpack.c.b16 %v1286, %v1285
      %v1311 = vpack.c.b16 %v1288, %v1287
      %v1312 = vpack.c.b16 %v1290, %v1289
      %v1313 = vpack.c.b16 %v1292, %v1291
      %v1314 = vpack.c.b16 %v1294, %v1293
      %v1315 = vpack.c.b16 %v1296, %v1295
      %v1316 = vpack.c.b16 %v1298, %v1297
      %v1317 = vpack.c.b16 %v1300, %v1299
      %v1318 = vpack.c.b16 %v1302, %v1301
      %1335 = vmatprep.subr.bf16.mxu0 0
      %1336 = vmatpush1.bf16.msra.mxu0 %v1303
      %1337 = vmatprep.subr.bf16.mxu0 0
      %1338 = vmatpush1.bf16.msra.mxu0 %v1304
      %1339 = vmatprep.subr.bf16.mxu0 0
      %1340 = vmatpush1.bf16.msra.mxu0 %v1305
      %1341 = vmatprep.subr.bf16.mxu0 0
      %1342 = vmatpush1.bf16.msra.mxu0 %v1306
      %1343 = vmatprep.subr.bf16.mxu0 0
      %1344 = vmatpush1.bf16.msra.mxu0 %v1307
      %1345 = vmatprep.subr.bf16.mxu0 0
      %1346 = vmatpush1.bf16.msra.mxu0 %v1308
      %1347 = vmatprep.subr.bf16.mxu0 0
      %1348 = vmatpush1.bf16.msra.mxu0 %v1309
      %1349 = vmatprep.subr.bf16.mxu0 0
      %1350 = vmatpush1.bf16.msra.mxu0 %v1310
      %1351 = vmatprep.subr.bf16.mxu0 0
      %1352 = vmatpush1.bf16.msra.mxu0 %v1311
      %1353 = vmatprep.subr.bf16.mxu0 0
      %1354 = vmatpush1.bf16.msra.mxu0 %v1312
      %1355 = vmatprep.subr.bf16.mxu0 0
      %1356 = vmatpush1.bf16.msra.mxu0 %v1313
      %1357 = vmatprep.subr.bf16.mxu0 0
      %1358 = vmatpush1.bf16.msra.mxu0 %v1314
      %1359 = vmatprep.subr.bf16.mxu0 0
      %1360 = vmatpush1.bf16.msra.mxu0 %v1315
      %1361 = vmatprep.subr.bf16.mxu0 0
      %1362 = vmatpush1.bf16.msra.mxu0 %v1316
      %1363 = vmatprep.subr.bf16.mxu0 0
      %1364 = vmatpush1.bf16.msra.mxu0 %v1317
      %1365 = vmatprep.subr.bf16.mxu0 0
      %1366 = vmatpush1.bf16.msra.mxu0 %v1318
      %1367 = vmatprep.mubr.bf16.mxu0 %v1205
      %1368 = vmatmul.mubr.bf16.gmra.mrb[0].mxu0 %v1204
      %v1369 = vpop.f32.mrb[0].mxu0
      %v1370 = vadd.f32 0.0, %v1369
      %v1371 = vpop.f32.mrb[0].mxu0
      %v1372 = vpop.f32.mrb[0].mxu0
      %v1373 = vpop.f32.mrb[0].mxu0
      %1374 = vdwg.mxu0
      %v1375 = vpack.c.bf16 %v1370, %v1370
      %v1377 = vunpack.c.l.b16 %v1375
      %v1378 = vpack.c.b16 %v1377, %v1377
      %1379 = vrot.lane.b32.xlu0 %v1378, 16
      %v1380 = vpop.permute.xlu0 %1379
      %vm1382 = vcmask 191616
      %1383 = vst.msk [vmem:[#allocation2] sm:$0xf] %vm1382, %v1380
      %s1384 = scalar_lea.vmem %s521, 24
      %v1385 = vld [vmem:[%s1384] sm:$0xff]
      %1386 = vrot.lane.b32.xlu0 %v628, 104
      %v1387 = vpop.permute.xlu0 %1386
      %v1389 = vunpack.c.l.b16 %v1385
      %v1390 = vunpack.c.h.b16 %v1385
      %v1391 = vpack.c.b16 %v1389, %v1389
      %v1392 = vpack.c.b16 %v1390, %v1390
      %v1394 = vsel %vm635, %v1387, 0
      %v1397 = vsel %vm639, %v1391, 0
      %v1400 = vsel %vm639, %v1392, 0
      %1402 = vmatprep.subr.bf16.mxu0 %v1400
      %1403 = vmatpush1.bf16.msra.mxu0 %v1397
      %1404 = vmatprep.subr.bf16.mxu0 0
      %1405 = vmatpush1.bf16.msra.mxu0 0
      %1406 = vmatprep.subr.bf16.mxu0 0
      %1407 = vmatpush1.bf16.msra.mxu0 0
      %1408 = vmatprep.subr.bf16.mxu0 0
      %1409 = vmatpush1.bf16.msra.mxu0 0
      %1410 = vmatprep.subr.bf16.mxu0 0
      %1411 = vmatpush1.bf16.msra.mxu0 0
      %1412 = vmatprep.subr.bf16.mxu0 0
      %1413 = vmatpush1.bf16.msra.mxu0 0
      %1414 = vmatprep.subr.bf16.mxu0 0
      %1415 = vmatpush1.bf16.msra.mxu0 0
      %1416 = vmatprep.subr.bf16.mxu0 0
      %1417 = vmatpush1.bf16.msra.mxu0 0
      %1418 = vmatprep.subr.bf16.mxu0 0
      %1419 = vmatpush1.bf16.msra.mxu0 0
      %1420 = vmatprep.subr.bf16.mxu0 0
      %1421 = vmatpush1.bf16.msra.mxu0 0
      %1422 = vmatprep.subr.bf16.mxu0 0
      %1423 = vmatpush1.bf16.msra.mxu0 0
      %1424 = vmatprep.subr.bf16.mxu0 0
      %1425 = vmatpush1.bf16.msra.mxu0 0
      %1426 = vmatprep.subr.bf16.mxu0 0
      %1427 = vmatpush1.bf16.msra.mxu0 0
      %1428 = vmatprep.subr.bf16.mxu0 0
      %1429 = vmatpush1.bf16.msra.mxu0 0
      %1430 = vmatprep.subr.bf16.mxu0 0
      %1431 = vmatpush1.bf16.msra.mxu0 0
      %1432 = vmatprep.subr.bf16.mxu0 0
      %1433 = vmatpush1.bf16.msra.mxu0 0
      %1434 = vmatprep.mubr.bf16.mxu0 0
      %1435 = vmatmul.mubr.bf16.gmra.mrb[0].mxu0 %v1394
      %v1436 = vpop.f32.mrb[0].mxu0
      %v1437 = vadd.f32 0.0, %v1436
      %v1438 = vpop.f32.mrb[0].mxu0
      %v1439 = vadd.f32 0.0, %v1438
      %v1440 = vpop.f32.mrb[0].mxu0
      %v1441 = vpop.f32.mrb[0].mxu0
      %1442 = vdwg.mxu0
      %v1443 = vmax.f32 %v1437, %v1439
      %1444 = vmax.xlane.f32.xlu0 %v1443
      %v1445 = vpop.xlane.xlu0 %1444
      %v1446 = vsub.f32 %v1437, %v1445
      %v1447 = vsub.f32 %v1439, %v1445
      %v1448 = vmul.f32 %v1446, 1.442695
      %v1449 = vpow.pop %v1448
      %v1450 = vmul.f32 %v1447, 1.442695
      %v1451 = vpow.pop %v1450
      %v1452 = vadd.f32 %v1449, %v1451
      %1453 = vadd.xlane.f32.xlu0 %v1452
      %v1454 = vpop.xlane.xlu0 %1453
      %v1455 = vrcp.pop %v1454
      %v1456 = vmul.f32 %v1449, %v1455
      %v1457 = vmul.f32 %v1451, %v1455
      %v1458 = vpack.c.bf16 %v1456, %v1456
      %v1459 = vpack.c.bf16 %v1457, %v1457
      %s1460 = scalar_lea.vmem %s526, 384
      %v1461 = vld [vmem:[%s1460] sm:$0xf]
      %v1462 = vld [vmem:[%s1460 + $0x4] sm:$0xf]
      %v1463 = vld [vmem:[%s1460 + $0x8] sm:$0xf]
      %v1464 = vld [vmem:[%s1460 + $0xc] sm:$0xf]
      %v1465 = vld [vmem:[%s1460 + $0x10] sm:$0xf]
      %v1466 = vld [vmem:[%s1460 + $0x14] sm:$0xf]
      %v1467 = vld [vmem:[%s1460 + $0x18] sm:$0xf]
      %v1468 = vld [vmem:[%s1460 + $0x1c] sm:$0xf]
      %v1469 = vld [vmem:[%s1460 + $0x20] sm:$0xf]
      %v1470 = vld [vmem:[%s1460 + $0x24] sm:$0xf]
      %v1471 = vld [vmem:[%s1460 + $0x28] sm:$0xf]
      %v1472 = vld [vmem:[%s1460 + $0x2c] sm:$0xf]
      %v1473 = vld [vmem:[%s1460 + $0x30] sm:$0xf]
      %v1474 = vld [vmem:[%s1460 + $0x34] sm:$0xf]
      %v1475 = vld [vmem:[%s1460 + $0x38] sm:$0xf]
      %v1476 = vld [vmem:[%s1460 + $0x3c] sm:$0xf]
      %v1477 = vld [vmem:[%s1460 + $0x40] sm:$0xf]
      %v1478 = vld [vmem:[%s1460 + $0x44] sm:$0xf]
      %v1479 = vld [vmem:[%s1460 + $0x48] sm:$0xf]
      %v1480 = vld [vmem:[%s1460 + $0x4c] sm:$0xf]
      %v1481 = vld [vmem:[%s1460 + $0x50] sm:$0xf]
      %v1482 = vld [vmem:[%s1460 + $0x54] sm:$0xf]
      %v1483 = vld [vmem:[%s1460 + $0x58] sm:$0xf]
      %v1484 = vld [vmem:[%s1460 + $0x5c] sm:$0xf]
      %v1485 = vld [vmem:[%s1460 + $0x60] sm:$0xf]
      %v1486 = vld [vmem:[%s1460 + $0x64] sm:$0xf]
      %v1487 = vld [vmem:[%s1460 + $0x68] sm:$0xf]
      %v1488 = vld [vmem:[%s1460 + $0x6c] sm:$0xf]
      %v1489 = vld [vmem:[%s1460 + $0x70] sm:$0xf]
      %v1490 = vld [vmem:[%s1460 + $0x74] sm:$0xf]
      %v1491 = vld [vmem:[%s1460 + $0x78] sm:$0xf]
      %v1492 = vld [vmem:[%s1460 + $0x7c] sm:$0xf]
      %v1525 = vunpack.c.l.b16 %v1461
      %v1526 = vunpack.c.l.b16 %v1462
      %v1527 = vunpack.c.l.b16 %v1463
      %v1528 = vunpack.c.l.b16 %v1464
      %v1529 = vunpack.c.l.b16 %v1465
      %v1530 = vunpack.c.l.b16 %v1466
      %v1531 = vunpack.c.l.b16 %v1467
      %v1532 = vunpack.c.l.b16 %v1468
      %v1533 = vunpack.c.l.b16 %v1469
      %v1534 = vunpack.c.l.b16 %v1470
      %v1535 = vunpack.c.l.b16 %v1471
      %v1536 = vunpack.c.l.b16 %v1472
      %v1537 = vunpack.c.l.b16 %v1473
      %v1538 = vunpack.c.l.b16 %v1474
      %v1539 = vunpack.c.l.b16 %v1475
      %v1540 = vunpack.c.l.b16 %v1476
      %v1541 = vunpack.c.l.b16 %v1477
      %v1542 = vunpack.c.l.b16 %v1478
      %v1543 = vunpack.c.l.b16 %v1479
      %v1544 = vunpack.c.l.b16 %v1480
      %v1545 = vunpack.c.l.b16 %v1481
      %v1546 = vunpack.c.l.b16 %v1482
      %v1547 = vunpack.c.l.b16 %v1483
      %v1548 = vunpack.c.l.b16 %v1484
      %v1549 = vunpack.c.l.b16 %v1485
      %v1550 = vunpack.c.l.b16 %v1486
      %v1551 = vunpack.c.l.b16 %v1487
      %v1552 = vunpack.c.l.b16 %v1488
      %v1553 = vunpack.c.l.b16 %v1489
      %v1554 = vunpack.c.l.b16 %v1490
      %v1555 = vunpack.c.l.b16 %v1491
      %v1556 = vunpack.c.l.b16 %v1492
      %v1557 = vpack.c.b16 %v1526, %v1525
      %v1558 = vpack.c.b16 %v1528, %v1527
      %v1559 = vpack.c.b16 %v1530, %v1529
      %v1560 = vpack.c.b16 %v1532, %v1531
      %v1561 = vpack.c.b16 %v1534, %v1533
      %v1562 = vpack.c.b16 %v1536, %v1535
      %v1563 = vpack.c.b16 %v1538, %v1537
      %v1564 = vpack.c.b16 %v1540, %v1539
      %v1565 = vpack.c.b16 %v1542, %v1541
      %v1566 = vpack.c.b16 %v1544, %v1543
      %v1567 = vpack.c.b16 %v1546, %v1545
      %v1568 = vpack.c.b16 %v1548, %v1547
      %v1569 = vpack.c.b16 %v1550, %v1549
      %v1570 = vpack.c.b16 %v1552, %v1551
      %v1571 = vpack.c.b16 %v1554, %v1553
      %v1572 = vpack.c.b16 %v1556, %v1555
      %1589 = vmatprep.subr.bf16.mxu0 0
      %1590 = vmatpush1.bf16.msra.mxu0 %v1557
      %1591 = vmatprep.subr.bf16.mxu0 0
      %1592 = vmatpush1.bf16.msra.mxu0 %v1558
      %1593 = vmatprep.subr.bf16.mxu0 0
      %1594 = vmatpush1.bf16.msra.mxu0 %v1559
      %1595 = vmatprep.subr.bf16.mxu0 0
      %1596 = vmatpush1.bf16.msra.mxu0 %v1560
      %1597 = vmatprep.subr.bf16.mxu0 0
      %1598 = vmatpush1.bf16.msra.mxu0 %v1561
      %1599 = vmatprep.subr.bf16.mxu0 0
      %1600 = vmatpush1.bf16.msra.mxu0 %v1562
      %1601 = vmatprep.subr.bf16.mxu0 0
      %1602 = vmatpush1.bf16.msra.mxu0 %v1563
      %1603 = vmatprep.subr.bf16.mxu0 0
      %1604 = vmatpush1.bf16.msra.mxu0 %v1564
      %1605 = vmatprep.subr.bf16.mxu0 0
      %1606 = vmatpush1.bf16.msra.mxu0 %v1565
      %1607 = vmatprep.subr.bf16.mxu0 0
      %1608 = vmatpush1.bf16.msra.mxu0 %v1566
      %1609 = vmatprep.subr.bf16.mxu0 0
      %1610 = vmatpush1.bf16.msra.mxu0 %v1567
      %1611 = vmatprep.subr.bf16.mxu0 0
      %1612 = vmatpush1.bf16.msra.mxu0 %v1568
      %1613 = vmatprep.subr.bf16.mxu0 0
      %1614 = vmatpush1.bf16.msra.mxu0 %v1569
      %1615 = vmatprep.subr.bf16.mxu0 0
      %1616 = vmatpush1.bf16.msra.mxu0 %v1570
      %1617 = vmatprep.subr.bf16.mxu0 0
      %1618 = vmatpush1.bf16.msra.mxu0 %v1571
      %1619 = vmatprep.subr.bf16.mxu0 0
      %1620 = vmatpush1.bf16.msra.mxu0 %v1572
      %1621 = vmatprep.mubr.bf16.mxu0 %v1459
      %1622 = vmatmul.mubr.bf16.gmra.mrb[0].mxu0 %v1458
      %v1623 = vpop.f32.mrb[0].mxu0
      %v1624 = vadd.f32 0.0, %v1623
      %v1625 = vpop.f32.mrb[0].mxu0
      %v1626 = vpop.f32.mrb[0].mxu0
      %v1627 = vpop.f32.mrb[0].mxu0
      %1628 = vdwg.mxu0
      %v1629 = vpack.c.bf16 %v1624, %v1624
      %v1631 = vunpack.c.l.b16 %v1629
      %v1632 = vpack.c.b16 %v1631, %v1631
      %1633 = vrot.lane.b32.xlu0 %v1632, 24
      %v1634 = vpop.permute.xlu0 %1633
      %vm1636 = vcmask 257216
      %1637 = vst.msk [vmem:[#allocation2] sm:$0xf] %vm1636, %v1634
      %v1638 = vld [vmem:[#allocation2] sm:$0xf]
      %v1639 = vld [vmem:[%s6] sm:$0xf]
      %v1640 = vld [vmem:[%s6 + $0x4] sm:$0xf]
      %v1641 = vld [vmem:[%s6 + $0x8] sm:$0xf]
      %v1642 = vld [vmem:[%s6 + $0xc] sm:$0xf]
      %v1647 = vunpack.c.l.b16 %v1639
      %v1648 = vunpack.c.l.b16 %v1640
      %v1649 = vunpack.c.l.b16 %v1641
      %v1650 = vunpack.c.l.b16 %v1642
      %v1651 = vpack.c.b16 %v1648, %v1647
      %v1652 = vpack.c.b16 %v1650, %v1649
      %v1656 = vsel %vm539, %v1638, 0
      %1658 = vmatprep.subr.bf16.mxu0 0
      %1659 = vmatpush1.bf16.msra.mxu0 %v1651
      %1660 = vmatprep.subr.bf16.mxu0 0
      %1661 = vmatpush1.bf16.msra.mxu0 %v1652
      %1662 = vmatprep.subr.bf16.mxu0 0
      %1663 = vmatpush1.bf16.msra.mxu0 0
      %1664 = vmatprep.subr.bf16.mxu0 0
      %1665 = vmatpush1.bf16.msra.mxu0 0
      %1666 = vmatprep.subr.bf16.mxu0 0
      %1667 = vmatpush1.bf16.msra.mxu0 0
      %1668 = vmatprep.subr.bf16.mxu0 0
      %1669 = vmatpush1.bf16.msra.mxu0 0
      %1670 = vmatprep.subr.bf16.mxu0 0
      %1671 = vmatpush1.bf16.msra.mxu0 0
      %1672 = vmatprep.subr.bf16.mxu0 0
      %1673 = vmatpush1.bf16.msra.mxu0 0
      %1674 = vmatprep.subr.bf16.mxu0 0
      %1675 = vmatpush1.bf16.msra.mxu0 0
      %1676 = vmatprep.subr.bf16.mxu0 0
      %1677 = vmatpush1.bf16.msra.mxu0 0
      %1678 = vmatprep.subr.bf16.mxu0 0
      %1679 = vmatpush1.bf16.msra.mxu0 0
      %1680 = vmatprep.subr.bf16.mxu0 0
      %1681 = vmatpush1.bf16.msra.mxu0 0
      %1682 = vmatprep.subr.bf16.mxu0 0
      %1683 = vmatpush1.bf16.msra.mxu0 0
      %1684 = vmatprep.subr.bf16.mxu0 0
      %1685 = vmatpush1.bf16.msra.mxu0 0
      %1686 = vmatprep.subr.bf16.mxu0 0
      %1687 = vmatpush1.bf16.msra.mxu0 0
      %1688 = vmatprep.subr.bf16.mxu0 0
      %1689 = vmatpush1.bf16.msra.mxu0 0
      %1690 = vmatprep.mubr.bf16.mxu0 0
      %1691 = vmatmul.mubr.bf16.gmra.mrb[0].mxu0 %v1656
      %v1692 = vpop.f32.mrb[0].mxu0
      %v1693 = vadd.f32 0.0, %v1692
      %v1694 = vpop.f32.mrb[0].mxu0
      %v1695 = vpop.f32.mrb[0].mxu0
      %v1696 = vpop.f32.mrb[0].mxu0
      %1697 = vdwg.mxu0
      %v1698 = vadd.f32 %v536, %v1693
      %v1699 = vld [vmem:[%s7] sm:$0x1]
      %v1701 = vlaneseq
      %v1702 = vshrl.u32 %v1701, 7
      %v1703 = vsub.s32 0, %v1702
      %v1704 = vrot.slane %v1699, %v1703
      %v1706 = vadd.f32 %v1698, %v1704
      %v1707 = vld [vmem:[%s8] sm:$0x1]
      %v1708 = vld [vmem:[%s9] sm:$0x1]
      %v1709 = vsel %vm539, %v1706, 0.0
      %1710 = vadd.xlane.f32.xlu0 %v1709
      %v1711 = vpop.xlane.xlu0 %1710
      %v1712 = vmul.f32 %v1711, %v543
      %v1713 = vsub.f32 %v1706, %v1712
      %v1714 = vmul.f32 %v1713, %v1713
      %v1715 = vsel %vm539, %v1714, 0.0
      %1716 = vadd.xlane.f32.xlu0 %v1715
      %v1717 = vpop.xlane.xlu0 %1716
      %v1718 = vmul.f32 %v1717, %v543
      %v1719 = vadd.f32 %v1718, 1e-05
      %v1720 = vrsqrt.pop %v1719
      %v1721 = vmul.f32 %v1713, %v1720
      %v1723 = vlaneseq
      %v1724 = vshrl.u32 %v1723, 7
      %v1725 = vsub.s32 0, %v1724
      %v1726 = vrot.slane %v1707, %v1725
      %v1728 = vmul.f32 %v1721, %v1726
      %v1730 = vlaneseq
      %v1731 = vshrl.u32 %v1730, 7
      %v1732 = vsub.s32 0, %v1731
      %v1733 = vrot.slane %v1708, %v1732
      %v1735 = vadd.f32 %v1728, %v1733
      %v1736 = vpack.c.bf16 %v1735, %v1735
      %v1737 = vld [vmem:[%s10] sm:$0xf]
      %v1738 = vld [vmem:[%s10 + $0x4] sm:$0xf]
      %v1739 = vld [vmem:[%s10 + $0x8] sm:$0xf]
      %v1740 = vld [vmem:[%s10 + $0xc] sm:$0xf]
      %v1741 = vld [vmem:[%s11] sm:$0x1]
      %v1743 = vlaneseq
      %v1744 = vshrl.u32 %v1743, 7
      %v1745 = vsub.s32 0, %v1744
      %v1746 = vrot.slane %v1741, %v1745
      %v1752 = vunpack.c.l.b16 %v1737
      %v1753 = vunpack.c.l.b16 %v1738
      %v1754 = vunpack.c.l.b16 %v1739
      %v1755 = vunpack.c.l.b16 %v1740
      %v1756 = vpack.c.b16 %v1753, %v1752
      %v1757 = vpack.c.b16 %v1755, %v1754
      %v1761 = vsel %vm539, %v1736, 0
      %1763 = vmatprep.subr.bf16.mxu0 0
      %1764 = vmatpush1.bf16.msra.mxu0 %v1756
      %1765 = vmatprep.subr.bf16.mxu0 0
      %1766 = vmatpush1.bf16.msra.mxu0 %v1757
      %1767 = vmatprep.subr.bf16.mxu0 0
      %1768 = vmatpush1.bf16.msra.mxu0 0
      %1769 = vmatprep.subr.bf16.mxu0 0
      %1770 = vmatpush1.bf16.msra.mxu0 0
      %1771 = vmatprep.subr.bf16.mxu0 0
      %1772 = vmatpush1.bf16.msra.mxu0 0
      %1773 = vmatprep.subr.bf16.mxu0 0
      %1774 = vmatpush1.bf16.msra.mxu0 0
      %1775 = vmatprep.subr.bf16.mxu0 0
      %1776 = vmatpush1.bf16.msra.mxu0 0
      %1777 = vmatprep.subr.bf16.mxu0 0
      %1778 = vmatpush1.bf16.msra.mxu0 0
      %1779 = vmatprep.subr.bf16.mxu0 0
      %1780 = vmatpush1.bf16.msra.mxu0 0
      %1781 = vmatprep.subr.bf16.mxu0 0
      %1782 = vmatpush1.bf16.msra.mxu0 0
      %1783 = vmatprep.subr.bf16.mxu0 0
      %1784 = vmatpush1.bf16.msra.mxu0 0
      %1785 = vmatprep.subr.bf16.mxu0 0
      %1786 = vmatpush1.bf16.msra.mxu0 0
      %1787 = vmatprep.subr.bf16.mxu0 0
      %1788 = vmatpush1.bf16.msra.mxu0 0
      %1789 = vmatprep.subr.bf16.mxu0 0
      %1790 = vmatpush1.bf16.msra.mxu0 0
      %1791 = vmatprep.subr.bf16.mxu0 0
      %1792 = vmatpush1.bf16.msra.mxu0 0
      %1793 = vmatprep.subr.bf16.mxu0 0
      %1794 = vmatpush1.bf16.msra.mxu0 0
      %1795 = vmatprep.mubr.bf16.mxu0 0
      %1796 = vmatmul.mubr.bf16.gmra.mrb[0].mxu0 %v1761
      %v1797 = vpop.f32.mrb[0].mxu0
      %v1798 = vadd.f32 %v1746, %v1797
      %v1799 = vpop.f32.mrb[0].mxu0
      %v1800 = vpop.f32.mrb[0].mxu0
      %v1801 = vpop.f32.mrb[0].mxu0
      %1802 = vdwg.mxu0
      %v1803 = vmul.f32 %v1798, 0.5
      %v1804 = vmul.f32 %v1798, 0.70710677
      %vm1805 = vcmp.ge.f32.partialorder %v1804, 0.0
      %v1806 = vsel %vm1805, 1.0, -1.0
      %v1807 = vand.u32 2147483647, %v1804
      %v1808 = vmul.f32 %v1807, 0.3275911
      %v1809 = vadd.f32 %v1808, 1.0
      %v1810 = vrcp.pop %v1809
      %v1811 = vmul.f32 %v1810, 1.0614054
      %v1812 = vadd.f32 %v1811, -1.4531521
      %v1813 = vmul.f32 %v1812, %v1810
      %v1814 = vadd.f32 %v1813, 1.4214138
      %v1815 = vmul.f32 %v1814, %v1810
      %v1816 = vadd.f32 %v1815, -0.28449672
      %v1817 = vmul.f32 %v1816, %v1810
      %v1818 = vadd.f32 %v1817, 0.2548296
      %v1819 = vmul.f32 %v1818, %v1810
      %v1820 = vsub.f32 0.0, %v1807
      %v1821 = vmul.f32 %v1820, %v1807
      %v1822 = vmul.f32 %v1821, 1.442695
      %v1823 = vpow.pop %v1822
      %v1824 = vmul.f32 %v1819, %v1823
      %v1825 = vsub.f32 1.0, %v1824
      %v1826 = vmul.f32 %v1806, %v1825
      %v1827 = vadd.f32 %v1826, 1.0
      %v1828 = vmul.f32 %v1803, %v1827
      %v1829 = vpack.c.bf16 %v1828, %v1828
      %v1830 = vld [vmem:[%s12] sm:$0xf]
      %v1831 = vld [vmem:[%s12 + $0x4] sm:$0xf]
      %v1832 = vld [vmem:[%s12 + $0x8] sm:$0xf]
      %v1833 = vld [vmem:[%s12 + $0xc] sm:$0xf]
      %v1834 = vld [vmem:[%s12 + $0x10] sm:$0xf]
      %v1835 = vld [vmem:[%s12 + $0x14] sm:$0xf]
      %v1836 = vld [vmem:[%s12 + $0x18] sm:$0xf]
      %v1837 = vld [vmem:[%s12 + $0x1c] sm:$0xf]
      %v1838 = vld [vmem:[%s12 + $0x20] sm:$0xf]
      %v1839 = vld [vmem:[%s12 + $0x24] sm:$0xf]
      %v1840 = vld [vmem:[%s12 + $0x28] sm:$0xf]
      %v1841 = vld [vmem:[%s12 + $0x2c] sm:$0xf]
      %v1842 = vld [vmem:[%s12 + $0x30] sm:$0xf]
      %v1843 = vld [vmem:[%s12 + $0x34] sm:$0xf]
      %v1844 = vld [vmem:[%s12 + $0x38] sm:$0xf]
      %v1845 = vld [vmem:[%s12 + $0x3c] sm:$0xf]
      %v1846 = vld [vmem:[%s13] sm:$0x1]
      %v1848 = vlaneseq
      %v1849 = vshrl.u32 %v1848, 7
      %v1850 = vsub.s32 0, %v1849
      %v1851 = vrot.slane %v1846, %v1850
      %v1869 = vunpack.c.l.b16 %v1830
      %v1870 = vunpack.c.l.b16 %v1831
      %v1871 = vunpack.c.l.b16 %v1832
      %v1872 = vunpack.c.l.b16 %v1833
      %v1873 = vunpack.c.l.b16 %v1834
      %v1874 = vunpack.c.l.b16 %v1835
      %v1875 = vunpack.c.l.b16 %v1836
      %v1876 = vunpack.c.l.b16 %v1837
      %v1877 = vunpack.c.l.b16 %v1838
      %v1878 = vunpack.c.l.b16 %v1839
      %v1879 = vunpack.c.l.b16 %v1840
      %v1880 = vunpack.c.l.b16 %v1841
      %v1881 = vunpack.c.l.b16 %v1842
      %v1882 = vunpack.c.l.b16 %v1843
      %v1883 = vunpack.c.l.b16 %v1844
      %v1884 = vunpack.c.l.b16 %v1845
      %v1885 = vpack.c.b16 %v1870, %v1869
      %v1886 = vpack.c.b16 %v1872, %v1871
      %v1887 = vpack.c.b16 %v1874, %v1873
      %v1888 = vpack.c.b16 %v1876, %v1875
      %v1889 = vpack.c.b16 %v1878, %v1877
      %v1890 = vpack.c.b16 %v1880, %v1879
      %v1891 = vpack.c.b16 %v1882, %v1881
      %v1892 = vpack.c.b16 %v1884, %v1883
      %1901 = vmatprep.subr.bf16.mxu0 0
      %1902 = vmatpush1.bf16.msra.mxu0 %v1885
      %1903 = vmatprep.subr.bf16.mxu0 0
      %1904 = vmatpush1.bf16.msra.mxu0 %v1886
      %1905 = vmatprep.subr.bf16.mxu0 0
      %1906 = vmatpush1.bf16.msra.mxu0 %v1887
      %1907 = vmatprep.subr.bf16.mxu0 0
      %1908 = vmatpush1.bf16.msra.mxu0 %v1888
      %1909 = vmatprep.subr.bf16.mxu0 0
      %1910 = vmatpush1.bf16.msra.mxu0 %v1889
      %1911 = vmatprep.subr.bf16.mxu0 0
      %1912 = vmatpush1.bf16.msra.mxu0 %v1890
      %1913 = vmatprep.subr.bf16.mxu0 0
      %1914 = vmatpush1.bf16.msra.mxu0 %v1891
      %1915 = vmatprep.subr.bf16.mxu0 0
      %1916 = vmatpush1.bf16.msra.mxu0 %v1892
      %1917 = vmatprep.subr.bf16.mxu0 0
      %1918 = vmatpush1.bf16.msra.mxu0 0
      %1919 = vmatprep.subr.bf16.mxu0 0
      %1920 = vmatpush1.bf16.msra.mxu0 0
      %1921 = vmatprep.subr.bf16.mxu0 0
      %1922 = vmatpush1.bf16.msra.mxu0 0
      %1923 = vmatprep.subr.bf16.mxu0 0
      %1924 = vmatpush1.bf16.msra.mxu0 0
      %1925 = vmatprep.subr.bf16.mxu0 0
      %1926 = vmatpush1.bf16.msra.mxu0 0
      %1927 = vmatprep.subr.bf16.mxu0 0
      %1928 = vmatpush1.bf16.msra.mxu0 0
      %1929 = vmatprep.subr.bf16.mxu0 0
      %1930 = vmatpush1.bf16.msra.mxu0 0
      %1931 = vmatprep.subr.bf16.mxu0 0
      %1932 = vmatpush1.bf16.msra.mxu0 0
      %1933 = vmatprep.mubr.bf16.mxu0 0
      %1934 = vmatmul.mubr.bf16.gmra.mrb[0].mxu0 %v1829
      %v1935 = vpop.f32.mrb[0].mxu0
      %v1936 = vadd.f32 %v1851, %v1935
      %v1937 = vpop.f32.mrb[0].mxu0
      %v1938 = vpop.f32.mrb[0].mxu0
      %v1939 = vpop.f32.mrb[0].mxu0
      %1940 = vdwg.mxu0
      %v1941 = vadd.f32 %v1706, %v1936
      %v1942 = vpack.c.bf16 %v1941, %v1941
      %vm1943 = vcmask 257024
      %1944 = vst.msk [vmem:[%s533] sm:$0xf] %vm1943, %v1942
      %p1945 = scmp.lt.s32.totalorder %s29, 1
      %s1946 = scalar_select %p1945, %s29, 1
      %p1947 = scmp.lt.s32.totalorder %s30, 0
      %s1948 = scalar_select %p1947, %s30, 0
      %s1949 = sadd.s32 %s1948, %s1946
      %s1950 = smul.addr %s1949, 4
      %s1951 = scalar_lea.vmem %s14, %s1950
      // Predicated region
      $region77: #{linformer_forward.6} parent=75 // pred_check
        %p1952 = pneg %p368
      $region78: #{linformer_forward.6} parent=75 // pred_check_branch
        %1954 = sbr.rel (%p1952) target = $region80
      $region79: #{linformer_forward.6} parent=75 // pred_region
        _
      $region80: #{linformer_forward.6} parent=75 // pred_fallthru
        _
    $region76: #{linformer_forward.6} parent=5 // pred_fallthru
      _
    %p1955 = scmp.le.s32.totalorder 2, %s20
    // Predicated region
    $region81: #{linformer_forward.6} parent=5 // pred_check
      %p1956 = pneg %p1955
    $region82: #{linformer_forward.6} parent=5 // pred_check_branch
      %1958 = sbr.rel (%p1956) target = $region84
    $region83: #{linformer_forward.6} parent=5 // pred_region
      %s1959 = ssub.s32 %s20, 2
      // Predicated region
      $region85: #{linformer_forward.6} parent=83 // pred_check
        %p1960 = pneg %p374
      $region86: #{linformer_forward.6} parent=83 // pred_check_branch
        %1962 = sbr.rel (%p1960) target = $region88
      $region87: #{linformer_forward.6} parent=83 // pred_region
        %p1963 = scmp.lt.s32.totalorder %s31, 1
        %s1964 = scalar_select %p1963, %s31, 1
        %p1965 = scmp.lt.s32.totalorder %s32, 0
        %s1966 = scalar_select %p1965, %s32, 0
        %s1967 = sadd.s32 %s1966, %s1964
        %s1968 = smul.addr %s1967, 4
        %s1969 = scalar_lea.vmem %s14, %s1968
      $region88: #{linformer_forward.6} parent=83 // pred_fallthru
        _
    $region84: #{linformer_forward.6} parent=5 // pred_fallthru
      _
  $region6: #{linformer_forward.6} parent=0 // loop_footer
    %s24 = sadd.s32 1, %s20
  $region7: #{linformer_forward.6} parent=0 // loop_footer_branch
    %19 = sbr.rel target = $region3
  $region8: #{linformer_forward.6} parent=0 // loop_exit
    _

</llo_original>
